<compile_context>
chip_gen: v5e
topology: v5e:2x2
jax: 0.10.0
libtpu: 0.0.40
codegen_flags: <defaults>
</compile_context>

<pallas_src>
import functools

import jax
import jax.numpy as jnp
from jax.experimental import pallas as pl
from jax.experimental.pallas import tpu as pltpu
from jax.scipy.stats import norm as jnorm


def strict_standard_normal(d, key):
    """Deterministic replica of the torch helper: inverse-CDF grid, shuffled."""
    y = jnp.linspace(0.0, 1.0, d + 2)
    x = jnorm.ppf(y)[1:-1]
    x = jax.random.permutation(key, x)
    return x.astype(jnp.float32)


def _phase_kernel(pts_ref, A_ref, P_ref, eA32_ref, eA16_ref, eP_ref):
    """Per-point phases: eA = [cos(p@A) | sin(p@A)] (f32 + bf16), eP likewise (f32)."""
    p = pts_ref[0]                                                    # (t, 8)
    thA = jnp.dot(p, A_ref[...], preferred_element_type=jnp.float32)  # (t, d)
    thP = jnp.dot(p, P_ref[...], preferred_element_type=jnp.float32)  # (t, d)
    eA = jnp.concatenate([jnp.cos(thA), jnp.sin(thA)], axis=-1)       # (t, 2d)
    eA32_ref[0] = eA
    eA16_ref[0] = eA.astype(jnp.bfloat16)
    eP_ref[0] = jnp.concatenate([jnp.cos(thP), jnp.sin(thP)], axis=-1)


def _veckm_main_kernel(pts_q_ref, ptsT_k_ref, eAk_ref, eAq_ref, ePq_ref,
                       out_ref, acc_ref, *, beta2, sqrt_d, d,
                       positional_encoding):
    k = pl.program_id(2)

    @pl.when(k == 0)
    def _init():
        acc_ref[...] = jnp.zeros_like(acc_ref)

    # J tile via the squared-distance identity; beta2 folded into the q-side
    # points so the cross term runs on the MXU and the VALU slot stays light.
    p_q = pts_q_ref[0]                                                # (bq, 8)
    p_kT = ptsT_k_ref[0]                                              # (8, bk)
    sq_q = beta2 * jnp.sum(p_q * p_q, axis=1, keepdims=True)          # (bq, 1)  beta2*|pi|^2
    sq_k = beta2 * jnp.sum(p_kT * p_kT, axis=0, keepdims=True)        # (1, bk)  beta2*|pj|^2
    cross = jnp.dot(p_q * (2.0 * beta2), p_kT,
                    preferred_element_type=jnp.float32)               # 2*beta2*pi.pj
    J = jnp.exp(cross - sq_q - sq_k)                                  # (bq, bk) = exp(-beta2*D2)

    # Single fused bf16 matmul against the pre-cast concatenated [cos|sin] RHS,
    # f32 accumulation in the VMEM scratch.
    acc_ref[...] += jnp.dot(J.astype(jnp.bfloat16), eAk_ref[0],
                            preferred_element_type=jnp.float32)

    @pl.when(k == pl.num_programs(2) - 1)
    def _finalize():
        acc = acc_ref[...]                                            # (bq, 2d)
        M_r, M_i = acc[:, :d], acc[:, d:]
        eAq = eAq_ref[0]                                              # (bq, 2d), f32
        c, s = eAq[:, :d], eAq[:, d:]
        # (J @ eA) / eA == (J @ eA) * conj(eA)  since |eA| == 1 (no division).
        G_r = M_r * c + M_i * s
        G_i = M_i * c - M_r * s
        nrm2 = jnp.sum(G_r * G_r + G_i * G_i, axis=-1, keepdims=True)
        scale = sqrt_d * jax.lax.rsqrt(nrm2)
        G_r = G_r * scale
        G_i = G_i * scale
        if positional_encoding:
            eP = ePq_ref[0]
            G_r = G_r + eP[:, :d]
            G_i = G_i + eP[:, d:]
        out_ref[0] = jnp.concatenate([G_r, G_i], axis=-1)             # lane-dense (bq, 2d)


def _pick_tile(n):
    for t in (512, 256, 128):
        if n % t == 0:
            return t
    return n  # fall back to a full-extent block (always legal)


def veckm_forward(pts, A, P, *, beta, positional_encoding=True,
                  block_q=None, block_k=None):
    B, N, _ = pts.shape
    d = A.shape[-1]
    beta2 = float(beta) ** 2 / 2.0
    sqrt_d = float(d) ** 0.5

    bq = block_q if block_q is not None else _pick_tile(N)
    bk = block_k if block_k is not None else _pick_tile(N)
    assert N % bq == 0 and N % bk == 0, "tile sizes must divide N"

    # Glue: pad coord dim 3 -> 8 (sublane-aligned contraction), make transposed copy.
    pts_pad = jnp.pad(pts.astype(jnp.float32), ((0, 0), (0, 0), (0, 5)))  # (B, N, 8)
    ptsT_pad = jnp.transpose(pts_pad, (0, 2, 1))                          # (B, 8, N)
    A_pad = jnp.pad(A.astype(jnp.float32), ((0, 5), (0, 0)))              # (8, d)
    P_pad = jnp.pad(P.astype(jnp.float32), ((0, 5), (0, 0)))              # (8, d)

    vmem_limit = 64 * 1024 * 1024  # <= physical VMEM on v5e/v6e/v7x

    # ---- Kernel 1: per-point phases (sin/cos computed once per point). ----
    eA32, eA16, eP = pl.pallas_call(
        _phase_kernel,
        out_shape=(jax.ShapeDtypeStruct((B, N, 2 * d), jnp.float32),
                   jax.ShapeDtypeStruct((B, N, 2 * d), jnp.bfloat16),
                   jax.ShapeDtypeStruct((B, N, 2 * d), jnp.float32)),
        grid_spec=pltpu.PrefetchScalarGridSpec(
            num_scalar_prefetch=0,
            grid=(B, N // bq),
            in_specs=[
                pl.BlockSpec((1, bq, 8), lambda b, i: (b, i, 0)),
                pl.BlockSpec((8, d), lambda b, i: (0, 0)),
                pl.BlockSpec((8, d), lambda b, i: (0, 0)),
            ],
            out_specs=[
                pl.BlockSpec((1, bq, 2 * d), lambda b, i: (b, i, 0)),
                pl.BlockSpec((1, bq, 2 * d), lambda b, i: (b, i, 0)),
                pl.BlockSpec((1, bq, 2 * d), lambda b, i: (b, i, 0)),
            ]),
        compiler_params=pltpu.CompilerParams(
            dimension_semantics=("parallel", "parallel"),
            vmem_limit_bytes=vmem_limit),
    )(pts_pad, A_pad, P_pad)

    # ---- Kernel 2: tiled J @ eA with VMEM accumulator + finalization. ----
    kernel = functools.partial(_veckm_main_kernel, beta2=beta2, sqrt_d=sqrt_d,
                               d=d, positional_encoding=positional_encoding)

    g_cat = pl.pallas_call(
        kernel,
        out_shape=jax.ShapeDtypeStruct((B, N, 2 * d), jnp.float32),
        grid_spec=pltpu.PrefetchScalarGridSpec(
            num_scalar_prefetch=0,
            grid=(B, N // bq, N // bk),
            in_specs=[
                pl.BlockSpec((1, bq, 8), lambda b, q, k: (b, q, 0)),       # pts   (q rows)
                pl.BlockSpec((1, 8, bk), lambda b, q, k: (b, 0, k)),       # ptsT  (k cols)
                pl.BlockSpec((1, bk, 2 * d), lambda b, q, k: (b, k, 0)),   # eA bf16 (k rows, RHS)
                pl.BlockSpec((1, bq, 2 * d), lambda b, q, k: (b, q, 0)),   # eA f32  (q rows, conj)
                pl.BlockSpec((1, bq, 2 * d), lambda b, q, k: (b, q, 0)),   # eP f32  (q rows)
            ],
            out_specs=pl.BlockSpec((1, bq, 2 * d), lambda b, q, k: (b, q, 0)),
            scratch_shapes=[pltpu.VMEM((bq, 2 * d), jnp.float32)]),
        compiler_params=pltpu.CompilerParams(
            dimension_semantics=("parallel", "parallel", "arbitrary"),
            vmem_limit_bytes=vmem_limit),
    )(pts_pad, ptsT_pad, eA16, eA32, eP)

    return jax.lax.complex(g_cat[..., :d], g_cat[..., d:])   # (B, N, d) complex64


if __name__ == "__main__":
    d, alpha, beta = 128, 6.0, 1.8
    B, N = 2, 256

    key = jax.random.PRNGKey(0)
    k_pts, kA0, kA1, kA2, kP0, kP1, kP2 = jax.random.split(key, 7)

    # Parameters as in VecKM.__init__ (deterministic, no checkpoint).
    A = jnp.stack([strict_standard_normal(d, k) for k in (kA0, kA1, kA2)], 0) * alpha
    P = jnp.stack([strict_standard_normal(d, k) for k in (kP0, kP1, kP2)], 0)
    pts = jax.random.normal(k_pts, (B, N, 3), jnp.float32) * 0.5

    # Force 128-sized tiles so the demo exercises the k-accumulation loop (grid 2x2x2).
    out = veckm_forward(pts, A, P, beta=beta, positional_encoding=True,
                        block_q=128, block_k=128)
    out = jax.block_until_ready(out)

    # Pure-JAX complex reference of the torch forward.
    beta2 = beta ** 2 / 2.0
    sqrt_d = d ** 0.5
    D2 = jnp.sum((pts[:, :, None, :] - pts[:, None, :, :]) ** 2, -1)
    J = jnp.exp(-beta2 * D2).astype(jnp.complex64)
    eA = jnp.exp(1j * (pts @ A))
    G = (J @ eA) / eA
    G = G / jnp.linalg.norm(G, axis=-1, keepdims=True) * sqrt_d
    ref = G + jnp.exp(1j * (pts @ P))

    assert out.shape == (B, N, d) and out.dtype == jnp.complex64
    err = float(jnp.max(jnp.abs(out - ref)))
    assert err < 5e-2, f"max |err| = {err}"
    print("KERNEL_OK")
</pallas_src>

<mosaic_0001>
module attributes {stable_mosaic.version = 11 : i64} {
  func.func @_phase_kernel(%arg0: i32, %arg1: i32, %arg2: memref<1x128x8xf32, #tpu.memory_space<vmem>>, %arg3: memref<8x128xf32, #tpu.memory_space<vmem>>, %arg4: memref<8x128xf32, #tpu.memory_space<vmem>>, %arg5: memref<1x128x256xf32, #tpu.memory_space<vmem>>, %arg6: memref<1x128x256xbf16, #tpu.memory_space<vmem>>, %arg7: memref<1x128x256xf32, #tpu.memory_space<vmem>>) attributes {dimension_semantics = [#tpu.dimension_semantics<parallel>, #tpu.dimension_semantics<parallel>], iteration_bounds = array<i64: 2, 2>, scalar_prefetch = 0 : i64, scratch_operands = 0 : i64, tpu.core_type = #tpu.core_type<tc>, window_params = [{transform_indices = @transform_0, window_bounds = array<i64: 1, 128, 8>}, {pipeline_mode = #tpu.pipeline_mode<synchronous>, transform_indices = @transform_1, window_bounds = array<i64: 8, 128>}, {pipeline_mode = #tpu.pipeline_mode<synchronous>, transform_indices = @transform_2, window_bounds = array<i64: 8, 128>}, {transform_indices = @transform_3, window_bounds = array<i64: 1, 128, 256>}, {transform_indices = @transform_4, window_bounds = array<i64: 1, 128, 256>}, {transform_indices = @transform_5, window_bounds = array<i64: 1, 128, 256>}]} {
    %c0 = arith.constant 0 : index
    %c0_0 = arith.constant 0 : index
    %c0_1 = arith.constant 0 : index
    %0 = vector.load %arg2[%c0, %c0_0, %c0_1] : memref<1x128x8xf32, #tpu.memory_space<vmem>>, vector<1x128x8xf32>
    %1 = vector.shape_cast %0 : vector<1x128x8xf32> to vector<128x8xf32>
    %c0_2 = arith.constant 0 : index
    %c0_3 = arith.constant 0 : index
    %2 = vector.load %arg3[%c0_2, %c0_3] : memref<8x128xf32, #tpu.memory_space<vmem>>, vector<8x128xf32>
    %cst = arith.constant dense<0.000000e+00> : vector<128x128xf32>
    %3 = tpu.matmul %1, %2, %cst {dimension_numbers = #tpu.dot_dimension_numbers<[1], [0], [0], [1], [0, 0, 1, 1], [], []>} : vector<128x8xf32>, vector<8x128xf32>, vector<128x128xf32> -> vector<128x128xf32>
    %c0_4 = arith.constant 0 : index
    %c0_5 = arith.constant 0 : index
    %4 = vector.load %arg4[%c0_4, %c0_5] : memref<8x128xf32, #tpu.memory_space<vmem>>, vector<8x128xf32>
    %cst_6 = arith.constant dense<0.000000e+00> : vector<128x128xf32>
    %5 = tpu.matmul %1, %4, %cst_6 {dimension_numbers = #tpu.dot_dimension_numbers<[1], [0], [0], [1], [0, 0, 1, 1], [], []>} : vector<128x8xf32>, vector<8x128xf32>, vector<128x128xf32> -> vector<128x128xf32>
    %6 = math.cos %3 : vector<128x128xf32>
    %7 = math.sin %3 : vector<128x128xf32>
    %8 = tpu.concatenate %6, %7 in 1 : vector<128x128xf32>, vector<128x128xf32> -> vector<128x256xf32>
    %c0_7 = arith.constant 0 : index
    %c0_8 = arith.constant 0 : index
    %c0_9 = arith.constant 0 : index
    %9 = vector.load %arg5[%c0_7, %c0_8, %c0_9] : memref<1x128x256xf32, #tpu.memory_space<vmem>>, vector<1x128x256xf32>
    %10 = vector.shape_cast %9 : vector<1x128x256xf32> to vector<128x256xf32>
    %11 = vector.shape_cast %8 : vector<128x256xf32> to vector<1x128x256xf32>
    tpu.vector_store %arg5[%c0_7, %c0_8, %c0_9], %11 {strides = array<i32>} : memref<1x128x256xf32, #tpu.memory_space<vmem>>, vector<1x128x256xf32>,
    %12 = arith.truncf %8 : vector<128x256xf32> to vector<128x256xbf16>
    %c0_10 = arith.constant 0 : index
    %c0_11 = arith.constant 0 : index
    %c0_12 = arith.constant 0 : index
    %13 = vector.load %arg6[%c0_10, %c0_11, %c0_12] : memref<1x128x256xbf16, #tpu.memory_space<vmem>>, vector<1x128x256xbf16>
    %14 = vector.shape_cast %13 : vector<1x128x256xbf16> to vector<128x256xbf16>
    %15 = vector.shape_cast %12 : vector<128x256xbf16> to vector<1x128x256xbf16>
    tpu.vector_store %arg6[%c0_10, %c0_11, %c0_12], %15 {strides = array<i32>} : memref<1x128x256xbf16, #tpu.memory_space<vmem>>, vector<1x128x256xbf16>,
    %16 = math.cos %5 : vector<128x128xf32>
    %17 = math.sin %5 : vector<128x128xf32>
    %18 = tpu.concatenate %16, %17 in 1 : vector<128x128xf32>, vector<128x128xf32> -> vector<128x256xf32>
    %c0_13 = arith.constant 0 : index
    %c0_14 = arith.constant 0 : index
    %c0_15 = arith.constant 0 : index
    %19 = vector.load %arg7[%c0_13, %c0_14, %c0_15] : memref<1x128x256xf32, #tpu.memory_space<vmem>>, vector<1x128x256xf32>
    %20 = vector.shape_cast %19 : vector<1x128x256xf32> to vector<128x256xf32>
    %21 = vector.shape_cast %18 : vector<128x256xf32> to vector<1x128x256xf32>
    tpu.vector_store %arg7[%c0_13, %c0_14, %c0_15], %21 {strides = array<i32>} : memref<1x128x256xf32, #tpu.memory_space<vmem>>, vector<1x128x256xf32>,
    return
  }
  func.func @transform_0(%arg0: i32, %arg1: i32) -> (i32, i32, i32) {
    %c0_i32 = arith.constant 0 : i32
    %c0_i32_0 = arith.constant 0 : i32
    return %arg0, %arg1, %c0_i32 : i32, i32, i32
  }
  func.func @transform_1(%arg0: i32, %arg1: i32) -> (i32, i32) {
    %c0_i32 = arith.constant 0 : i32
    %c0_i32_0 = arith.constant 0 : i32
    %c0_i32_1 = arith.constant 0 : i32
    return %c0_i32, %c0_i32_0 : i32, i32
  }
  func.func @transform_2(%arg0: i32, %arg1: i32) -> (i32, i32) {
    %c0_i32 = arith.constant 0 : i32
    %c0_i32_0 = arith.constant 0 : i32
    %c0_i32_1 = arith.constant 0 : i32
    return %c0_i32, %c0_i32_0 : i32, i32
  }
  func.func @transform_3(%arg0: i32, %arg1: i32) -> (i32, i32, i32) {
    %c0_i32 = arith.constant 0 : i32
    %c0_i32_0 = arith.constant 0 : i32
    return %arg0, %arg1, %c0_i32 : i32, i32, i32
  }
  func.func @transform_4(%arg0: i32, %arg1: i32) -> (i32, i32, i32) {
    %c0_i32 = arith.constant 0 : i32
    %c0_i32_0 = arith.constant 0 : i32
    return %arg0, %arg1, %c0_i32 : i32, i32, i32
  }
  func.func @transform_5(%arg0: i32, %arg1: i32) -> (i32, i32, i32) {
    %c0_i32 = arith.constant 0 : i32
    %c0_i32_0 = arith.constant 0 : i32
    return %arg0, %arg1, %c0_i32 : i32, i32, i32
  }
}

</mosaic_0001>

<llo_original>
// kernel: tpu_custom_call.1
$region0: #{tpu_custom_call.1}
  #allocation0 [shape = 'u32[]', space=smem, size = 0x4, offset = 0x4, fixed_abs, tag = 'smem constant byte address 0x4 - core index']
  #allocation1 [shape = 'u32[72,128]{1,0:T(1,128)}', space=vmem, size = 0x9000, scoped, tag = 'internal scratch']
  %s0 = inlined_call_operand.vmem [shape: f32[2,256,8], index: 0, kind: input, shape index: {}]
  %s1 = inlined_call_operand.vmem [shape: f32[8,128], index: 1, kind: input, shape index: {}]
  %s2 = inlined_call_operand.vmem [shape: f32[8,128], index: 2, kind: input, shape index: {}]
  %s3 = inlined_call_operand.hbm [shape: f32[2,256,256], index: 3, kind: output, shape index: {0}]
  %s4 = inlined_call_operand.hbm [shape: bf16[2,256,256], index: 4, kind: output, shape index: {1}]
  %s5 = inlined_call_operand.hbm [shape: f32[2,256,256], index: 5, kind: output, shape index: {2}]
  %6 = xla_tuple %s3, %s4, %s5
  %s7 = sld [smem:[#allocation0]]
  $region61: #{tpu_custom_call.1} parent=0
    _
  %s9 = ssub.s32 1, %s7
  %s10 = scalar_select 0, %s9, %s7
  $region1: #{tpu_custom_call.1} parent=0
    #allocation2 [shape = 'u8[262144]{0}', space=vmem, size = 0x40000, scoped, tag = 'output window, operand 0']
    #allocation3 [shape = 's32[2]{0}', space=sflag, size = 0x8, scoped, tag = 'scoped memory for tpu_custom_call.1']
    #allocation4 [shape = 'u8[131072]{0}', space=vmem, size = 0x20000, scoped, tag = 'output window, operand 1']
    #allocation5 [shape = 's32[2]{0}', space=sflag, size = 0x8, scoped, tag = 'scoped memory for tpu_custom_call.1']
    #allocation6 [shape = 'u8[262144]{0}', space=vmem, size = 0x40000, scoped, tag = 'output window, operand 2']
    %11 = vsyncpa [#allocation3], 0
    %s12 = scalar_lea.sflag [#allocation3], 1
    %13 = vsyncpa %s12, 0
    %14 = vsyncpa [#allocation5], 0
    %s15 = scalar_lea.sflag [#allocation5], 1
    %16 = vsyncpa %s15, 0
    loop: start=0, step=1, limit=6
    $region2: #{tpu_custom_call.1} parent=1 // loop_pre_header
      _
    $region3: #{tpu_custom_call.1} parent=1 // loop_header
      %s18 = sphi 0, %s22
      %p19 = scmp.ge.s32.totalorder %s18, 6
      %s25 = sphi 0, %s37
      %s26 = sphi 0, %s33
      %s27 = sphi 0, %s25
      %s28 = sphi 0, %s26
      %s29 = sphi 0, %s27
      %s30 = sphi 0, %s28
      %s42 = sphi 0, %s44
      %s45 = sphi 0, %s42
      %s46 = sphi 0, %s45
      %s62 = sphi 0, %s46
      %s66 = sphi 0, %s66
      %s68 = sphi 0, %s66
      %s69 = sphi 0, %s68
      %s83 = sphi 0, %s69
      %s87 = sphi 0, %s87
      %s89 = sphi 0, %s87
      %s90 = sphi 0, %s89
      %s104 = sphi 0, %s90
      %s112 = sphi 0, %s114
      %s115 = sphi 0, %s112
      %s116 = sphi 0, %s115
      %s132 = sphi 0, %s116
      %s140 = sphi 0, %s142
      %s143 = sphi 0, %s140
      %s144 = sphi 0, %s143
      %s160 = sphi 0, %s144
      %s168 = sphi 0, %s170
      %s171 = sphi 0, %s168
      %s172 = sphi 0, %s171
      %s188 = sphi 0, %s172
    $region4: #{tpu_custom_call.1} parent=1 // loop_header_branch
      %21 = sbr.rel (%p19) target = $region8
    $region5: #{tpu_custom_call.1} parent=1 // loop_body
      %s23 = ssub.s32 %s18, 1
      %s24 = ssub.s32 %s18, 2
      %s31 = sadd.s32 1, %s26
      %p32 = scmp.ge.s32.totalorder %s31, 2
      %s33 = scalar_select %p32, 0, %s31
      %s34 = sadd.s32 1, %s25
      %s35 = scalar_select %p32, %s34, %s25
      %p36 = scmp.ge.s32.totalorder %s35, 2
      %s37 = scalar_select %p36, 0, %s35
      %s38 = ssub.s32 %s25, %s37
      %s39 = ssub.s32 %s26, %s33
      %s40 = sor.u32 %s38, %s39
      %p41 = scmp.eq.s32.totalorder %s40, 0
      %s43 = sadd.s32 %s42, 1
      %s44 = scalar_select %p41, %s42, %s43
      %p47 = pneg %p41
      %p48 = scmp.eq.s32.totalorder %s18, 3
      %p49 = por %p47, %p48
      %p50 = scmp.ne.s32.totalorder %s42, %s45
      %p51 = scmp.eq.s32.totalorder %s18, 0
      %p52 = por %p50, %p51
      %p53 = scmp.ne.s32.totalorder %s42, %s45
      %p54 = scmp.eq.s32.totalorder %s23, 3
      %p55 = por %p53, %p54
      %p56 = scmp.ne.s32.totalorder %s45, %s46
      %p57 = scmp.eq.s32.totalorder %s23, 0
      %p58 = por %p56, %p57
      %p59 = scmp.ne.s32.totalorder %s45, %s46
      %p60 = scmp.eq.s32.totalorder %s24, 3
      %p61 = por %p59, %p60
      %p63 = scmp.ne.s32.totalorder %s46, %s62
      %p64 = scmp.eq.s32.totalorder %s24, 0
      %p65 = por %p63, %p64
      %s67 = sadd.s32 %s66, 1
      %p70 = scmp.eq.s32.totalorder %s18, 3
      %p71 = scmp.ne.s32.totalorder %s66, %s68
      %p72 = scmp.eq.s32.totalorder %s18, 0
      %p73 = por %p71, %p72
      %p74 = scmp.ne.s32.totalorder %s66, %s68
      %p75 = scmp.eq.s32.totalorder %s23, 3
      %p76 = por %p74, %p75
      %p77 = scmp.ne.s32.totalorder %s68, %s69
      %p78 = scmp.eq.s32.totalorder %s23, 0
      %p79 = por %p77, %p78
      %p80 = scmp.ne.s32.totalorder %s68, %s69
      %p81 = scmp.eq.s32.totalorder %s24, 3
      %p82 = por %p80, %p81
      %p84 = scmp.ne.s32.totalorder %s69, %s83
      %p85 = scmp.eq.s32.totalorder %s24, 0
      %p86 = por %p84, %p85
      %s88 = sadd.s32 %s87, 1
      %p91 = scmp.eq.s32.totalorder %s18, 3
      %p92 = scmp.ne.s32.totalorder %s87, %s89
      %p93 = scmp.eq.s32.totalorder %s18, 0
      %p94 = por %p92, %p93
      %p95 = scmp.ne.s32.totalorder %s87, %s89
      %p96 = scmp.eq.s32.totalorder %s23, 3
      %p97 = por %p95, %p96
      %p98 = scmp.ne.s32.totalorder %s89, %s90
      %p99 = scmp.eq.s32.totalorder %s23, 0
      %p100 = por %p98, %p99
      %p101 = scmp.ne.s32.totalorder %s89, %s90
      %p102 = scmp.eq.s32.totalorder %s24, 3
      %p103 = por %p101, %p102
      %p105 = scmp.ne.s32.totalorder %s90, %s104
      %p106 = scmp.eq.s32.totalorder %s24, 0
      %p107 = por %p105, %p106
      %s108 = ssub.s32 %s25, %s37
      %s109 = ssub.s32 %s26, %s33
      %s110 = sor.u32 %s108, %s109
      %p111 = scmp.eq.s32.totalorder %s110, 0
      %s113 = sadd.s32 %s112, 1
      %s114 = scalar_select %p111, %s112, %s113
      %p117 = pneg %p111
      %p118 = scmp.eq.s32.totalorder %s18, 3
      %p119 = por %p117, %p118
      %p120 = scmp.ne.s32.totalorder %s112, %s115
      %p121 = scmp.eq.s32.totalorder %s18, 0
      %p122 = por %p120, %p121
      %p123 = scmp.ne.s32.totalorder %s112, %s115
      %p124 = scmp.eq.s32.totalorder %s23, 3
      %p125 = por %p123, %p124
      %p126 = scmp.ne.s32.totalorder %s115, %s116
      %p127 = scmp.eq.s32.totalorder %s23, 0
      %p128 = por %p126, %p127
      %p129 = scmp.ne.s32.totalorder %s115, %s116
      %p130 = scmp.eq.s32.totalorder %s24, 3
      %p131 = por %p129, %p130
      %p133 = scmp.ne.s32.totalorder %s116, %s132
      %p134 = scmp.eq.s32.totalorder %s24, 0
      %p135 = por %p133, %p134
      %s136 = ssub.s32 %s25, %s37
      %s137 = ssub.s32 %s26, %s33
      %s138 = sor.u32 %s136, %s137
      %p139 = scmp.eq.s32.totalorder %s138, 0
      %s141 = sadd.s32 %s140, 1
      %s142 = scalar_select %p139, %s140, %s141
      %p145 = pneg %p139
      %p146 = scmp.eq.s32.totalorder %s18, 3
      %p147 = por %p145, %p146
      %p148 = scmp.ne.s32.totalorder %s140, %s143
      %p149 = scmp.eq.s32.totalorder %s18, 0
      %p150 = por %p148, %p149
      %p151 = scmp.ne.s32.totalorder %s140, %s143
      %p152 = scmp.eq.s32.totalorder %s23, 3
      %p153 = por %p151, %p152
      %p154 = scmp.ne.s32.totalorder %s143, %s144
      %p155 = scmp.eq.s32.totalorder %s23, 0
      %p156 = por %p154, %p155
      %p157 = scmp.ne.s32.totalorder %s143, %s144
      %p158 = scmp.eq.s32.totalorder %s24, 3
      %p159 = por %p157, %p158
      %p161 = scmp.ne.s32.totalorder %s144, %s160
      %p162 = scmp.eq.s32.totalorder %s24, 0
      %p163 = por %p161, %p162
      %s164 = ssub.s32 %s25, %s37
      %s165 = ssub.s32 %s26, %s33
      %s166 = sor.u32 %s164, %s165
      %p167 = scmp.eq.s32.totalorder %s166, 0
      %s169 = sadd.s32 %s168, 1
      %s170 = scalar_select %p167, %s168, %s169
      %p173 = pneg %p167
      %p174 = scmp.eq.s32.totalorder %s18, 3
      %p175 = por %p173, %p174
      %p176 = scmp.ne.s32.totalorder %s168, %s171
      %p177 = scmp.eq.s32.totalorder %s18, 0
      %p178 = por %p176, %p177
      %p179 = scmp.ne.s32.totalorder %s168, %s171
      %p180 = scmp.eq.s32.totalorder %s23, 3
      %p181 = por %p179, %p180
      %p182 = scmp.ne.s32.totalorder %s171, %s172
      %p183 = scmp.eq.s32.totalorder %s23, 0
      %p184 = por %p182, %p183
      %p185 = scmp.ne.s32.totalorder %s171, %s172
      %p186 = scmp.eq.s32.totalorder %s24, 3
      %p187 = por %p185, %p186
      %p189 = scmp.ne.s32.totalorder %s172, %s188
      %p190 = scmp.eq.s32.totalorder %s24, 0
      %p191 = por %p189, %p190
      %p192 = scmp.le.s32.totalorder 1, %s18
      %p193 = scmp.lt.s32.totalorder %s18, 5
      %p194 = pnand %p192, %p193
      %p195 = pneg %p194
      // Predicated region
      $region9: #{tpu_custom_call.1} parent=5 // pred_check
        _
      $region10: #{tpu_custom_call.1} parent=5 // pred_check_branch
        %197 = sbr.rel (%p194) target = $region12
      $region11: #{tpu_custom_call.1} parent=5 // pred_region
        %s198 = ssub.s32 %s18, 1
        // Predicated region
        $region13: #{tpu_custom_call.1} parent=11 // pred_check
          %p199 = pneg %p79
        $region14: #{tpu_custom_call.1} parent=11 // pred_check_branch
          %201 = sbr.rel (%p199) target = $region16
        $region15: #{tpu_custom_call.1} parent=11 // pred_region
          _
        $region16: #{tpu_custom_call.1} parent=11 // pred_fallthru
          _
        // Predicated region
        $region17: #{tpu_custom_call.1} parent=11 // pred_check
          %p202 = pneg %p100
        $region18: #{tpu_custom_call.1} parent=11 // pred_check_branch
          %204 = sbr.rel (%p202) target = $region20
        $region19: #{tpu_custom_call.1} parent=11 // pred_region
          _
        $region20: #{tpu_custom_call.1} parent=11 // pred_fallthru
          _
      $region12: #{tpu_custom_call.1} parent=5 // pred_fallthru
        _
      %p205 = scmp.lt.s32.totalorder %s18, 4
      // Predicated region
      $region21: #{tpu_custom_call.1} parent=5 // pred_check
        %p206 = pneg %p205
      $region22: #{tpu_custom_call.1} parent=5 // pred_check_branch
        %208 = sbr.rel (%p206) target = $region24
      $region23: #{tpu_custom_call.1} parent=5 // pred_region
        // Predicated region
        $region25: #{tpu_custom_call.1} parent=23 // pred_check
          %p209 = pneg %p52
        $region26: #{tpu_custom_call.1} parent=23 // pred_check_branch
          %211 = sbr.rel (%p209) target = $region28
        $region27: #{tpu_custom_call.1} parent=23 // pred_region
          %s212 = smul.u32 16, %s26
          %p213 = scmp.lt.s32.totalorder %s25, 1
          %s214 = scalar_select %p213, %s25, 1
          %p215 = scmp.lt.s32.totalorder %s212, 31
          %s216 = scalar_select %p215, %s212, 31
          %s217 = smul.addr %s214, 32
          %s218 = sadd.s32 %s216, %s217
          %s219 = smul.addr %s218, 8
          %s220 = scalar_lea.vmem %s0, %s219
          %s221 = smul.u32 16, %s26
        $region28: #{tpu_custom_call.1} parent=23 // pred_fallthru
          _
      $region24: #{tpu_custom_call.1} parent=5 // pred_fallthru
        _
      %p222 = scmp.le.s32.totalorder 1, %s18
      %p223 = scmp.lt.s32.totalorder %s18, 5
      %p224 = pnand %p222, %p223
      %p225 = pneg %p224
      // Predicated region
      $region29: #{tpu_custom_call.1} parent=5 // pred_check
        _
      $region30: #{tpu_custom_call.1} parent=5 // pred_check_branch
        %227 = sbr.rel (%p224) target = $region32
      $region31: #{tpu_custom_call.1} parent=5 // pred_region
        %s228 = ssub.s32 %s18, 1
        %s229 = smul.u32 16, %s28
        %p230 = scmp.lt.s32.totalorder %s27, 1
        %s231 = scalar_select %p230, %s27, 1
        %p232 = scmp.lt.s32.totalorder %s229, 31
        %s233 = scalar_select %p232, %s229, 31
        %s234 = smul.addr %s231, 32
        %s235 = sadd.s32 %s233, %s234
        %s236 = smul.addr %s235, 8
        %s237 = scalar_lea.vmem %s0, %s236
        %p238 = pneg %p58
        %p239 = pneg %p55
        %p240 = pneg %p79
        %p241 = pneg %p76
        %p242 = pneg %p100
        %p243 = pneg %p97
        %p244 = pneg %p128
        %p245 = pneg %p125
        %s246 = sand.u32 %s115, 1
        %s247 = scalar_lea.sflag [#allocation3], %s246
        %s248 = sand.u32 %s115, 1
        %s249 = smul.addr %s248, 256
        %s250 = scalar_lea.vmem [#allocation2], %s249
        %p251 = pneg %p156
        %p252 = pneg %p153
        %s253 = sand.u32 %s23, 1
        %s254 = scalar_lea.sflag [#allocation5], %s253
        %s255 = sand.u32 %s143, 1
        %s256 = smul.addr %s255, 128
        %s257 = scalar_lea.vmem [#allocation4], %s256
        %p258 = pneg %p184
        %p259 = pneg %p181
        %s260 = sand.u32 %s23, 1
        %s261 = scalar_lea.sflag [#allocation5], %s260
        %s262 = sand.u32 %s171, 1
        %s263 = smul.addr %s262, 256
        %s264 = scalar_lea.vmem [#allocation6], %s263
        %s265 = smul.u32 16, %s28
        %p266 = scmp.lt.s32.totalorder %s27, 1
        %s267 = scalar_select %p266, %s27, 1
        %p268 = scmp.lt.s32.totalorder %s265, 31
        %s269 = scalar_select %p268, %s265, 31
        %s270 = smul.addr %s267, 32
        %s271 = sadd.s32 %s269, %s270
        %s272 = smul.addr %s271, 8
        %s273 = scalar_lea.vmem %s0, %s272
        %s274 = smul.u32 16, %s28
        %s275 = smul.u32 16, %s28
        %s276 = smul.u32 16, %s28
        %s277 = smul.u32 16, %s28
        %v278 = vld [vmem:[%s273] sm:$0xff]
        %v279 = vld [vmem:[%s273 + $0x8] sm:$0xff]
        %v280 = vld [vmem:[%s273 + $0x10] sm:$0xff]
        %v281 = vld [vmem:[%s273 + $0x18] sm:$0xff]
        %v282 = vld [vmem:[%s273 + $0x20] sm:$0xff]
        %v283 = vld [vmem:[%s273 + $0x28] sm:$0xff]
        %v284 = vld [vmem:[%s273 + $0x30] sm:$0xff]
        %v285 = vld [vmem:[%s273 + $0x38] sm:$0xff]
        %v286 = vld [vmem:[%s273 + $0x40] sm:$0xff]
        %v287 = vld [vmem:[%s273 + $0x48] sm:$0xff]
        %v288 = vld [vmem:[%s273 + $0x50] sm:$0xff]
        %v289 = vld [vmem:[%s273 + $0x58] sm:$0xff]
        %v290 = vld [vmem:[%s273 + $0x60] sm:$0xff]
        %v291 = vld [vmem:[%s273 + $0x68] sm:$0xff]
        %v292 = vld [vmem:[%s273 + $0x70] sm:$0xff]
        %v293 = vld [vmem:[%s273 + $0x78] sm:$0xff]
        %v294 = vld [vmem:[%s1] sm:$0xff]
        %vm295 = vcmask 64512
        %v297 = vsel %vm295, %v278, 0
        %v300 = vsel %vm295, %v279, 0
        %v303 = vsel %vm295, %v280, 0
        %v306 = vsel %vm295, %v281, 0
        %v309 = vsel %vm295, %v282, 0
        %v312 = vsel %vm295, %v283, 0
        %v315 = vsel %vm295, %v284, 0
        %v318 = vsel %vm295, %v285, 0
        %v321 = vsel %vm295, %v286, 0
        %v324 = vsel %vm295, %v287, 0
        %v327 = vsel %vm295, %v288, 0
        %v330 = vsel %vm295, %v289, 0
        %v333 = vsel %vm295, %v290, 0
        %v336 = vsel %vm295, %v291, 0
        %v339 = vsel %vm295, %v292, 0
        %v342 = vsel %vm295, %v293, 0
        %344 = vmatpush.msra.mxu0 0.0
        %345 = vmatpush.msra.mxu0 0.0
        %346 = vmatpush.msra.mxu0 0.0
        %347 = vmatpush.msra.mxu0 0.0
        %348 = vmatpush.msra.mxu0 0.0
        %349 = vmatpush.msra.mxu0 0.0
        %350 = vmatpush.msra.mxu0 0.0
        %351 = vmatpush.msra.mxu0 0.0
        %352 = vmatpush.msra.mxu0 0.0
        %353 = vmatpush.msra.mxu0 0.0
        %354 = vmatpush.msra.mxu0 0.0
        %355 = vmatpush.msra.mxu0 0.0
        %356 = vmatpush.msra.mxu0 0.0
        %357 = vmatpush.msra.mxu0 0.0
        %358 = vmatpush.msra.mxu0 0.0
        %359 = vmatpush.msra.mxu0 %v294
        %360 = vmatmul.f32.gmra.mxu0 %v297
        %v361 = vpop.f32.mrf.mxu0
        %v362 = vadd.f32 0.0, %v361
        %363 = vmatmul.f32.gmra.mxu0 %v300
        %v364 = vpop.f32.mrf.mxu0
        %v365 = vadd.f32 0.0, %v364
        %366 = vmatmul.f32.gmra.mxu0 %v303
        %v367 = vpop.f32.mrf.mxu0
        %v368 = vadd.f32 0.0, %v367
        %369 = vmatmul.f32.gmra.mxu0 %v306
        %v370 = vpop.f32.mrf.mxu0
        %v371 = vadd.f32 0.0, %v370
        %372 = vmatmul.f32.gmra.mxu0 %v309
        %v373 = vpop.f32.mrf.mxu0
        %v374 = vadd.f32 0.0, %v373
        %375 = vmatmul.f32.gmra.mxu0 %v312
        %v376 = vpop.f32.mrf.mxu0
        %v377 = vadd.f32 0.0, %v376
        %378 = vmatmul.f32.gmra.mxu0 %v315
        %v379 = vpop.f32.mrf.mxu0
        %v380 = vadd.f32 0.0, %v379
        %381 = vmatmul.f32.gmra.mxu0 %v318
        %v382 = vpop.f32.mrf.mxu0
        %v383 = vadd.f32 0.0, %v382
        %384 = vmatmul.f32.gmra.mxu0 %v321
        %v385 = vpop.f32.mrf.mxu0
        %v386 = vadd.f32 0.0, %v385
        %387 = vmatmul.f32.gmra.mxu0 %v324
        %v388 = vpop.f32.mrf.mxu0
        %v389 = vadd.f32 0.0, %v388
        %390 = vmatmul.f32.gmra.mxu0 %v327
        %v391 = vpop.f32.mrf.mxu0
        %v392 = vadd.f32 0.0, %v391
        %393 = vmatmul.f32.gmra.mxu0 %v330
        %v394 = vpop.f32.mrf.mxu0
        %v395 = vadd.f32 0.0, %v394
        %396 = vmatmul.f32.gmra.mxu0 %v333
        %v397 = vpop.f32.mrf.mxu0
        %v398 = vadd.f32 0.0, %v397
        %399 = vmatmul.f32.gmra.mxu0 %v336
        %v400 = vpop.f32.mrf.mxu0
        %v401 = vadd.f32 0.0, %v400
        %402 = vmatmul.f32.gmra.mxu0 %v339
        %v403 = vpop.f32.mrf.mxu0
        %v404 = vadd.f32 0.0, %v403
        %405 = vmatmul.f32.gmra.mxu0 %v342
        %v406 = vpop.f32.mrf.mxu0
        %v407 = vadd.f32 0.0, %v406
        %408 = vdwg.mxu0
        %v409 = vld [vmem:[%s2] sm:$0xff]
        %410 = vmatpush.msra.mxu0 0.0
        %411 = vmatpush.msra.mxu0 0.0
        %412 = vmatpush.msra.mxu0 0.0
        %413 = vmatpush.msra.mxu0 0.0
        %414 = vmatpush.msra.mxu0 0.0
        %415 = vmatpush.msra.mxu0 0.0
        %416 = vmatpush.msra.mxu0 0.0
        %417 = vmatpush.msra.mxu0 0.0
        %418 = vmatpush.msra.mxu0 0.0
        %419 = vmatpush.msra.mxu0 0.0
        %420 = vmatpush.msra.mxu0 0.0
        %421 = vmatpush.msra.mxu0 0.0
        %422 = vmatpush.msra.mxu0 0.0
        %423 = vmatpush.msra.mxu0 0.0
        %424 = vmatpush.msra.mxu0 0.0
        %425 = vmatpush.msra.mxu0 %v409
        %426 = vmatmul.f32.gmra.mxu0 %v297
        %v427 = vpop.f32.mrf.mxu0
        %v428 = vadd.f32 0.0, %v427
        %429 = vmatmul.f32.gmra.mxu0 %v300
        %v430 = vpop.f32.mrf.mxu0
        %v431 = vadd.f32 0.0, %v430
        %432 = vmatmul.f32.gmra.mxu0 %v303
        %v433 = vpop.f32.mrf.mxu0
        %v434 = vadd.f32 0.0, %v433
        %435 = vmatmul.f32.gmra.mxu0 %v306
        %v436 = vpop.f32.mrf.mxu0
        %v437 = vadd.f32 0.0, %v436
        %438 = vmatmul.f32.gmra.mxu0 %v309
        %v439 = vpop.f32.mrf.mxu0
        %v440 = vadd.f32 0.0, %v439
        %441 = vmatmul.f32.gmra.mxu0 %v312
        %v442 = vpop.f32.mrf.mxu0
        %v443 = vadd.f32 0.0, %v442
        %444 = vmatmul.f32.gmra.mxu0 %v315
        %v445 = vpop.f32.mrf.mxu0
        %v446 = vadd.f32 0.0, %v445
        %447 = vmatmul.f32.gmra.mxu0 %v318
        %v448 = vpop.f32.mrf.mxu0
        %v449 = vadd.f32 0.0, %v448
        %450 = vmatmul.f32.gmra.mxu0 %v321
        %v451 = vpop.f32.mrf.mxu0
        %v452 = vadd.f32 0.0, %v451
        %453 = vmatmul.f32.gmra.mxu0 %v324
        %v454 = vpop.f32.mrf.mxu0
        %v455 = vadd.f32 0.0, %v454
        %456 = vmatmul.f32.gmra.mxu0 %v327
        %v457 = vpop.f32.mrf.mxu0
        %v458 = vadd.f32 0.0, %v457
        %459 = vmatmul.f32.gmra.mxu0 %v330
        %v460 = vpop.f32.mrf.mxu0
        %v461 = vadd.f32 0.0, %v460
        %462 = vmatmul.f32.gmra.mxu0 %v333
        %v463 = vpop.f32.mrf.mxu0
        %v464 = vadd.f32 0.0, %v463
        %465 = vmatmul.f32.gmra.mxu0 %v336
        %v466 = vpop.f32.mrf.mxu0
        %v467 = vadd.f32 0.0, %v466
        %468 = vmatmul.f32.gmra.mxu0 %v339
        %v469 = vpop.f32.mrf.mxu0
        %v470 = vadd.f32 0.0, %v469
        %471 = vmatmul.f32.gmra.mxu0 %v342
        %v472 = vpop.f32.mrf.mxu0
        %v473 = vadd.f32 0.0, %v472
        %474 = vdwg.mxu0
        %v475 = vand.u32 2147483647, %v362
        %vm476 = vcmp.le.f32.partialorder %v475, 0.7853982
        %vm477 = vcmp.lt.s32.totalorder %v362, 0
        %v478 = vand.u32 %v362, 2139095040
        %v479 = vshrl.u32 %v478, 23
        %v480 = vsub.s32 %v479, 127
        %v481 = vand.u32 2147483647, %v362
        %v482 = vand.u32 %v481, 8388607
        %v483 = vor.u32 %v482, 8388608
        %v484 = vsub.s32 0, %v483
        %v485 = vadd.s32 %v480, 1
        %vm486 = vcmp.gt.s32.totalorder %v485, 0
        %v487 = vsel %vm486, %v485, 0
        %v488 = vshrl.u32 %v487, 5
        %v489 = vand.u32 %v487, 31
        %v490 = vsub.s32 32, %v489
        %v491 = vshrl.u32 683565275, %v490
        %v492 = vshll.u32 683565275, %v489
        %v493 = vshrl.u32 2475754826, %v490
        %v494 = vor.u32 %v492, %v493
        %v495 = vshll.u32 2475754826, %v489
        %v496 = vshrl.u32 2131351028, %v490
        %v497 = vor.u32 %v495, %v496
        %v498 = vshll.u32 2131351028, %v489
        %v499 = vshrl.u32 2102212464, %v490
        %v500 = vor.u32 %v498, %v499
        %v501 = vshll.u32 2102212464, %v489
        %v502 = vshrl.u32 920167782, %v490
        %v503 = vor.u32 %v501, %v502
        %v504 = vshll.u32 920167782, %v489
        %v505 = vshrl.u32 1326507024, %v490
        %v506 = vor.u32 %v504, %v505
        %vm507 = vcmp.lt.s32.totalorder %v488, 1
        %vm508 = vcmp.lt.s32.totalorder %v488, 2
        %vm509 = vcmp.lt.s32.totalorder %v488, 3
        %vm510 = vcmp.lt.s32.totalorder %v488, 4
        %v511 = vsel %vm507, %v491, %v494
        %v512 = vsel %vm510, %v500, 2102212464
        %v513 = vsel %vm509, %v497, %v512
        %v514 = vsel %vm508, %v511, %v513
        %v515 = vsel %vm507, %v494, %v497
        %v516 = vsel %vm510, %v503, 920167782
        %v517 = vsel %vm509, %v500, %v516
        %v518 = vsel %vm508, %v515, %v517
        %v519 = vsel %vm507, %v497, %v500
        %v520 = vsel %vm510, %v506, 1326507024
        %v521 = vsel %vm509, %v503, %v520
        %v522 = vsel %vm508, %v519, %v521
        %v523 = vshll.u32 %v483, 8
        %v524 = vand.u32 %v523, 65535
        %v525 = vshrl.u32 %v523, 16
        %v526 = vand.u32 %v522, 65535
        %v527 = vshrl.u32 %v522, 16
        %v528 = vmul.u32 %v524, %v526
        %v529 = vmul.u32 %v524, %v527
        %v530 = vmul.u32 %v525, %v526
        %v531 = vmul.u32 %v525, %v527
        %v532 = vshll.u32 %v529, 16
        %v533 = vshrl.u32 %v529, 16
        %v534 = vshll.u32 %v530, 16
        %v535 = vshrl.u32 %v530, 16
        %vm536 = vc.u32 %v528, %v532
        %v537 = vsel %vm536, 1, 0
        %v538 = vadd.s32 %v528, %v532
        %v539 = vadd.s32 %v531, %v537
        %vm540 = vc.u32 %v538, %v534
        %v541 = vsel %vm540, 1, 0
        %v542 = vadd.s32 %v538, %v534
        %v543 = vadd.s32 %v539, %v541
        %v544 = vadd.s32 %v543, %v533
        %v545 = vadd.s32 %v544, %v535
        %v546 = vand.u32 %v523, 65535
        %v547 = vshrl.u32 %v523, 16
        %v548 = vand.u32 %v518, 65535
        %v549 = vshrl.u32 %v518, 16
        %v550 = vmul.u32 %v546, %v548
        %v551 = vmul.u32 %v546, %v549
        %v552 = vmul.u32 %v547, %v548
        %v553 = vmul.u32 %v547, %v549
        %v554 = vshll.u32 %v551, 16
        %v555 = vshrl.u32 %v551, 16
        %v556 = vshll.u32 %v552, 16
        %v557 = vshrl.u32 %v552, 16
        %vm558 = vc.u32 %v550, %v554
        %v559 = vsel %vm558, 1, 0
        %v560 = vadd.s32 %v550, %v554
        %v561 = vadd.s32 %v553, %v559
        %vm562 = vc.u32 %v560, %v556
        %v563 = vsel %vm562, 1, 0
        %v564 = vadd.s32 %v560, %v556
        %v565 = vadd.s32 %v561, %v563
        %v566 = vadd.s32 %v565, %v555
        %v567 = vadd.s32 %v566, %v557
        %v568 = vmul.u32 %v523, %v514
        %v569 = vadd.s32 %v545, %v564
        %vm570 = vc.u32 %v545, %v564
        %v571 = vadd.s32 %v567, 1
        %v572 = vsel %vm570, %v571, %v567
        %v573 = vadd.s32 %v568, %v572
        %v574 = vadd.s32 %v573, 536870912
        %v575 = vshrl.u32 %v574, 30
        %v576 = vshll.u32 %v575, 30
        %v577 = vsub.s32 %v573, %v576
        %vm578 = vcmp.lt.s32.totalorder %v577, 0
        %v579 = vsub.s32 0, %v577
        %v580 = vsel %vm578, %v579, %v577
        %v581 = vclz %v580
        %v582 = vsub.s32 %v581, 2
        %vm583 = vcmp.gt.s32.totalorder 0, %v582
        %v584 = vsel %vm583, 0, %v582
        %v585 = vsub.s32 32, %v584
        %v586 = vshll.u32 %v577, %v584
        %v587 = vshrl.u32 %v569, %v585
        %v588 = vor.u32 %v586, %v587
        %v589 = vsub.s32 4294967266, %v584
        %v590 = vadd.s32 %v589, 127
        %v591 = vshll.u32 %v590, 23
        %v592 = vor.u32 4788187, %v591
        %v593 = vand.u32 2147483647, %v592
        %v595 = vcvt.s32.f32 %v588
        %v596 = vmul.f32 %v595, %v593
        %v597 = vxor.u32 %v596, 2147483648
        %v598 = vsel %vm477, %v597, %v596
        %v599 = vsub.s32 4, %v575
        %v600 = vsel %vm477, %v599, %v575
        %v601 = vsel %vm476, %v362, %v598
        %v602 = vsel %vm476, 0, %v600
        %v603 = vmul.f32 %v601, %v601
        %v604 = vmul.f32 %v603, -0.001358992
        %v605 = vadd.f32 %v604, 0.041655596
        %v606 = vmul.f32 %v603, %v605
        %v607 = vadd.f32 %v606, -0.4999988
        %v608 = vmul.f32 %v603, %v607
        %v609 = vadd.f32 1.0, %v608
        %v610 = vmul.f32 %v601, %v601
        %v611 = vmul.f32 %v610, -0.00019511016
        %v612 = vadd.f32 %v611, 0.008332121
        %v613 = vmul.f32 %v610, %v612
        %v614 = vadd.f32 %v613, -0.16666654
        %v615 = vmul.f32 %v610, %v614
        %v616 = vadd.f32 %v615, 1.0
        %v617 = vmul.f32 %v616, %v601
        %vm618 = vweird.f32 %v362
        %v619 = vand.u32 %v602, 3
        %vm620 = vcmp.lt.s32.totalorder %v619, 2
        %vm621 = vcmp.eq.s32.totalorder %v619, 0
        %v622 = vxor.u32 %v617, 2147483648
        %v623 = vsel %vm621, %v609, %v622
        %vm624 = vcmp.eq.s32.totalorder %v619, 2
        %v625 = vxor.u32 %v609, 2147483648
        %v626 = vsel %vm624, %v625, %v617
        %v627 = vsel %vm620, %v623, %v626
        %v628 = vsel %vm618, nan, %v627
        %v629 = vand.u32 2147483647, %v365
        %vm630 = vcmp.le.f32.partialorder %v629, 0.7853982
        %vm631 = vcmp.lt.s32.totalorder %v365, 0
        %v632 = vand.u32 %v365, 2139095040
        %v633 = vshrl.u32 %v632, 23
        %v634 = vsub.s32 %v633, 127
        %v635 = vand.u32 2147483647, %v365
        %v636 = vand.u32 %v635, 8388607
        %v637 = vor.u32 %v636, 8388608
        %v638 = vsub.s32 0, %v637
        %v639 = vadd.s32 %v634, 1
        %vm640 = vcmp.gt.s32.totalorder %v639, 0
        %v641 = vsel %vm640, %v639, 0
        %v642 = vshrl.u32 %v641, 5
        %v643 = vand.u32 %v641, 31
        %v644 = vsub.s32 32, %v643
        %v645 = vshrl.u32 683565275, %v644
        %v646 = vshll.u32 683565275, %v643
        %v647 = vshrl.u32 2475754826, %v644
        %v648 = vor.u32 %v646, %v647
        %v649 = vshll.u32 2475754826, %v643
        %v650 = vshrl.u32 2131351028, %v644
        %v651 = vor.u32 %v649, %v650
        %v652 = vshll.u32 2131351028, %v643
        %v653 = vshrl.u32 2102212464, %v644
        %v654 = vor.u32 %v652, %v653
        %v655 = vshll.u32 2102212464, %v643
        %v656 = vshrl.u32 920167782, %v644
        %v657 = vor.u32 %v655, %v656
        %v658 = vshll.u32 920167782, %v643
        %v659 = vshrl.u32 1326507024, %v644
        %v660 = vor.u32 %v658, %v659
        %vm661 = vcmp.lt.s32.totalorder %v642, 1
        %vm662 = vcmp.lt.s32.totalorder %v642, 2
        %vm663 = vcmp.lt.s32.totalorder %v642, 3
        %vm664 = vcmp.lt.s32.totalorder %v642, 4
        %v665 = vsel %vm661, %v645, %v648
        %v666 = vsel %vm664, %v654, 2102212464
        %v667 = vsel %vm663, %v651, %v666
        %v668 = vsel %vm662, %v665, %v667
        %v669 = vsel %vm661, %v648, %v651
        %v670 = vsel %vm664, %v657, 920167782
        %v671 = vsel %vm663, %v654, %v670
        %v672 = vsel %vm662, %v669, %v671
        %v673 = vsel %vm661, %v651, %v654
        %v674 = vsel %vm664, %v660, 1326507024
        %v675 = vsel %vm663, %v657, %v674
        %v676 = vsel %vm662, %v673, %v675
        %v677 = vshll.u32 %v637, 8
        %v678 = vand.u32 %v677, 65535
        %v679 = vshrl.u32 %v677, 16
        %v680 = vand.u32 %v676, 65535
        %v681 = vshrl.u32 %v676, 16
        %v682 = vmul.u32 %v678, %v680
        %v683 = vmul.u32 %v678, %v681
        %v684 = vmul.u32 %v679, %v680
        %v685 = vmul.u32 %v679, %v681
        %v686 = vshll.u32 %v683, 16
        %v687 = vshrl.u32 %v683, 16
        %v688 = vshll.u32 %v684, 16
        %v689 = vshrl.u32 %v684, 16
        %vm690 = vc.u32 %v682, %v686
        %v691 = vsel %vm690, 1, 0
        %v692 = vadd.s32 %v682, %v686
        %v693 = vadd.s32 %v685, %v691
        %vm694 = vc.u32 %v692, %v688
        %v695 = vsel %vm694, 1, 0
        %v696 = vadd.s32 %v692, %v688
        %v697 = vadd.s32 %v693, %v695
        %v698 = vadd.s32 %v697, %v687
        %v699 = vadd.s32 %v698, %v689
        %v700 = vand.u32 %v677, 65535
        %v701 = vshrl.u32 %v677, 16
        %v702 = vand.u32 %v672, 65535
        %v703 = vshrl.u32 %v672, 16
        %v704 = vmul.u32 %v700, %v702
        %v705 = vmul.u32 %v700, %v703
        %v706 = vmul.u32 %v701, %v702
        %v707 = vmul.u32 %v701, %v703
        %v708 = vshll.u32 %v705, 16
        %v709 = vshrl.u32 %v705, 16
        %v710 = vshll.u32 %v706, 16
        %v711 = vshrl.u32 %v706, 16
        %vm712 = vc.u32 %v704, %v708
        %v713 = vsel %vm712, 1, 0
        %v714 = vadd.s32 %v704, %v708
        %v715 = vadd.s32 %v707, %v713
        %vm716 = vc.u32 %v714, %v710
        %v717 = vsel %vm716, 1, 0
        %v718 = vadd.s32 %v714, %v710
        %v719 = vadd.s32 %v715, %v717
        %v720 = vadd.s32 %v719, %v709
        %v721 = vadd.s32 %v720, %v711
        %v722 = vmul.u32 %v677, %v668
        %v723 = vadd.s32 %v699, %v718
        %vm724 = vc.u32 %v699, %v718
        %v725 = vadd.s32 %v721, 1
        %v726 = vsel %vm724, %v725, %v721
        %v727 = vadd.s32 %v722, %v726
        %v728 = vadd.s32 %v727, 536870912
        %v729 = vshrl.u32 %v728, 30
        %v730 = vshll.u32 %v729, 30
        %v731 = vsub.s32 %v727, %v730
        %vm732 = vcmp.lt.s32.totalorder %v731, 0
        %v733 = vsub.s32 0, %v731
        %v734 = vsel %vm732, %v733, %v731
        %v735 = vclz %v734
        %v736 = vsub.s32 %v735, 2
        %vm737 = vcmp.gt.s32.totalorder 0, %v736
        %v738 = vsel %vm737, 0, %v736
        %v739 = vsub.s32 32, %v738
        %v740 = vshll.u32 %v731, %v738
        %v741 = vshrl.u32 %v723, %v739
        %v742 = vor.u32 %v740, %v741
        %v743 = vsub.s32 4294967266, %v738
        %v744 = vadd.s32 %v743, 127
        %v745 = vshll.u32 %v744, 23
        %v746 = vor.u32 4788187, %v745
        %v747 = vand.u32 2147483647, %v746
        %v749 = vcvt.s32.f32 %v742
        %v750 = vmul.f32 %v749, %v747
        %v751 = vxor.u32 %v750, 2147483648
        %v752 = vsel %vm631, %v751, %v750
        %v753 = vsub.s32 4, %v729
        %v754 = vsel %vm631, %v753, %v729
        %v755 = vsel %vm630, %v365, %v752
        %v756 = vsel %vm630, 0, %v754
        %v757 = vmul.f32 %v755, %v755
        %v758 = vmul.f32 %v757, -0.001358992
        %v759 = vadd.f32 %v758, 0.041655596
        %v760 = vmul.f32 %v757, %v759
        %v761 = vadd.f32 %v760, -0.4999988
        %v762 = vmul.f32 %v757, %v761
        %v763 = vadd.f32 1.0, %v762
        %v764 = vmul.f32 %v755, %v755
        %v765 = vmul.f32 %v764, -0.00019511016
        %v766 = vadd.f32 %v765, 0.008332121
        %v767 = vmul.f32 %v764, %v766
        %v768 = vadd.f32 %v767, -0.16666654
        %v769 = vmul.f32 %v764, %v768
        %v770 = vadd.f32 %v769, 1.0
        %v771 = vmul.f32 %v770, %v755
        %vm772 = vweird.f32 %v365
        %v773 = vand.u32 %v756, 3
        %vm774 = vcmp.lt.s32.totalorder %v773, 2
        %vm775 = vcmp.eq.s32.totalorder %v773, 0
        %v776 = vxor.u32 %v771, 2147483648
        %v777 = vsel %vm775, %v763, %v776
        %vm778 = vcmp.eq.s32.totalorder %v773, 2
        %v779 = vxor.u32 %v763, 2147483648
        %v780 = vsel %vm778, %v779, %v771
        %v781 = vsel %vm774, %v777, %v780
        %v782 = vsel %vm772, nan, %v781
        %v783 = vand.u32 2147483647, %v368
        %vm784 = vcmp.le.f32.partialorder %v783, 0.7853982
        %vm785 = vcmp.lt.s32.totalorder %v368, 0
        %v786 = vand.u32 %v368, 2139095040
        %v787 = vshrl.u32 %v786, 23
        %v788 = vsub.s32 %v787, 127
        %v789 = vand.u32 2147483647, %v368
        %v790 = vand.u32 %v789, 8388607
        %v791 = vor.u32 %v790, 8388608
        %v792 = vsub.s32 0, %v791
        %v793 = vadd.s32 %v788, 1
        %vm794 = vcmp.gt.s32.totalorder %v793, 0
        %v795 = vsel %vm794, %v793, 0
        %v796 = vshrl.u32 %v795, 5
        %v797 = vand.u32 %v795, 31
        %v798 = vsub.s32 32, %v797
        %v799 = vshrl.u32 683565275, %v798
        %v800 = vshll.u32 683565275, %v797
        %v801 = vshrl.u32 2475754826, %v798
        %v802 = vor.u32 %v800, %v801
        %v803 = vshll.u32 2475754826, %v797
        %v804 = vshrl.u32 2131351028, %v798
        %v805 = vor.u32 %v803, %v804
        %v806 = vshll.u32 2131351028, %v797
        %v807 = vshrl.u32 2102212464, %v798
        %v808 = vor.u32 %v806, %v807
        %v809 = vshll.u32 2102212464, %v797
        %v810 = vshrl.u32 920167782, %v798
        %v811 = vor.u32 %v809, %v810
        %v812 = vshll.u32 920167782, %v797
        %v813 = vshrl.u32 1326507024, %v798
        %v814 = vor.u32 %v812, %v813
        %vm815 = vcmp.lt.s32.totalorder %v796, 1
        %vm816 = vcmp.lt.s32.totalorder %v796, 2
        %vm817 = vcmp.lt.s32.totalorder %v796, 3
        %vm818 = vcmp.lt.s32.totalorder %v796, 4
        %v819 = vsel %vm815, %v799, %v802
        %v820 = vsel %vm818, %v808, 2102212464
        %v821 = vsel %vm817, %v805, %v820
        %v822 = vsel %vm816, %v819, %v821
        %v823 = vsel %vm815, %v802, %v805
        %v824 = vsel %vm818, %v811, 920167782
        %v825 = vsel %vm817, %v808, %v824
        %v826 = vsel %vm816, %v823, %v825
        %v827 = vsel %vm815, %v805, %v808
        %v828 = vsel %vm818, %v814, 1326507024
        %v829 = vsel %vm817, %v811, %v828
        %v830 = vsel %vm816, %v827, %v829
        %v831 = vshll.u32 %v791, 8
        %v832 = vand.u32 %v831, 65535
        %v833 = vshrl.u32 %v831, 16
        %v834 = vand.u32 %v830, 65535
        %v835 = vshrl.u32 %v830, 16
        %v836 = vmul.u32 %v832, %v834
        %v837 = vmul.u32 %v832, %v835
        %v838 = vmul.u32 %v833, %v834
        %v839 = vmul.u32 %v833, %v835
        %v840 = vshll.u32 %v837, 16
        %v841 = vshrl.u32 %v837, 16
        %v842 = vshll.u32 %v838, 16
        %v843 = vshrl.u32 %v838, 16
        %vm844 = vc.u32 %v836, %v840
        %v845 = vsel %vm844, 1, 0
        %v846 = vadd.s32 %v836, %v840
        %v847 = vadd.s32 %v839, %v845
        %vm848 = vc.u32 %v846, %v842
        %v849 = vsel %vm848, 1, 0
        %v850 = vadd.s32 %v846, %v842
        %v851 = vadd.s32 %v847, %v849
        %v852 = vadd.s32 %v851, %v841
        %v853 = vadd.s32 %v852, %v843
        %v854 = vand.u32 %v831, 65535
        %v855 = vshrl.u32 %v831, 16
        %v856 = vand.u32 %v826, 65535
        %v857 = vshrl.u32 %v826, 16
        %v858 = vmul.u32 %v854, %v856
        %v859 = vmul.u32 %v854, %v857
        %v860 = vmul.u32 %v855, %v856
        %v861 = vmul.u32 %v855, %v857
        %v862 = vshll.u32 %v859, 16
        %v863 = vshrl.u32 %v859, 16
        %v864 = vshll.u32 %v860, 16
        %v865 = vshrl.u32 %v860, 16
        %vm866 = vc.u32 %v858, %v862
        %v867 = vsel %vm866, 1, 0
        %v868 = vadd.s32 %v858, %v862
        %v869 = vadd.s32 %v861, %v867
        %vm870 = vc.u32 %v868, %v864
        %v871 = vsel %vm870, 1, 0
        %v872 = vadd.s32 %v868, %v864
        %v873 = vadd.s32 %v869, %v871
        %v874 = vadd.s32 %v873, %v863
        %v875 = vadd.s32 %v874, %v865
        %v876 = vmul.u32 %v831, %v822
        %v877 = vadd.s32 %v853, %v872
        %vm878 = vc.u32 %v853, %v872
        %v879 = vadd.s32 %v875, 1
        %v880 = vsel %vm878, %v879, %v875
        %v881 = vadd.s32 %v876, %v880
        %v882 = vadd.s32 %v881, 536870912
        %v883 = vshrl.u32 %v882, 30
        %v884 = vshll.u32 %v883, 30
        %v885 = vsub.s32 %v881, %v884
        %vm886 = vcmp.lt.s32.totalorder %v885, 0
        %v887 = vsub.s32 0, %v885
        %v888 = vsel %vm886, %v887, %v885
        %v889 = vclz %v888
        %v890 = vsub.s32 %v889, 2
        %vm891 = vcmp.gt.s32.totalorder 0, %v890
        %v892 = vsel %vm891, 0, %v890
        %v893 = vsub.s32 32, %v892
        %v894 = vshll.u32 %v885, %v892
        %v895 = vshrl.u32 %v877, %v893
        %v896 = vor.u32 %v894, %v895
        %v897 = vsub.s32 4294967266, %v892
        %v898 = vadd.s32 %v897, 127
        %v899 = vshll.u32 %v898, 23
        %v900 = vor.u32 4788187, %v899
        %v901 = vand.u32 2147483647, %v900
        %v903 = vcvt.s32.f32 %v896
        %v904 = vmul.f32 %v903, %v901
        %v905 = vxor.u32 %v904, 2147483648
        %v906 = vsel %vm785, %v905, %v904
        %v907 = vsub.s32 4, %v883
        %v908 = vsel %vm785, %v907, %v883
        %v909 = vsel %vm784, %v368, %v906
        %v910 = vsel %vm784, 0, %v908
        %v911 = vmul.f32 %v909, %v909
        %v912 = vmul.f32 %v911, -0.001358992
        %v913 = vadd.f32 %v912, 0.041655596
        %v914 = vmul.f32 %v911, %v913
        %v915 = vadd.f32 %v914, -0.4999988
        %v916 = vmul.f32 %v911, %v915
        %v917 = vadd.f32 1.0, %v916
        %v918 = vmul.f32 %v909, %v909
        %v919 = vmul.f32 %v918, -0.00019511016
        %v920 = vadd.f32 %v919, 0.008332121
        %v921 = vmul.f32 %v918, %v920
        %v922 = vadd.f32 %v921, -0.16666654
        %v923 = vmul.f32 %v918, %v922
        %v924 = vadd.f32 %v923, 1.0
        %v925 = vmul.f32 %v924, %v909
        %vm926 = vweird.f32 %v368
        %v927 = vand.u32 %v910, 3
        %vm928 = vcmp.lt.s32.totalorder %v927, 2
        %vm929 = vcmp.eq.s32.totalorder %v927, 0
        %v930 = vxor.u32 %v925, 2147483648
        %v931 = vsel %vm929, %v917, %v930
        %vm932 = vcmp.eq.s32.totalorder %v927, 2
        %v933 = vxor.u32 %v917, 2147483648
        %v934 = vsel %vm932, %v933, %v925
        %v935 = vsel %vm928, %v931, %v934
        %v936 = vsel %vm926, nan, %v935
        %v937 = vand.u32 2147483647, %v371
        %vm938 = vcmp.le.f32.partialorder %v937, 0.7853982
        %vm939 = vcmp.lt.s32.totalorder %v371, 0
        %v940 = vand.u32 %v371, 2139095040
        %v941 = vshrl.u32 %v940, 23
        %v942 = vsub.s32 %v941, 127
        %v943 = vand.u32 2147483647, %v371
        %v944 = vand.u32 %v943, 8388607
        %v945 = vor.u32 %v944, 8388608
        %v946 = vsub.s32 0, %v945
        %v947 = vadd.s32 %v942, 1
        %vm948 = vcmp.gt.s32.totalorder %v947, 0
        %v949 = vsel %vm948, %v947, 0
        %v950 = vshrl.u32 %v949, 5
        %v951 = vand.u32 %v949, 31
        %v952 = vsub.s32 32, %v951
        %v953 = vshrl.u32 683565275, %v952
        %v954 = vshll.u32 683565275, %v951
        %v955 = vshrl.u32 2475754826, %v952
        %v956 = vor.u32 %v954, %v955
        %v957 = vshll.u32 2475754826, %v951
        %v958 = vshrl.u32 2131351028, %v952
        %v959 = vor.u32 %v957, %v958
        %v960 = vshll.u32 2131351028, %v951
        %v961 = vshrl.u32 2102212464, %v952
        %v962 = vor.u32 %v960, %v961
        %v963 = vshll.u32 2102212464, %v951
        %v964 = vshrl.u32 920167782, %v952
        %v965 = vor.u32 %v963, %v964
        %v966 = vshll.u32 920167782, %v951
        %v967 = vshrl.u32 1326507024, %v952
        %v968 = vor.u32 %v966, %v967
        %vm969 = vcmp.lt.s32.totalorder %v950, 1
        %vm970 = vcmp.lt.s32.totalorder %v950, 2
        %vm971 = vcmp.lt.s32.totalorder %v950, 3
        %vm972 = vcmp.lt.s32.totalorder %v950, 4
        %v973 = vsel %vm969, %v953, %v956
        %v974 = vsel %vm972, %v962, 2102212464
        %v975 = vsel %vm971, %v959, %v974
        %v976 = vsel %vm970, %v973, %v975
        %v977 = vsel %vm969, %v956, %v959
        %v978 = vsel %vm972, %v965, 920167782
        %v979 = vsel %vm971, %v962, %v978
        %v980 = vsel %vm970, %v977, %v979
        %v981 = vsel %vm969, %v959, %v962
        %v982 = vsel %vm972, %v968, 1326507024
        %v983 = vsel %vm971, %v965, %v982
        %v984 = vsel %vm970, %v981, %v983
        %v985 = vshll.u32 %v945, 8
        %v986 = vand.u32 %v985, 65535
        %v987 = vshrl.u32 %v985, 16
        %v988 = vand.u32 %v984, 65535
        %v989 = vshrl.u32 %v984, 16
        %v990 = vmul.u32 %v986, %v988
        %v991 = vmul.u32 %v986, %v989
        %v992 = vmul.u32 %v987, %v988
        %v993 = vmul.u32 %v987, %v989
        %v994 = vshll.u32 %v991, 16
        %v995 = vshrl.u32 %v991, 16
        %v996 = vshll.u32 %v992, 16
        %v997 = vshrl.u32 %v992, 16
        %vm998 = vc.u32 %v990, %v994
        %v999 = vsel %vm998, 1, 0
        %v1000 = vadd.s32 %v990, %v994
        %v1001 = vadd.s32 %v993, %v999
        %vm1002 = vc.u32 %v1000, %v996
        %v1003 = vsel %vm1002, 1, 0
        %v1004 = vadd.s32 %v1000, %v996
        %v1005 = vadd.s32 %v1001, %v1003
        %v1006 = vadd.s32 %v1005, %v995
        %v1007 = vadd.s32 %v1006, %v997
        %v1008 = vand.u32 %v985, 65535
        %v1009 = vshrl.u32 %v985, 16
        %v1010 = vand.u32 %v980, 65535
        %v1011 = vshrl.u32 %v980, 16
        %v1012 = vmul.u32 %v1008, %v1010
        %v1013 = vmul.u32 %v1008, %v1011
        %v1014 = vmul.u32 %v1009, %v1010
        %v1015 = vmul.u32 %v1009, %v1011
        %v1016 = vshll.u32 %v1013, 16
        %v1017 = vshrl.u32 %v1013, 16
        %v1018 = vshll.u32 %v1014, 16
        %v1019 = vshrl.u32 %v1014, 16
        %vm1020 = vc.u32 %v1012, %v1016
        %v1021 = vsel %vm1020, 1, 0
        %v1022 = vadd.s32 %v1012, %v1016
        %v1023 = vadd.s32 %v1015, %v1021
        %vm1024 = vc.u32 %v1022, %v1018
        %v1025 = vsel %vm1024, 1, 0
        %v1026 = vadd.s32 %v1022, %v1018
        %v1027 = vadd.s32 %v1023, %v1025
        %v1028 = vadd.s32 %v1027, %v1017
        %v1029 = vadd.s32 %v1028, %v1019
        %v1030 = vmul.u32 %v985, %v976
        %v1031 = vadd.s32 %v1007, %v1026
        %vm1032 = vc.u32 %v1007, %v1026
        %v1033 = vadd.s32 %v1029, 1
        %v1034 = vsel %vm1032, %v1033, %v1029
        %v1035 = vadd.s32 %v1030, %v1034
        %v1036 = vadd.s32 %v1035, 536870912
        %v1037 = vshrl.u32 %v1036, 30
        %v1038 = vshll.u32 %v1037, 30
        %v1039 = vsub.s32 %v1035, %v1038
        %vm1040 = vcmp.lt.s32.totalorder %v1039, 0
        %v1041 = vsub.s32 0, %v1039
        %v1042 = vsel %vm1040, %v1041, %v1039
        %v1043 = vclz %v1042
        %v1044 = vsub.s32 %v1043, 2
        %vm1045 = vcmp.gt.s32.totalorder 0, %v1044
        %v1046 = vsel %vm1045, 0, %v1044
        %v1047 = vsub.s32 32, %v1046
        %v1048 = vshll.u32 %v1039, %v1046
        %v1049 = vshrl.u32 %v1031, %v1047
        %v1050 = vor.u32 %v1048, %v1049
        %v1051 = vsub.s32 4294967266, %v1046
        %v1052 = vadd.s32 %v1051, 127
        %v1053 = vshll.u32 %v1052, 23
        %v1054 = vor.u32 4788187, %v1053
        %v1055 = vand.u32 2147483647, %v1054
        %v1057 = vcvt.s32.f32 %v1050
        %v1058 = vmul.f32 %v1057, %v1055
        %v1059 = vxor.u32 %v1058, 2147483648
        %v1060 = vsel %vm939, %v1059, %v1058
        %v1061 = vsub.s32 4, %v1037
        %v1062 = vsel %vm939, %v1061, %v1037
        %v1063 = vsel %vm938, %v371, %v1060
        %v1064 = vsel %vm938, 0, %v1062
        %v1065 = vmul.f32 %v1063, %v1063
        %v1066 = vmul.f32 %v1065, -0.001358992
        %v1067 = vadd.f32 %v1066, 0.041655596
        %v1068 = vmul.f32 %v1065, %v1067
        %v1069 = vadd.f32 %v1068, -0.4999988
        %v1070 = vmul.f32 %v1065, %v1069
        %v1071 = vadd.f32 1.0, %v1070
        %v1072 = vmul.f32 %v1063, %v1063
        %v1073 = vmul.f32 %v1072, -0.00019511016
        %v1074 = vadd.f32 %v1073, 0.008332121
        %v1075 = vmul.f32 %v1072, %v1074
        %v1076 = vadd.f32 %v1075, -0.16666654
        %v1077 = vmul.f32 %v1072, %v1076
        %v1078 = vadd.f32 %v1077, 1.0
        %v1079 = vmul.f32 %v1078, %v1063
        %vm1080 = vweird.f32 %v371
        %v1081 = vand.u32 %v1064, 3
        %vm1082 = vcmp.lt.s32.totalorder %v1081, 2
        %vm1083 = vcmp.eq.s32.totalorder %v1081, 0
        %v1084 = vxor.u32 %v1079, 2147483648
        %v1085 = vsel %vm1083, %v1071, %v1084
        %vm1086 = vcmp.eq.s32.totalorder %v1081, 2
        %v1087 = vxor.u32 %v1071, 2147483648
        %v1088 = vsel %vm1086, %v1087, %v1079
        %v1089 = vsel %vm1082, %v1085, %v1088
        %v1090 = vsel %vm1080, nan, %v1089
        %v1091 = vand.u32 2147483647, %v374
        %vm1092 = vcmp.le.f32.partialorder %v1091, 0.7853982
        %vm1093 = vcmp.lt.s32.totalorder %v374, 0
        %v1094 = vand.u32 %v374, 2139095040
        %v1095 = vshrl.u32 %v1094, 23
        %v1096 = vsub.s32 %v1095, 127
        %v1097 = vand.u32 2147483647, %v374
        %v1098 = vand.u32 %v1097, 8388607
        %v1099 = vor.u32 %v1098, 8388608
        %v1100 = vsub.s32 0, %v1099
        %v1101 = vadd.s32 %v1096, 1
        %vm1102 = vcmp.gt.s32.totalorder %v1101, 0
        %v1103 = vsel %vm1102, %v1101, 0
        %v1104 = vshrl.u32 %v1103, 5
        %v1105 = vand.u32 %v1103, 31
        %v1106 = vsub.s32 32, %v1105
        %v1107 = vshrl.u32 683565275, %v1106
        %v1108 = vshll.u32 683565275, %v1105
        %v1109 = vshrl.u32 2475754826, %v1106
        %v1110 = vor.u32 %v1108, %v1109
        %v1111 = vshll.u32 2475754826, %v1105
        %v1112 = vshrl.u32 2131351028, %v1106
        %v1113 = vor.u32 %v1111, %v1112
        %v1114 = vshll.u32 2131351028, %v1105
        %v1115 = vshrl.u32 2102212464, %v1106
        %v1116 = vor.u32 %v1114, %v1115
        %v1117 = vshll.u32 2102212464, %v1105
        %v1118 = vshrl.u32 920167782, %v1106
        %v1119 = vor.u32 %v1117, %v1118
        %v1120 = vshll.u32 920167782, %v1105
        %v1121 = vshrl.u32 1326507024, %v1106
        %v1122 = vor.u32 %v1120, %v1121
        %vm1123 = vcmp.lt.s32.totalorder %v1104, 1
        %vm1124 = vcmp.lt.s32.totalorder %v1104, 2
        %vm1125 = vcmp.lt.s32.totalorder %v1104, 3
        %vm1126 = vcmp.lt.s32.totalorder %v1104, 4
        %v1127 = vsel %vm1123, %v1107, %v1110
        %v1128 = vsel %vm1126, %v1116, 2102212464
        %v1129 = vsel %vm1125, %v1113, %v1128
        %v1130 = vsel %vm1124, %v1127, %v1129
        %v1131 = vsel %vm1123, %v1110, %v1113
        %v1132 = vsel %vm1126, %v1119, 920167782
        %v1133 = vsel %vm1125, %v1116, %v1132
        %v1134 = vsel %vm1124, %v1131, %v1133
        %v1135 = vsel %vm1123, %v1113, %v1116
        %v1136 = vsel %vm1126, %v1122, 1326507024
        %v1137 = vsel %vm1125, %v1119, %v1136
        %v1138 = vsel %vm1124, %v1135, %v1137
        %v1139 = vshll.u32 %v1099, 8
        %v1140 = vand.u32 %v1139, 65535
        %v1141 = vshrl.u32 %v1139, 16
        %v1142 = vand.u32 %v1138, 65535
        %v1143 = vshrl.u32 %v1138, 16
        %v1144 = vmul.u32 %v1140, %v1142
        %v1145 = vmul.u32 %v1140, %v1143
        %v1146 = vmul.u32 %v1141, %v1142
        %v1147 = vmul.u32 %v1141, %v1143
        %v1148 = vshll.u32 %v1145, 16
        %v1149 = vshrl.u32 %v1145, 16
        %v1150 = vshll.u32 %v1146, 16
        %v1151 = vshrl.u32 %v1146, 16
        %vm1152 = vc.u32 %v1144, %v1148
        %v1153 = vsel %vm1152, 1, 0
        %v1154 = vadd.s32 %v1144, %v1148
        %v1155 = vadd.s32 %v1147, %v1153
        %vm1156 = vc.u32 %v1154, %v1150
        %v1157 = vsel %vm1156, 1, 0
        %v1158 = vadd.s32 %v1154, %v1150
        %v1159 = vadd.s32 %v1155, %v1157
        %v1160 = vadd.s32 %v1159, %v1149
        %v1161 = vadd.s32 %v1160, %v1151
        %v1162 = vand.u32 %v1139, 65535
        %v1163 = vshrl.u32 %v1139, 16
        %v1164 = vand.u32 %v1134, 65535
        %v1165 = vshrl.u32 %v1134, 16
        %v1166 = vmul.u32 %v1162, %v1164
        %v1167 = vmul.u32 %v1162, %v1165
        %v1168 = vmul.u32 %v1163, %v1164
        %v1169 = vmul.u32 %v1163, %v1165
        %v1170 = vshll.u32 %v1167, 16
        %v1171 = vshrl.u32 %v1167, 16
        %v1172 = vshll.u32 %v1168, 16
        %v1173 = vshrl.u32 %v1168, 16
        %vm1174 = vc.u32 %v1166, %v1170
        %v1175 = vsel %vm1174, 1, 0
        %v1176 = vadd.s32 %v1166, %v1170
        %v1177 = vadd.s32 %v1169, %v1175
        %vm1178 = vc.u32 %v1176, %v1172
        %v1179 = vsel %vm1178, 1, 0
        %v1180 = vadd.s32 %v1176, %v1172
        %v1181 = vadd.s32 %v1177, %v1179
        %v1182 = vadd.s32 %v1181, %v1171
        %v1183 = vadd.s32 %v1182, %v1173
        %v1184 = vmul.u32 %v1139, %v1130
        %v1185 = vadd.s32 %v1161, %v1180
        %vm1186 = vc.u32 %v1161, %v1180
        %v1187 = vadd.s32 %v1183, 1
        %v1188 = vsel %vm1186, %v1187, %v1183
        %v1189 = vadd.s32 %v1184, %v1188
        %v1190 = vadd.s32 %v1189, 536870912
        %v1191 = vshrl.u32 %v1190, 30
        %v1192 = vshll.u32 %v1191, 30
        %v1193 = vsub.s32 %v1189, %v1192
        %vm1194 = vcmp.lt.s32.totalorder %v1193, 0
        %v1195 = vsub.s32 0, %v1193
        %v1196 = vsel %vm1194, %v1195, %v1193
        %v1197 = vclz %v1196
        %v1198 = vsub.s32 %v1197, 2
        %vm1199 = vcmp.gt.s32.totalorder 0, %v1198
        %v1200 = vsel %vm1199, 0, %v1198
        %v1201 = vsub.s32 32, %v1200
        %v1202 = vshll.u32 %v1193, %v1200
        %v1203 = vshrl.u32 %v1185, %v1201
        %v1204 = vor.u32 %v1202, %v1203
        %v1205 = vsub.s32 4294967266, %v1200
        %v1206 = vadd.s32 %v1205, 127
        %v1207 = vshll.u32 %v1206, 23
        %v1208 = vor.u32 4788187, %v1207
        %v1209 = vand.u32 2147483647, %v1208
        %v1211 = vcvt.s32.f32 %v1204
        %v1212 = vmul.f32 %v1211, %v1209
        %v1213 = vxor.u32 %v1212, 2147483648
        %v1214 = vsel %vm1093, %v1213, %v1212
        %v1215 = vsub.s32 4, %v1191
        %v1216 = vsel %vm1093, %v1215, %v1191
        %v1217 = vsel %vm1092, %v374, %v1214
        %v1218 = vsel %vm1092, 0, %v1216
        %v1219 = vmul.f32 %v1217, %v1217
        %v1220 = vmul.f32 %v1219, -0.001358992
        %v1221 = vadd.f32 %v1220, 0.041655596
        %v1222 = vmul.f32 %v1219, %v1221
        %v1223 = vadd.f32 %v1222, -0.4999988
        %v1224 = vmul.f32 %v1219, %v1223
        %v1225 = vadd.f32 1.0, %v1224
        %v1226 = vmul.f32 %v1217, %v1217
        %v1227 = vmul.f32 %v1226, -0.00019511016
        %v1228 = vadd.f32 %v1227, 0.008332121
        %v1229 = vmul.f32 %v1226, %v1228
        %v1230 = vadd.f32 %v1229, -0.16666654
        %v1231 = vmul.f32 %v1226, %v1230
        %v1232 = vadd.f32 %v1231, 1.0
        %v1233 = vmul.f32 %v1232, %v1217
        %vm1234 = vweird.f32 %v374
        %v1235 = vand.u32 %v1218, 3
        %vm1236 = vcmp.lt.s32.totalorder %v1235, 2
        %vm1237 = vcmp.eq.s32.totalorder %v1235, 0
        %v1238 = vxor.u32 %v1233, 2147483648
        %v1239 = vsel %vm1237, %v1225, %v1238
        %vm1240 = vcmp.eq.s32.totalorder %v1235, 2
        %v1241 = vxor.u32 %v1225, 2147483648
        %v1242 = vsel %vm1240, %v1241, %v1233
        %v1243 = vsel %vm1236, %v1239, %v1242
        %v1244 = vsel %vm1234, nan, %v1243
        %v1245 = vand.u32 2147483647, %v377
        %vm1246 = vcmp.le.f32.partialorder %v1245, 0.7853982
        %vm1247 = vcmp.lt.s32.totalorder %v377, 0
        %v1248 = vand.u32 %v377, 2139095040
        %v1249 = vshrl.u32 %v1248, 23
        %v1250 = vsub.s32 %v1249, 127
        %v1251 = vand.u32 2147483647, %v377
        %v1252 = vand.u32 %v1251, 8388607
        %v1253 = vor.u32 %v1252, 8388608
        %v1254 = vsub.s32 0, %v1253
        %v1255 = vadd.s32 %v1250, 1
        %vm1256 = vcmp.gt.s32.totalorder %v1255, 0
        %v1257 = vsel %vm1256, %v1255, 0
        %v1258 = vshrl.u32 %v1257, 5
        %v1259 = vand.u32 %v1257, 31
        %v1260 = vsub.s32 32, %v1259
        %v1261 = vshrl.u32 683565275, %v1260
        %v1262 = vshll.u32 683565275, %v1259
        %v1263 = vshrl.u32 2475754826, %v1260
        %v1264 = vor.u32 %v1262, %v1263
        %v1265 = vshll.u32 2475754826, %v1259
        %v1266 = vshrl.u32 2131351028, %v1260
        %v1267 = vor.u32 %v1265, %v1266
        %v1268 = vshll.u32 2131351028, %v1259
        %v1269 = vshrl.u32 2102212464, %v1260
        %v1270 = vor.u32 %v1268, %v1269
        %v1271 = vshll.u32 2102212464, %v1259
        %v1272 = vshrl.u32 920167782, %v1260
        %v1273 = vor.u32 %v1271, %v1272
        %v1274 = vshll.u32 920167782, %v1259
        %v1275 = vshrl.u32 1326507024, %v1260
        %v1276 = vor.u32 %v1274, %v1275
        %vm1277 = vcmp.lt.s32.totalorder %v1258, 1
        %vm1278 = vcmp.lt.s32.totalorder %v1258, 2
        %vm1279 = vcmp.lt.s32.totalorder %v1258, 3
        %vm1280 = vcmp.lt.s32.totalorder %v1258, 4
        %v1281 = vsel %vm1277, %v1261, %v1264
        %v1282 = vsel %vm1280, %v1270, 2102212464
        %v1283 = vsel %vm1279, %v1267, %v1282
        %v1284 = vsel %vm1278, %v1281, %v1283
        %v1285 = vsel %vm1277, %v1264, %v1267
        %v1286 = vsel %vm1280, %v1273, 920167782
        %v1287 = vsel %vm1279, %v1270, %v1286
        %v1288 = vsel %vm1278, %v1285, %v1287
        %v1289 = vsel %vm1277, %v1267, %v1270
        %v1290 = vsel %vm1280, %v1276, 1326507024
        %v1291 = vsel %vm1279, %v1273, %v1290
        %v1292 = vsel %vm1278, %v1289, %v1291
        %v1293 = vshll.u32 %v1253, 8
        %v1294 = vand.u32 %v1293, 65535
        %v1295 = vshrl.u32 %v1293, 16
        %v1296 = vand.u32 %v1292, 65535
        %v1297 = vshrl.u32 %v1292, 16
        %v1298 = vmul.u32 %v1294, %v1296
        %v1299 = vmul.u32 %v1294, %v1297
        %v1300 = vmul.u32 %v1295, %v1296
        %v1301 = vmul.u32 %v1295, %v1297
        %v1302 = vshll.u32 %v1299, 16
        %v1303 = vshrl.u32 %v1299, 16
        %v1304 = vshll.u32 %v1300, 16
        %v1305 = vshrl.u32 %v1300, 16
        %vm1306 = vc.u32 %v1298, %v1302
        %v1307 = vsel %vm1306, 1, 0
        %v1308 = vadd.s32 %v1298, %v1302
        %v1309 = vadd.s32 %v1301, %v1307
        %vm1310 = vc.u32 %v1308, %v1304
        %v1311 = vsel %vm1310, 1, 0
        %v1312 = vadd.s32 %v1308, %v1304
        %v1313 = vadd.s32 %v1309, %v1311
        %v1314 = vadd.s32 %v1313, %v1303
        %v1315 = vadd.s32 %v1314, %v1305
        %v1316 = vand.u32 %v1293, 65535
        %v1317 = vshrl.u32 %v1293, 16
        %v1318 = vand.u32 %v1288, 65535
        %v1319 = vshrl.u32 %v1288, 16
        %v1320 = vmul.u32 %v1316, %v1318
        %v1321 = vmul.u32 %v1316, %v1319
        %v1322 = vmul.u32 %v1317, %v1318
        %v1323 = vmul.u32 %v1317, %v1319
        %v1324 = vshll.u32 %v1321, 16
        %v1325 = vshrl.u32 %v1321, 16
        %v1326 = vshll.u32 %v1322, 16
        %v1327 = vshrl.u32 %v1322, 16
        %vm1328 = vc.u32 %v1320, %v1324
        %v1329 = vsel %vm1328, 1, 0
        %v1330 = vadd.s32 %v1320, %v1324
        %v1331 = vadd.s32 %v1323, %v1329
        %vm1332 = vc.u32 %v1330, %v1326
        %v1333 = vsel %vm1332, 1, 0
        %v1334 = vadd.s32 %v1330, %v1326
        %v1335 = vadd.s32 %v1331, %v1333
        %v1336 = vadd.s32 %v1335, %v1325
        %v1337 = vadd.s32 %v1336, %v1327
        %v1338 = vmul.u32 %v1293, %v1284
        %v1339 = vadd.s32 %v1315, %v1334
        %vm1340 = vc.u32 %v1315, %v1334
        %v1341 = vadd.s32 %v1337, 1
        %v1342 = vsel %vm1340, %v1341, %v1337
        %v1343 = vadd.s32 %v1338, %v1342
        %v1344 = vadd.s32 %v1343, 536870912
        %v1345 = vshrl.u32 %v1344, 30
        %v1346 = vshll.u32 %v1345, 30
        %v1347 = vsub.s32 %v1343, %v1346
        %vm1348 = vcmp.lt.s32.totalorder %v1347, 0
        %v1349 = vsub.s32 0, %v1347
        %v1350 = vsel %vm1348, %v1349, %v1347
        %v1351 = vclz %v1350
        %v1352 = vsub.s32 %v1351, 2
        %vm1353 = vcmp.gt.s32.totalorder 0, %v1352
        %v1354 = vsel %vm1353, 0, %v1352
        %v1355 = vsub.s32 32, %v1354
        %v1356 = vshll.u32 %v1347, %v1354
        %v1357 = vshrl.u32 %v1339, %v1355
        %v1358 = vor.u32 %v1356, %v1357
        %v1359 = vsub.s32 4294967266, %v1354
        %v1360 = vadd.s32 %v1359, 127
        %v1361 = vshll.u32 %v1360, 23
        %v1362 = vor.u32 4788187, %v1361
        %v1363 = vand.u32 2147483647, %v1362
        %v1365 = vcvt.s32.f32 %v1358
        %v1366 = vmul.f32 %v1365, %v1363
        %v1367 = vxor.u32 %v1366, 2147483648
        %v1368 = vsel %vm1247, %v1367, %v1366
        %v1369 = vsub.s32 4, %v1345
        %v1370 = vsel %vm1247, %v1369, %v1345
        %v1371 = vsel %vm1246, %v377, %v1368
        %v1372 = vsel %vm1246, 0, %v1370
        %v1373 = vmul.f32 %v1371, %v1371
        %v1374 = vmul.f32 %v1373, -0.001358992
        %v1375 = vadd.f32 %v1374, 0.041655596
        %v1376 = vmul.f32 %v1373, %v1375
        %v1377 = vadd.f32 %v1376, -0.4999988
        %v1378 = vmul.f32 %v1373, %v1377
        %v1379 = vadd.f32 1.0, %v1378
        %v1380 = vmul.f32 %v1371, %v1371
        %v1381 = vmul.f32 %v1380, -0.00019511016
        %v1382 = vadd.f32 %v1381, 0.008332121
        %v1383 = vmul.f32 %v1380, %v1382
        %v1384 = vadd.f32 %v1383, -0.16666654
        %v1385 = vmul.f32 %v1380, %v1384
        %v1386 = vadd.f32 %v1385, 1.0
        %v1387 = vmul.f32 %v1386, %v1371
        %vm1388 = vweird.f32 %v377
        %v1389 = vand.u32 %v1372, 3
        %vm1390 = vcmp.lt.s32.totalorder %v1389, 2
        %vm1391 = vcmp.eq.s32.totalorder %v1389, 0
        %v1392 = vxor.u32 %v1387, 2147483648
        %v1393 = vsel %vm1391, %v1379, %v1392
        %vm1394 = vcmp.eq.s32.totalorder %v1389, 2
        %v1395 = vxor.u32 %v1379, 2147483648
        %v1396 = vsel %vm1394, %v1395, %v1387
        %v1397 = vsel %vm1390, %v1393, %v1396
        %v1398 = vsel %vm1388, nan, %v1397
        %v1399 = vand.u32 2147483647, %v380
        %vm1400 = vcmp.le.f32.partialorder %v1399, 0.7853982
        %vm1401 = vcmp.lt.s32.totalorder %v380, 0
        %v1402 = vand.u32 %v380, 2139095040
        %v1403 = vshrl.u32 %v1402, 23
        %v1404 = vsub.s32 %v1403, 127
        %v1405 = vand.u32 2147483647, %v380
        %v1406 = vand.u32 %v1405, 8388607
        %v1407 = vor.u32 %v1406, 8388608
        %v1408 = vsub.s32 0, %v1407
        %v1409 = vadd.s32 %v1404, 1
        %vm1410 = vcmp.gt.s32.totalorder %v1409, 0
        %v1411 = vsel %vm1410, %v1409, 0
        %v1412 = vshrl.u32 %v1411, 5
        %v1413 = vand.u32 %v1411, 31
        %v1414 = vsub.s32 32, %v1413
        %v1415 = vshrl.u32 683565275, %v1414
        %v1416 = vshll.u32 683565275, %v1413
        %v1417 = vshrl.u32 2475754826, %v1414
        %v1418 = vor.u32 %v1416, %v1417
        %v1419 = vshll.u32 2475754826, %v1413
        %v1420 = vshrl.u32 2131351028, %v1414
        %v1421 = vor.u32 %v1419, %v1420
        %v1422 = vshll.u32 2131351028, %v1413
        %v1423 = vshrl.u32 2102212464, %v1414
        %v1424 = vor.u32 %v1422, %v1423
        %v1425 = vshll.u32 2102212464, %v1413
        %v1426 = vshrl.u32 920167782, %v1414
        %v1427 = vor.u32 %v1425, %v1426
        %v1428 = vshll.u32 920167782, %v1413
        %v1429 = vshrl.u32 1326507024, %v1414
        %v1430 = vor.u32 %v1428, %v1429
        %vm1431 = vcmp.lt.s32.totalorder %v1412, 1
        %vm1432 = vcmp.lt.s32.totalorder %v1412, 2
        %vm1433 = vcmp.lt.s32.totalorder %v1412, 3
        %vm1434 = vcmp.lt.s32.totalorder %v1412, 4
        %v1435 = vsel %vm1431, %v1415, %v1418
        %v1436 = vsel %vm1434, %v1424, 2102212464
        %v1437 = vsel %vm1433, %v1421, %v1436
        %v1438 = vsel %vm1432, %v1435, %v1437
        %v1439 = vsel %vm1431, %v1418, %v1421
        %v1440 = vsel %vm1434, %v1427, 920167782
        %v1441 = vsel %vm1433, %v1424, %v1440
        %v1442 = vsel %vm1432, %v1439, %v1441
        %v1443 = vsel %vm1431, %v1421, %v1424
        %v1444 = vsel %vm1434, %v1430, 1326507024
        %v1445 = vsel %vm1433, %v1427, %v1444
        %v1446 = vsel %vm1432, %v1443, %v1445
        %v1447 = vshll.u32 %v1407, 8
        %v1448 = vand.u32 %v1447, 65535
        %v1449 = vshrl.u32 %v1447, 16
        %v1450 = vand.u32 %v1446, 65535
        %v1451 = vshrl.u32 %v1446, 16
        %v1452 = vmul.u32 %v1448, %v1450
        %v1453 = vmul.u32 %v1448, %v1451
        %v1454 = vmul.u32 %v1449, %v1450
        %v1455 = vmul.u32 %v1449, %v1451
        %v1456 = vshll.u32 %v1453, 16
        %v1457 = vshrl.u32 %v1453, 16
        %v1458 = vshll.u32 %v1454, 16
        %v1459 = vshrl.u32 %v1454, 16
        %vm1460 = vc.u32 %v1452, %v1456
        %v1461 = vsel %vm1460, 1, 0
        %v1462 = vadd.s32 %v1452, %v1456
        %v1463 = vadd.s32 %v1455, %v1461
        %vm1464 = vc.u32 %v1462, %v1458
        %v1465 = vsel %vm1464, 1, 0
        %v1466 = vadd.s32 %v1462, %v1458
        %v1467 = vadd.s32 %v1463, %v1465
        %v1468 = vadd.s32 %v1467, %v1457
        %v1469 = vadd.s32 %v1468, %v1459
        %v1470 = vand.u32 %v1447, 65535
        %v1471 = vshrl.u32 %v1447, 16
        %v1472 = vand.u32 %v1442, 65535
        %v1473 = vshrl.u32 %v1442, 16
        %v1474 = vmul.u32 %v1470, %v1472
        %v1475 = vmul.u32 %v1470, %v1473
        %v1476 = vmul.u32 %v1471, %v1472
        %v1477 = vmul.u32 %v1471, %v1473
        %v1478 = vshll.u32 %v1475, 16
        %v1479 = vshrl.u32 %v1475, 16
        %v1480 = vshll.u32 %v1476, 16
        %v1481 = vshrl.u32 %v1476, 16
        %vm1482 = vc.u32 %v1474, %v1478
        %v1483 = vsel %vm1482, 1, 0
        %v1484 = vadd.s32 %v1474, %v1478
        %v1485 = vadd.s32 %v1477, %v1483
        %vm1486 = vc.u32 %v1484, %v1480
        %v1487 = vsel %vm1486, 1, 0
        %v1488 = vadd.s32 %v1484, %v1480
        %v1489 = vadd.s32 %v1485, %v1487
        %v1490 = vadd.s32 %v1489, %v1479
        %v1491 = vadd.s32 %v1490, %v1481
        %v1492 = vmul.u32 %v1447, %v1438
        %v1493 = vadd.s32 %v1469, %v1488
        %vm1494 = vc.u32 %v1469, %v1488
        %v1495 = vadd.s32 %v1491, 1
        %v1496 = vsel %vm1494, %v1495, %v1491
        %v1497 = vadd.s32 %v1492, %v1496
        %v1498 = vadd.s32 %v1497, 536870912
        %v1499 = vshrl.u32 %v1498, 30
        %v1500 = vshll.u32 %v1499, 30
        %v1501 = vsub.s32 %v1497, %v1500
        %vm1502 = vcmp.lt.s32.totalorder %v1501, 0
        %v1503 = vsub.s32 0, %v1501
        %v1504 = vsel %vm1502, %v1503, %v1501
        %v1505 = vclz %v1504
        %v1506 = vsub.s32 %v1505, 2
        %vm1507 = vcmp.gt.s32.totalorder 0, %v1506
        %v1508 = vsel %vm1507, 0, %v1506
        %v1509 = vsub.s32 32, %v1508
        %v1510 = vshll.u32 %v1501, %v1508
        %v1511 = vshrl.u32 %v1493, %v1509
        %v1512 = vor.u32 %v1510, %v1511
        %v1513 = vsub.s32 4294967266, %v1508
        %v1514 = vadd.s32 %v1513, 127
        %v1515 = vshll.u32 %v1514, 23
        %v1516 = vor.u32 4788187, %v1515
        %v1517 = vand.u32 2147483647, %v1516
        %v1519 = vcvt.s32.f32 %v1512
        %v1520 = vmul.f32 %v1519, %v1517
        %v1521 = vxor.u32 %v1520, 2147483648
        %v1522 = vsel %vm1401, %v1521, %v1520
        %v1523 = vsub.s32 4, %v1499
        %v1524 = vsel %vm1401, %v1523, %v1499
        %v1525 = vsel %vm1400, %v380, %v1522
        %v1526 = vsel %vm1400, 0, %v1524
        %v1527 = vmul.f32 %v1525, %v1525
        %v1528 = vmul.f32 %v1527, -0.001358992
        %v1529 = vadd.f32 %v1528, 0.041655596
        %v1530 = vmul.f32 %v1527, %v1529
        %v1531 = vadd.f32 %v1530, -0.4999988
        %v1532 = vmul.f32 %v1527, %v1531
        %v1533 = vadd.f32 1.0, %v1532
        %v1534 = vmul.f32 %v1525, %v1525
        %v1535 = vmul.f32 %v1534, -0.00019511016
        %v1536 = vadd.f32 %v1535, 0.008332121
        %v1537 = vmul.f32 %v1534, %v1536
        %v1538 = vadd.f32 %v1537, -0.16666654
        %v1539 = vmul.f32 %v1534, %v1538
        %v1540 = vadd.f32 %v1539, 1.0
        %v1541 = vmul.f32 %v1540, %v1525
        %vm1542 = vweird.f32 %v380
        %v1543 = vand.u32 %v1526, 3
        %vm1544 = vcmp.lt.s32.totalorder %v1543, 2
        %vm1545 = vcmp.eq.s32.totalorder %v1543, 0
        %v1546 = vxor.u32 %v1541, 2147483648
        %v1547 = vsel %vm1545, %v1533, %v1546
        %vm1548 = vcmp.eq.s32.totalorder %v1543, 2
        %v1549 = vxor.u32 %v1533, 2147483648
        %v1550 = vsel %vm1548, %v1549, %v1541
        %v1551 = vsel %vm1544, %v1547, %v1550
        %v1552 = vsel %vm1542, nan, %v1551
        %v1553 = vand.u32 2147483647, %v383
        %vm1554 = vcmp.le.f32.partialorder %v1553, 0.7853982
        %vm1555 = vcmp.lt.s32.totalorder %v383, 0
        %v1556 = vand.u32 %v383, 2139095040
        %v1557 = vshrl.u32 %v1556, 23
        %v1558 = vsub.s32 %v1557, 127
        %v1559 = vand.u32 2147483647, %v383
        %v1560 = vand.u32 %v1559, 8388607
        %v1561 = vor.u32 %v1560, 8388608
        %v1562 = vsub.s32 0, %v1561
        %v1563 = vadd.s32 %v1558, 1
        %vm1564 = vcmp.gt.s32.totalorder %v1563, 0
        %v1565 = vsel %vm1564, %v1563, 0
        %v1566 = vshrl.u32 %v1565, 5
        %v1567 = vand.u32 %v1565, 31
        %v1568 = vsub.s32 32, %v1567
        %v1569 = vshrl.u32 683565275, %v1568
        %v1570 = vshll.u32 683565275, %v1567
        %v1571 = vshrl.u32 2475754826, %v1568
        %v1572 = vor.u32 %v1570, %v1571
        %v1573 = vshll.u32 2475754826, %v1567
        %v1574 = vshrl.u32 2131351028, %v1568
        %v1575 = vor.u32 %v1573, %v1574
        %v1576 = vshll.u32 2131351028, %v1567
        %v1577 = vshrl.u32 2102212464, %v1568
        %v1578 = vor.u32 %v1576, %v1577
        %v1579 = vshll.u32 2102212464, %v1567
        %v1580 = vshrl.u32 920167782, %v1568
        %v1581 = vor.u32 %v1579, %v1580
        %v1582 = vshll.u32 920167782, %v1567
        %v1583 = vshrl.u32 1326507024, %v1568
        %v1584 = vor.u32 %v1582, %v1583
        %vm1585 = vcmp.lt.s32.totalorder %v1566, 1
        %vm1586 = vcmp.lt.s32.totalorder %v1566, 2
        %vm1587 = vcmp.lt.s32.totalorder %v1566, 3
        %vm1588 = vcmp.lt.s32.totalorder %v1566, 4
        %v1589 = vsel %vm1585, %v1569, %v1572
        %v1590 = vsel %vm1588, %v1578, 2102212464
        %v1591 = vsel %vm1587, %v1575, %v1590
        %v1592 = vsel %vm1586, %v1589, %v1591
        %v1593 = vsel %vm1585, %v1572, %v1575
        %v1594 = vsel %vm1588, %v1581, 920167782
        %v1595 = vsel %vm1587, %v1578, %v1594
        %v1596 = vsel %vm1586, %v1593, %v1595
        %v1597 = vsel %vm1585, %v1575, %v1578
        %v1598 = vsel %vm1588, %v1584, 1326507024
        %v1599 = vsel %vm1587, %v1581, %v1598
        %v1600 = vsel %vm1586, %v1597, %v1599
        %v1601 = vshll.u32 %v1561, 8
        %v1602 = vand.u32 %v1601, 65535
        %v1603 = vshrl.u32 %v1601, 16
        %v1604 = vand.u32 %v1600, 65535
        %v1605 = vshrl.u32 %v1600, 16
        %v1606 = vmul.u32 %v1602, %v1604
        %v1607 = vmul.u32 %v1602, %v1605
        %v1608 = vmul.u32 %v1603, %v1604
        %v1609 = vmul.u32 %v1603, %v1605
        %v1610 = vshll.u32 %v1607, 16
        %v1611 = vshrl.u32 %v1607, 16
        %v1612 = vshll.u32 %v1608, 16
        %v1613 = vshrl.u32 %v1608, 16
        %vm1614 = vc.u32 %v1606, %v1610
        %v1615 = vsel %vm1614, 1, 0
        %v1616 = vadd.s32 %v1606, %v1610
        %v1617 = vadd.s32 %v1609, %v1615
        %vm1618 = vc.u32 %v1616, %v1612
        %v1619 = vsel %vm1618, 1, 0
        %v1620 = vadd.s32 %v1616, %v1612
        %v1621 = vadd.s32 %v1617, %v1619
        %v1622 = vadd.s32 %v1621, %v1611
        %v1623 = vadd.s32 %v1622, %v1613
        %v1624 = vand.u32 %v1601, 65535
        %v1625 = vshrl.u32 %v1601, 16
        %v1626 = vand.u32 %v1596, 65535
        %v1627 = vshrl.u32 %v1596, 16
        %v1628 = vmul.u32 %v1624, %v1626
        %v1629 = vmul.u32 %v1624, %v1627
        %v1630 = vmul.u32 %v1625, %v1626
        %v1631 = vmul.u32 %v1625, %v1627
        %v1632 = vshll.u32 %v1629, 16
        %v1633 = vshrl.u32 %v1629, 16
        %v1634 = vshll.u32 %v1630, 16
        %v1635 = vshrl.u32 %v1630, 16
        %vm1636 = vc.u32 %v1628, %v1632
        %v1637 = vsel %vm1636, 1, 0
        %v1638 = vadd.s32 %v1628, %v1632
        %v1639 = vadd.s32 %v1631, %v1637
        %vm1640 = vc.u32 %v1638, %v1634
        %v1641 = vsel %vm1640, 1, 0
        %v1642 = vadd.s32 %v1638, %v1634
        %v1643 = vadd.s32 %v1639, %v1641
        %v1644 = vadd.s32 %v1643, %v1633
        %v1645 = vadd.s32 %v1644, %v1635
        %v1646 = vmul.u32 %v1601, %v1592
        %v1647 = vadd.s32 %v1623, %v1642
        %vm1648 = vc.u32 %v1623, %v1642
        %v1649 = vadd.s32 %v1645, 1
        %v1650 = vsel %vm1648, %v1649, %v1645
        %v1651 = vadd.s32 %v1646, %v1650
        %v1652 = vadd.s32 %v1651, 536870912
        %v1653 = vshrl.u32 %v1652, 30
        %v1654 = vshll.u32 %v1653, 30
        %v1655 = vsub.s32 %v1651, %v1654
        %vm1656 = vcmp.lt.s32.totalorder %v1655, 0
        %v1657 = vsub.s32 0, %v1655
        %v1658 = vsel %vm1656, %v1657, %v1655
        %v1659 = vclz %v1658
        %v1660 = vsub.s32 %v1659, 2
        %vm1661 = vcmp.gt.s32.totalorder 0, %v1660
        %v1662 = vsel %vm1661, 0, %v1660
        %v1663 = vsub.s32 32, %v1662
        %v1664 = vshll.u32 %v1655, %v1662
        %v1665 = vshrl.u32 %v1647, %v1663
        %v1666 = vor.u32 %v1664, %v1665
        %v1667 = vsub.s32 4294967266, %v1662
        %v1668 = vadd.s32 %v1667, 127
        %v1669 = vshll.u32 %v1668, 23
        %v1670 = vor.u32 4788187, %v1669
        %v1671 = vand.u32 2147483647, %v1670
        %v1673 = vcvt.s32.f32 %v1666
        %v1674 = vmul.f32 %v1673, %v1671
        %v1675 = vxor.u32 %v1674, 2147483648
        %v1676 = vsel %vm1555, %v1675, %v1674
        %v1677 = vsub.s32 4, %v1653
        %v1678 = vsel %vm1555, %v1677, %v1653
        %v1679 = vsel %vm1554, %v383, %v1676
        %v1680 = vsel %vm1554, 0, %v1678
        %v1681 = vmul.f32 %v1679, %v1679
        %v1682 = vmul.f32 %v1681, -0.001358992
        %v1683 = vadd.f32 %v1682, 0.041655596
        %v1684 = vmul.f32 %v1681, %v1683
        %v1685 = vadd.f32 %v1684, -0.4999988
        %v1686 = vmul.f32 %v1681, %v1685
        %v1687 = vadd.f32 1.0, %v1686
        %v1688 = vmul.f32 %v1679, %v1679
        %v1689 = vmul.f32 %v1688, -0.00019511016
        %v1690 = vadd.f32 %v1689, 0.008332121
        %v1691 = vmul.f32 %v1688, %v1690
        %v1692 = vadd.f32 %v1691, -0.16666654
        %v1693 = vmul.f32 %v1688, %v1692
        %v1694 = vadd.f32 %v1693, 1.0
        %v1695 = vmul.f32 %v1694, %v1679
        %vm1696 = vweird.f32 %v383
        %v1697 = vand.u32 %v1680, 3
        %vm1698 = vcmp.lt.s32.totalorder %v1697, 2
        %vm1699 = vcmp.eq.s32.totalorder %v1697, 0
        %v1700 = vxor.u32 %v1695, 2147483648
        %v1701 = vsel %vm1699, %v1687, %v1700
        %vm1702 = vcmp.eq.s32.totalorder %v1697, 2
        %v1703 = vxor.u32 %v1687, 2147483648
        %v1704 = vsel %vm1702, %v1703, %v1695
        %v1705 = vsel %vm1698, %v1701, %v1704
        %v1706 = vsel %vm1696, nan, %v1705
        %v1707 = vand.u32 2147483647, %v386
        %vm1708 = vcmp.le.f32.partialorder %v1707, 0.7853982
        %vm1709 = vcmp.lt.s32.totalorder %v386, 0
        %v1710 = vand.u32 %v386, 2139095040
        %v1711 = vshrl.u32 %v1710, 23
        %v1712 = vsub.s32 %v1711, 127
        %v1713 = vand.u32 2147483647, %v386
        %v1714 = vand.u32 %v1713, 8388607
        %v1715 = vor.u32 %v1714, 8388608
        %v1716 = vsub.s32 0, %v1715
        %v1717 = vadd.s32 %v1712, 1
        %vm1718 = vcmp.gt.s32.totalorder %v1717, 0
        %v1719 = vsel %vm1718, %v1717, 0
        %v1720 = vshrl.u32 %v1719, 5
        %v1721 = vand.u32 %v1719, 31
        %v1722 = vsub.s32 32, %v1721
        %v1723 = vshrl.u32 683565275, %v1722
        %v1724 = vshll.u32 683565275, %v1721
        %v1725 = vshrl.u32 2475754826, %v1722
        %v1726 = vor.u32 %v1724, %v1725
        %v1727 = vshll.u32 2475754826, %v1721
        %v1728 = vshrl.u32 2131351028, %v1722
        %v1729 = vor.u32 %v1727, %v1728
        %v1730 = vshll.u32 2131351028, %v1721
        %v1731 = vshrl.u32 2102212464, %v1722
        %v1732 = vor.u32 %v1730, %v1731
        %v1733 = vshll.u32 2102212464, %v1721
        %v1734 = vshrl.u32 920167782, %v1722
        %v1735 = vor.u32 %v1733, %v1734
        %v1736 = vshll.u32 920167782, %v1721
        %v1737 = vshrl.u32 1326507024, %v1722
        %v1738 = vor.u32 %v1736, %v1737
        %vm1739 = vcmp.lt.s32.totalorder %v1720, 1
        %vm1740 = vcmp.lt.s32.totalorder %v1720, 2
        %vm1741 = vcmp.lt.s32.totalorder %v1720, 3
        %vm1742 = vcmp.lt.s32.totalorder %v1720, 4
        %v1743 = vsel %vm1739, %v1723, %v1726
        %v1744 = vsel %vm1742, %v1732, 2102212464
        %v1745 = vsel %vm1741, %v1729, %v1744
        %v1746 = vsel %vm1740, %v1743, %v1745
        %v1747 = vsel %vm1739, %v1726, %v1729
        %v1748 = vsel %vm1742, %v1735, 920167782
        %v1749 = vsel %vm1741, %v1732, %v1748
        %v1750 = vsel %vm1740, %v1747, %v1749
        %v1751 = vsel %vm1739, %v1729, %v1732
        %v1752 = vsel %vm1742, %v1738, 1326507024
        %v1753 = vsel %vm1741, %v1735, %v1752
        %v1754 = vsel %vm1740, %v1751, %v1753
        %v1755 = vshll.u32 %v1715, 8
        %v1756 = vand.u32 %v1755, 65535
        %v1757 = vshrl.u32 %v1755, 16
        %v1758 = vand.u32 %v1754, 65535
        %v1759 = vshrl.u32 %v1754, 16
        %v1760 = vmul.u32 %v1756, %v1758
        %v1761 = vmul.u32 %v1756, %v1759
        %v1762 = vmul.u32 %v1757, %v1758
        %v1763 = vmul.u32 %v1757, %v1759
        %v1764 = vshll.u32 %v1761, 16
        %v1765 = vshrl.u32 %v1761, 16
        %v1766 = vshll.u32 %v1762, 16
        %v1767 = vshrl.u32 %v1762, 16
        %vm1768 = vc.u32 %v1760, %v1764
        %v1769 = vsel %vm1768, 1, 0
        %v1770 = vadd.s32 %v1760, %v1764
        %v1771 = vadd.s32 %v1763, %v1769
        %vm1772 = vc.u32 %v1770, %v1766
        %v1773 = vsel %vm1772, 1, 0
        %v1774 = vadd.s32 %v1770, %v1766
        %v1775 = vadd.s32 %v1771, %v1773
        %v1776 = vadd.s32 %v1775, %v1765
        %v1777 = vadd.s32 %v1776, %v1767
        %v1778 = vand.u32 %v1755, 65535
        %v1779 = vshrl.u32 %v1755, 16
        %v1780 = vand.u32 %v1750, 65535
        %v1781 = vshrl.u32 %v1750, 16
        %v1782 = vmul.u32 %v1778, %v1780
        %v1783 = vmul.u32 %v1778, %v1781
        %v1784 = vmul.u32 %v1779, %v1780
        %v1785 = vmul.u32 %v1779, %v1781
        %v1786 = vshll.u32 %v1783, 16
        %v1787 = vshrl.u32 %v1783, 16
        %v1788 = vshll.u32 %v1784, 16
        %v1789 = vshrl.u32 %v1784, 16
        %vm1790 = vc.u32 %v1782, %v1786
        %v1791 = vsel %vm1790, 1, 0
        %v1792 = vadd.s32 %v1782, %v1786
        %v1793 = vadd.s32 %v1785, %v1791
        %vm1794 = vc.u32 %v1792, %v1788
        %v1795 = vsel %vm1794, 1, 0
        %v1796 = vadd.s32 %v1792, %v1788
        %v1797 = vadd.s32 %v1793, %v1795
        %v1798 = vadd.s32 %v1797, %v1787
        %v1799 = vadd.s32 %v1798, %v1789
        %v1800 = vmul.u32 %v1755, %v1746
        %v1801 = vadd.s32 %v1777, %v1796
        %vm1802 = vc.u32 %v1777, %v1796
        %v1803 = vadd.s32 %v1799, 1
        %v1804 = vsel %vm1802, %v1803, %v1799
        %v1805 = vadd.s32 %v1800, %v1804
        %v1806 = vadd.s32 %v1805, 536870912
        %v1807 = vshrl.u32 %v1806, 30
        %v1808 = vshll.u32 %v1807, 30
        %v1809 = vsub.s32 %v1805, %v1808
        %vm1810 = vcmp.lt.s32.totalorder %v1809, 0
        %v1811 = vsub.s32 0, %v1809
        %v1812 = vsel %vm1810, %v1811, %v1809
        %v1813 = vclz %v1812
        %v1814 = vsub.s32 %v1813, 2
        %vm1815 = vcmp.gt.s32.totalorder 0, %v1814
        %v1816 = vsel %vm1815, 0, %v1814
        %v1817 = vsub.s32 32, %v1816
        %v1818 = vshll.u32 %v1809, %v1816
        %v1819 = vshrl.u32 %v1801, %v1817
        %v1820 = vor.u32 %v1818, %v1819
        %v1821 = vsub.s32 4294967266, %v1816
        %v1822 = vadd.s32 %v1821, 127
        %v1823 = vshll.u32 %v1822, 23
        %v1824 = vor.u32 4788187, %v1823
        %v1825 = vand.u32 2147483647, %v1824
        %v1827 = vcvt.s32.f32 %v1820
        %v1828 = vmul.f32 %v1827, %v1825
        %v1829 = vxor.u32 %v1828, 2147483648
        %v1830 = vsel %vm1709, %v1829, %v1828
        %v1831 = vsub.s32 4, %v1807
        %v1832 = vsel %vm1709, %v1831, %v1807
        %v1833 = vsel %vm1708, %v386, %v1830
        %v1834 = vsel %vm1708, 0, %v1832
        %v1835 = vmul.f32 %v1833, %v1833
        %v1836 = vmul.f32 %v1835, -0.001358992
        %v1837 = vadd.f32 %v1836, 0.041655596
        %v1838 = vmul.f32 %v1835, %v1837
        %v1839 = vadd.f32 %v1838, -0.4999988
        %v1840 = vmul.f32 %v1835, %v1839
        %v1841 = vadd.f32 1.0, %v1840
        %v1842 = vmul.f32 %v1833, %v1833
        %v1843 = vmul.f32 %v1842, -0.00019511016
        %v1844 = vadd.f32 %v1843, 0.008332121
        %v1845 = vmul.f32 %v1842, %v1844
        %v1846 = vadd.f32 %v1845, -0.16666654
        %v1847 = vmul.f32 %v1842, %v1846
        %v1848 = vadd.f32 %v1847, 1.0
        %v1849 = vmul.f32 %v1848, %v1833
        %vm1850 = vweird.f32 %v386
        %v1851 = vand.u32 %v1834, 3
        %vm1852 = vcmp.lt.s32.totalorder %v1851, 2
        %vm1853 = vcmp.eq.s32.totalorder %v1851, 0
        %v1854 = vxor.u32 %v1849, 2147483648
        %v1855 = vsel %vm1853, %v1841, %v1854
        %vm1856 = vcmp.eq.s32.totalorder %v1851, 2
        %v1857 = vxor.u32 %v1841, 2147483648
        %v1858 = vsel %vm1856, %v1857, %v1849
        %v1859 = vsel %vm1852, %v1855, %v1858
        %v1860 = vsel %vm1850, nan, %v1859
        %v1861 = vand.u32 2147483647, %v389
        %vm1862 = vcmp.le.f32.partialorder %v1861, 0.7853982
        %vm1863 = vcmp.lt.s32.totalorder %v389, 0
        %v1864 = vand.u32 %v389, 2139095040
        %v1865 = vshrl.u32 %v1864, 23
        %v1866 = vsub.s32 %v1865, 127
        %v1867 = vand.u32 2147483647, %v389
        %v1868 = vand.u32 %v1867, 8388607
        %v1869 = vor.u32 %v1868, 8388608
        %v1870 = vsub.s32 0, %v1869
        %v1871 = vadd.s32 %v1866, 1
        %vm1872 = vcmp.gt.s32.totalorder %v1871, 0
        %v1873 = vsel %vm1872, %v1871, 0
        %v1874 = vshrl.u32 %v1873, 5
        %v1875 = vand.u32 %v1873, 31
        %v1876 = vsub.s32 32, %v1875
        %v1877 = vshrl.u32 683565275, %v1876
        %v1878 = vshll.u32 683565275, %v1875
        %v1879 = vshrl.u32 2475754826, %v1876
        %v1880 = vor.u32 %v1878, %v1879
        %v1881 = vshll.u32 2475754826, %v1875
        %v1882 = vshrl.u32 2131351028, %v1876
        %v1883 = vor.u32 %v1881, %v1882
        %v1884 = vshll.u32 2131351028, %v1875
        %v1885 = vshrl.u32 2102212464, %v1876
        %v1886 = vor.u32 %v1884, %v1885
        %v1887 = vshll.u32 2102212464, %v1875
        %v1888 = vshrl.u32 920167782, %v1876
        %v1889 = vor.u32 %v1887, %v1888
        %v1890 = vshll.u32 920167782, %v1875
        %v1891 = vshrl.u32 1326507024, %v1876
        %v1892 = vor.u32 %v1890, %v1891
        %vm1893 = vcmp.lt.s32.totalorder %v1874, 1
        %vm1894 = vcmp.lt.s32.totalorder %v1874, 2
        %vm1895 = vcmp.lt.s32.totalorder %v1874, 3
        %vm1896 = vcmp.lt.s32.totalorder %v1874, 4
        %v1897 = vsel %vm1893, %v1877, %v1880
        %v1898 = vsel %vm1896, %v1886, 2102212464
        %v1899 = vsel %vm1895, %v1883, %v1898
        %v1900 = vsel %vm1894, %v1897, %v1899
        %v1901 = vsel %vm1893, %v1880, %v1883
        %v1902 = vsel %vm1896, %v1889, 920167782
        %v1903 = vsel %vm1895, %v1886, %v1902
        %v1904 = vsel %vm1894, %v1901, %v1903
        %v1905 = vsel %vm1893, %v1883, %v1886
        %v1906 = vsel %vm1896, %v1892, 1326507024
        %v1907 = vsel %vm1895, %v1889, %v1906
        %v1908 = vsel %vm1894, %v1905, %v1907
        %v1909 = vshll.u32 %v1869, 8
        %v1910 = vand.u32 %v1909, 65535
        %v1911 = vshrl.u32 %v1909, 16
        %v1912 = vand.u32 %v1908, 65535
        %v1913 = vshrl.u32 %v1908, 16
        %v1914 = vmul.u32 %v1910, %v1912
        %v1915 = vmul.u32 %v1910, %v1913
        %v1916 = vmul.u32 %v1911, %v1912
        %v1917 = vmul.u32 %v1911, %v1913
        %v1918 = vshll.u32 %v1915, 16
        %v1919 = vshrl.u32 %v1915, 16
        %v1920 = vshll.u32 %v1916, 16
        %v1921 = vshrl.u32 %v1916, 16
        %vm1922 = vc.u32 %v1914, %v1918
        %v1923 = vsel %vm1922, 1, 0
        %v1924 = vadd.s32 %v1914, %v1918
        %v1925 = vadd.s32 %v1917, %v1923
        %vm1926 = vc.u32 %v1924, %v1920
        %v1927 = vsel %vm1926, 1, 0
        %v1928 = vadd.s32 %v1924, %v1920
        %v1929 = vadd.s32 %v1925, %v1927
        %v1930 = vadd.s32 %v1929, %v1919
        %v1931 = vadd.s32 %v1930, %v1921
        %v1932 = vand.u32 %v1909, 65535
        %v1933 = vshrl.u32 %v1909, 16
        %v1934 = vand.u32 %v1904, 65535
        %v1935 = vshrl.u32 %v1904, 16
        %v1936 = vmul.u32 %v1932, %v1934
        %v1937 = vmul.u32 %v1932, %v1935
        %v1938 = vmul.u32 %v1933, %v1934
        %v1939 = vmul.u32 %v1933, %v1935
        %v1940 = vshll.u32 %v1937, 16
        %v1941 = vshrl.u32 %v1937, 16
        %v1942 = vshll.u32 %v1938, 16
        %v1943 = vshrl.u32 %v1938, 16
        %vm1944 = vc.u32 %v1936, %v1940
        %v1945 = vsel %vm1944, 1, 0
        %v1946 = vadd.s32 %v1936, %v1940
        %v1947 = vadd.s32 %v1939, %v1945
        %vm1948 = vc.u32 %v1946, %v1942
        %v1949 = vsel %vm1948, 1, 0
        %v1950 = vadd.s32 %v1946, %v1942
        %v1951 = vadd.s32 %v1947, %v1949
        %v1952 = vadd.s32 %v1951, %v1941
        %v1953 = vadd.s32 %v1952, %v1943
        %v1954 = vmul.u32 %v1909, %v1900
        %v1955 = vadd.s32 %v1931, %v1950
        %vm1956 = vc.u32 %v1931, %v1950
        %v1957 = vadd.s32 %v1953, 1
        %v1958 = vsel %vm1956, %v1957, %v1953
        %v1959 = vadd.s32 %v1954, %v1958
        %v1960 = vadd.s32 %v1959, 536870912
        %v1961 = vshrl.u32 %v1960, 30
        %v1962 = vshll.u32 %v1961, 30
        %v1963 = vsub.s32 %v1959, %v1962
        %vm1964 = vcmp.lt.s32.totalorder %v1963, 0
        %v1965 = vsub.s32 0, %v1963
        %v1966 = vsel %vm1964, %v1965, %v1963
        %v1967 = vclz %v1966
        %v1968 = vsub.s32 %v1967, 2
        %vm1969 = vcmp.gt.s32.totalorder 0, %v1968
        %v1970 = vsel %vm1969, 0, %v1968
        %v1971 = vsub.s32 32, %v1970
        %v1972 = vshll.u32 %v1963, %v1970
        %v1973 = vshrl.u32 %v1955, %v1971
        %v1974 = vor.u32 %v1972, %v1973
        %v1975 = vsub.s32 4294967266, %v1970
        %v1976 = vadd.s32 %v1975, 127
        %v1977 = vshll.u32 %v1976, 23
        %v1978 = vor.u32 4788187, %v1977
        %v1979 = vand.u32 2147483647, %v1978
        %v1981 = vcvt.s32.f32 %v1974
        %v1982 = vmul.f32 %v1981, %v1979
        %v1983 = vxor.u32 %v1982, 2147483648
        %v1984 = vsel %vm1863, %v1983, %v1982
        %v1985 = vsub.s32 4, %v1961
        %v1986 = vsel %vm1863, %v1985, %v1961
        %v1987 = vsel %vm1862, %v389, %v1984
        %v1988 = vsel %vm1862, 0, %v1986
        %v1989 = vmul.f32 %v1987, %v1987
        %v1990 = vmul.f32 %v1989, -0.001358992
        %v1991 = vadd.f32 %v1990, 0.041655596
        %v1992 = vmul.f32 %v1989, %v1991
        %v1993 = vadd.f32 %v1992, -0.4999988
        %v1994 = vmul.f32 %v1989, %v1993
        %v1995 = vadd.f32 1.0, %v1994
        %v1996 = vmul.f32 %v1987, %v1987
        %v1997 = vmul.f32 %v1996, -0.00019511016
        %v1998 = vadd.f32 %v1997, 0.008332121
        %v1999 = vmul.f32 %v1996, %v1998
        %v2000 = vadd.f32 %v1999, -0.16666654
        %v2001 = vmul.f32 %v1996, %v2000
        %v2002 = vadd.f32 %v2001, 1.0
        %v2003 = vmul.f32 %v2002, %v1987
        %vm2004 = vweird.f32 %v389
        %v2005 = vand.u32 %v1988, 3
        %vm2006 = vcmp.lt.s32.totalorder %v2005, 2
        %vm2007 = vcmp.eq.s32.totalorder %v2005, 0
        %v2008 = vxor.u32 %v2003, 2147483648
        %v2009 = vsel %vm2007, %v1995, %v2008
        %vm2010 = vcmp.eq.s32.totalorder %v2005, 2
        %v2011 = vxor.u32 %v1995, 2147483648
        %v2012 = vsel %vm2010, %v2011, %v2003
        %v2013 = vsel %vm2006, %v2009, %v2012
        %v2014 = vsel %vm2004, nan, %v2013
        %v2015 = vand.u32 2147483647, %v392
        %vm2016 = vcmp.le.f32.partialorder %v2015, 0.7853982
        %vm2017 = vcmp.lt.s32.totalorder %v392, 0
        %v2018 = vand.u32 %v392, 2139095040
        %v2019 = vshrl.u32 %v2018, 23
        %v2020 = vsub.s32 %v2019, 127
        %v2021 = vand.u32 2147483647, %v392
        %v2022 = vand.u32 %v2021, 8388607
        %v2023 = vor.u32 %v2022, 8388608
        %v2024 = vsub.s32 0, %v2023
        %v2025 = vadd.s32 %v2020, 1
        %vm2026 = vcmp.gt.s32.totalorder %v2025, 0
        %v2027 = vsel %vm2026, %v2025, 0
        %v2028 = vshrl.u32 %v2027, 5
        %v2029 = vand.u32 %v2027, 31
        %v2030 = vsub.s32 32, %v2029
        %v2031 = vshrl.u32 683565275, %v2030
        %v2032 = vshll.u32 683565275, %v2029
        %v2033 = vshrl.u32 2475754826, %v2030
        %v2034 = vor.u32 %v2032, %v2033
        %v2035 = vshll.u32 2475754826, %v2029
        %v2036 = vshrl.u32 2131351028, %v2030
        %v2037 = vor.u32 %v2035, %v2036
        %v2038 = vshll.u32 2131351028, %v2029
        %v2039 = vshrl.u32 2102212464, %v2030
        %v2040 = vor.u32 %v2038, %v2039
        %v2041 = vshll.u32 2102212464, %v2029
        %v2042 = vshrl.u32 920167782, %v2030
        %v2043 = vor.u32 %v2041, %v2042
        %v2044 = vshll.u32 920167782, %v2029
        %v2045 = vshrl.u32 1326507024, %v2030
        %v2046 = vor.u32 %v2044, %v2045
        %vm2047 = vcmp.lt.s32.totalorder %v2028, 1
        %vm2048 = vcmp.lt.s32.totalorder %v2028, 2
        %vm2049 = vcmp.lt.s32.totalorder %v2028, 3
        %vm2050 = vcmp.lt.s32.totalorder %v2028, 4
        %v2051 = vsel %vm2047, %v2031, %v2034
        %v2052 = vsel %vm2050, %v2040, 2102212464
        %v2053 = vsel %vm2049, %v2037, %v2052
        %v2054 = vsel %vm2048, %v2051, %v2053
        %v2055 = vsel %vm2047, %v2034, %v2037
        %v2056 = vsel %vm2050, %v2043, 920167782
        %v2057 = vsel %vm2049, %v2040, %v2056
        %v2058 = vsel %vm2048, %v2055, %v2057
        %v2059 = vsel %vm2047, %v2037, %v2040
        %v2060 = vsel %vm2050, %v2046, 1326507024
        %v2061 = vsel %vm2049, %v2043, %v2060
        %v2062 = vsel %vm2048, %v2059, %v2061
        %v2063 = vshll.u32 %v2023, 8
        %v2064 = vand.u32 %v2063, 65535
        %v2065 = vshrl.u32 %v2063, 16
        %v2066 = vand.u32 %v2062, 65535
        %v2067 = vshrl.u32 %v2062, 16
        %v2068 = vmul.u32 %v2064, %v2066
        %v2069 = vmul.u32 %v2064, %v2067
        %v2070 = vmul.u32 %v2065, %v2066
        %v2071 = vmul.u32 %v2065, %v2067
        %v2072 = vshll.u32 %v2069, 16
        %v2073 = vshrl.u32 %v2069, 16
        %v2074 = vshll.u32 %v2070, 16
        %v2075 = vshrl.u32 %v2070, 16
        %vm2076 = vc.u32 %v2068, %v2072
        %v2077 = vsel %vm2076, 1, 0
        %v2078 = vadd.s32 %v2068, %v2072
        %v2079 = vadd.s32 %v2071, %v2077
        %vm2080 = vc.u32 %v2078, %v2074
        %v2081 = vsel %vm2080, 1, 0
        %v2082 = vadd.s32 %v2078, %v2074
        %v2083 = vadd.s32 %v2079, %v2081
        %v2084 = vadd.s32 %v2083, %v2073
        %v2085 = vadd.s32 %v2084, %v2075
        %v2086 = vand.u32 %v2063, 65535
        %v2087 = vshrl.u32 %v2063, 16
        %v2088 = vand.u32 %v2058, 65535
        %v2089 = vshrl.u32 %v2058, 16
        %v2090 = vmul.u32 %v2086, %v2088
        %v2091 = vmul.u32 %v2086, %v2089
        %v2092 = vmul.u32 %v2087, %v2088
        %v2093 = vmul.u32 %v2087, %v2089
        %v2094 = vshll.u32 %v2091, 16
        %v2095 = vshrl.u32 %v2091, 16
        %v2096 = vshll.u32 %v2092, 16
        %v2097 = vshrl.u32 %v2092, 16
        %vm2098 = vc.u32 %v2090, %v2094
        %v2099 = vsel %vm2098, 1, 0
        %v2100 = vadd.s32 %v2090, %v2094
        %v2101 = vadd.s32 %v2093, %v2099
        %vm2102 = vc.u32 %v2100, %v2096
        %v2103 = vsel %vm2102, 1, 0
        %v2104 = vadd.s32 %v2100, %v2096
        %v2105 = vadd.s32 %v2101, %v2103
        %v2106 = vadd.s32 %v2105, %v2095
        %v2107 = vadd.s32 %v2106, %v2097
        %v2108 = vmul.u32 %v2063, %v2054
        %v2109 = vadd.s32 %v2085, %v2104
        %vm2110 = vc.u32 %v2085, %v2104
        %v2111 = vadd.s32 %v2107, 1
        %v2112 = vsel %vm2110, %v2111, %v2107
        %v2113 = vadd.s32 %v2108, %v2112
        %v2114 = vadd.s32 %v2113, 536870912
        %v2115 = vshrl.u32 %v2114, 30
        %v2116 = vshll.u32 %v2115, 30
        %v2117 = vsub.s32 %v2113, %v2116
        %vm2118 = vcmp.lt.s32.totalorder %v2117, 0
        %v2119 = vsub.s32 0, %v2117
        %v2120 = vsel %vm2118, %v2119, %v2117
        %v2121 = vclz %v2120
        %v2122 = vsub.s32 %v2121, 2
        %vm2123 = vcmp.gt.s32.totalorder 0, %v2122
        %v2124 = vsel %vm2123, 0, %v2122
        %v2125 = vsub.s32 32, %v2124
        %v2126 = vshll.u32 %v2117, %v2124
        %v2127 = vshrl.u32 %v2109, %v2125
        %v2128 = vor.u32 %v2126, %v2127
        %v2129 = vsub.s32 4294967266, %v2124
        %v2130 = vadd.s32 %v2129, 127
        %v2131 = vshll.u32 %v2130, 23
        %v2132 = vor.u32 4788187, %v2131
        %v2133 = vand.u32 2147483647, %v2132
        %v2135 = vcvt.s32.f32 %v2128
        %v2136 = vmul.f32 %v2135, %v2133
        %v2137 = vxor.u32 %v2136, 2147483648
        %v2138 = vsel %vm2017, %v2137, %v2136
        %v2139 = vsub.s32 4, %v2115
        %v2140 = vsel %vm2017, %v2139, %v2115
        %v2141 = vsel %vm2016, %v392, %v2138
        %v2142 = vsel %vm2016, 0, %v2140
        %v2143 = vmul.f32 %v2141, %v2141
        %v2144 = vmul.f32 %v2143, -0.001358992
        %v2145 = vadd.f32 %v2144, 0.041655596
        %v2146 = vmul.f32 %v2143, %v2145
        %v2147 = vadd.f32 %v2146, -0.4999988
        %v2148 = vmul.f32 %v2143, %v2147
        %v2149 = vadd.f32 1.0, %v2148
        %v2150 = vmul.f32 %v2141, %v2141
        %v2151 = vmul.f32 %v2150, -0.00019511016
        %v2152 = vadd.f32 %v2151, 0.008332121
        %v2153 = vmul.f32 %v2150, %v2152
        %v2154 = vadd.f32 %v2153, -0.16666654
        %v2155 = vmul.f32 %v2150, %v2154
        %v2156 = vadd.f32 %v2155, 1.0
        %v2157 = vmul.f32 %v2156, %v2141
        %vm2158 = vweird.f32 %v392
        %v2159 = vand.u32 %v2142, 3
        %vm2160 = vcmp.lt.s32.totalorder %v2159, 2
        %vm2161 = vcmp.eq.s32.totalorder %v2159, 0
        %v2162 = vxor.u32 %v2157, 2147483648
        %v2163 = vsel %vm2161, %v2149, %v2162
        %vm2164 = vcmp.eq.s32.totalorder %v2159, 2
        %v2165 = vxor.u32 %v2149, 2147483648
        %v2166 = vsel %vm2164, %v2165, %v2157
        %v2167 = vsel %vm2160, %v2163, %v2166
        %v2168 = vsel %vm2158, nan, %v2167
        %v2169 = vand.u32 2147483647, %v395
        %vm2170 = vcmp.le.f32.partialorder %v2169, 0.7853982
        %vm2171 = vcmp.lt.s32.totalorder %v395, 0
        %v2172 = vand.u32 %v395, 2139095040
        %v2173 = vshrl.u32 %v2172, 23
        %v2174 = vsub.s32 %v2173, 127
        %v2175 = vand.u32 2147483647, %v395
        %v2176 = vand.u32 %v2175, 8388607
        %v2177 = vor.u32 %v2176, 8388608
        %v2178 = vsub.s32 0, %v2177
        %v2179 = vadd.s32 %v2174, 1
        %vm2180 = vcmp.gt.s32.totalorder %v2179, 0
        %v2181 = vsel %vm2180, %v2179, 0
        %v2182 = vshrl.u32 %v2181, 5
        %v2183 = vand.u32 %v2181, 31
        %v2184 = vsub.s32 32, %v2183
        %v2185 = vshrl.u32 683565275, %v2184
        %v2186 = vshll.u32 683565275, %v2183
        %v2187 = vshrl.u32 2475754826, %v2184
        %v2188 = vor.u32 %v2186, %v2187
        %v2189 = vshll.u32 2475754826, %v2183
        %v2190 = vshrl.u32 2131351028, %v2184
        %v2191 = vor.u32 %v2189, %v2190
        %v2192 = vshll.u32 2131351028, %v2183
        %v2193 = vshrl.u32 2102212464, %v2184
        %v2194 = vor.u32 %v2192, %v2193
        %v2195 = vshll.u32 2102212464, %v2183
        %v2196 = vshrl.u32 920167782, %v2184
        %v2197 = vor.u32 %v2195, %v2196
        %v2198 = vshll.u32 920167782, %v2183
        %v2199 = vshrl.u32 1326507024, %v2184
        %v2200 = vor.u32 %v2198, %v2199
        %vm2201 = vcmp.lt.s32.totalorder %v2182, 1
        %vm2202 = vcmp.lt.s32.totalorder %v2182, 2
        %vm2203 = vcmp.lt.s32.totalorder %v2182, 3
        %vm2204 = vcmp.lt.s32.totalorder %v2182, 4
        %v2205 = vsel %vm2201, %v2185, %v2188
        %v2206 = vsel %vm2204, %v2194, 2102212464
        %v2207 = vsel %vm2203, %v2191, %v2206
        %v2208 = vsel %vm2202, %v2205, %v2207
        %v2209 = vsel %vm2201, %v2188, %v2191
        %v2210 = vsel %vm2204, %v2197, 920167782
        %v2211 = vsel %vm2203, %v2194, %v2210
        %v2212 = vsel %vm2202, %v2209, %v2211
        %v2213 = vsel %vm2201, %v2191, %v2194
        %v2214 = vsel %vm2204, %v2200, 1326507024
        %v2215 = vsel %vm2203, %v2197, %v2214
        %v2216 = vsel %vm2202, %v2213, %v2215
        %v2217 = vshll.u32 %v2177, 8
        %v2218 = vand.u32 %v2217, 65535
        %v2219 = vshrl.u32 %v2217, 16
        %v2220 = vand.u32 %v2216, 65535
        %v2221 = vshrl.u32 %v2216, 16
        %v2222 = vmul.u32 %v2218, %v2220
        %v2223 = vmul.u32 %v2218, %v2221
        %v2224 = vmul.u32 %v2219, %v2220
        %v2225 = vmul.u32 %v2219, %v2221
        %v2226 = vshll.u32 %v2223, 16
        %v2227 = vshrl.u32 %v2223, 16
        %v2228 = vshll.u32 %v2224, 16
        %v2229 = vshrl.u32 %v2224, 16
        %vm2230 = vc.u32 %v2222, %v2226
        %v2231 = vsel %vm2230, 1, 0
        %v2232 = vadd.s32 %v2222, %v2226
        %v2233 = vadd.s32 %v2225, %v2231
        %vm2234 = vc.u32 %v2232, %v2228
        %v2235 = vsel %vm2234, 1, 0
        %v2236 = vadd.s32 %v2232, %v2228
        %v2237 = vadd.s32 %v2233, %v2235
        %v2238 = vadd.s32 %v2237, %v2227
        %v2239 = vadd.s32 %v2238, %v2229
        %v2240 = vand.u32 %v2217, 65535
        %v2241 = vshrl.u32 %v2217, 16
        %v2242 = vand.u32 %v2212, 65535
        %v2243 = vshrl.u32 %v2212, 16
        %v2244 = vmul.u32 %v2240, %v2242
        %v2245 = vmul.u32 %v2240, %v2243
        %v2246 = vmul.u32 %v2241, %v2242
        %v2247 = vmul.u32 %v2241, %v2243
        %v2248 = vshll.u32 %v2245, 16
        %v2249 = vshrl.u32 %v2245, 16
        %v2250 = vshll.u32 %v2246, 16
        %v2251 = vshrl.u32 %v2246, 16
        %vm2252 = vc.u32 %v2244, %v2248
        %v2253 = vsel %vm2252, 1, 0
        %v2254 = vadd.s32 %v2244, %v2248
        %v2255 = vadd.s32 %v2247, %v2253
        %vm2256 = vc.u32 %v2254, %v2250
        %v2257 = vsel %vm2256, 1, 0
        %v2258 = vadd.s32 %v2254, %v2250
        %v2259 = vadd.s32 %v2255, %v2257
        %v2260 = vadd.s32 %v2259, %v2249
        %v2261 = vadd.s32 %v2260, %v2251
        %v2262 = vmul.u32 %v2217, %v2208
        %v2263 = vadd.s32 %v2239, %v2258
        %vm2264 = vc.u32 %v2239, %v2258
        %v2265 = vadd.s32 %v2261, 1
        %v2266 = vsel %vm2264, %v2265, %v2261
        %v2267 = vadd.s32 %v2262, %v2266
        %v2268 = vadd.s32 %v2267, 536870912
        %v2269 = vshrl.u32 %v2268, 30
        %v2270 = vshll.u32 %v2269, 30
        %v2271 = vsub.s32 %v2267, %v2270
        %vm2272 = vcmp.lt.s32.totalorder %v2271, 0
        %v2273 = vsub.s32 0, %v2271
        %v2274 = vsel %vm2272, %v2273, %v2271
        %v2275 = vclz %v2274
        %v2276 = vsub.s32 %v2275, 2
        %vm2277 = vcmp.gt.s32.totalorder 0, %v2276
        %v2278 = vsel %vm2277, 0, %v2276
        %v2279 = vsub.s32 32, %v2278
        %v2280 = vshll.u32 %v2271, %v2278
        %v2281 = vshrl.u32 %v2263, %v2279
        %v2282 = vor.u32 %v2280, %v2281
        %v2283 = vsub.s32 4294967266, %v2278
        %v2284 = vadd.s32 %v2283, 127
        %v2285 = vshll.u32 %v2284, 23
        %v2286 = vor.u32 4788187, %v2285
        %v2287 = vand.u32 2147483647, %v2286
        %v2289 = vcvt.s32.f32 %v2282
        %v2290 = vmul.f32 %v2289, %v2287
        %v2291 = vxor.u32 %v2290, 2147483648
        %v2292 = vsel %vm2171, %v2291, %v2290
        %v2293 = vsub.s32 4, %v2269
        %v2294 = vsel %vm2171, %v2293, %v2269
        %v2295 = vsel %vm2170, %v395, %v2292
        %v2296 = vsel %vm2170, 0, %v2294
        %v2297 = vmul.f32 %v2295, %v2295
        %v2298 = vmul.f32 %v2297, -0.001358992
        %v2299 = vadd.f32 %v2298, 0.041655596
        %v2300 = vmul.f32 %v2297, %v2299
        %v2301 = vadd.f32 %v2300, -0.4999988
        %v2302 = vmul.f32 %v2297, %v2301
        %v2303 = vadd.f32 1.0, %v2302
        %v2304 = vmul.f32 %v2295, %v2295
        %v2305 = vmul.f32 %v2304, -0.00019511016
        %v2306 = vadd.f32 %v2305, 0.008332121
        %v2307 = vmul.f32 %v2304, %v2306
        %v2308 = vadd.f32 %v2307, -0.16666654
        %v2309 = vmul.f32 %v2304, %v2308
        %v2310 = vadd.f32 %v2309, 1.0
        %v2311 = vmul.f32 %v2310, %v2295
        %vm2312 = vweird.f32 %v395
        %v2313 = vand.u32 %v2296, 3
        %vm2314 = vcmp.lt.s32.totalorder %v2313, 2
        %vm2315 = vcmp.eq.s32.totalorder %v2313, 0
        %v2316 = vxor.u32 %v2311, 2147483648
        %v2317 = vsel %vm2315, %v2303, %v2316
        %vm2318 = vcmp.eq.s32.totalorder %v2313, 2
        %v2319 = vxor.u32 %v2303, 2147483648
        %v2320 = vsel %vm2318, %v2319, %v2311
        %v2321 = vsel %vm2314, %v2317, %v2320
        %v2322 = vsel %vm2312, nan, %v2321
        %v2323 = vand.u32 2147483647, %v398
        %vm2324 = vcmp.le.f32.partialorder %v2323, 0.7853982
        %vm2325 = vcmp.lt.s32.totalorder %v398, 0
        %v2326 = vand.u32 %v398, 2139095040
        %v2327 = vshrl.u32 %v2326, 23
        %v2328 = vsub.s32 %v2327, 127
        %v2329 = vand.u32 2147483647, %v398
        %v2330 = vand.u32 %v2329, 8388607
        %v2331 = vor.u32 %v2330, 8388608
        %v2332 = vsub.s32 0, %v2331
        %v2333 = vadd.s32 %v2328, 1
        %vm2334 = vcmp.gt.s32.totalorder %v2333, 0
        %v2335 = vsel %vm2334, %v2333, 0
        %v2336 = vshrl.u32 %v2335, 5
        %v2337 = vand.u32 %v2335, 31
        %v2338 = vsub.s32 32, %v2337
        %v2339 = vshrl.u32 683565275, %v2338
        %v2340 = vshll.u32 683565275, %v2337
        %v2341 = vshrl.u32 2475754826, %v2338
        %v2342 = vor.u32 %v2340, %v2341
        %v2343 = vshll.u32 2475754826, %v2337
        %v2344 = vshrl.u32 2131351028, %v2338
        %v2345 = vor.u32 %v2343, %v2344
        %v2346 = vshll.u32 2131351028, %v2337
        %v2347 = vshrl.u32 2102212464, %v2338
        %v2348 = vor.u32 %v2346, %v2347
        %v2349 = vshll.u32 2102212464, %v2337
        %v2350 = vshrl.u32 920167782, %v2338
        %v2351 = vor.u32 %v2349, %v2350
        %v2352 = vshll.u32 920167782, %v2337
        %v2353 = vshrl.u32 1326507024, %v2338
        %v2354 = vor.u32 %v2352, %v2353
        %vm2355 = vcmp.lt.s32.totalorder %v2336, 1
        %vm2356 = vcmp.lt.s32.totalorder %v2336, 2
        %vm2357 = vcmp.lt.s32.totalorder %v2336, 3
        %vm2358 = vcmp.lt.s32.totalorder %v2336, 4
        %v2359 = vsel %vm2355, %v2339, %v2342
        %v2360 = vsel %vm2358, %v2348, 2102212464
        %v2361 = vsel %vm2357, %v2345, %v2360
        %v2362 = vsel %vm2356, %v2359, %v2361
        %v2363 = vsel %vm2355, %v2342, %v2345
        %v2364 = vsel %vm2358, %v2351, 920167782
        %v2365 = vsel %vm2357, %v2348, %v2364
        %v2366 = vsel %vm2356, %v2363, %v2365
        %v2367 = vsel %vm2355, %v2345, %v2348
        %v2368 = vsel %vm2358, %v2354, 1326507024
        %v2369 = vsel %vm2357, %v2351, %v2368
        %v2370 = vsel %vm2356, %v2367, %v2369
        %v2371 = vshll.u32 %v2331, 8
        %v2372 = vand.u32 %v2371, 65535
        %v2373 = vshrl.u32 %v2371, 16
        %v2374 = vand.u32 %v2370, 65535
        %v2375 = vshrl.u32 %v2370, 16
        %v2376 = vmul.u32 %v2372, %v2374
        %v2377 = vmul.u32 %v2372, %v2375
        %v2378 = vmul.u32 %v2373, %v2374
        %v2379 = vmul.u32 %v2373, %v2375
        %v2380 = vshll.u32 %v2377, 16
        %v2381 = vshrl.u32 %v2377, 16
        %v2382 = vshll.u32 %v2378, 16
        %v2383 = vshrl.u32 %v2378, 16
        %vm2384 = vc.u32 %v2376, %v2380
        %v2385 = vsel %vm2384, 1, 0
        %v2386 = vadd.s32 %v2376, %v2380
        %v2387 = vadd.s32 %v2379, %v2385
        %vm2388 = vc.u32 %v2386, %v2382
        %v2389 = vsel %vm2388, 1, 0
        %v2390 = vadd.s32 %v2386, %v2382
        %v2391 = vadd.s32 %v2387, %v2389
        %v2392 = vadd.s32 %v2391, %v2381
        %v2393 = vadd.s32 %v2392, %v2383
        %v2394 = vand.u32 %v2371, 65535
        %v2395 = vshrl.u32 %v2371, 16
        %v2396 = vand.u32 %v2366, 65535
        %v2397 = vshrl.u32 %v2366, 16
        %v2398 = vmul.u32 %v2394, %v2396
        %v2399 = vmul.u32 %v2394, %v2397
        %v2400 = vmul.u32 %v2395, %v2396
        %v2401 = vmul.u32 %v2395, %v2397
        %v2402 = vshll.u32 %v2399, 16
        %v2403 = vshrl.u32 %v2399, 16
        %v2404 = vshll.u32 %v2400, 16
        %v2405 = vshrl.u32 %v2400, 16
        %vm2406 = vc.u32 %v2398, %v2402
        %v2407 = vsel %vm2406, 1, 0
        %v2408 = vadd.s32 %v2398, %v2402
        %v2409 = vadd.s32 %v2401, %v2407
        %vm2410 = vc.u32 %v2408, %v2404
        %v2411 = vsel %vm2410, 1, 0
        %v2412 = vadd.s32 %v2408, %v2404
        %v2413 = vadd.s32 %v2409, %v2411
        %v2414 = vadd.s32 %v2413, %v2403
        %v2415 = vadd.s32 %v2414, %v2405
        %v2416 = vmul.u32 %v2371, %v2362
        %v2417 = vadd.s32 %v2393, %v2412
        %vm2418 = vc.u32 %v2393, %v2412
        %v2419 = vadd.s32 %v2415, 1
        %v2420 = vsel %vm2418, %v2419, %v2415
        %v2421 = vadd.s32 %v2416, %v2420
        %v2422 = vadd.s32 %v2421, 536870912
        %v2423 = vshrl.u32 %v2422, 30
        %v2424 = vshll.u32 %v2423, 30
        %v2425 = vsub.s32 %v2421, %v2424
        %vm2426 = vcmp.lt.s32.totalorder %v2425, 0
        %v2427 = vsub.s32 0, %v2425
        %v2428 = vsel %vm2426, %v2427, %v2425
        %v2429 = vclz %v2428
        %v2430 = vsub.s32 %v2429, 2
        %vm2431 = vcmp.gt.s32.totalorder 0, %v2430
        %v2432 = vsel %vm2431, 0, %v2430
        %v2433 = vsub.s32 32, %v2432
        %v2434 = vshll.u32 %v2425, %v2432
        %v2435 = vshrl.u32 %v2417, %v2433
        %v2436 = vor.u32 %v2434, %v2435
        %v2437 = vsub.s32 4294967266, %v2432
        %v2438 = vadd.s32 %v2437, 127
        %v2439 = vshll.u32 %v2438, 23
        %v2440 = vor.u32 4788187, %v2439
        %v2441 = vand.u32 2147483647, %v2440
        %v2443 = vcvt.s32.f32 %v2436
        %v2444 = vmul.f32 %v2443, %v2441
        %v2445 = vxor.u32 %v2444, 2147483648
        %v2446 = vsel %vm2325, %v2445, %v2444
        %v2447 = vsub.s32 4, %v2423
        %v2448 = vsel %vm2325, %v2447, %v2423
        %v2449 = vsel %vm2324, %v398, %v2446
        %v2450 = vsel %vm2324, 0, %v2448
        %v2451 = vmul.f32 %v2449, %v2449
        %v2452 = vmul.f32 %v2451, -0.001358992
        %v2453 = vadd.f32 %v2452, 0.041655596
        %v2454 = vmul.f32 %v2451, %v2453
        %v2455 = vadd.f32 %v2454, -0.4999988
        %v2456 = vmul.f32 %v2451, %v2455
        %v2457 = vadd.f32 1.0, %v2456
        %v2458 = vmul.f32 %v2449, %v2449
        %v2459 = vmul.f32 %v2458, -0.00019511016
        %v2460 = vadd.f32 %v2459, 0.008332121
        %v2461 = vmul.f32 %v2458, %v2460
        %v2462 = vadd.f32 %v2461, -0.16666654
        %v2463 = vmul.f32 %v2458, %v2462
        %v2464 = vadd.f32 %v2463, 1.0
        %v2465 = vmul.f32 %v2464, %v2449
        %vm2466 = vweird.f32 %v398
        %v2467 = vand.u32 %v2450, 3
        %vm2468 = vcmp.lt.s32.totalorder %v2467, 2
        %vm2469 = vcmp.eq.s32.totalorder %v2467, 0
        %v2470 = vxor.u32 %v2465, 2147483648
        %v2471 = vsel %vm2469, %v2457, %v2470
        %vm2472 = vcmp.eq.s32.totalorder %v2467, 2
        %v2473 = vxor.u32 %v2457, 2147483648
        %v2474 = vsel %vm2472, %v2473, %v2465
        %v2475 = vsel %vm2468, %v2471, %v2474
        %v2476 = vsel %vm2466, nan, %v2475
        %v2477 = vand.u32 2147483647, %v401
        %vm2478 = vcmp.le.f32.partialorder %v2477, 0.7853982
        %vm2479 = vcmp.lt.s32.totalorder %v401, 0
        %v2480 = vand.u32 %v401, 2139095040
        %v2481 = vshrl.u32 %v2480, 23
        %v2482 = vsub.s32 %v2481, 127
        %v2483 = vand.u32 2147483647, %v401
        %v2484 = vand.u32 %v2483, 8388607
        %v2485 = vor.u32 %v2484, 8388608
        %v2486 = vsub.s32 0, %v2485
        %v2487 = vadd.s32 %v2482, 1
        %vm2488 = vcmp.gt.s32.totalorder %v2487, 0
        %v2489 = vsel %vm2488, %v2487, 0
        %v2490 = vshrl.u32 %v2489, 5
        %v2491 = vand.u32 %v2489, 31
        %v2492 = vsub.s32 32, %v2491
        %v2493 = vshrl.u32 683565275, %v2492
        %v2494 = vshll.u32 683565275, %v2491
        %v2495 = vshrl.u32 2475754826, %v2492
        %v2496 = vor.u32 %v2494, %v2495
        %v2497 = vshll.u32 2475754826, %v2491
        %v2498 = vshrl.u32 2131351028, %v2492
        %v2499 = vor.u32 %v2497, %v2498
        %v2500 = vshll.u32 2131351028, %v2491
        %v2501 = vshrl.u32 2102212464, %v2492
        %v2502 = vor.u32 %v2500, %v2501
        %v2503 = vshll.u32 2102212464, %v2491
        %v2504 = vshrl.u32 920167782, %v2492
        %v2505 = vor.u32 %v2503, %v2504
        %v2506 = vshll.u32 920167782, %v2491
        %v2507 = vshrl.u32 1326507024, %v2492
        %v2508 = vor.u32 %v2506, %v2507
        %vm2509 = vcmp.lt.s32.totalorder %v2490, 1
        %vm2510 = vcmp.lt.s32.totalorder %v2490, 2
        %vm2511 = vcmp.lt.s32.totalorder %v2490, 3
        %vm2512 = vcmp.lt.s32.totalorder %v2490, 4
        %v2513 = vsel %vm2509, %v2493, %v2496
        %v2514 = vsel %vm2512, %v2502, 2102212464
        %v2515 = vsel %vm2511, %v2499, %v2514
        %v2516 = vsel %vm2510, %v2513, %v2515
        %v2517 = vsel %vm2509, %v2496, %v2499
        %v2518 = vsel %vm2512, %v2505, 920167782
        %v2519 = vsel %vm2511, %v2502, %v2518
        %v2520 = vsel %vm2510, %v2517, %v2519
        %v2521 = vsel %vm2509, %v2499, %v2502
        %v2522 = vsel %vm2512, %v2508, 1326507024
        %v2523 = vsel %vm2511, %v2505, %v2522
        %v2524 = vsel %vm2510, %v2521, %v2523
        %v2525 = vshll.u32 %v2485, 8
        %v2526 = vand.u32 %v2525, 65535
        %v2527 = vshrl.u32 %v2525, 16
        %v2528 = vand.u32 %v2524, 65535
        %v2529 = vshrl.u32 %v2524, 16
        %v2530 = vmul.u32 %v2526, %v2528
        %v2531 = vmul.u32 %v2526, %v2529
        %v2532 = vmul.u32 %v2527, %v2528
        %v2533 = vmul.u32 %v2527, %v2529
        %v2534 = vshll.u32 %v2531, 16
        %v2535 = vshrl.u32 %v2531, 16
        %v2536 = vshll.u32 %v2532, 16
        %v2537 = vshrl.u32 %v2532, 16
        %vm2538 = vc.u32 %v2530, %v2534
        %v2539 = vsel %vm2538, 1, 0
        %v2540 = vadd.s32 %v2530, %v2534
        %v2541 = vadd.s32 %v2533, %v2539
        %vm2542 = vc.u32 %v2540, %v2536
        %v2543 = vsel %vm2542, 1, 0
        %v2544 = vadd.s32 %v2540, %v2536
        %v2545 = vadd.s32 %v2541, %v2543
        %v2546 = vadd.s32 %v2545, %v2535
        %v2547 = vadd.s32 %v2546, %v2537
        %v2548 = vand.u32 %v2525, 65535
        %v2549 = vshrl.u32 %v2525, 16
        %v2550 = vand.u32 %v2520, 65535
        %v2551 = vshrl.u32 %v2520, 16
        %v2552 = vmul.u32 %v2548, %v2550
        %v2553 = vmul.u32 %v2548, %v2551
        %v2554 = vmul.u32 %v2549, %v2550
        %v2555 = vmul.u32 %v2549, %v2551
        %v2556 = vshll.u32 %v2553, 16
        %v2557 = vshrl.u32 %v2553, 16
        %v2558 = vshll.u32 %v2554, 16
        %v2559 = vshrl.u32 %v2554, 16
        %vm2560 = vc.u32 %v2552, %v2556
        %v2561 = vsel %vm2560, 1, 0
        %v2562 = vadd.s32 %v2552, %v2556
        %v2563 = vadd.s32 %v2555, %v2561
        %vm2564 = vc.u32 %v2562, %v2558
        %v2565 = vsel %vm2564, 1, 0
        %v2566 = vadd.s32 %v2562, %v2558
        %v2567 = vadd.s32 %v2563, %v2565
        %v2568 = vadd.s32 %v2567, %v2557
        %v2569 = vadd.s32 %v2568, %v2559
        %v2570 = vmul.u32 %v2525, %v2516
        %v2571 = vadd.s32 %v2547, %v2566
        %vm2572 = vc.u32 %v2547, %v2566
        %v2573 = vadd.s32 %v2569, 1
        %v2574 = vsel %vm2572, %v2573, %v2569
        %v2575 = vadd.s32 %v2570, %v2574
        %v2576 = vadd.s32 %v2575, 536870912
        %v2577 = vshrl.u32 %v2576, 30
        %v2578 = vshll.u32 %v2577, 30
        %v2579 = vsub.s32 %v2575, %v2578
        %vm2580 = vcmp.lt.s32.totalorder %v2579, 0
        %v2581 = vsub.s32 0, %v2579
        %v2582 = vsel %vm2580, %v2581, %v2579
        %v2583 = vclz %v2582
        %v2584 = vsub.s32 %v2583, 2
        %vm2585 = vcmp.gt.s32.totalorder 0, %v2584
        %v2586 = vsel %vm2585, 0, %v2584
        %v2587 = vsub.s32 32, %v2586
        %v2588 = vshll.u32 %v2579, %v2586
        %v2589 = vshrl.u32 %v2571, %v2587
        %v2590 = vor.u32 %v2588, %v2589
        %v2591 = vsub.s32 4294967266, %v2586
        %v2592 = vadd.s32 %v2591, 127
        %v2593 = vshll.u32 %v2592, 23
        %v2594 = vor.u32 4788187, %v2593
        %v2595 = vand.u32 2147483647, %v2594
        %v2597 = vcvt.s32.f32 %v2590
        %v2598 = vmul.f32 %v2597, %v2595
        %v2599 = vxor.u32 %v2598, 2147483648
        %v2600 = vsel %vm2479, %v2599, %v2598
        %v2601 = vsub.s32 4, %v2577
        %v2602 = vsel %vm2479, %v2601, %v2577
        %v2603 = vsel %vm2478, %v401, %v2600
        %v2604 = vsel %vm2478, 0, %v2602
        %v2605 = vmul.f32 %v2603, %v2603
        %v2606 = vmul.f32 %v2605, -0.001358992
        %v2607 = vadd.f32 %v2606, 0.041655596
        %v2608 = vmul.f32 %v2605, %v2607
        %v2609 = vadd.f32 %v2608, -0.4999988
        %v2610 = vmul.f32 %v2605, %v2609
        %v2611 = vadd.f32 1.0, %v2610
        %v2612 = vmul.f32 %v2603, %v2603
        %v2613 = vmul.f32 %v2612, -0.00019511016
        %v2614 = vadd.f32 %v2613, 0.008332121
        %v2615 = vmul.f32 %v2612, %v2614
        %v2616 = vadd.f32 %v2615, -0.16666654
        %v2617 = vmul.f32 %v2612, %v2616
        %v2618 = vadd.f32 %v2617, 1.0
        %v2619 = vmul.f32 %v2618, %v2603
        %vm2620 = vweird.f32 %v401
        %v2621 = vand.u32 %v2604, 3
        %vm2622 = vcmp.lt.s32.totalorder %v2621, 2
        %vm2623 = vcmp.eq.s32.totalorder %v2621, 0
        %v2624 = vxor.u32 %v2619, 2147483648
        %v2625 = vsel %vm2623, %v2611, %v2624
        %vm2626 = vcmp.eq.s32.totalorder %v2621, 2
        %v2627 = vxor.u32 %v2611, 2147483648
        %v2628 = vsel %vm2626, %v2627, %v2619
        %v2629 = vsel %vm2622, %v2625, %v2628
        %v2630 = vsel %vm2620, nan, %v2629
        %v2631 = vand.u32 2147483647, %v404
        %vm2632 = vcmp.le.f32.partialorder %v2631, 0.7853982
        %vm2633 = vcmp.lt.s32.totalorder %v404, 0
        %v2634 = vand.u32 %v404, 2139095040
        %v2635 = vshrl.u32 %v2634, 23
        %v2636 = vsub.s32 %v2635, 127
        %v2637 = vand.u32 2147483647, %v404
        %v2638 = vand.u32 %v2637, 8388607
        %v2639 = vor.u32 %v2638, 8388608
        %v2640 = vsub.s32 0, %v2639
        %v2641 = vadd.s32 %v2636, 1
        %vm2642 = vcmp.gt.s32.totalorder %v2641, 0
        %v2643 = vsel %vm2642, %v2641, 0
        %v2644 = vshrl.u32 %v2643, 5
        %v2645 = vand.u32 %v2643, 31
        %v2646 = vsub.s32 32, %v2645
        %v2647 = vshrl.u32 683565275, %v2646
        %v2648 = vshll.u32 683565275, %v2645
        %v2649 = vshrl.u32 2475754826, %v2646
        %v2650 = vor.u32 %v2648, %v2649
        %v2651 = vshll.u32 2475754826, %v2645
        %v2652 = vshrl.u32 2131351028, %v2646
        %v2653 = vor.u32 %v2651, %v2652
        %v2654 = vshll.u32 2131351028, %v2645
        %v2655 = vshrl.u32 2102212464, %v2646
        %v2656 = vor.u32 %v2654, %v2655
        %v2657 = vshll.u32 2102212464, %v2645
        %v2658 = vshrl.u32 920167782, %v2646
        %v2659 = vor.u32 %v2657, %v2658
        %v2660 = vshll.u32 920167782, %v2645
        %v2661 = vshrl.u32 1326507024, %v2646
        %v2662 = vor.u32 %v2660, %v2661
        %vm2663 = vcmp.lt.s32.totalorder %v2644, 1
        %vm2664 = vcmp.lt.s32.totalorder %v2644, 2
        %vm2665 = vcmp.lt.s32.totalorder %v2644, 3
        %vm2666 = vcmp.lt.s32.totalorder %v2644, 4
        %v2667 = vsel %vm2663, %v2647, %v2650
        %v2668 = vsel %vm2666, %v2656, 2102212464
        %v2669 = vsel %vm2665, %v2653, %v2668
        %v2670 = vsel %vm2664, %v2667, %v2669
        %v2671 = vsel %vm2663, %v2650, %v2653
        %v2672 = vsel %vm2666, %v2659, 920167782
        %v2673 = vsel %vm2665, %v2656, %v2672
        %v2674 = vsel %vm2664, %v2671, %v2673
        %v2675 = vsel %vm2663, %v2653, %v2656
        %v2676 = vsel %vm2666, %v2662, 1326507024
        %v2677 = vsel %vm2665, %v2659, %v2676
        %v2678 = vsel %vm2664, %v2675, %v2677
        %v2679 = vshll.u32 %v2639, 8
        %v2680 = vand.u32 %v2679, 65535
        %v2681 = vshrl.u32 %v2679, 16
        %v2682 = vand.u32 %v2678, 65535
        %v2683 = vshrl.u32 %v2678, 16
        %v2684 = vmul.u32 %v2680, %v2682
        %v2685 = vmul.u32 %v2680, %v2683
        %v2686 = vmul.u32 %v2681, %v2682
        %v2687 = vmul.u32 %v2681, %v2683
        %v2688 = vshll.u32 %v2685, 16
        %v2689 = vshrl.u32 %v2685, 16
        %v2690 = vshll.u32 %v2686, 16
        %v2691 = vshrl.u32 %v2686, 16
        %vm2692 = vc.u32 %v2684, %v2688
        %v2693 = vsel %vm2692, 1, 0
        %v2694 = vadd.s32 %v2684, %v2688
        %v2695 = vadd.s32 %v2687, %v2693
        %vm2696 = vc.u32 %v2694, %v2690
        %v2697 = vsel %vm2696, 1, 0
        %v2698 = vadd.s32 %v2694, %v2690
        %v2699 = vadd.s32 %v2695, %v2697
        %v2700 = vadd.s32 %v2699, %v2689
        %v2701 = vadd.s32 %v2700, %v2691
        %v2702 = vand.u32 %v2679, 65535
        %v2703 = vshrl.u32 %v2679, 16
        %v2704 = vand.u32 %v2674, 65535
        %v2705 = vshrl.u32 %v2674, 16
        %v2706 = vmul.u32 %v2702, %v2704
        %v2707 = vmul.u32 %v2702, %v2705
        %v2708 = vmul.u32 %v2703, %v2704
        %v2709 = vmul.u32 %v2703, %v2705
        %v2710 = vshll.u32 %v2707, 16
        %v2711 = vshrl.u32 %v2707, 16
        %v2712 = vshll.u32 %v2708, 16
        %v2713 = vshrl.u32 %v2708, 16
        %vm2714 = vc.u32 %v2706, %v2710
        %v2715 = vsel %vm2714, 1, 0
        %v2716 = vadd.s32 %v2706, %v2710
        %v2717 = vadd.s32 %v2709, %v2715
        %vm2718 = vc.u32 %v2716, %v2712
        %v2719 = vsel %vm2718, 1, 0
        %v2720 = vadd.s32 %v2716, %v2712
        %v2721 = vadd.s32 %v2717, %v2719
        %v2722 = vadd.s32 %v2721, %v2711
        %v2723 = vadd.s32 %v2722, %v2713
        %v2724 = vmul.u32 %v2679, %v2670
        %v2725 = vadd.s32 %v2701, %v2720
        %vm2726 = vc.u32 %v2701, %v2720
        %v2727 = vadd.s32 %v2723, 1
        %v2728 = vsel %vm2726, %v2727, %v2723
        %v2729 = vadd.s32 %v2724, %v2728
        %v2730 = vadd.s32 %v2729, 536870912
        %v2731 = vshrl.u32 %v2730, 30
        %v2732 = vshll.u32 %v2731, 30
        %v2733 = vsub.s32 %v2729, %v2732
        %vm2734 = vcmp.lt.s32.totalorder %v2733, 0
        %v2735 = vsub.s32 0, %v2733
        %v2736 = vsel %vm2734, %v2735, %v2733
        %v2737 = vclz %v2736
        %v2738 = vsub.s32 %v2737, 2
        %vm2739 = vcmp.gt.s32.totalorder 0, %v2738
        %v2740 = vsel %vm2739, 0, %v2738
        %v2741 = vsub.s32 32, %v2740
        %v2742 = vshll.u32 %v2733, %v2740
        %v2743 = vshrl.u32 %v2725, %v2741
        %v2744 = vor.u32 %v2742, %v2743
        %v2745 = vsub.s32 4294967266, %v2740
        %v2746 = vadd.s32 %v2745, 127
        %v2747 = vshll.u32 %v2746, 23
        %v2748 = vor.u32 4788187, %v2747
        %v2749 = vand.u32 2147483647, %v2748
        %v2751 = vcvt.s32.f32 %v2744
        %v2752 = vmul.f32 %v2751, %v2749
        %v2753 = vxor.u32 %v2752, 2147483648
        %v2754 = vsel %vm2633, %v2753, %v2752
        %v2755 = vsub.s32 4, %v2731
        %v2756 = vsel %vm2633, %v2755, %v2731
        %v2757 = vsel %vm2632, %v404, %v2754
        %v2758 = vsel %vm2632, 0, %v2756
        %v2759 = vmul.f32 %v2757, %v2757
        %v2760 = vmul.f32 %v2759, -0.001358992
        %v2761 = vadd.f32 %v2760, 0.041655596
        %v2762 = vmul.f32 %v2759, %v2761
        %v2763 = vadd.f32 %v2762, -0.4999988
        %v2764 = vmul.f32 %v2759, %v2763
        %v2765 = vadd.f32 1.0, %v2764
        %v2766 = vmul.f32 %v2757, %v2757
        %v2767 = vmul.f32 %v2766, -0.00019511016
        %v2768 = vadd.f32 %v2767, 0.008332121
        %v2769 = vmul.f32 %v2766, %v2768
        %v2770 = vadd.f32 %v2769, -0.16666654
        %v2771 = vmul.f32 %v2766, %v2770
        %v2772 = vadd.f32 %v2771, 1.0
        %v2773 = vmul.f32 %v2772, %v2757
        %vm2774 = vweird.f32 %v404
        %v2775 = vand.u32 %v2758, 3
        %vm2776 = vcmp.lt.s32.totalorder %v2775, 2
        %vm2777 = vcmp.eq.s32.totalorder %v2775, 0
        %v2778 = vxor.u32 %v2773, 2147483648
        %v2779 = vsel %vm2777, %v2765, %v2778
        %vm2780 = vcmp.eq.s32.totalorder %v2775, 2
        %v2781 = vxor.u32 %v2765, 2147483648
        %v2782 = vsel %vm2780, %v2781, %v2773
        %v2783 = vsel %vm2776, %v2779, %v2782
        %v2784 = vsel %vm2774, nan, %v2783
        %v2785 = vand.u32 2147483647, %v407
        %vm2786 = vcmp.le.f32.partialorder %v2785, 0.7853982
        %vm2787 = vcmp.lt.s32.totalorder %v407, 0
        %v2788 = vand.u32 %v407, 2139095040
        %v2789 = vshrl.u32 %v2788, 23
        %v2790 = vsub.s32 %v2789, 127
        %v2791 = vand.u32 2147483647, %v407
        %v2792 = vand.u32 %v2791, 8388607
        %v2793 = vor.u32 %v2792, 8388608
        %v2794 = vsub.s32 0, %v2793
        %v2795 = vadd.s32 %v2790, 1
        %vm2796 = vcmp.gt.s32.totalorder %v2795, 0
        %v2797 = vsel %vm2796, %v2795, 0
        %v2798 = vshrl.u32 %v2797, 5
        %v2799 = vand.u32 %v2797, 31
        %v2800 = vsub.s32 32, %v2799
        %v2801 = vshrl.u32 683565275, %v2800
        %v2802 = vshll.u32 683565275, %v2799
        %v2803 = vshrl.u32 2475754826, %v2800
        %v2804 = vor.u32 %v2802, %v2803
        %v2805 = vshll.u32 2475754826, %v2799
        %v2806 = vshrl.u32 2131351028, %v2800
        %v2807 = vor.u32 %v2805, %v2806
        %v2808 = vshll.u32 2131351028, %v2799
        %v2809 = vshrl.u32 2102212464, %v2800
        %v2810 = vor.u32 %v2808, %v2809
        %v2811 = vshll.u32 2102212464, %v2799
        %v2812 = vshrl.u32 920167782, %v2800
        %v2813 = vor.u32 %v2811, %v2812
        %v2814 = vshll.u32 920167782, %v2799
        %v2815 = vshrl.u32 1326507024, %v2800
        %v2816 = vor.u32 %v2814, %v2815
        %vm2817 = vcmp.lt.s32.totalorder %v2798, 1
        %vm2818 = vcmp.lt.s32.totalorder %v2798, 2
        %vm2819 = vcmp.lt.s32.totalorder %v2798, 3
        %vm2820 = vcmp.lt.s32.totalorder %v2798, 4
        %v2821 = vsel %vm2817, %v2801, %v2804
        %v2822 = vsel %vm2820, %v2810, 2102212464
        %v2823 = vsel %vm2819, %v2807, %v2822
        %v2824 = vsel %vm2818, %v2821, %v2823
        %v2825 = vsel %vm2817, %v2804, %v2807
        %v2826 = vsel %vm2820, %v2813, 920167782
        %v2827 = vsel %vm2819, %v2810, %v2826
        %v2828 = vsel %vm2818, %v2825, %v2827
        %v2829 = vsel %vm2817, %v2807, %v2810
        %v2830 = vsel %vm2820, %v2816, 1326507024
        %v2831 = vsel %vm2819, %v2813, %v2830
        %v2832 = vsel %vm2818, %v2829, %v2831
        %v2833 = vshll.u32 %v2793, 8
        %v2834 = vand.u32 %v2833, 65535
        %v2835 = vshrl.u32 %v2833, 16
        %v2836 = vand.u32 %v2832, 65535
        %v2837 = vshrl.u32 %v2832, 16
        %v2838 = vmul.u32 %v2834, %v2836
        %v2839 = vmul.u32 %v2834, %v2837
        %v2840 = vmul.u32 %v2835, %v2836
        %v2841 = vmul.u32 %v2835, %v2837
        %v2842 = vshll.u32 %v2839, 16
        %v2843 = vshrl.u32 %v2839, 16
        %v2844 = vshll.u32 %v2840, 16
        %v2845 = vshrl.u32 %v2840, 16
        %vm2846 = vc.u32 %v2838, %v2842
        %v2847 = vsel %vm2846, 1, 0
        %v2848 = vadd.s32 %v2838, %v2842
        %v2849 = vadd.s32 %v2841, %v2847
        %vm2850 = vc.u32 %v2848, %v2844
        %v2851 = vsel %vm2850, 1, 0
        %v2852 = vadd.s32 %v2848, %v2844
        %v2853 = vadd.s32 %v2849, %v2851
        %v2854 = vadd.s32 %v2853, %v2843
        %v2855 = vadd.s32 %v2854, %v2845
        %v2856 = vand.u32 %v2833, 65535
        %v2857 = vshrl.u32 %v2833, 16
        %v2858 = vand.u32 %v2828, 65535
        %v2859 = vshrl.u32 %v2828, 16
        %v2860 = vmul.u32 %v2856, %v2858
        %v2861 = vmul.u32 %v2856, %v2859
        %v2862 = vmul.u32 %v2857, %v2858
        %v2863 = vmul.u32 %v2857, %v2859
        %v2864 = vshll.u32 %v2861, 16
        %v2865 = vshrl.u32 %v2861, 16
        %v2866 = vshll.u32 %v2862, 16
        %v2867 = vshrl.u32 %v2862, 16
        %vm2868 = vc.u32 %v2860, %v2864
        %v2869 = vsel %vm2868, 1, 0
        %v2870 = vadd.s32 %v2860, %v2864
        %v2871 = vadd.s32 %v2863, %v2869
        %vm2872 = vc.u32 %v2870, %v2866
        %v2873 = vsel %vm2872, 1, 0
        %v2874 = vadd.s32 %v2870, %v2866
        %v2875 = vadd.s32 %v2871, %v2873
        %v2876 = vadd.s32 %v2875, %v2865
        %v2877 = vadd.s32 %v2876, %v2867
        %v2878 = vmul.u32 %v2833, %v2824
        %v2879 = vadd.s32 %v2855, %v2874
        %vm2880 = vc.u32 %v2855, %v2874
        %v2881 = vadd.s32 %v2877, 1
        %v2882 = vsel %vm2880, %v2881, %v2877
        %v2883 = vadd.s32 %v2878, %v2882
        %v2884 = vadd.s32 %v2883, 536870912
        %v2885 = vshrl.u32 %v2884, 30
        %v2886 = vshll.u32 %v2885, 30
        %v2887 = vsub.s32 %v2883, %v2886
        %vm2888 = vcmp.lt.s32.totalorder %v2887, 0
        %v2889 = vsub.s32 0, %v2887
        %v2890 = vsel %vm2888, %v2889, %v2887
        %v2891 = vclz %v2890
        %v2892 = vsub.s32 %v2891, 2
        %vm2893 = vcmp.gt.s32.totalorder 0, %v2892
        %v2894 = vsel %vm2893, 0, %v2892
        %v2895 = vsub.s32 32, %v2894
        %v2896 = vshll.u32 %v2887, %v2894
        %v2897 = vshrl.u32 %v2879, %v2895
        %v2898 = vor.u32 %v2896, %v2897
        %v2899 = vsub.s32 4294967266, %v2894
        %v2900 = vadd.s32 %v2899, 127
        %v2901 = vshll.u32 %v2900, 23
        %v2902 = vor.u32 4788187, %v2901
        %v2903 = vand.u32 2147483647, %v2902
        %v2905 = vcvt.s32.f32 %v2898
        %v2906 = vmul.f32 %v2905, %v2903
        %v2907 = vxor.u32 %v2906, 2147483648
        %v2908 = vsel %vm2787, %v2907, %v2906
        %v2909 = vsub.s32 4, %v2885
        %v2910 = vsel %vm2787, %v2909, %v2885
        %v2911 = vsel %vm2786, %v407, %v2908
        %v2912 = vsel %vm2786, 0, %v2910
        %v2913 = vmul.f32 %v2911, %v2911
        %v2914 = vmul.f32 %v2913, -0.001358992
        %v2915 = vadd.f32 %v2914, 0.041655596
        %v2916 = vmul.f32 %v2913, %v2915
        %v2917 = vadd.f32 %v2916, -0.4999988
        %v2918 = vmul.f32 %v2913, %v2917
        %v2919 = vadd.f32 1.0, %v2918
        %v2920 = vmul.f32 %v2911, %v2911
        %v2921 = vmul.f32 %v2920, -0.00019511016
        %v2922 = vadd.f32 %v2921, 0.008332121
        %v2923 = vmul.f32 %v2920, %v2922
        %v2924 = vadd.f32 %v2923, -0.16666654
        %v2925 = vmul.f32 %v2920, %v2924
        %v2926 = vadd.f32 %v2925, 1.0
        %v2927 = vmul.f32 %v2926, %v2911
        %vm2928 = vweird.f32 %v407
        %v2929 = vand.u32 %v2912, 3
        %vm2930 = vcmp.lt.s32.totalorder %v2929, 2
        %vm2931 = vcmp.eq.s32.totalorder %v2929, 0
        %v2932 = vxor.u32 %v2927, 2147483648
        %v2933 = vsel %vm2931, %v2919, %v2932
        %vm2934 = vcmp.eq.s32.totalorder %v2929, 2
        %v2935 = vxor.u32 %v2919, 2147483648
        %v2936 = vsel %vm2934, %v2935, %v2927
        %v2937 = vsel %vm2930, %v2933, %v2936
        %v2938 = vsel %vm2928, nan, %v2937
        %v2939 = vand.u32 2147483647, %v362
        %vm2940 = vcmp.le.f32.partialorder %v2939, 0.7853982
        %vm2941 = vcmp.lt.s32.totalorder %v362, 0
        %v2942 = vand.u32 %v362, 2139095040
        %v2943 = vshrl.u32 %v2942, 23
        %v2944 = vsub.s32 %v2943, 127
        %v2945 = vand.u32 2147483647, %v362
        %v2946 = vand.u32 %v2945, 8388607
        %v2947 = vor.u32 %v2946, 8388608
        %v2948 = vsub.s32 0, %v2947
        %v2949 = vadd.s32 %v2944, 1
        %vm2950 = vcmp.gt.s32.totalorder %v2949, 0
        %v2951 = vsel %vm2950, %v2949, 0
        %v2952 = vshrl.u32 %v2951, 5
        %v2953 = vand.u32 %v2951, 31
        %v2954 = vsub.s32 32, %v2953
        %v2955 = vshrl.u32 683565275, %v2954
        %v2956 = vshll.u32 683565275, %v2953
        %v2957 = vshrl.u32 2475754826, %v2954
        %v2958 = vor.u32 %v2956, %v2957
        %v2959 = vshll.u32 2475754826, %v2953
        %v2960 = vshrl.u32 2131351028, %v2954
        %v2961 = vor.u32 %v2959, %v2960
        %v2962 = vshll.u32 2131351028, %v2953
        %v2963 = vshrl.u32 2102212464, %v2954
        %v2964 = vor.u32 %v2962, %v2963
        %v2965 = vshll.u32 2102212464, %v2953
        %v2966 = vshrl.u32 920167782, %v2954
        %v2967 = vor.u32 %v2965, %v2966
        %v2968 = vshll.u32 920167782, %v2953
        %v2969 = vshrl.u32 1326507024, %v2954
        %v2970 = vor.u32 %v2968, %v2969
        %vm2971 = vcmp.lt.s32.totalorder %v2952, 1
        %vm2972 = vcmp.lt.s32.totalorder %v2952, 2
        %vm2973 = vcmp.lt.s32.totalorder %v2952, 3
        %vm2974 = vcmp.lt.s32.totalorder %v2952, 4
        %v2975 = vsel %vm2971, %v2955, %v2958
        %v2976 = vsel %vm2974, %v2964, 2102212464
        %v2977 = vsel %vm2973, %v2961, %v2976
        %v2978 = vsel %vm2972, %v2975, %v2977
        %v2979 = vsel %vm2971, %v2958, %v2961
        %v2980 = vsel %vm2974, %v2967, 920167782
        %v2981 = vsel %vm2973, %v2964, %v2980
        %v2982 = vsel %vm2972, %v2979, %v2981
        %v2983 = vsel %vm2971, %v2961, %v2964
        %v2984 = vsel %vm2974, %v2970, 1326507024
        %v2985 = vsel %vm2973, %v2967, %v2984
        %v2986 = vsel %vm2972, %v2983, %v2985
        %v2987 = vshll.u32 %v2947, 8
        %v2988 = vand.u32 %v2987, 65535
        %v2989 = vshrl.u32 %v2987, 16
        %v2990 = vand.u32 %v2986, 65535
        %v2991 = vshrl.u32 %v2986, 16
        %v2992 = vmul.u32 %v2988, %v2990
        %v2993 = vmul.u32 %v2988, %v2991
        %v2994 = vmul.u32 %v2989, %v2990
        %v2995 = vmul.u32 %v2989, %v2991
        %v2996 = vshll.u32 %v2993, 16
        %v2997 = vshrl.u32 %v2993, 16
        %v2998 = vshll.u32 %v2994, 16
        %v2999 = vshrl.u32 %v2994, 16
        %vm3000 = vc.u32 %v2992, %v2996
        %v3001 = vsel %vm3000, 1, 0
        %v3002 = vadd.s32 %v2992, %v2996
        %v3003 = vadd.s32 %v2995, %v3001
        %vm3004 = vc.u32 %v3002, %v2998
        %v3005 = vsel %vm3004, 1, 0
        %v3006 = vadd.s32 %v3002, %v2998
        %v3007 = vadd.s32 %v3003, %v3005
        %v3008 = vadd.s32 %v3007, %v2997
        %v3009 = vadd.s32 %v3008, %v2999
        %v3010 = vand.u32 %v2987, 65535
        %v3011 = vshrl.u32 %v2987, 16
        %v3012 = vand.u32 %v2982, 65535
        %v3013 = vshrl.u32 %v2982, 16
        %v3014 = vmul.u32 %v3010, %v3012
        %v3015 = vmul.u32 %v3010, %v3013
        %v3016 = vmul.u32 %v3011, %v3012
        %v3017 = vmul.u32 %v3011, %v3013
        %v3018 = vshll.u32 %v3015, 16
        %v3019 = vshrl.u32 %v3015, 16
        %v3020 = vshll.u32 %v3016, 16
        %v3021 = vshrl.u32 %v3016, 16
        %vm3022 = vc.u32 %v3014, %v3018
        %v3023 = vsel %vm3022, 1, 0
        %v3024 = vadd.s32 %v3014, %v3018
        %v3025 = vadd.s32 %v3017, %v3023
        %vm3026 = vc.u32 %v3024, %v3020
        %v3027 = vsel %vm3026, 1, 0
        %v3028 = vadd.s32 %v3024, %v3020
        %v3029 = vadd.s32 %v3025, %v3027
        %v3030 = vadd.s32 %v3029, %v3019
        %v3031 = vadd.s32 %v3030, %v3021
        %v3032 = vmul.u32 %v2987, %v2978
        %v3033 = vadd.s32 %v3009, %v3028
        %vm3034 = vc.u32 %v3009, %v3028
        %v3035 = vadd.s32 %v3031, 1
        %v3036 = vsel %vm3034, %v3035, %v3031
        %v3037 = vadd.s32 %v3032, %v3036
        %v3038 = vadd.s32 %v3037, 536870912
        %v3039 = vshrl.u32 %v3038, 30
        %v3040 = vshll.u32 %v3039, 30
        %v3041 = vsub.s32 %v3037, %v3040
        %vm3042 = vcmp.lt.s32.totalorder %v3041, 0
        %v3043 = vsub.s32 0, %v3041
        %v3044 = vsel %vm3042, %v3043, %v3041
        %v3045 = vclz %v3044
        %v3046 = vsub.s32 %v3045, 2
        %vm3047 = vcmp.gt.s32.totalorder 0, %v3046
        %v3048 = vsel %vm3047, 0, %v3046
        %v3049 = vsub.s32 32, %v3048
        %v3050 = vshll.u32 %v3041, %v3048
        %v3051 = vshrl.u32 %v3033, %v3049
        %v3052 = vor.u32 %v3050, %v3051
        %v3053 = vsub.s32 4294967266, %v3048
        %v3054 = vadd.s32 %v3053, 127
        %v3055 = vshll.u32 %v3054, 23
        %v3056 = vor.u32 4788187, %v3055
        %v3057 = vand.u32 2147483647, %v3056
        %v3059 = vcvt.s32.f32 %v3052
        %v3060 = vmul.f32 %v3059, %v3057
        %v3061 = vxor.u32 %v3060, 2147483648
        %v3062 = vsel %vm2941, %v3061, %v3060
        %v3063 = vsub.s32 4, %v3039
        %v3064 = vsel %vm2941, %v3063, %v3039
        %v3065 = vsel %vm2940, %v362, %v3062
        %v3066 = vsel %vm2940, 0, %v3064
        %v3067 = vmul.f32 %v3065, %v3065
        %v3068 = vmul.f32 %v3067, -0.001358992
        %v3069 = vadd.f32 %v3068, 0.041655596
        %v3070 = vmul.f32 %v3067, %v3069
        %v3071 = vadd.f32 %v3070, -0.4999988
        %v3072 = vmul.f32 %v3067, %v3071
        %v3073 = vadd.f32 1.0, %v3072
        %v3074 = vmul.f32 %v3065, %v3065
        %v3075 = vmul.f32 %v3074, -0.00019511016
        %v3076 = vadd.f32 %v3075, 0.008332121
        %v3077 = vmul.f32 %v3074, %v3076
        %v3078 = vadd.f32 %v3077, -0.16666654
        %v3079 = vmul.f32 %v3074, %v3078
        %v3080 = vadd.f32 %v3079, 1.0
        %v3081 = vmul.f32 %v3080, %v3065
        %vm3082 = vweird.f32 %v362
        %v3083 = vadd.s32 %v3066, 3
        %v3084 = vand.u32 %v3083, 3
        %vm3085 = vcmp.lt.s32.totalorder %v3084, 2
        %vm3086 = vcmp.eq.s32.totalorder %v3084, 0
        %v3087 = vxor.u32 %v3081, 2147483648
        %v3088 = vsel %vm3086, %v3073, %v3087
        %vm3089 = vcmp.eq.s32.totalorder %v3084, 2
        %v3090 = vxor.u32 %v3073, 2147483648
        %v3091 = vsel %vm3089, %v3090, %v3081
        %v3092 = vsel %vm3085, %v3088, %v3091
        %v3093 = vsel %vm3082, nan, %v3092
        %v3094 = vand.u32 2147483647, %v365
        %vm3095 = vcmp.le.f32.partialorder %v3094, 0.7853982
        %vm3096 = vcmp.lt.s32.totalorder %v365, 0
        %v3097 = vand.u32 %v365, 2139095040
        %v3098 = vshrl.u32 %v3097, 23
        %v3099 = vsub.s32 %v3098, 127
        %v3100 = vand.u32 2147483647, %v365
        %v3101 = vand.u32 %v3100, 8388607
        %v3102 = vor.u32 %v3101, 8388608
        %v3103 = vsub.s32 0, %v3102
        %v3104 = vadd.s32 %v3099, 1
        %vm3105 = vcmp.gt.s32.totalorder %v3104, 0
        %v3106 = vsel %vm3105, %v3104, 0
        %v3107 = vshrl.u32 %v3106, 5
        %v3108 = vand.u32 %v3106, 31
        %v3109 = vsub.s32 32, %v3108
        %v3110 = vshrl.u32 683565275, %v3109
        %v3111 = vshll.u32 683565275, %v3108
        %v3112 = vshrl.u32 2475754826, %v3109
        %v3113 = vor.u32 %v3111, %v3112
        %v3114 = vshll.u32 2475754826, %v3108
        %v3115 = vshrl.u32 2131351028, %v3109
        %v3116 = vor.u32 %v3114, %v3115
        %v3117 = vshll.u32 2131351028, %v3108
        %v3118 = vshrl.u32 2102212464, %v3109
        %v3119 = vor.u32 %v3117, %v3118
        %v3120 = vshll.u32 2102212464, %v3108
        %v3121 = vshrl.u32 920167782, %v3109
        %v3122 = vor.u32 %v3120, %v3121
        %v3123 = vshll.u32 920167782, %v3108
        %v3124 = vshrl.u32 1326507024, %v3109
        %v3125 = vor.u32 %v3123, %v3124
        %vm3126 = vcmp.lt.s32.totalorder %v3107, 1
        %vm3127 = vcmp.lt.s32.totalorder %v3107, 2
        %vm3128 = vcmp.lt.s32.totalorder %v3107, 3
        %vm3129 = vcmp.lt.s32.totalorder %v3107, 4
        %v3130 = vsel %vm3126, %v3110, %v3113
        %v3131 = vsel %vm3129, %v3119, 2102212464
        %v3132 = vsel %vm3128, %v3116, %v3131
        %v3133 = vsel %vm3127, %v3130, %v3132
        %v3134 = vsel %vm3126, %v3113, %v3116
        %v3135 = vsel %vm3129, %v3122, 920167782
        %v3136 = vsel %vm3128, %v3119, %v3135
        %v3137 = vsel %vm3127, %v3134, %v3136
        %v3138 = vsel %vm3126, %v3116, %v3119
        %v3139 = vsel %vm3129, %v3125, 1326507024
        %v3140 = vsel %vm3128, %v3122, %v3139
        %v3141 = vsel %vm3127, %v3138, %v3140
        %v3142 = vshll.u32 %v3102, 8
        %v3143 = vand.u32 %v3142, 65535
        %v3144 = vshrl.u32 %v3142, 16
        %v3145 = vand.u32 %v3141, 65535
        %v3146 = vshrl.u32 %v3141, 16
        %v3147 = vmul.u32 %v3143, %v3145
        %v3148 = vmul.u32 %v3143, %v3146
        %v3149 = vmul.u32 %v3144, %v3145
        %v3150 = vmul.u32 %v3144, %v3146
        %v3151 = vshll.u32 %v3148, 16
        %v3152 = vshrl.u32 %v3148, 16
        %v3153 = vshll.u32 %v3149, 16
        %v3154 = vshrl.u32 %v3149, 16
        %vm3155 = vc.u32 %v3147, %v3151
        %v3156 = vsel %vm3155, 1, 0
        %v3157 = vadd.s32 %v3147, %v3151
        %v3158 = vadd.s32 %v3150, %v3156
        %vm3159 = vc.u32 %v3157, %v3153
        %v3160 = vsel %vm3159, 1, 0
        %v3161 = vadd.s32 %v3157, %v3153
        %v3162 = vadd.s32 %v3158, %v3160
        %v3163 = vadd.s32 %v3162, %v3152
        %v3164 = vadd.s32 %v3163, %v3154
        %v3165 = vand.u32 %v3142, 65535
        %v3166 = vshrl.u32 %v3142, 16
        %v3167 = vand.u32 %v3137, 65535
        %v3168 = vshrl.u32 %v3137, 16
        %v3169 = vmul.u32 %v3165, %v3167
        %v3170 = vmul.u32 %v3165, %v3168
        %v3171 = vmul.u32 %v3166, %v3167
        %v3172 = vmul.u32 %v3166, %v3168
        %v3173 = vshll.u32 %v3170, 16
        %v3174 = vshrl.u32 %v3170, 16
        %v3175 = vshll.u32 %v3171, 16
        %v3176 = vshrl.u32 %v3171, 16
        %vm3177 = vc.u32 %v3169, %v3173
        %v3178 = vsel %vm3177, 1, 0
        %v3179 = vadd.s32 %v3169, %v3173
        %v3180 = vadd.s32 %v3172, %v3178
        %vm3181 = vc.u32 %v3179, %v3175
        %v3182 = vsel %vm3181, 1, 0
        %v3183 = vadd.s32 %v3179, %v3175
        %v3184 = vadd.s32 %v3180, %v3182
        %v3185 = vadd.s32 %v3184, %v3174
        %v3186 = vadd.s32 %v3185, %v3176
        %v3187 = vmul.u32 %v3142, %v3133
        %v3188 = vadd.s32 %v3164, %v3183
        %vm3189 = vc.u32 %v3164, %v3183
        %v3190 = vadd.s32 %v3186, 1
        %v3191 = vsel %vm3189, %v3190, %v3186
        %v3192 = vadd.s32 %v3187, %v3191
        %v3193 = vadd.s32 %v3192, 536870912
        %v3194 = vshrl.u32 %v3193, 30
        %v3195 = vshll.u32 %v3194, 30
        %v3196 = vsub.s32 %v3192, %v3195
        %vm3197 = vcmp.lt.s32.totalorder %v3196, 0
        %v3198 = vsub.s32 0, %v3196
        %v3199 = vsel %vm3197, %v3198, %v3196
        %v3200 = vclz %v3199
        %v3201 = vsub.s32 %v3200, 2
        %vm3202 = vcmp.gt.s32.totalorder 0, %v3201
        %v3203 = vsel %vm3202, 0, %v3201
        %v3204 = vsub.s32 32, %v3203
        %v3205 = vshll.u32 %v3196, %v3203
        %v3206 = vshrl.u32 %v3188, %v3204
        %v3207 = vor.u32 %v3205, %v3206
        %v3208 = vsub.s32 4294967266, %v3203
        %v3209 = vadd.s32 %v3208, 127
        %v3210 = vshll.u32 %v3209, 23
        %v3211 = vor.u32 4788187, %v3210
        %v3212 = vand.u32 2147483647, %v3211
        %v3214 = vcvt.s32.f32 %v3207
        %v3215 = vmul.f32 %v3214, %v3212
        %v3216 = vxor.u32 %v3215, 2147483648
        %v3217 = vsel %vm3096, %v3216, %v3215
        %v3218 = vsub.s32 4, %v3194
        %v3219 = vsel %vm3096, %v3218, %v3194
        %v3220 = vsel %vm3095, %v365, %v3217
        %v3221 = vsel %vm3095, 0, %v3219
        %v3222 = vmul.f32 %v3220, %v3220
        %v3223 = vmul.f32 %v3222, -0.001358992
        %v3224 = vadd.f32 %v3223, 0.041655596
        %v3225 = vmul.f32 %v3222, %v3224
        %v3226 = vadd.f32 %v3225, -0.4999988
        %v3227 = vmul.f32 %v3222, %v3226
        %v3228 = vadd.f32 1.0, %v3227
        %v3229 = vmul.f32 %v3220, %v3220
        %v3230 = vmul.f32 %v3229, -0.00019511016
        %v3231 = vadd.f32 %v3230, 0.008332121
        %v3232 = vmul.f32 %v3229, %v3231
        %v3233 = vadd.f32 %v3232, -0.16666654
        %v3234 = vmul.f32 %v3229, %v3233
        %v3235 = vadd.f32 %v3234, 1.0
        %v3236 = vmul.f32 %v3235, %v3220
        %vm3237 = vweird.f32 %v365
        %v3238 = vadd.s32 %v3221, 3
        %v3239 = vand.u32 %v3238, 3
        %vm3240 = vcmp.lt.s32.totalorder %v3239, 2
        %vm3241 = vcmp.eq.s32.totalorder %v3239, 0
        %v3242 = vxor.u32 %v3236, 2147483648
        %v3243 = vsel %vm3241, %v3228, %v3242
        %vm3244 = vcmp.eq.s32.totalorder %v3239, 2
        %v3245 = vxor.u32 %v3228, 2147483648
        %v3246 = vsel %vm3244, %v3245, %v3236
        %v3247 = vsel %vm3240, %v3243, %v3246
        %v3248 = vsel %vm3237, nan, %v3247
        %v3249 = vand.u32 2147483647, %v368
        %vm3250 = vcmp.le.f32.partialorder %v3249, 0.7853982
        %vm3251 = vcmp.lt.s32.totalorder %v368, 0
        %v3252 = vand.u32 %v368, 2139095040
        %v3253 = vshrl.u32 %v3252, 23
        %v3254 = vsub.s32 %v3253, 127
        %v3255 = vand.u32 2147483647, %v368
        %v3256 = vand.u32 %v3255, 8388607
        %v3257 = vor.u32 %v3256, 8388608
        %v3258 = vsub.s32 0, %v3257
        %v3259 = vadd.s32 %v3254, 1
        %vm3260 = vcmp.gt.s32.totalorder %v3259, 0
        %v3261 = vsel %vm3260, %v3259, 0
        %v3262 = vshrl.u32 %v3261, 5
        %v3263 = vand.u32 %v3261, 31
        %v3264 = vsub.s32 32, %v3263
        %v3265 = vshrl.u32 683565275, %v3264
        %v3266 = vshll.u32 683565275, %v3263
        %v3267 = vshrl.u32 2475754826, %v3264
        %v3268 = vor.u32 %v3266, %v3267
        %v3269 = vshll.u32 2475754826, %v3263
        %v3270 = vshrl.u32 2131351028, %v3264
        %v3271 = vor.u32 %v3269, %v3270
        %v3272 = vshll.u32 2131351028, %v3263
        %v3273 = vshrl.u32 2102212464, %v3264
        %v3274 = vor.u32 %v3272, %v3273
        %v3275 = vshll.u32 2102212464, %v3263
        %v3276 = vshrl.u32 920167782, %v3264
        %v3277 = vor.u32 %v3275, %v3276
        %v3278 = vshll.u32 920167782, %v3263
        %v3279 = vshrl.u32 1326507024, %v3264
        %v3280 = vor.u32 %v3278, %v3279
        %vm3281 = vcmp.lt.s32.totalorder %v3262, 1
        %vm3282 = vcmp.lt.s32.totalorder %v3262, 2
        %vm3283 = vcmp.lt.s32.totalorder %v3262, 3
        %vm3284 = vcmp.lt.s32.totalorder %v3262, 4
        %v3285 = vsel %vm3281, %v3265, %v3268
        %v3286 = vsel %vm3284, %v3274, 2102212464
        %v3287 = vsel %vm3283, %v3271, %v3286
        %v3288 = vsel %vm3282, %v3285, %v3287
        %v3289 = vsel %vm3281, %v3268, %v3271
        %v3290 = vsel %vm3284, %v3277, 920167782
        %v3291 = vsel %vm3283, %v3274, %v3290
        %v3292 = vsel %vm3282, %v3289, %v3291
        %v3293 = vsel %vm3281, %v3271, %v3274
        %v3294 = vsel %vm3284, %v3280, 1326507024
        %v3295 = vsel %vm3283, %v3277, %v3294
        %v3296 = vsel %vm3282, %v3293, %v3295
        %v3297 = vshll.u32 %v3257, 8
        %v3298 = vand.u32 %v3297, 65535
        %v3299 = vshrl.u32 %v3297, 16
        %v3300 = vand.u32 %v3296, 65535
        %v3301 = vshrl.u32 %v3296, 16
        %v3302 = vmul.u32 %v3298, %v3300
        %v3303 = vmul.u32 %v3298, %v3301
        %v3304 = vmul.u32 %v3299, %v3300
        %v3305 = vmul.u32 %v3299, %v3301
        %v3306 = vshll.u32 %v3303, 16
        %v3307 = vshrl.u32 %v3303, 16
        %v3308 = vshll.u32 %v3304, 16
        %v3309 = vshrl.u32 %v3304, 16
        %vm3310 = vc.u32 %v3302, %v3306
        %v3311 = vsel %vm3310, 1, 0
        %v3312 = vadd.s32 %v3302, %v3306
        %v3313 = vadd.s32 %v3305, %v3311
        %vm3314 = vc.u32 %v3312, %v3308
        %v3315 = vsel %vm3314, 1, 0
        %v3316 = vadd.s32 %v3312, %v3308
        %v3317 = vadd.s32 %v3313, %v3315
        %v3318 = vadd.s32 %v3317, %v3307
        %v3319 = vadd.s32 %v3318, %v3309
        %v3320 = vand.u32 %v3297, 65535
        %v3321 = vshrl.u32 %v3297, 16
        %v3322 = vand.u32 %v3292, 65535
        %v3323 = vshrl.u32 %v3292, 16
        %v3324 = vmul.u32 %v3320, %v3322
        %v3325 = vmul.u32 %v3320, %v3323
        %v3326 = vmul.u32 %v3321, %v3322
        %v3327 = vmul.u32 %v3321, %v3323
        %v3328 = vshll.u32 %v3325, 16
        %v3329 = vshrl.u32 %v3325, 16
        %v3330 = vshll.u32 %v3326, 16
        %v3331 = vshrl.u32 %v3326, 16
        %vm3332 = vc.u32 %v3324, %v3328
        %v3333 = vsel %vm3332, 1, 0
        %v3334 = vadd.s32 %v3324, %v3328
        %v3335 = vadd.s32 %v3327, %v3333
        %vm3336 = vc.u32 %v3334, %v3330
        %v3337 = vsel %vm3336, 1, 0
        %v3338 = vadd.s32 %v3334, %v3330
        %v3339 = vadd.s32 %v3335, %v3337
        %v3340 = vadd.s32 %v3339, %v3329
        %v3341 = vadd.s32 %v3340, %v3331
        %v3342 = vmul.u32 %v3297, %v3288
        %v3343 = vadd.s32 %v3319, %v3338
        %vm3344 = vc.u32 %v3319, %v3338
        %v3345 = vadd.s32 %v3341, 1
        %v3346 = vsel %vm3344, %v3345, %v3341
        %v3347 = vadd.s32 %v3342, %v3346
        %v3348 = vadd.s32 %v3347, 536870912
        %v3349 = vshrl.u32 %v3348, 30
        %v3350 = vshll.u32 %v3349, 30
        %v3351 = vsub.s32 %v3347, %v3350
        %vm3352 = vcmp.lt.s32.totalorder %v3351, 0
        %v3353 = vsub.s32 0, %v3351
        %v3354 = vsel %vm3352, %v3353, %v3351
        %v3355 = vclz %v3354
        %v3356 = vsub.s32 %v3355, 2
        %vm3357 = vcmp.gt.s32.totalorder 0, %v3356
        %v3358 = vsel %vm3357, 0, %v3356
        %v3359 = vsub.s32 32, %v3358
        %v3360 = vshll.u32 %v3351, %v3358
        %v3361 = vshrl.u32 %v3343, %v3359
        %v3362 = vor.u32 %v3360, %v3361
        %v3363 = vsub.s32 4294967266, %v3358
        %v3364 = vadd.s32 %v3363, 127
        %v3365 = vshll.u32 %v3364, 23
        %v3366 = vor.u32 4788187, %v3365
        %v3367 = vand.u32 2147483647, %v3366
        %v3369 = vcvt.s32.f32 %v3362
        %v3370 = vmul.f32 %v3369, %v3367
        %v3371 = vxor.u32 %v3370, 2147483648
        %v3372 = vsel %vm3251, %v3371, %v3370
        %v3373 = vsub.s32 4, %v3349
        %v3374 = vsel %vm3251, %v3373, %v3349
        %v3375 = vsel %vm3250, %v368, %v3372
        %v3376 = vsel %vm3250, 0, %v3374
        %v3377 = vmul.f32 %v3375, %v3375
        %v3378 = vmul.f32 %v3377, -0.001358992
        %v3379 = vadd.f32 %v3378, 0.041655596
        %v3380 = vmul.f32 %v3377, %v3379
        %v3381 = vadd.f32 %v3380, -0.4999988
        %v3382 = vmul.f32 %v3377, %v3381
        %v3383 = vadd.f32 1.0, %v3382
        %v3384 = vmul.f32 %v3375, %v3375
        %v3385 = vmul.f32 %v3384, -0.00019511016
        %v3386 = vadd.f32 %v3385, 0.008332121
        %v3387 = vmul.f32 %v3384, %v3386
        %v3388 = vadd.f32 %v3387, -0.16666654
        %v3389 = vmul.f32 %v3384, %v3388
        %v3390 = vadd.f32 %v3389, 1.0
        %v3391 = vmul.f32 %v3390, %v3375
        %vm3392 = vweird.f32 %v368
        %v3393 = vadd.s32 %v3376, 3
        %v3394 = vand.u32 %v3393, 3
        %vm3395 = vcmp.lt.s32.totalorder %v3394, 2
        %vm3396 = vcmp.eq.s32.totalorder %v3394, 0
        %v3397 = vxor.u32 %v3391, 2147483648
        %v3398 = vsel %vm3396, %v3383, %v3397
        %vm3399 = vcmp.eq.s32.totalorder %v3394, 2
        %v3400 = vxor.u32 %v3383, 2147483648
        %v3401 = vsel %vm3399, %v3400, %v3391
        %v3402 = vsel %vm3395, %v3398, %v3401
        %v3403 = vsel %vm3392, nan, %v3402
        %v3404 = vand.u32 2147483647, %v371
        %vm3405 = vcmp.le.f32.partialorder %v3404, 0.7853982
        %vm3406 = vcmp.lt.s32.totalorder %v371, 0
        %v3407 = vand.u32 %v371, 2139095040
        %v3408 = vshrl.u32 %v3407, 23
        %v3409 = vsub.s32 %v3408, 127
        %v3410 = vand.u32 2147483647, %v371
        %v3411 = vand.u32 %v3410, 8388607
        %v3412 = vor.u32 %v3411, 8388608
        %v3413 = vsub.s32 0, %v3412
        %v3414 = vadd.s32 %v3409, 1
        %vm3415 = vcmp.gt.s32.totalorder %v3414, 0
        %v3416 = vsel %vm3415, %v3414, 0
        %v3417 = vshrl.u32 %v3416, 5
        %v3418 = vand.u32 %v3416, 31
        %v3419 = vsub.s32 32, %v3418
        %v3420 = vshrl.u32 683565275, %v3419
        %v3421 = vshll.u32 683565275, %v3418
        %v3422 = vshrl.u32 2475754826, %v3419
        %v3423 = vor.u32 %v3421, %v3422
        %v3424 = vshll.u32 2475754826, %v3418
        %v3425 = vshrl.u32 2131351028, %v3419
        %v3426 = vor.u32 %v3424, %v3425
        %v3427 = vshll.u32 2131351028, %v3418
        %v3428 = vshrl.u32 2102212464, %v3419
        %v3429 = vor.u32 %v3427, %v3428
        %v3430 = vshll.u32 2102212464, %v3418
        %v3431 = vshrl.u32 920167782, %v3419
        %v3432 = vor.u32 %v3430, %v3431
        %v3433 = vshll.u32 920167782, %v3418
        %v3434 = vshrl.u32 1326507024, %v3419
        %v3435 = vor.u32 %v3433, %v3434
        %vm3436 = vcmp.lt.s32.totalorder %v3417, 1
        %vm3437 = vcmp.lt.s32.totalorder %v3417, 2
        %vm3438 = vcmp.lt.s32.totalorder %v3417, 3
        %vm3439 = vcmp.lt.s32.totalorder %v3417, 4
        %v3440 = vsel %vm3436, %v3420, %v3423
        %v3441 = vsel %vm3439, %v3429, 2102212464
        %v3442 = vsel %vm3438, %v3426, %v3441
        %v3443 = vsel %vm3437, %v3440, %v3442
        %v3444 = vsel %vm3436, %v3423, %v3426
        %v3445 = vsel %vm3439, %v3432, 920167782
        %v3446 = vsel %vm3438, %v3429, %v3445
        %v3447 = vsel %vm3437, %v3444, %v3446
        %v3448 = vsel %vm3436, %v3426, %v3429
        %v3449 = vsel %vm3439, %v3435, 1326507024
        %v3450 = vsel %vm3438, %v3432, %v3449
        %v3451 = vsel %vm3437, %v3448, %v3450
        %v3452 = vshll.u32 %v3412, 8
        %v3453 = vand.u32 %v3452, 65535
        %v3454 = vshrl.u32 %v3452, 16
        %v3455 = vand.u32 %v3451, 65535
        %v3456 = vshrl.u32 %v3451, 16
        %v3457 = vmul.u32 %v3453, %v3455
        %v3458 = vmul.u32 %v3453, %v3456
        %v3459 = vmul.u32 %v3454, %v3455
        %v3460 = vmul.u32 %v3454, %v3456
        %v3461 = vshll.u32 %v3458, 16
        %v3462 = vshrl.u32 %v3458, 16
        %v3463 = vshll.u32 %v3459, 16
        %v3464 = vshrl.u32 %v3459, 16
        %vm3465 = vc.u32 %v3457, %v3461
        %v3466 = vsel %vm3465, 1, 0
        %v3467 = vadd.s32 %v3457, %v3461
        %v3468 = vadd.s32 %v3460, %v3466
        %vm3469 = vc.u32 %v3467, %v3463
        %v3470 = vsel %vm3469, 1, 0
        %v3471 = vadd.s32 %v3467, %v3463
        %v3472 = vadd.s32 %v3468, %v3470
        %v3473 = vadd.s32 %v3472, %v3462
        %v3474 = vadd.s32 %v3473, %v3464
        %v3475 = vand.u32 %v3452, 65535
        %v3476 = vshrl.u32 %v3452, 16
        %v3477 = vand.u32 %v3447, 65535
        %v3478 = vshrl.u32 %v3447, 16
        %v3479 = vmul.u32 %v3475, %v3477
        %v3480 = vmul.u32 %v3475, %v3478
        %v3481 = vmul.u32 %v3476, %v3477
        %v3482 = vmul.u32 %v3476, %v3478
        %v3483 = vshll.u32 %v3480, 16
        %v3484 = vshrl.u32 %v3480, 16
        %v3485 = vshll.u32 %v3481, 16
        %v3486 = vshrl.u32 %v3481, 16
        %vm3487 = vc.u32 %v3479, %v3483
        %v3488 = vsel %vm3487, 1, 0
        %v3489 = vadd.s32 %v3479, %v3483
        %v3490 = vadd.s32 %v3482, %v3488
        %vm3491 = vc.u32 %v3489, %v3485
        %v3492 = vsel %vm3491, 1, 0
        %v3493 = vadd.s32 %v3489, %v3485
        %v3494 = vadd.s32 %v3490, %v3492
        %v3495 = vadd.s32 %v3494, %v3484
        %v3496 = vadd.s32 %v3495, %v3486
        %v3497 = vmul.u32 %v3452, %v3443
        %v3498 = vadd.s32 %v3474, %v3493
        %vm3499 = vc.u32 %v3474, %v3493
        %v3500 = vadd.s32 %v3496, 1
        %v3501 = vsel %vm3499, %v3500, %v3496
        %v3502 = vadd.s32 %v3497, %v3501
        %v3503 = vadd.s32 %v3502, 536870912
        %v3504 = vshrl.u32 %v3503, 30
        %v3505 = vshll.u32 %v3504, 30
        %v3506 = vsub.s32 %v3502, %v3505
        %vm3507 = vcmp.lt.s32.totalorder %v3506, 0
        %v3508 = vsub.s32 0, %v3506
        %v3509 = vsel %vm3507, %v3508, %v3506
        %v3510 = vclz %v3509
        %v3511 = vsub.s32 %v3510, 2
        %vm3512 = vcmp.gt.s32.totalorder 0, %v3511
        %v3513 = vsel %vm3512, 0, %v3511
        %v3514 = vsub.s32 32, %v3513
        %v3515 = vshll.u32 %v3506, %v3513
        %v3516 = vshrl.u32 %v3498, %v3514
        %v3517 = vor.u32 %v3515, %v3516
        %v3518 = vsub.s32 4294967266, %v3513
        %v3519 = vadd.s32 %v3518, 127
        %v3520 = vshll.u32 %v3519, 23
        %v3521 = vor.u32 4788187, %v3520
        %v3522 = vand.u32 2147483647, %v3521
        %v3524 = vcvt.s32.f32 %v3517
        %v3525 = vmul.f32 %v3524, %v3522
        %v3526 = vxor.u32 %v3525, 2147483648
        %v3527 = vsel %vm3406, %v3526, %v3525
        %v3528 = vsub.s32 4, %v3504
        %v3529 = vsel %vm3406, %v3528, %v3504
        %v3530 = vsel %vm3405, %v371, %v3527
        %v3531 = vsel %vm3405, 0, %v3529
        %v3532 = vmul.f32 %v3530, %v3530
        %v3533 = vmul.f32 %v3532, -0.001358992
        %v3534 = vadd.f32 %v3533, 0.041655596
        %v3535 = vmul.f32 %v3532, %v3534
        %v3536 = vadd.f32 %v3535, -0.4999988
        %v3537 = vmul.f32 %v3532, %v3536
        %v3538 = vadd.f32 1.0, %v3537
        %v3539 = vmul.f32 %v3530, %v3530
        %v3540 = vmul.f32 %v3539, -0.00019511016
        %v3541 = vadd.f32 %v3540, 0.008332121
        %v3542 = vmul.f32 %v3539, %v3541
        %v3543 = vadd.f32 %v3542, -0.16666654
        %v3544 = vmul.f32 %v3539, %v3543
        %v3545 = vadd.f32 %v3544, 1.0
        %v3546 = vmul.f32 %v3545, %v3530
        %vm3547 = vweird.f32 %v371
        %v3548 = vadd.s32 %v3531, 3
        %v3549 = vand.u32 %v3548, 3
        %vm3550 = vcmp.lt.s32.totalorder %v3549, 2
        %vm3551 = vcmp.eq.s32.totalorder %v3549, 0
        %v3552 = vxor.u32 %v3546, 2147483648
        %v3553 = vsel %vm3551, %v3538, %v3552
        %vm3554 = vcmp.eq.s32.totalorder %v3549, 2
        %v3555 = vxor.u32 %v3538, 2147483648
        %v3556 = vsel %vm3554, %v3555, %v3546
        %v3557 = vsel %vm3550, %v3553, %v3556
        %v3558 = vsel %vm3547, nan, %v3557
        %v3559 = vand.u32 2147483647, %v374
        %vm3560 = vcmp.le.f32.partialorder %v3559, 0.7853982
        %vm3561 = vcmp.lt.s32.totalorder %v374, 0
        %v3562 = vand.u32 %v374, 2139095040
        %v3563 = vshrl.u32 %v3562, 23
        %v3564 = vsub.s32 %v3563, 127
        %v3565 = vand.u32 2147483647, %v374
        %v3566 = vand.u32 %v3565, 8388607
        %v3567 = vor.u32 %v3566, 8388608
        %v3568 = vsub.s32 0, %v3567
        %v3569 = vadd.s32 %v3564, 1
        %vm3570 = vcmp.gt.s32.totalorder %v3569, 0
        %v3571 = vsel %vm3570, %v3569, 0
        %v3572 = vshrl.u32 %v3571, 5
        %v3573 = vand.u32 %v3571, 31
        %v3574 = vsub.s32 32, %v3573
        %v3575 = vshrl.u32 683565275, %v3574
        %v3576 = vshll.u32 683565275, %v3573
        %v3577 = vshrl.u32 2475754826, %v3574
        %v3578 = vor.u32 %v3576, %v3577
        %v3579 = vshll.u32 2475754826, %v3573
        %v3580 = vshrl.u32 2131351028, %v3574
        %v3581 = vor.u32 %v3579, %v3580
        %v3582 = vshll.u32 2131351028, %v3573
        %v3583 = vshrl.u32 2102212464, %v3574
        %v3584 = vor.u32 %v3582, %v3583
        %v3585 = vshll.u32 2102212464, %v3573
        %v3586 = vshrl.u32 920167782, %v3574
        %v3587 = vor.u32 %v3585, %v3586
        %v3588 = vshll.u32 920167782, %v3573
        %v3589 = vshrl.u32 1326507024, %v3574
        %v3590 = vor.u32 %v3588, %v3589
        %vm3591 = vcmp.lt.s32.totalorder %v3572, 1
        %vm3592 = vcmp.lt.s32.totalorder %v3572, 2
        %vm3593 = vcmp.lt.s32.totalorder %v3572, 3
        %vm3594 = vcmp.lt.s32.totalorder %v3572, 4
        %v3595 = vsel %vm3591, %v3575, %v3578
        %v3596 = vsel %vm3594, %v3584, 2102212464
        %v3597 = vsel %vm3593, %v3581, %v3596
        %v3598 = vsel %vm3592, %v3595, %v3597
        %v3599 = vsel %vm3591, %v3578, %v3581
        %v3600 = vsel %vm3594, %v3587, 920167782
        %v3601 = vsel %vm3593, %v3584, %v3600
        %v3602 = vsel %vm3592, %v3599, %v3601
        %v3603 = vsel %vm3591, %v3581, %v3584
        %v3604 = vsel %vm3594, %v3590, 1326507024
        %v3605 = vsel %vm3593, %v3587, %v3604
        %v3606 = vsel %vm3592, %v3603, %v3605
        %v3607 = vshll.u32 %v3567, 8
        %v3608 = vand.u32 %v3607, 65535
        %v3609 = vshrl.u32 %v3607, 16
        %v3610 = vand.u32 %v3606, 65535
        %v3611 = vshrl.u32 %v3606, 16
        %v3612 = vmul.u32 %v3608, %v3610
        %v3613 = vmul.u32 %v3608, %v3611
        %v3614 = vmul.u32 %v3609, %v3610
        %v3615 = vmul.u32 %v3609, %v3611
        %v3616 = vshll.u32 %v3613, 16
        %v3617 = vshrl.u32 %v3613, 16
        %v3618 = vshll.u32 %v3614, 16
        %v3619 = vshrl.u32 %v3614, 16
        %vm3620 = vc.u32 %v3612, %v3616
        %v3621 = vsel %vm3620, 1, 0
        %v3622 = vadd.s32 %v3612, %v3616
        %v3623 = vadd.s32 %v3615, %v3621
        %vm3624 = vc.u32 %v3622, %v3618
        %v3625 = vsel %vm3624, 1, 0
        %v3626 = vadd.s32 %v3622, %v3618
        %v3627 = vadd.s32 %v3623, %v3625
        %v3628 = vadd.s32 %v3627, %v3617
        %v3629 = vadd.s32 %v3628, %v3619
        %v3630 = vand.u32 %v3607, 65535
        %v3631 = vshrl.u32 %v3607, 16
        %v3632 = vand.u32 %v3602, 65535
        %v3633 = vshrl.u32 %v3602, 16
        %v3634 = vmul.u32 %v3630, %v3632
        %v3635 = vmul.u32 %v3630, %v3633
        %v3636 = vmul.u32 %v3631, %v3632
        %v3637 = vmul.u32 %v3631, %v3633
        %v3638 = vshll.u32 %v3635, 16
        %v3639 = vshrl.u32 %v3635, 16
        %v3640 = vshll.u32 %v3636, 16
        %v3641 = vshrl.u32 %v3636, 16
        %vm3642 = vc.u32 %v3634, %v3638
        %v3643 = vsel %vm3642, 1, 0
        %v3644 = vadd.s32 %v3634, %v3638
        %v3645 = vadd.s32 %v3637, %v3643
        %vm3646 = vc.u32 %v3644, %v3640
        %v3647 = vsel %vm3646, 1, 0
        %v3648 = vadd.s32 %v3644, %v3640
        %v3649 = vadd.s32 %v3645, %v3647
        %v3650 = vadd.s32 %v3649, %v3639
        %v3651 = vadd.s32 %v3650, %v3641
        %v3652 = vmul.u32 %v3607, %v3598
        %v3653 = vadd.s32 %v3629, %v3648
        %vm3654 = vc.u32 %v3629, %v3648
        %v3655 = vadd.s32 %v3651, 1
        %v3656 = vsel %vm3654, %v3655, %v3651
        %v3657 = vadd.s32 %v3652, %v3656
        %v3658 = vadd.s32 %v3657, 536870912
        %v3659 = vshrl.u32 %v3658, 30
        %v3660 = vshll.u32 %v3659, 30
        %v3661 = vsub.s32 %v3657, %v3660
        %vm3662 = vcmp.lt.s32.totalorder %v3661, 0
        %v3663 = vsub.s32 0, %v3661
        %v3664 = vsel %vm3662, %v3663, %v3661
        %v3665 = vclz %v3664
        %v3666 = vsub.s32 %v3665, 2
        %vm3667 = vcmp.gt.s32.totalorder 0, %v3666
        %v3668 = vsel %vm3667, 0, %v3666
        %v3669 = vsub.s32 32, %v3668
        %v3670 = vshll.u32 %v3661, %v3668
        %v3671 = vshrl.u32 %v3653, %v3669
        %v3672 = vor.u32 %v3670, %v3671
        %v3673 = vsub.s32 4294967266, %v3668
        %v3674 = vadd.s32 %v3673, 127
        %v3675 = vshll.u32 %v3674, 23
        %v3676 = vor.u32 4788187, %v3675
        %v3677 = vand.u32 2147483647, %v3676
        %v3679 = vcvt.s32.f32 %v3672
        %v3680 = vmul.f32 %v3679, %v3677
        %v3681 = vxor.u32 %v3680, 2147483648
        %v3682 = vsel %vm3561, %v3681, %v3680
        %v3683 = vsub.s32 4, %v3659
        %v3684 = vsel %vm3561, %v3683, %v3659
        %v3685 = vsel %vm3560, %v374, %v3682
        %v3686 = vsel %vm3560, 0, %v3684
        %v3687 = vmul.f32 %v3685, %v3685
        %v3688 = vmul.f32 %v3687, -0.001358992
        %v3689 = vadd.f32 %v3688, 0.041655596
        %v3690 = vmul.f32 %v3687, %v3689
        %v3691 = vadd.f32 %v3690, -0.4999988
        %v3692 = vmul.f32 %v3687, %v3691
        %v3693 = vadd.f32 1.0, %v3692
        %v3694 = vmul.f32 %v3685, %v3685
        %v3695 = vmul.f32 %v3694, -0.00019511016
        %v3696 = vadd.f32 %v3695, 0.008332121
        %v3697 = vmul.f32 %v3694, %v3696
        %v3698 = vadd.f32 %v3697, -0.16666654
        %v3699 = vmul.f32 %v3694, %v3698
        %v3700 = vadd.f32 %v3699, 1.0
        %v3701 = vmul.f32 %v3700, %v3685
        %vm3702 = vweird.f32 %v374
        %v3703 = vadd.s32 %v3686, 3
        %v3704 = vand.u32 %v3703, 3
        %vm3705 = vcmp.lt.s32.totalorder %v3704, 2
        %vm3706 = vcmp.eq.s32.totalorder %v3704, 0
        %v3707 = vxor.u32 %v3701, 2147483648
        %v3708 = vsel %vm3706, %v3693, %v3707
        %vm3709 = vcmp.eq.s32.totalorder %v3704, 2
        %v3710 = vxor.u32 %v3693, 2147483648
        %v3711 = vsel %vm3709, %v3710, %v3701
        %v3712 = vsel %vm3705, %v3708, %v3711
        %v3713 = vsel %vm3702, nan, %v3712
        %v3714 = vand.u32 2147483647, %v377
        %vm3715 = vcmp.le.f32.partialorder %v3714, 0.7853982
        %vm3716 = vcmp.lt.s32.totalorder %v377, 0
        %v3717 = vand.u32 %v377, 2139095040
        %v3718 = vshrl.u32 %v3717, 23
        %v3719 = vsub.s32 %v3718, 127
        %v3720 = vand.u32 2147483647, %v377
        %v3721 = vand.u32 %v3720, 8388607
        %v3722 = vor.u32 %v3721, 8388608
        %v3723 = vsub.s32 0, %v3722
        %v3724 = vadd.s32 %v3719, 1
        %vm3725 = vcmp.gt.s32.totalorder %v3724, 0
        %v3726 = vsel %vm3725, %v3724, 0
        %v3727 = vshrl.u32 %v3726, 5
        %v3728 = vand.u32 %v3726, 31
        %v3729 = vsub.s32 32, %v3728
        %v3730 = vshrl.u32 683565275, %v3729
        %v3731 = vshll.u32 683565275, %v3728
        %v3732 = vshrl.u32 2475754826, %v3729
        %v3733 = vor.u32 %v3731, %v3732
        %v3734 = vshll.u32 2475754826, %v3728
        %v3735 = vshrl.u32 2131351028, %v3729
        %v3736 = vor.u32 %v3734, %v3735
        %v3737 = vshll.u32 2131351028, %v3728
        %v3738 = vshrl.u32 2102212464, %v3729
        %v3739 = vor.u32 %v3737, %v3738
        %v3740 = vshll.u32 2102212464, %v3728
        %v3741 = vshrl.u32 920167782, %v3729
        %v3742 = vor.u32 %v3740, %v3741
        %v3743 = vshll.u32 920167782, %v3728
        %v3744 = vshrl.u32 1326507024, %v3729
        %v3745 = vor.u32 %v3743, %v3744
        %vm3746 = vcmp.lt.s32.totalorder %v3727, 1
        %vm3747 = vcmp.lt.s32.totalorder %v3727, 2
        %vm3748 = vcmp.lt.s32.totalorder %v3727, 3
        %vm3749 = vcmp.lt.s32.totalorder %v3727, 4
        %v3750 = vsel %vm3746, %v3730, %v3733
        %v3751 = vsel %vm3749, %v3739, 2102212464
        %v3752 = vsel %vm3748, %v3736, %v3751
        %v3753 = vsel %vm3747, %v3750, %v3752
        %v3754 = vsel %vm3746, %v3733, %v3736
        %v3755 = vsel %vm3749, %v3742, 920167782
        %v3756 = vsel %vm3748, %v3739, %v3755
        %v3757 = vsel %vm3747, %v3754, %v3756
        %v3758 = vsel %vm3746, %v3736, %v3739
        %v3759 = vsel %vm3749, %v3745, 1326507024
        %v3760 = vsel %vm3748, %v3742, %v3759
        %v3761 = vsel %vm3747, %v3758, %v3760
        %v3762 = vshll.u32 %v3722, 8
        %v3763 = vand.u32 %v3762, 65535
        %v3764 = vshrl.u32 %v3762, 16
        %v3765 = vand.u32 %v3761, 65535
        %v3766 = vshrl.u32 %v3761, 16
        %v3767 = vmul.u32 %v3763, %v3765
        %v3768 = vmul.u32 %v3763, %v3766
        %v3769 = vmul.u32 %v3764, %v3765
        %v3770 = vmul.u32 %v3764, %v3766
        %v3771 = vshll.u32 %v3768, 16
        %v3772 = vshrl.u32 %v3768, 16
        %v3773 = vshll.u32 %v3769, 16
        %v3774 = vshrl.u32 %v3769, 16
        %vm3775 = vc.u32 %v3767, %v3771
        %v3776 = vsel %vm3775, 1, 0
        %v3777 = vadd.s32 %v3767, %v3771
        %v3778 = vadd.s32 %v3770, %v3776
        %vm3779 = vc.u32 %v3777, %v3773
        %v3780 = vsel %vm3779, 1, 0
        %v3781 = vadd.s32 %v3777, %v3773
        %v3782 = vadd.s32 %v3778, %v3780
        %v3783 = vadd.s32 %v3782, %v3772
        %v3784 = vadd.s32 %v3783, %v3774
        %v3785 = vand.u32 %v3762, 65535
        %v3786 = vshrl.u32 %v3762, 16
        %v3787 = vand.u32 %v3757, 65535
        %v3788 = vshrl.u32 %v3757, 16
        %v3789 = vmul.u32 %v3785, %v3787
        %v3790 = vmul.u32 %v3785, %v3788
        %v3791 = vmul.u32 %v3786, %v3787
        %v3792 = vmul.u32 %v3786, %v3788
        %v3793 = vshll.u32 %v3790, 16
        %v3794 = vshrl.u32 %v3790, 16
        %v3795 = vshll.u32 %v3791, 16
        %v3796 = vshrl.u32 %v3791, 16
        %vm3797 = vc.u32 %v3789, %v3793
        %v3798 = vsel %vm3797, 1, 0
        %v3799 = vadd.s32 %v3789, %v3793
        %v3800 = vadd.s32 %v3792, %v3798
        %vm3801 = vc.u32 %v3799, %v3795
        %v3802 = vsel %vm3801, 1, 0
        %v3803 = vadd.s32 %v3799, %v3795
        %v3804 = vadd.s32 %v3800, %v3802
        %v3805 = vadd.s32 %v3804, %v3794
        %v3806 = vadd.s32 %v3805, %v3796
        %v3807 = vmul.u32 %v3762, %v3753
        %v3808 = vadd.s32 %v3784, %v3803
        %vm3809 = vc.u32 %v3784, %v3803
        %v3810 = vadd.s32 %v3806, 1
        %v3811 = vsel %vm3809, %v3810, %v3806
        %v3812 = vadd.s32 %v3807, %v3811
        %v3813 = vadd.s32 %v3812, 536870912
        %v3814 = vshrl.u32 %v3813, 30
        %v3815 = vshll.u32 %v3814, 30
        %v3816 = vsub.s32 %v3812, %v3815
        %vm3817 = vcmp.lt.s32.totalorder %v3816, 0
        %v3818 = vsub.s32 0, %v3816
        %v3819 = vsel %vm3817, %v3818, %v3816
        %v3820 = vclz %v3819
        %v3821 = vsub.s32 %v3820, 2
        %vm3822 = vcmp.gt.s32.totalorder 0, %v3821
        %v3823 = vsel %vm3822, 0, %v3821
        %v3824 = vsub.s32 32, %v3823
        %v3825 = vshll.u32 %v3816, %v3823
        %v3826 = vshrl.u32 %v3808, %v3824
        %v3827 = vor.u32 %v3825, %v3826
        %v3828 = vsub.s32 4294967266, %v3823
        %v3829 = vadd.s32 %v3828, 127
        %v3830 = vshll.u32 %v3829, 23
        %v3831 = vor.u32 4788187, %v3830
        %v3832 = vand.u32 2147483647, %v3831
        %v3834 = vcvt.s32.f32 %v3827
        %v3835 = vmul.f32 %v3834, %v3832
        %v3836 = vxor.u32 %v3835, 2147483648
        %v3837 = vsel %vm3716, %v3836, %v3835
        %v3838 = vsub.s32 4, %v3814
        %v3839 = vsel %vm3716, %v3838, %v3814
        %v3840 = vsel %vm3715, %v377, %v3837
        %v3841 = vsel %vm3715, 0, %v3839
        %v3842 = vmul.f32 %v3840, %v3840
        %v3843 = vmul.f32 %v3842, -0.001358992
        %v3844 = vadd.f32 %v3843, 0.041655596
        %v3845 = vmul.f32 %v3842, %v3844
        %v3846 = vadd.f32 %v3845, -0.4999988
        %v3847 = vmul.f32 %v3842, %v3846
        %v3848 = vadd.f32 1.0, %v3847
        %v3849 = vmul.f32 %v3840, %v3840
        %v3850 = vmul.f32 %v3849, -0.00019511016
        %v3851 = vadd.f32 %v3850, 0.008332121
        %v3852 = vmul.f32 %v3849, %v3851
        %v3853 = vadd.f32 %v3852, -0.16666654
        %v3854 = vmul.f32 %v3849, %v3853
        %v3855 = vadd.f32 %v3854, 1.0
        %v3856 = vmul.f32 %v3855, %v3840
        %vm3857 = vweird.f32 %v377
        %v3858 = vadd.s32 %v3841, 3
        %v3859 = vand.u32 %v3858, 3
        %vm3860 = vcmp.lt.s32.totalorder %v3859, 2
        %vm3861 = vcmp.eq.s32.totalorder %v3859, 0
        %v3862 = vxor.u32 %v3856, 2147483648
        %v3863 = vsel %vm3861, %v3848, %v3862
        %vm3864 = vcmp.eq.s32.totalorder %v3859, 2
        %v3865 = vxor.u32 %v3848, 2147483648
        %v3866 = vsel %vm3864, %v3865, %v3856
        %v3867 = vsel %vm3860, %v3863, %v3866
        %v3868 = vsel %vm3857, nan, %v3867
        %v3869 = vand.u32 2147483647, %v380
        %vm3870 = vcmp.le.f32.partialorder %v3869, 0.7853982
        %vm3871 = vcmp.lt.s32.totalorder %v380, 0
        %v3872 = vand.u32 %v380, 2139095040
        %v3873 = vshrl.u32 %v3872, 23
        %v3874 = vsub.s32 %v3873, 127
        %v3875 = vand.u32 2147483647, %v380
        %v3876 = vand.u32 %v3875, 8388607
        %v3877 = vor.u32 %v3876, 8388608
        %v3878 = vsub.s32 0, %v3877
        %v3879 = vadd.s32 %v3874, 1
        %vm3880 = vcmp.gt.s32.totalorder %v3879, 0
        %v3881 = vsel %vm3880, %v3879, 0
        %v3882 = vshrl.u32 %v3881, 5
        %v3883 = vand.u32 %v3881, 31
        %v3884 = vsub.s32 32, %v3883
        %v3885 = vshrl.u32 683565275, %v3884
        %v3886 = vshll.u32 683565275, %v3883
        %v3887 = vshrl.u32 2475754826, %v3884
        %v3888 = vor.u32 %v3886, %v3887
        %v3889 = vshll.u32 2475754826, %v3883
        %v3890 = vshrl.u32 2131351028, %v3884
        %v3891 = vor.u32 %v3889, %v3890
        %v3892 = vshll.u32 2131351028, %v3883
        %v3893 = vshrl.u32 2102212464, %v3884
        %v3894 = vor.u32 %v3892, %v3893
        %v3895 = vshll.u32 2102212464, %v3883
        %v3896 = vshrl.u32 920167782, %v3884
        %v3897 = vor.u32 %v3895, %v3896
        %v3898 = vshll.u32 920167782, %v3883
        %v3899 = vshrl.u32 1326507024, %v3884
        %v3900 = vor.u32 %v3898, %v3899
        %vm3901 = vcmp.lt.s32.totalorder %v3882, 1
        %vm3902 = vcmp.lt.s32.totalorder %v3882, 2
        %vm3903 = vcmp.lt.s32.totalorder %v3882, 3
        %vm3904 = vcmp.lt.s32.totalorder %v3882, 4
        %v3905 = vsel %vm3901, %v3885, %v3888
        %v3906 = vsel %vm3904, %v3894, 2102212464
        %v3907 = vsel %vm3903, %v3891, %v3906
        %v3908 = vsel %vm3902, %v3905, %v3907
        %v3909 = vsel %vm3901, %v3888, %v3891
        %v3910 = vsel %vm3904, %v3897, 920167782
        %v3911 = vsel %vm3903, %v3894, %v3910
        %v3912 = vsel %vm3902, %v3909, %v3911
        %v3913 = vsel %vm3901, %v3891, %v3894
        %v3914 = vsel %vm3904, %v3900, 1326507024
        %v3915 = vsel %vm3903, %v3897, %v3914
        %v3916 = vsel %vm3902, %v3913, %v3915
        %v3917 = vshll.u32 %v3877, 8
        %v3918 = vand.u32 %v3917, 65535
        %v3919 = vshrl.u32 %v3917, 16
        %v3920 = vand.u32 %v3916, 65535
        %v3921 = vshrl.u32 %v3916, 16
        %v3922 = vmul.u32 %v3918, %v3920
        %v3923 = vmul.u32 %v3918, %v3921
        %v3924 = vmul.u32 %v3919, %v3920
        %v3925 = vmul.u32 %v3919, %v3921
        %v3926 = vshll.u32 %v3923, 16
        %v3927 = vshrl.u32 %v3923, 16
        %v3928 = vshll.u32 %v3924, 16
        %v3929 = vshrl.u32 %v3924, 16
        %vm3930 = vc.u32 %v3922, %v3926
        %v3931 = vsel %vm3930, 1, 0
        %v3932 = vadd.s32 %v3922, %v3926
        %v3933 = vadd.s32 %v3925, %v3931
        %vm3934 = vc.u32 %v3932, %v3928
        %v3935 = vsel %vm3934, 1, 0
        %v3936 = vadd.s32 %v3932, %v3928
        %v3937 = vadd.s32 %v3933, %v3935
        %v3938 = vadd.s32 %v3937, %v3927
        %v3939 = vadd.s32 %v3938, %v3929
        %v3940 = vand.u32 %v3917, 65535
        %v3941 = vshrl.u32 %v3917, 16
        %v3942 = vand.u32 %v3912, 65535
        %v3943 = vshrl.u32 %v3912, 16
        %v3944 = vmul.u32 %v3940, %v3942
        %v3945 = vmul.u32 %v3940, %v3943
        %v3946 = vmul.u32 %v3941, %v3942
        %v3947 = vmul.u32 %v3941, %v3943
        %v3948 = vshll.u32 %v3945, 16
        %v3949 = vshrl.u32 %v3945, 16
        %v3950 = vshll.u32 %v3946, 16
        %v3951 = vshrl.u32 %v3946, 16
        %vm3952 = vc.u32 %v3944, %v3948
        %v3953 = vsel %vm3952, 1, 0
        %v3954 = vadd.s32 %v3944, %v3948
        %v3955 = vadd.s32 %v3947, %v3953
        %vm3956 = vc.u32 %v3954, %v3950
        %v3957 = vsel %vm3956, 1, 0
        %v3958 = vadd.s32 %v3954, %v3950
        %v3959 = vadd.s32 %v3955, %v3957
        %v3960 = vadd.s32 %v3959, %v3949
        %v3961 = vadd.s32 %v3960, %v3951
        %v3962 = vmul.u32 %v3917, %v3908
        %v3963 = vadd.s32 %v3939, %v3958
        %vm3964 = vc.u32 %v3939, %v3958
        %v3965 = vadd.s32 %v3961, 1
        %v3966 = vsel %vm3964, %v3965, %v3961
        %v3967 = vadd.s32 %v3962, %v3966
        %v3968 = vadd.s32 %v3967, 536870912
        %v3969 = vshrl.u32 %v3968, 30
        %v3970 = vshll.u32 %v3969, 30
        %v3971 = vsub.s32 %v3967, %v3970
        %vm3972 = vcmp.lt.s32.totalorder %v3971, 0
        %v3973 = vsub.s32 0, %v3971
        %v3974 = vsel %vm3972, %v3973, %v3971
        %v3975 = vclz %v3974
        %v3976 = vsub.s32 %v3975, 2
        %vm3977 = vcmp.gt.s32.totalorder 0, %v3976
        %v3978 = vsel %vm3977, 0, %v3976
        %v3979 = vsub.s32 32, %v3978
        %v3980 = vshll.u32 %v3971, %v3978
        %v3981 = vshrl.u32 %v3963, %v3979
        %v3982 = vor.u32 %v3980, %v3981
        %v3983 = vsub.s32 4294967266, %v3978
        %v3984 = vadd.s32 %v3983, 127
        %v3985 = vshll.u32 %v3984, 23
        %v3986 = vor.u32 4788187, %v3985
        %v3987 = vand.u32 2147483647, %v3986
        %v3989 = vcvt.s32.f32 %v3982
        %v3990 = vmul.f32 %v3989, %v3987
        %v3991 = vxor.u32 %v3990, 2147483648
        %v3992 = vsel %vm3871, %v3991, %v3990
        %v3993 = vsub.s32 4, %v3969
        %v3994 = vsel %vm3871, %v3993, %v3969
        %v3995 = vsel %vm3870, %v380, %v3992
        %v3996 = vsel %vm3870, 0, %v3994
        %v3997 = vmul.f32 %v3995, %v3995
        %v3998 = vmul.f32 %v3997, -0.001358992
        %v3999 = vadd.f32 %v3998, 0.041655596
        %v4000 = vmul.f32 %v3997, %v3999
        %v4001 = vadd.f32 %v4000, -0.4999988
        %v4002 = vmul.f32 %v3997, %v4001
        %v4003 = vadd.f32 1.0, %v4002
        %v4004 = vmul.f32 %v3995, %v3995
        %v4005 = vmul.f32 %v4004, -0.00019511016
        %v4006 = vadd.f32 %v4005, 0.008332121
        %v4007 = vmul.f32 %v4004, %v4006
        %v4008 = vadd.f32 %v4007, -0.16666654
        %v4009 = vmul.f32 %v4004, %v4008
        %v4010 = vadd.f32 %v4009, 1.0
        %v4011 = vmul.f32 %v4010, %v3995
        %vm4012 = vweird.f32 %v380
        %v4013 = vadd.s32 %v3996, 3
        %v4014 = vand.u32 %v4013, 3
        %vm4015 = vcmp.lt.s32.totalorder %v4014, 2
        %vm4016 = vcmp.eq.s32.totalorder %v4014, 0
        %v4017 = vxor.u32 %v4011, 2147483648
        %v4018 = vsel %vm4016, %v4003, %v4017
        %vm4019 = vcmp.eq.s32.totalorder %v4014, 2
        %v4020 = vxor.u32 %v4003, 2147483648
        %v4021 = vsel %vm4019, %v4020, %v4011
        %v4022 = vsel %vm4015, %v4018, %v4021
        %v4023 = vsel %vm4012, nan, %v4022
        %v4024 = vand.u32 2147483647, %v383
        %vm4025 = vcmp.le.f32.partialorder %v4024, 0.7853982
        %vm4026 = vcmp.lt.s32.totalorder %v383, 0
        %v4027 = vand.u32 %v383, 2139095040
        %v4028 = vshrl.u32 %v4027, 23
        %v4029 = vsub.s32 %v4028, 127
        %v4030 = vand.u32 2147483647, %v383
        %v4031 = vand.u32 %v4030, 8388607
        %v4032 = vor.u32 %v4031, 8388608
        %v4033 = vsub.s32 0, %v4032
        %v4034 = vadd.s32 %v4029, 1
        %vm4035 = vcmp.gt.s32.totalorder %v4034, 0
        %v4036 = vsel %vm4035, %v4034, 0
        %v4037 = vshrl.u32 %v4036, 5
        %v4038 = vand.u32 %v4036, 31
        %v4039 = vsub.s32 32, %v4038
        %v4040 = vshrl.u32 683565275, %v4039
        %v4041 = vshll.u32 683565275, %v4038
        %v4042 = vshrl.u32 2475754826, %v4039
        %v4043 = vor.u32 %v4041, %v4042
        %v4044 = vshll.u32 2475754826, %v4038
        %v4045 = vshrl.u32 2131351028, %v4039
        %v4046 = vor.u32 %v4044, %v4045
        %v4047 = vshll.u32 2131351028, %v4038
        %v4048 = vshrl.u32 2102212464, %v4039
        %v4049 = vor.u32 %v4047, %v4048
        %v4050 = vshll.u32 2102212464, %v4038
        %v4051 = vshrl.u32 920167782, %v4039
        %v4052 = vor.u32 %v4050, %v4051
        %v4053 = vshll.u32 920167782, %v4038
        %v4054 = vshrl.u32 1326507024, %v4039
        %v4055 = vor.u32 %v4053, %v4054
        %vm4056 = vcmp.lt.s32.totalorder %v4037, 1
        %vm4057 = vcmp.lt.s32.totalorder %v4037, 2
        %vm4058 = vcmp.lt.s32.totalorder %v4037, 3
        %vm4059 = vcmp.lt.s32.totalorder %v4037, 4
        %v4060 = vsel %vm4056, %v4040, %v4043
        %v4061 = vsel %vm4059, %v4049, 2102212464
        %v4062 = vsel %vm4058, %v4046, %v4061
        %v4063 = vsel %vm4057, %v4060, %v4062
        %v4064 = vsel %vm4056, %v4043, %v4046
        %v4065 = vsel %vm4059, %v4052, 920167782
        %v4066 = vsel %vm4058, %v4049, %v4065
        %v4067 = vsel %vm4057, %v4064, %v4066
        %v4068 = vsel %vm4056, %v4046, %v4049
        %v4069 = vsel %vm4059, %v4055, 1326507024
        %v4070 = vsel %vm4058, %v4052, %v4069
        %v4071 = vsel %vm4057, %v4068, %v4070
        %v4072 = vshll.u32 %v4032, 8
        %v4073 = vand.u32 %v4072, 65535
        %v4074 = vshrl.u32 %v4072, 16
        %v4075 = vand.u32 %v4071, 65535
        %v4076 = vshrl.u32 %v4071, 16
        %v4077 = vmul.u32 %v4073, %v4075
        %v4078 = vmul.u32 %v4073, %v4076
        %v4079 = vmul.u32 %v4074, %v4075
        %v4080 = vmul.u32 %v4074, %v4076
        %v4081 = vshll.u32 %v4078, 16
        %v4082 = vshrl.u32 %v4078, 16
        %v4083 = vshll.u32 %v4079, 16
        %v4084 = vshrl.u32 %v4079, 16
        %vm4085 = vc.u32 %v4077, %v4081
        %v4086 = vsel %vm4085, 1, 0
        %v4087 = vadd.s32 %v4077, %v4081
        %v4088 = vadd.s32 %v4080, %v4086
        %vm4089 = vc.u32 %v4087, %v4083
        %v4090 = vsel %vm4089, 1, 0
        %v4091 = vadd.s32 %v4087, %v4083
        %v4092 = vadd.s32 %v4088, %v4090
        %v4093 = vadd.s32 %v4092, %v4082
        %v4094 = vadd.s32 %v4093, %v4084
        %v4095 = vand.u32 %v4072, 65535
        %v4096 = vshrl.u32 %v4072, 16
        %v4097 = vand.u32 %v4067, 65535
        %v4098 = vshrl.u32 %v4067, 16
        %v4099 = vmul.u32 %v4095, %v4097
        %v4100 = vmul.u32 %v4095, %v4098
        %v4101 = vmul.u32 %v4096, %v4097
        %v4102 = vmul.u32 %v4096, %v4098
        %v4103 = vshll.u32 %v4100, 16
        %v4104 = vshrl.u32 %v4100, 16
        %v4105 = vshll.u32 %v4101, 16
        %v4106 = vshrl.u32 %v4101, 16
        %vm4107 = vc.u32 %v4099, %v4103
        %v4108 = vsel %vm4107, 1, 0
        %v4109 = vadd.s32 %v4099, %v4103
        %v4110 = vadd.s32 %v4102, %v4108
        %vm4111 = vc.u32 %v4109, %v4105
        %v4112 = vsel %vm4111, 1, 0
        %v4113 = vadd.s32 %v4109, %v4105
        %v4114 = vadd.s32 %v4110, %v4112
        %v4115 = vadd.s32 %v4114, %v4104
        %v4116 = vadd.s32 %v4115, %v4106
        %v4117 = vmul.u32 %v4072, %v4063
        %v4118 = vadd.s32 %v4094, %v4113
        %vm4119 = vc.u32 %v4094, %v4113
        %v4120 = vadd.s32 %v4116, 1
        %v4121 = vsel %vm4119, %v4120, %v4116
        %v4122 = vadd.s32 %v4117, %v4121
        %v4123 = vadd.s32 %v4122, 536870912
        %v4124 = vshrl.u32 %v4123, 30
        %v4125 = vshll.u32 %v4124, 30
        %v4126 = vsub.s32 %v4122, %v4125
        %vm4127 = vcmp.lt.s32.totalorder %v4126, 0
        %v4128 = vsub.s32 0, %v4126
        %v4129 = vsel %vm4127, %v4128, %v4126
        %v4130 = vclz %v4129
        %v4131 = vsub.s32 %v4130, 2
        %vm4132 = vcmp.gt.s32.totalorder 0, %v4131
        %v4133 = vsel %vm4132, 0, %v4131
        %v4134 = vsub.s32 32, %v4133
        %v4135 = vshll.u32 %v4126, %v4133
        %v4136 = vshrl.u32 %v4118, %v4134
        %v4137 = vor.u32 %v4135, %v4136
        %v4138 = vsub.s32 4294967266, %v4133
        %v4139 = vadd.s32 %v4138, 127
        %v4140 = vshll.u32 %v4139, 23
        %v4141 = vor.u32 4788187, %v4140
        %v4142 = vand.u32 2147483647, %v4141
        %v4144 = vcvt.s32.f32 %v4137
        %v4145 = vmul.f32 %v4144, %v4142
        %v4146 = vxor.u32 %v4145, 2147483648
        %v4147 = vsel %vm4026, %v4146, %v4145
        %v4148 = vsub.s32 4, %v4124
        %v4149 = vsel %vm4026, %v4148, %v4124
        %v4150 = vsel %vm4025, %v383, %v4147
        %v4151 = vsel %vm4025, 0, %v4149
        %v4152 = vmul.f32 %v4150, %v4150
        %v4153 = vmul.f32 %v4152, -0.001358992
        %v4154 = vadd.f32 %v4153, 0.041655596
        %v4155 = vmul.f32 %v4152, %v4154
        %v4156 = vadd.f32 %v4155, -0.4999988
        %v4157 = vmul.f32 %v4152, %v4156
        %v4158 = vadd.f32 1.0, %v4157
        %v4159 = vmul.f32 %v4150, %v4150
        %v4160 = vmul.f32 %v4159, -0.00019511016
        %v4161 = vadd.f32 %v4160, 0.008332121
        %v4162 = vmul.f32 %v4159, %v4161
        %v4163 = vadd.f32 %v4162, -0.16666654
        %v4164 = vmul.f32 %v4159, %v4163
        %v4165 = vadd.f32 %v4164, 1.0
        %v4166 = vmul.f32 %v4165, %v4150
        %vm4167 = vweird.f32 %v383
        %v4168 = vadd.s32 %v4151, 3
        %v4169 = vand.u32 %v4168, 3
        %vm4170 = vcmp.lt.s32.totalorder %v4169, 2
        %vm4171 = vcmp.eq.s32.totalorder %v4169, 0
        %v4172 = vxor.u32 %v4166, 2147483648
        %v4173 = vsel %vm4171, %v4158, %v4172
        %vm4174 = vcmp.eq.s32.totalorder %v4169, 2
        %v4175 = vxor.u32 %v4158, 2147483648
        %v4176 = vsel %vm4174, %v4175, %v4166
        %v4177 = vsel %vm4170, %v4173, %v4176
        %v4178 = vsel %vm4167, nan, %v4177
        %v4179 = vand.u32 2147483647, %v386
        %vm4180 = vcmp.le.f32.partialorder %v4179, 0.7853982
        %vm4181 = vcmp.lt.s32.totalorder %v386, 0
        %v4182 = vand.u32 %v386, 2139095040
        %v4183 = vshrl.u32 %v4182, 23
        %v4184 = vsub.s32 %v4183, 127
        %v4185 = vand.u32 2147483647, %v386
        %v4186 = vand.u32 %v4185, 8388607
        %v4187 = vor.u32 %v4186, 8388608
        %v4188 = vsub.s32 0, %v4187
        %v4189 = vadd.s32 %v4184, 1
        %vm4190 = vcmp.gt.s32.totalorder %v4189, 0
        %v4191 = vsel %vm4190, %v4189, 0
        %v4192 = vshrl.u32 %v4191, 5
        %v4193 = vand.u32 %v4191, 31
        %v4194 = vsub.s32 32, %v4193
        %v4195 = vshrl.u32 683565275, %v4194
        %v4196 = vshll.u32 683565275, %v4193
        %v4197 = vshrl.u32 2475754826, %v4194
        %v4198 = vor.u32 %v4196, %v4197
        %v4199 = vshll.u32 2475754826, %v4193
        %v4200 = vshrl.u32 2131351028, %v4194
        %v4201 = vor.u32 %v4199, %v4200
        %v4202 = vshll.u32 2131351028, %v4193
        %v4203 = vshrl.u32 2102212464, %v4194
        %v4204 = vor.u32 %v4202, %v4203
        %v4205 = vshll.u32 2102212464, %v4193
        %v4206 = vshrl.u32 920167782, %v4194
        %v4207 = vor.u32 %v4205, %v4206
        %v4208 = vshll.u32 920167782, %v4193
        %v4209 = vshrl.u32 1326507024, %v4194
        %v4210 = vor.u32 %v4208, %v4209
        %vm4211 = vcmp.lt.s32.totalorder %v4192, 1
        %vm4212 = vcmp.lt.s32.totalorder %v4192, 2
        %vm4213 = vcmp.lt.s32.totalorder %v4192, 3
        %vm4214 = vcmp.lt.s32.totalorder %v4192, 4
        %v4215 = vsel %vm4211, %v4195, %v4198
        %v4216 = vsel %vm4214, %v4204, 2102212464
        %v4217 = vsel %vm4213, %v4201, %v4216
        %v4218 = vsel %vm4212, %v4215, %v4217
        %v4219 = vsel %vm4211, %v4198, %v4201
        %v4220 = vsel %vm4214, %v4207, 920167782
        %v4221 = vsel %vm4213, %v4204, %v4220
        %v4222 = vsel %vm4212, %v4219, %v4221
        %v4223 = vsel %vm4211, %v4201, %v4204
        %v4224 = vsel %vm4214, %v4210, 1326507024
        %v4225 = vsel %vm4213, %v4207, %v4224
        %v4226 = vsel %vm4212, %v4223, %v4225
        %v4227 = vshll.u32 %v4187, 8
        %v4228 = vand.u32 %v4227, 65535
        %v4229 = vshrl.u32 %v4227, 16
        %v4230 = vand.u32 %v4226, 65535
        %v4231 = vshrl.u32 %v4226, 16
        %v4232 = vmul.u32 %v4228, %v4230
        %v4233 = vmul.u32 %v4228, %v4231
        %v4234 = vmul.u32 %v4229, %v4230
        %v4235 = vmul.u32 %v4229, %v4231
        %v4236 = vshll.u32 %v4233, 16
        %v4237 = vshrl.u32 %v4233, 16
        %v4238 = vshll.u32 %v4234, 16
        %v4239 = vshrl.u32 %v4234, 16
        %vm4240 = vc.u32 %v4232, %v4236
        %v4241 = vsel %vm4240, 1, 0
        %v4242 = vadd.s32 %v4232, %v4236
        %v4243 = vadd.s32 %v4235, %v4241
        %vm4244 = vc.u32 %v4242, %v4238
        %v4245 = vsel %vm4244, 1, 0
        %v4246 = vadd.s32 %v4242, %v4238
        %v4247 = vadd.s32 %v4243, %v4245
        %v4248 = vadd.s32 %v4247, %v4237
        %v4249 = vadd.s32 %v4248, %v4239
        %v4250 = vand.u32 %v4227, 65535
        %v4251 = vshrl.u32 %v4227, 16
        %v4252 = vand.u32 %v4222, 65535
        %v4253 = vshrl.u32 %v4222, 16
        %v4254 = vmul.u32 %v4250, %v4252
        %v4255 = vmul.u32 %v4250, %v4253
        %v4256 = vmul.u32 %v4251, %v4252
        %v4257 = vmul.u32 %v4251, %v4253
        %v4258 = vshll.u32 %v4255, 16
        %v4259 = vshrl.u32 %v4255, 16
        %v4260 = vshll.u32 %v4256, 16
        %v4261 = vshrl.u32 %v4256, 16
        %vm4262 = vc.u32 %v4254, %v4258
        %v4263 = vsel %vm4262, 1, 0
        %v4264 = vadd.s32 %v4254, %v4258
        %v4265 = vadd.s32 %v4257, %v4263
        %vm4266 = vc.u32 %v4264, %v4260
        %v4267 = vsel %vm4266, 1, 0
        %v4268 = vadd.s32 %v4264, %v4260
        %v4269 = vadd.s32 %v4265, %v4267
        %v4270 = vadd.s32 %v4269, %v4259
        %v4271 = vadd.s32 %v4270, %v4261
        %v4272 = vmul.u32 %v4227, %v4218
        %v4273 = vadd.s32 %v4249, %v4268
        %vm4274 = vc.u32 %v4249, %v4268
        %v4275 = vadd.s32 %v4271, 1
        %v4276 = vsel %vm4274, %v4275, %v4271
        %v4277 = vadd.s32 %v4272, %v4276
        %v4278 = vadd.s32 %v4277, 536870912
        %v4279 = vshrl.u32 %v4278, 30
        %v4280 = vshll.u32 %v4279, 30
        %v4281 = vsub.s32 %v4277, %v4280
        %vm4282 = vcmp.lt.s32.totalorder %v4281, 0
        %v4283 = vsub.s32 0, %v4281
        %v4284 = vsel %vm4282, %v4283, %v4281
        %v4285 = vclz %v4284
        %v4286 = vsub.s32 %v4285, 2
        %vm4287 = vcmp.gt.s32.totalorder 0, %v4286
        %v4288 = vsel %vm4287, 0, %v4286
        %v4289 = vsub.s32 32, %v4288
        %v4290 = vshll.u32 %v4281, %v4288
        %v4291 = vshrl.u32 %v4273, %v4289
        %v4292 = vor.u32 %v4290, %v4291
        %v4293 = vsub.s32 4294967266, %v4288
        %v4294 = vadd.s32 %v4293, 127
        %v4295 = vshll.u32 %v4294, 23
        %v4296 = vor.u32 4788187, %v4295
        %v4297 = vand.u32 2147483647, %v4296
        %v4299 = vcvt.s32.f32 %v4292
        %v4300 = vmul.f32 %v4299, %v4297
        %v4301 = vxor.u32 %v4300, 2147483648
        %v4302 = vsel %vm4181, %v4301, %v4300
        %v4303 = vsub.s32 4, %v4279
        %v4304 = vsel %vm4181, %v4303, %v4279
        %v4305 = vsel %vm4180, %v386, %v4302
        %v4306 = vsel %vm4180, 0, %v4304
        %v4307 = vmul.f32 %v4305, %v4305
        %v4308 = vmul.f32 %v4307, -0.001358992
        %v4309 = vadd.f32 %v4308, 0.041655596
        %v4310 = vmul.f32 %v4307, %v4309
        %v4311 = vadd.f32 %v4310, -0.4999988
        %v4312 = vmul.f32 %v4307, %v4311
        %v4313 = vadd.f32 1.0, %v4312
        %v4314 = vmul.f32 %v4305, %v4305
        %v4315 = vmul.f32 %v4314, -0.00019511016
        %v4316 = vadd.f32 %v4315, 0.008332121
        %v4317 = vmul.f32 %v4314, %v4316
        %v4318 = vadd.f32 %v4317, -0.16666654
        %v4319 = vmul.f32 %v4314, %v4318
        %v4320 = vadd.f32 %v4319, 1.0
        %v4321 = vmul.f32 %v4320, %v4305
        %vm4322 = vweird.f32 %v386
        %v4323 = vadd.s32 %v4306, 3
        %v4324 = vand.u32 %v4323, 3
        %vm4325 = vcmp.lt.s32.totalorder %v4324, 2
        %vm4326 = vcmp.eq.s32.totalorder %v4324, 0
        %v4327 = vxor.u32 %v4321, 2147483648
        %v4328 = vsel %vm4326, %v4313, %v4327
        %vm4329 = vcmp.eq.s32.totalorder %v4324, 2
        %v4330 = vxor.u32 %v4313, 2147483648
        %v4331 = vsel %vm4329, %v4330, %v4321
        %v4332 = vsel %vm4325, %v4328, %v4331
        %v4333 = vsel %vm4322, nan, %v4332
        %v4334 = vand.u32 2147483647, %v389
        %vm4335 = vcmp.le.f32.partialorder %v4334, 0.7853982
        %vm4336 = vcmp.lt.s32.totalorder %v389, 0
        %v4337 = vand.u32 %v389, 2139095040
        %v4338 = vshrl.u32 %v4337, 23
        %v4339 = vsub.s32 %v4338, 127
        %v4340 = vand.u32 2147483647, %v389
        %v4341 = vand.u32 %v4340, 8388607
        %v4342 = vor.u32 %v4341, 8388608
        %v4343 = vsub.s32 0, %v4342
        %v4344 = vadd.s32 %v4339, 1
        %vm4345 = vcmp.gt.s32.totalorder %v4344, 0
        %v4346 = vsel %vm4345, %v4344, 0
        %v4347 = vshrl.u32 %v4346, 5
        %v4348 = vand.u32 %v4346, 31
        %v4349 = vsub.s32 32, %v4348
        %v4350 = vshrl.u32 683565275, %v4349
        %v4351 = vshll.u32 683565275, %v4348
        %v4352 = vshrl.u32 2475754826, %v4349
        %v4353 = vor.u32 %v4351, %v4352
        %v4354 = vshll.u32 2475754826, %v4348
        %v4355 = vshrl.u32 2131351028, %v4349
        %v4356 = vor.u32 %v4354, %v4355
        %v4357 = vshll.u32 2131351028, %v4348
        %v4358 = vshrl.u32 2102212464, %v4349
        %v4359 = vor.u32 %v4357, %v4358
        %v4360 = vshll.u32 2102212464, %v4348
        %v4361 = vshrl.u32 920167782, %v4349
        %v4362 = vor.u32 %v4360, %v4361
        %v4363 = vshll.u32 920167782, %v4348
        %v4364 = vshrl.u32 1326507024, %v4349
        %v4365 = vor.u32 %v4363, %v4364
        %vm4366 = vcmp.lt.s32.totalorder %v4347, 1
        %vm4367 = vcmp.lt.s32.totalorder %v4347, 2
        %vm4368 = vcmp.lt.s32.totalorder %v4347, 3
        %vm4369 = vcmp.lt.s32.totalorder %v4347, 4
        %v4370 = vsel %vm4366, %v4350, %v4353
        %v4371 = vsel %vm4369, %v4359, 2102212464
        %v4372 = vsel %vm4368, %v4356, %v4371
        %v4373 = vsel %vm4367, %v4370, %v4372
        %v4374 = vsel %vm4366, %v4353, %v4356
        %v4375 = vsel %vm4369, %v4362, 920167782
        %v4376 = vsel %vm4368, %v4359, %v4375
        %v4377 = vsel %vm4367, %v4374, %v4376
        %v4378 = vsel %vm4366, %v4356, %v4359
        %v4379 = vsel %vm4369, %v4365, 1326507024
        %v4380 = vsel %vm4368, %v4362, %v4379
        %v4381 = vsel %vm4367, %v4378, %v4380
        %v4382 = vshll.u32 %v4342, 8
        %v4383 = vand.u32 %v4382, 65535
        %v4384 = vshrl.u32 %v4382, 16
        %v4385 = vand.u32 %v4381, 65535
        %v4386 = vshrl.u32 %v4381, 16
        %v4387 = vmul.u32 %v4383, %v4385
        %v4388 = vmul.u32 %v4383, %v4386
        %v4389 = vmul.u32 %v4384, %v4385
        %v4390 = vmul.u32 %v4384, %v4386
        %v4391 = vshll.u32 %v4388, 16
        %v4392 = vshrl.u32 %v4388, 16
        %v4393 = vshll.u32 %v4389, 16
        %v4394 = vshrl.u32 %v4389, 16
        %vm4395 = vc.u32 %v4387, %v4391
        %v4396 = vsel %vm4395, 1, 0
        %v4397 = vadd.s32 %v4387, %v4391
        %v4398 = vadd.s32 %v4390, %v4396
        %vm4399 = vc.u32 %v4397, %v4393
        %v4400 = vsel %vm4399, 1, 0
        %v4401 = vadd.s32 %v4397, %v4393
        %v4402 = vadd.s32 %v4398, %v4400
        %v4403 = vadd.s32 %v4402, %v4392
        %v4404 = vadd.s32 %v4403, %v4394
        %v4405 = vand.u32 %v4382, 65535
        %v4406 = vshrl.u32 %v4382, 16
        %v4407 = vand.u32 %v4377, 65535
        %v4408 = vshrl.u32 %v4377, 16
        %v4409 = vmul.u32 %v4405, %v4407
        %v4410 = vmul.u32 %v4405, %v4408
        %v4411 = vmul.u32 %v4406, %v4407
        %v4412 = vmul.u32 %v4406, %v4408
        %v4413 = vshll.u32 %v4410, 16
        %v4414 = vshrl.u32 %v4410, 16
        %v4415 = vshll.u32 %v4411, 16
        %v4416 = vshrl.u32 %v4411, 16
        %vm4417 = vc.u32 %v4409, %v4413
        %v4418 = vsel %vm4417, 1, 0
        %v4419 = vadd.s32 %v4409, %v4413
        %v4420 = vadd.s32 %v4412, %v4418
        %vm4421 = vc.u32 %v4419, %v4415
        %v4422 = vsel %vm4421, 1, 0
        %v4423 = vadd.s32 %v4419, %v4415
        %v4424 = vadd.s32 %v4420, %v4422
        %v4425 = vadd.s32 %v4424, %v4414
        %v4426 = vadd.s32 %v4425, %v4416
        %v4427 = vmul.u32 %v4382, %v4373
        %v4428 = vadd.s32 %v4404, %v4423
        %vm4429 = vc.u32 %v4404, %v4423
        %v4430 = vadd.s32 %v4426, 1
        %v4431 = vsel %vm4429, %v4430, %v4426
        %v4432 = vadd.s32 %v4427, %v4431
        %v4433 = vadd.s32 %v4432, 536870912
        %v4434 = vshrl.u32 %v4433, 30
        %v4435 = vshll.u32 %v4434, 30
        %v4436 = vsub.s32 %v4432, %v4435
        %vm4437 = vcmp.lt.s32.totalorder %v4436, 0
        %v4438 = vsub.s32 0, %v4436
        %v4439 = vsel %vm4437, %v4438, %v4436
        %v4440 = vclz %v4439
        %v4441 = vsub.s32 %v4440, 2
        %vm4442 = vcmp.gt.s32.totalorder 0, %v4441
        %v4443 = vsel %vm4442, 0, %v4441
        %v4444 = vsub.s32 32, %v4443
        %v4445 = vshll.u32 %v4436, %v4443
        %v4446 = vshrl.u32 %v4428, %v4444
        %v4447 = vor.u32 %v4445, %v4446
        %v4448 = vsub.s32 4294967266, %v4443
        %v4449 = vadd.s32 %v4448, 127
        %v4450 = vshll.u32 %v4449, 23
        %v4451 = vor.u32 4788187, %v4450
        %v4452 = vand.u32 2147483647, %v4451
        %v4454 = vcvt.s32.f32 %v4447
        %v4455 = vmul.f32 %v4454, %v4452
        %v4456 = vxor.u32 %v4455, 2147483648
        %v4457 = vsel %vm4336, %v4456, %v4455
        %v4458 = vsub.s32 4, %v4434
        %v4459 = vsel %vm4336, %v4458, %v4434
        %v4460 = vsel %vm4335, %v389, %v4457
        %v4461 = vsel %vm4335, 0, %v4459
        %v4462 = vmul.f32 %v4460, %v4460
        %v4463 = vmul.f32 %v4462, -0.001358992
        %v4464 = vadd.f32 %v4463, 0.041655596
        %v4465 = vmul.f32 %v4462, %v4464
        %v4466 = vadd.f32 %v4465, -0.4999988
        %v4467 = vmul.f32 %v4462, %v4466
        %v4468 = vadd.f32 1.0, %v4467
        %v4469 = vmul.f32 %v4460, %v4460
        %v4470 = vmul.f32 %v4469, -0.00019511016
        %v4471 = vadd.f32 %v4470, 0.008332121
        %v4472 = vmul.f32 %v4469, %v4471
        %v4473 = vadd.f32 %v4472, -0.16666654
        %v4474 = vmul.f32 %v4469, %v4473
        %v4475 = vadd.f32 %v4474, 1.0
        %v4476 = vmul.f32 %v4475, %v4460
        %vm4477 = vweird.f32 %v389
        %v4478 = vadd.s32 %v4461, 3
        %v4479 = vand.u32 %v4478, 3
        %vm4480 = vcmp.lt.s32.totalorder %v4479, 2
        %vm4481 = vcmp.eq.s32.totalorder %v4479, 0
        %v4482 = vxor.u32 %v4476, 2147483648
        %v4483 = vsel %vm4481, %v4468, %v4482
        %vm4484 = vcmp.eq.s32.totalorder %v4479, 2
        %v4485 = vxor.u32 %v4468, 2147483648
        %v4486 = vsel %vm4484, %v4485, %v4476
        %v4487 = vsel %vm4480, %v4483, %v4486
        %v4488 = vsel %vm4477, nan, %v4487
        %v4489 = vand.u32 2147483647, %v392
        %vm4490 = vcmp.le.f32.partialorder %v4489, 0.7853982
        %vm4491 = vcmp.lt.s32.totalorder %v392, 0
        %v4492 = vand.u32 %v392, 2139095040
        %v4493 = vshrl.u32 %v4492, 23
        %v4494 = vsub.s32 %v4493, 127
        %v4495 = vand.u32 2147483647, %v392
        %v4496 = vand.u32 %v4495, 8388607
        %v4497 = vor.u32 %v4496, 8388608
        %v4498 = vsub.s32 0, %v4497
        %v4499 = vadd.s32 %v4494, 1
        %vm4500 = vcmp.gt.s32.totalorder %v4499, 0
        %v4501 = vsel %vm4500, %v4499, 0
        %v4502 = vshrl.u32 %v4501, 5
        %v4503 = vand.u32 %v4501, 31
        %v4504 = vsub.s32 32, %v4503
        %v4505 = vshrl.u32 683565275, %v4504
        %v4506 = vshll.u32 683565275, %v4503
        %v4507 = vshrl.u32 2475754826, %v4504
        %v4508 = vor.u32 %v4506, %v4507
        %v4509 = vshll.u32 2475754826, %v4503
        %v4510 = vshrl.u32 2131351028, %v4504
        %v4511 = vor.u32 %v4509, %v4510
        %v4512 = vshll.u32 2131351028, %v4503
        %v4513 = vshrl.u32 2102212464, %v4504
        %v4514 = vor.u32 %v4512, %v4513
        %v4515 = vshll.u32 2102212464, %v4503
        %v4516 = vshrl.u32 920167782, %v4504
        %v4517 = vor.u32 %v4515, %v4516
        %v4518 = vshll.u32 920167782, %v4503
        %v4519 = vshrl.u32 1326507024, %v4504
        %v4520 = vor.u32 %v4518, %v4519
        %vm4521 = vcmp.lt.s32.totalorder %v4502, 1
        %vm4522 = vcmp.lt.s32.totalorder %v4502, 2
        %vm4523 = vcmp.lt.s32.totalorder %v4502, 3
        %vm4524 = vcmp.lt.s32.totalorder %v4502, 4
        %v4525 = vsel %vm4521, %v4505, %v4508
        %v4526 = vsel %vm4524, %v4514, 2102212464
        %v4527 = vsel %vm4523, %v4511, %v4526
        %v4528 = vsel %vm4522, %v4525, %v4527
        %v4529 = vsel %vm4521, %v4508, %v4511
        %v4530 = vsel %vm4524, %v4517, 920167782
        %v4531 = vsel %vm4523, %v4514, %v4530
        %v4532 = vsel %vm4522, %v4529, %v4531
        %v4533 = vsel %vm4521, %v4511, %v4514
        %v4534 = vsel %vm4524, %v4520, 1326507024
        %v4535 = vsel %vm4523, %v4517, %v4534
        %v4536 = vsel %vm4522, %v4533, %v4535
        %v4537 = vshll.u32 %v4497, 8
        %v4538 = vand.u32 %v4537, 65535
        %v4539 = vshrl.u32 %v4537, 16
        %v4540 = vand.u32 %v4536, 65535
        %v4541 = vshrl.u32 %v4536, 16
        %v4542 = vmul.u32 %v4538, %v4540
        %v4543 = vmul.u32 %v4538, %v4541
        %v4544 = vmul.u32 %v4539, %v4540
        %v4545 = vmul.u32 %v4539, %v4541
        %v4546 = vshll.u32 %v4543, 16
        %v4547 = vshrl.u32 %v4543, 16
        %v4548 = vshll.u32 %v4544, 16
        %v4549 = vshrl.u32 %v4544, 16
        %vm4550 = vc.u32 %v4542, %v4546
        %v4551 = vsel %vm4550, 1, 0
        %v4552 = vadd.s32 %v4542, %v4546
        %v4553 = vadd.s32 %v4545, %v4551
        %vm4554 = vc.u32 %v4552, %v4548
        %v4555 = vsel %vm4554, 1, 0
        %v4556 = vadd.s32 %v4552, %v4548
        %v4557 = vadd.s32 %v4553, %v4555
        %v4558 = vadd.s32 %v4557, %v4547
        %v4559 = vadd.s32 %v4558, %v4549
        %v4560 = vand.u32 %v4537, 65535
        %v4561 = vshrl.u32 %v4537, 16
        %v4562 = vand.u32 %v4532, 65535
        %v4563 = vshrl.u32 %v4532, 16
        %v4564 = vmul.u32 %v4560, %v4562
        %v4565 = vmul.u32 %v4560, %v4563
        %v4566 = vmul.u32 %v4561, %v4562
        %v4567 = vmul.u32 %v4561, %v4563
        %v4568 = vshll.u32 %v4565, 16
        %v4569 = vshrl.u32 %v4565, 16
        %v4570 = vshll.u32 %v4566, 16
        %v4571 = vshrl.u32 %v4566, 16
        %vm4572 = vc.u32 %v4564, %v4568
        %v4573 = vsel %vm4572, 1, 0
        %v4574 = vadd.s32 %v4564, %v4568
        %v4575 = vadd.s32 %v4567, %v4573
        %vm4576 = vc.u32 %v4574, %v4570
        %v4577 = vsel %vm4576, 1, 0
        %v4578 = vadd.s32 %v4574, %v4570
        %v4579 = vadd.s32 %v4575, %v4577
        %v4580 = vadd.s32 %v4579, %v4569
        %v4581 = vadd.s32 %v4580, %v4571
        %v4582 = vmul.u32 %v4537, %v4528
        %v4583 = vadd.s32 %v4559, %v4578
        %vm4584 = vc.u32 %v4559, %v4578
        %v4585 = vadd.s32 %v4581, 1
        %v4586 = vsel %vm4584, %v4585, %v4581
        %v4587 = vadd.s32 %v4582, %v4586
        %v4588 = vadd.s32 %v4587, 536870912
        %v4589 = vshrl.u32 %v4588, 30
        %v4590 = vshll.u32 %v4589, 30
        %v4591 = vsub.s32 %v4587, %v4590
        %vm4592 = vcmp.lt.s32.totalorder %v4591, 0
        %v4593 = vsub.s32 0, %v4591
        %v4594 = vsel %vm4592, %v4593, %v4591
        %v4595 = vclz %v4594
        %v4596 = vsub.s32 %v4595, 2
        %vm4597 = vcmp.gt.s32.totalorder 0, %v4596
        %v4598 = vsel %vm4597, 0, %v4596
        %v4599 = vsub.s32 32, %v4598
        %v4600 = vshll.u32 %v4591, %v4598
        %v4601 = vshrl.u32 %v4583, %v4599
        %v4602 = vor.u32 %v4600, %v4601
        %v4603 = vsub.s32 4294967266, %v4598
        %v4604 = vadd.s32 %v4603, 127
        %v4605 = vshll.u32 %v4604, 23
        %v4606 = vor.u32 4788187, %v4605
        %v4607 = vand.u32 2147483647, %v4606
        %v4609 = vcvt.s32.f32 %v4602
        %v4610 = vmul.f32 %v4609, %v4607
        %v4611 = vxor.u32 %v4610, 2147483648
        %v4612 = vsel %vm4491, %v4611, %v4610
        %v4613 = vsub.s32 4, %v4589
        %v4614 = vsel %vm4491, %v4613, %v4589
        %v4615 = vsel %vm4490, %v392, %v4612
        %v4616 = vsel %vm4490, 0, %v4614
        %v4617 = vmul.f32 %v4615, %v4615
        %v4618 = vmul.f32 %v4617, -0.001358992
        %v4619 = vadd.f32 %v4618, 0.041655596
        %v4620 = vmul.f32 %v4617, %v4619
        %v4621 = vadd.f32 %v4620, -0.4999988
        %v4622 = vmul.f32 %v4617, %v4621
        %v4623 = vadd.f32 1.0, %v4622
        %v4624 = vmul.f32 %v4615, %v4615
        %v4625 = vmul.f32 %v4624, -0.00019511016
        %v4626 = vadd.f32 %v4625, 0.008332121
        %v4627 = vmul.f32 %v4624, %v4626
        %v4628 = vadd.f32 %v4627, -0.16666654
        %v4629 = vmul.f32 %v4624, %v4628
        %v4630 = vadd.f32 %v4629, 1.0
        %v4631 = vmul.f32 %v4630, %v4615
        %vm4632 = vweird.f32 %v392
        %v4633 = vadd.s32 %v4616, 3
        %v4634 = vand.u32 %v4633, 3
        %vm4635 = vcmp.lt.s32.totalorder %v4634, 2
        %vm4636 = vcmp.eq.s32.totalorder %v4634, 0
        %v4637 = vxor.u32 %v4631, 2147483648
        %v4638 = vsel %vm4636, %v4623, %v4637
        %vm4639 = vcmp.eq.s32.totalorder %v4634, 2
        %v4640 = vxor.u32 %v4623, 2147483648
        %v4641 = vsel %vm4639, %v4640, %v4631
        %v4642 = vsel %vm4635, %v4638, %v4641
        %v4643 = vsel %vm4632, nan, %v4642
        %v4644 = vand.u32 2147483647, %v395
        %vm4645 = vcmp.le.f32.partialorder %v4644, 0.7853982
        %vm4646 = vcmp.lt.s32.totalorder %v395, 0
        %v4647 = vand.u32 %v395, 2139095040
        %v4648 = vshrl.u32 %v4647, 23
        %v4649 = vsub.s32 %v4648, 127
        %v4650 = vand.u32 2147483647, %v395
        %v4651 = vand.u32 %v4650, 8388607
        %v4652 = vor.u32 %v4651, 8388608
        %v4653 = vsub.s32 0, %v4652
        %v4654 = vadd.s32 %v4649, 1
        %vm4655 = vcmp.gt.s32.totalorder %v4654, 0
        %v4656 = vsel %vm4655, %v4654, 0
        %v4657 = vshrl.u32 %v4656, 5
        %v4658 = vand.u32 %v4656, 31
        %v4659 = vsub.s32 32, %v4658
        %v4660 = vshrl.u32 683565275, %v4659
        %v4661 = vshll.u32 683565275, %v4658
        %v4662 = vshrl.u32 2475754826, %v4659
        %v4663 = vor.u32 %v4661, %v4662
        %v4664 = vshll.u32 2475754826, %v4658
        %v4665 = vshrl.u32 2131351028, %v4659
        %v4666 = vor.u32 %v4664, %v4665
        %v4667 = vshll.u32 2131351028, %v4658
        %v4668 = vshrl.u32 2102212464, %v4659
        %v4669 = vor.u32 %v4667, %v4668
        %v4670 = vshll.u32 2102212464, %v4658
        %v4671 = vshrl.u32 920167782, %v4659
        %v4672 = vor.u32 %v4670, %v4671
        %v4673 = vshll.u32 920167782, %v4658
        %v4674 = vshrl.u32 1326507024, %v4659
        %v4675 = vor.u32 %v4673, %v4674
        %vm4676 = vcmp.lt.s32.totalorder %v4657, 1
        %vm4677 = vcmp.lt.s32.totalorder %v4657, 2
        %vm4678 = vcmp.lt.s32.totalorder %v4657, 3
        %vm4679 = vcmp.lt.s32.totalorder %v4657, 4
        %v4680 = vsel %vm4676, %v4660, %v4663
        %v4681 = vsel %vm4679, %v4669, 2102212464
        %v4682 = vsel %vm4678, %v4666, %v4681
        %v4683 = vsel %vm4677, %v4680, %v4682
        %v4684 = vsel %vm4676, %v4663, %v4666
        %v4685 = vsel %vm4679, %v4672, 920167782
        %v4686 = vsel %vm4678, %v4669, %v4685
        %v4687 = vsel %vm4677, %v4684, %v4686
        %v4688 = vsel %vm4676, %v4666, %v4669
        %v4689 = vsel %vm4679, %v4675, 1326507024
        %v4690 = vsel %vm4678, %v4672, %v4689
        %v4691 = vsel %vm4677, %v4688, %v4690
        %v4692 = vshll.u32 %v4652, 8
        %v4693 = vand.u32 %v4692, 65535
        %v4694 = vshrl.u32 %v4692, 16
        %v4695 = vand.u32 %v4691, 65535
        %v4696 = vshrl.u32 %v4691, 16
        %v4697 = vmul.u32 %v4693, %v4695
        %v4698 = vmul.u32 %v4693, %v4696
        %v4699 = vmul.u32 %v4694, %v4695
        %v4700 = vmul.u32 %v4694, %v4696
        %v4701 = vshll.u32 %v4698, 16
        %v4702 = vshrl.u32 %v4698, 16
        %v4703 = vshll.u32 %v4699, 16
        %v4704 = vshrl.u32 %v4699, 16
        %vm4705 = vc.u32 %v4697, %v4701
        %v4706 = vsel %vm4705, 1, 0
        %v4707 = vadd.s32 %v4697, %v4701
        %v4708 = vadd.s32 %v4700, %v4706
        %vm4709 = vc.u32 %v4707, %v4703
        %v4710 = vsel %vm4709, 1, 0
        %v4711 = vadd.s32 %v4707, %v4703
        %v4712 = vadd.s32 %v4708, %v4710
        %v4713 = vadd.s32 %v4712, %v4702
        %v4714 = vadd.s32 %v4713, %v4704
        %v4715 = vand.u32 %v4692, 65535
        %v4716 = vshrl.u32 %v4692, 16
        %v4717 = vand.u32 %v4687, 65535
        %v4718 = vshrl.u32 %v4687, 16
        %v4719 = vmul.u32 %v4715, %v4717
        %v4720 = vmul.u32 %v4715, %v4718
        %v4721 = vmul.u32 %v4716, %v4717
        %v4722 = vmul.u32 %v4716, %v4718
        %v4723 = vshll.u32 %v4720, 16
        %v4724 = vshrl.u32 %v4720, 16
        %v4725 = vshll.u32 %v4721, 16
        %v4726 = vshrl.u32 %v4721, 16
        %vm4727 = vc.u32 %v4719, %v4723
        %v4728 = vsel %vm4727, 1, 0
        %v4729 = vadd.s32 %v4719, %v4723
        %v4730 = vadd.s32 %v4722, %v4728
        %vm4731 = vc.u32 %v4729, %v4725
        %v4732 = vsel %vm4731, 1, 0
        %v4733 = vadd.s32 %v4729, %v4725
        %v4734 = vadd.s32 %v4730, %v4732
        %v4735 = vadd.s32 %v4734, %v4724
        %v4736 = vadd.s32 %v4735, %v4726
        %v4737 = vmul.u32 %v4692, %v4683
        %v4738 = vadd.s32 %v4714, %v4733
        %vm4739 = vc.u32 %v4714, %v4733
        %v4740 = vadd.s32 %v4736, 1
        %v4741 = vsel %vm4739, %v4740, %v4736
        %v4742 = vadd.s32 %v4737, %v4741
        %v4743 = vadd.s32 %v4742, 536870912
        %v4744 = vshrl.u32 %v4743, 30
        %v4745 = vshll.u32 %v4744, 30
        %v4746 = vsub.s32 %v4742, %v4745
        %vm4747 = vcmp.lt.s32.totalorder %v4746, 0
        %v4748 = vsub.s32 0, %v4746
        %v4749 = vsel %vm4747, %v4748, %v4746
        %v4750 = vclz %v4749
        %v4751 = vsub.s32 %v4750, 2
        %vm4752 = vcmp.gt.s32.totalorder 0, %v4751
        %v4753 = vsel %vm4752, 0, %v4751
        %v4754 = vsub.s32 32, %v4753
        %v4755 = vshll.u32 %v4746, %v4753
        %v4756 = vshrl.u32 %v4738, %v4754
        %v4757 = vor.u32 %v4755, %v4756
        %v4758 = vsub.s32 4294967266, %v4753
        %v4759 = vadd.s32 %v4758, 127
        %v4760 = vshll.u32 %v4759, 23
        %v4761 = vor.u32 4788187, %v4760
        %v4762 = vand.u32 2147483647, %v4761
        %v4764 = vcvt.s32.f32 %v4757
        %v4765 = vmul.f32 %v4764, %v4762
        %v4766 = vxor.u32 %v4765, 2147483648
        %v4767 = vsel %vm4646, %v4766, %v4765
        %v4768 = vsub.s32 4, %v4744
        %v4769 = vsel %vm4646, %v4768, %v4744
        %v4770 = vsel %vm4645, %v395, %v4767
        %v4771 = vsel %vm4645, 0, %v4769
        %v4772 = vmul.f32 %v4770, %v4770
        %v4773 = vmul.f32 %v4772, -0.001358992
        %v4774 = vadd.f32 %v4773, 0.041655596
        %v4775 = vmul.f32 %v4772, %v4774
        %v4776 = vadd.f32 %v4775, -0.4999988
        %v4777 = vmul.f32 %v4772, %v4776
        %v4778 = vadd.f32 1.0, %v4777
        %v4779 = vmul.f32 %v4770, %v4770
        %v4780 = vmul.f32 %v4779, -0.00019511016
        %v4781 = vadd.f32 %v4780, 0.008332121
        %v4782 = vmul.f32 %v4779, %v4781
        %v4783 = vadd.f32 %v4782, -0.16666654
        %v4784 = vmul.f32 %v4779, %v4783
        %v4785 = vadd.f32 %v4784, 1.0
        %v4786 = vmul.f32 %v4785, %v4770
        %vm4787 = vweird.f32 %v395
        %v4788 = vadd.s32 %v4771, 3
        %v4789 = vand.u32 %v4788, 3
        %vm4790 = vcmp.lt.s32.totalorder %v4789, 2
        %vm4791 = vcmp.eq.s32.totalorder %v4789, 0
        %v4792 = vxor.u32 %v4786, 2147483648
        %v4793 = vsel %vm4791, %v4778, %v4792
        %vm4794 = vcmp.eq.s32.totalorder %v4789, 2
        %v4795 = vxor.u32 %v4778, 2147483648
        %v4796 = vsel %vm4794, %v4795, %v4786
        %v4797 = vsel %vm4790, %v4793, %v4796
        %v4798 = vsel %vm4787, nan, %v4797
        %v4799 = vand.u32 2147483647, %v398
        %vm4800 = vcmp.le.f32.partialorder %v4799, 0.7853982
        %vm4801 = vcmp.lt.s32.totalorder %v398, 0
        %v4802 = vand.u32 %v398, 2139095040
        %v4803 = vshrl.u32 %v4802, 23
        %v4804 = vsub.s32 %v4803, 127
        %v4805 = vand.u32 2147483647, %v398
        %v4806 = vand.u32 %v4805, 8388607
        %v4807 = vor.u32 %v4806, 8388608
        %v4808 = vsub.s32 0, %v4807
        %v4809 = vadd.s32 %v4804, 1
        %vm4810 = vcmp.gt.s32.totalorder %v4809, 0
        %v4811 = vsel %vm4810, %v4809, 0
        %v4812 = vshrl.u32 %v4811, 5
        %v4813 = vand.u32 %v4811, 31
        %v4814 = vsub.s32 32, %v4813
        %v4815 = vshrl.u32 683565275, %v4814
        %v4816 = vshll.u32 683565275, %v4813
        %v4817 = vshrl.u32 2475754826, %v4814
        %v4818 = vor.u32 %v4816, %v4817
        %v4819 = vshll.u32 2475754826, %v4813
        %v4820 = vshrl.u32 2131351028, %v4814
        %v4821 = vor.u32 %v4819, %v4820
        %v4822 = vshll.u32 2131351028, %v4813
        %v4823 = vshrl.u32 2102212464, %v4814
        %v4824 = vor.u32 %v4822, %v4823
        %v4825 = vshll.u32 2102212464, %v4813
        %v4826 = vshrl.u32 920167782, %v4814
        %v4827 = vor.u32 %v4825, %v4826
        %v4828 = vshll.u32 920167782, %v4813
        %v4829 = vshrl.u32 1326507024, %v4814
        %v4830 = vor.u32 %v4828, %v4829
        %vm4831 = vcmp.lt.s32.totalorder %v4812, 1
        %vm4832 = vcmp.lt.s32.totalorder %v4812, 2
        %vm4833 = vcmp.lt.s32.totalorder %v4812, 3
        %vm4834 = vcmp.lt.s32.totalorder %v4812, 4
        %v4835 = vsel %vm4831, %v4815, %v4818
        %v4836 = vsel %vm4834, %v4824, 2102212464
        %v4837 = vsel %vm4833, %v4821, %v4836
        %v4838 = vsel %vm4832, %v4835, %v4837
        %v4839 = vsel %vm4831, %v4818, %v4821
        %v4840 = vsel %vm4834, %v4827, 920167782
        %v4841 = vsel %vm4833, %v4824, %v4840
        %v4842 = vsel %vm4832, %v4839, %v4841
        %v4843 = vsel %vm4831, %v4821, %v4824
        %v4844 = vsel %vm4834, %v4830, 1326507024
        %v4845 = vsel %vm4833, %v4827, %v4844
        %v4846 = vsel %vm4832, %v4843, %v4845
        %v4847 = vshll.u32 %v4807, 8
        %v4848 = vand.u32 %v4847, 65535
        %v4849 = vshrl.u32 %v4847, 16
        %v4850 = vand.u32 %v4846, 65535
        %v4851 = vshrl.u32 %v4846, 16
        %v4852 = vmul.u32 %v4848, %v4850
        %v4853 = vmul.u32 %v4848, %v4851
        %v4854 = vmul.u32 %v4849, %v4850
        %v4855 = vmul.u32 %v4849, %v4851
        %v4856 = vshll.u32 %v4853, 16
        %v4857 = vshrl.u32 %v4853, 16
        %v4858 = vshll.u32 %v4854, 16
        %v4859 = vshrl.u32 %v4854, 16
        %vm4860 = vc.u32 %v4852, %v4856
        %v4861 = vsel %vm4860, 1, 0
        %v4862 = vadd.s32 %v4852, %v4856
        %v4863 = vadd.s32 %v4855, %v4861
        %vm4864 = vc.u32 %v4862, %v4858
        %v4865 = vsel %vm4864, 1, 0
        %v4866 = vadd.s32 %v4862, %v4858
        %v4867 = vadd.s32 %v4863, %v4865
        %v4868 = vadd.s32 %v4867, %v4857
        %v4869 = vadd.s32 %v4868, %v4859
        %v4870 = vand.u32 %v4847, 65535
        %v4871 = vshrl.u32 %v4847, 16
        %v4872 = vand.u32 %v4842, 65535
        %v4873 = vshrl.u32 %v4842, 16
        %v4874 = vmul.u32 %v4870, %v4872
        %v4875 = vmul.u32 %v4870, %v4873
        %v4876 = vmul.u32 %v4871, %v4872
        %v4877 = vmul.u32 %v4871, %v4873
        %v4878 = vshll.u32 %v4875, 16
        %v4879 = vshrl.u32 %v4875, 16
        %v4880 = vshll.u32 %v4876, 16
        %v4881 = vshrl.u32 %v4876, 16
        %vm4882 = vc.u32 %v4874, %v4878
        %v4883 = vsel %vm4882, 1, 0
        %v4884 = vadd.s32 %v4874, %v4878
        %v4885 = vadd.s32 %v4877, %v4883
        %vm4886 = vc.u32 %v4884, %v4880
        %v4887 = vsel %vm4886, 1, 0
        %v4888 = vadd.s32 %v4884, %v4880
        %v4889 = vadd.s32 %v4885, %v4887
        %v4890 = vadd.s32 %v4889, %v4879
        %v4891 = vadd.s32 %v4890, %v4881
        %v4892 = vmul.u32 %v4847, %v4838
        %v4893 = vadd.s32 %v4869, %v4888
        %vm4894 = vc.u32 %v4869, %v4888
        %v4895 = vadd.s32 %v4891, 1
        %v4896 = vsel %vm4894, %v4895, %v4891
        %v4897 = vadd.s32 %v4892, %v4896
        %v4898 = vadd.s32 %v4897, 536870912
        %v4899 = vshrl.u32 %v4898, 30
        %v4900 = vshll.u32 %v4899, 30
        %v4901 = vsub.s32 %v4897, %v4900
        %vm4902 = vcmp.lt.s32.totalorder %v4901, 0
        %v4903 = vsub.s32 0, %v4901
        %v4904 = vsel %vm4902, %v4903, %v4901
        %v4905 = vclz %v4904
        %v4906 = vsub.s32 %v4905, 2
        %vm4907 = vcmp.gt.s32.totalorder 0, %v4906
        %v4908 = vsel %vm4907, 0, %v4906
        %v4909 = vsub.s32 32, %v4908
        %v4910 = vshll.u32 %v4901, %v4908
        %v4911 = vshrl.u32 %v4893, %v4909
        %v4912 = vor.u32 %v4910, %v4911
        %v4913 = vsub.s32 4294967266, %v4908
        %v4914 = vadd.s32 %v4913, 127
        %v4915 = vshll.u32 %v4914, 23
        %v4916 = vor.u32 4788187, %v4915
        %v4917 = vand.u32 2147483647, %v4916
        %v4919 = vcvt.s32.f32 %v4912
        %v4920 = vmul.f32 %v4919, %v4917
        %v4921 = vxor.u32 %v4920, 2147483648
        %v4922 = vsel %vm4801, %v4921, %v4920
        %v4923 = vsub.s32 4, %v4899
        %v4924 = vsel %vm4801, %v4923, %v4899
        %v4925 = vsel %vm4800, %v398, %v4922
        %v4926 = vsel %vm4800, 0, %v4924
        %v4927 = vmul.f32 %v4925, %v4925
        %v4928 = vmul.f32 %v4927, -0.001358992
        %v4929 = vadd.f32 %v4928, 0.041655596
        %v4930 = vmul.f32 %v4927, %v4929
        %v4931 = vadd.f32 %v4930, -0.4999988
        %v4932 = vmul.f32 %v4927, %v4931
        %v4933 = vadd.f32 1.0, %v4932
        %v4934 = vmul.f32 %v4925, %v4925
        %v4935 = vmul.f32 %v4934, -0.00019511016
        %v4936 = vadd.f32 %v4935, 0.008332121
        %v4937 = vmul.f32 %v4934, %v4936
        %v4938 = vadd.f32 %v4937, -0.16666654
        %v4939 = vmul.f32 %v4934, %v4938
        %v4940 = vadd.f32 %v4939, 1.0
        %v4941 = vmul.f32 %v4940, %v4925
        %vm4942 = vweird.f32 %v398
        %v4943 = vadd.s32 %v4926, 3
        %v4944 = vand.u32 %v4943, 3
        %vm4945 = vcmp.lt.s32.totalorder %v4944, 2
        %vm4946 = vcmp.eq.s32.totalorder %v4944, 0
        %v4947 = vxor.u32 %v4941, 2147483648
        %v4948 = vsel %vm4946, %v4933, %v4947
        %vm4949 = vcmp.eq.s32.totalorder %v4944, 2
        %v4950 = vxor.u32 %v4933, 2147483648
        %v4951 = vsel %vm4949, %v4950, %v4941
        %v4952 = vsel %vm4945, %v4948, %v4951
        %v4953 = vsel %vm4942, nan, %v4952
        %v4954 = vand.u32 2147483647, %v401
        %vm4955 = vcmp.le.f32.partialorder %v4954, 0.7853982
        %vm4956 = vcmp.lt.s32.totalorder %v401, 0
        %v4957 = vand.u32 %v401, 2139095040
        %v4958 = vshrl.u32 %v4957, 23
        %v4959 = vsub.s32 %v4958, 127
        %v4960 = vand.u32 2147483647, %v401
        %v4961 = vand.u32 %v4960, 8388607
        %v4962 = vor.u32 %v4961, 8388608
        %v4963 = vsub.s32 0, %v4962
        %v4964 = vadd.s32 %v4959, 1
        %vm4965 = vcmp.gt.s32.totalorder %v4964, 0
        %v4966 = vsel %vm4965, %v4964, 0
        %v4967 = vshrl.u32 %v4966, 5
        %v4968 = vand.u32 %v4966, 31
        %v4969 = vsub.s32 32, %v4968
        %v4970 = vshrl.u32 683565275, %v4969
        %v4971 = vshll.u32 683565275, %v4968
        %v4972 = vshrl.u32 2475754826, %v4969
        %v4973 = vor.u32 %v4971, %v4972
        %v4974 = vshll.u32 2475754826, %v4968
        %v4975 = vshrl.u32 2131351028, %v4969
        %v4976 = vor.u32 %v4974, %v4975
        %v4977 = vshll.u32 2131351028, %v4968
        %v4978 = vshrl.u32 2102212464, %v4969
        %v4979 = vor.u32 %v4977, %v4978
        %v4980 = vshll.u32 2102212464, %v4968
        %v4981 = vshrl.u32 920167782, %v4969
        %v4982 = vor.u32 %v4980, %v4981
        %v4983 = vshll.u32 920167782, %v4968
        %v4984 = vshrl.u32 1326507024, %v4969
        %v4985 = vor.u32 %v4983, %v4984
        %vm4986 = vcmp.lt.s32.totalorder %v4967, 1
        %vm4987 = vcmp.lt.s32.totalorder %v4967, 2
        %vm4988 = vcmp.lt.s32.totalorder %v4967, 3
        %vm4989 = vcmp.lt.s32.totalorder %v4967, 4
        %v4990 = vsel %vm4986, %v4970, %v4973
        %v4991 = vsel %vm4989, %v4979, 2102212464
        %v4992 = vsel %vm4988, %v4976, %v4991
        %v4993 = vsel %vm4987, %v4990, %v4992
        %v4994 = vsel %vm4986, %v4973, %v4976
        %v4995 = vsel %vm4989, %v4982, 920167782
        %v4996 = vsel %vm4988, %v4979, %v4995
        %v4997 = vsel %vm4987, %v4994, %v4996
        %v4998 = vsel %vm4986, %v4976, %v4979
        %v4999 = vsel %vm4989, %v4985, 1326507024
        %v5000 = vsel %vm4988, %v4982, %v4999
        %v5001 = vsel %vm4987, %v4998, %v5000
        %v5002 = vshll.u32 %v4962, 8
        %v5003 = vand.u32 %v5002, 65535
        %v5004 = vshrl.u32 %v5002, 16
        %v5005 = vand.u32 %v5001, 65535
        %v5006 = vshrl.u32 %v5001, 16
        %v5007 = vmul.u32 %v5003, %v5005
        %v5008 = vmul.u32 %v5003, %v5006
        %v5009 = vmul.u32 %v5004, %v5005
        %v5010 = vmul.u32 %v5004, %v5006
        %v5011 = vshll.u32 %v5008, 16
        %v5012 = vshrl.u32 %v5008, 16
        %v5013 = vshll.u32 %v5009, 16
        %v5014 = vshrl.u32 %v5009, 16
        %vm5015 = vc.u32 %v5007, %v5011
        %v5016 = vsel %vm5015, 1, 0
        %v5017 = vadd.s32 %v5007, %v5011
        %v5018 = vadd.s32 %v5010, %v5016
        %vm5019 = vc.u32 %v5017, %v5013
        %v5020 = vsel %vm5019, 1, 0
        %v5021 = vadd.s32 %v5017, %v5013
        %v5022 = vadd.s32 %v5018, %v5020
        %v5023 = vadd.s32 %v5022, %v5012
        %v5024 = vadd.s32 %v5023, %v5014
        %v5025 = vand.u32 %v5002, 65535
        %v5026 = vshrl.u32 %v5002, 16
        %v5027 = vand.u32 %v4997, 65535
        %v5028 = vshrl.u32 %v4997, 16
        %v5029 = vmul.u32 %v5025, %v5027
        %v5030 = vmul.u32 %v5025, %v5028
        %v5031 = vmul.u32 %v5026, %v5027
        %v5032 = vmul.u32 %v5026, %v5028
        %v5033 = vshll.u32 %v5030, 16
        %v5034 = vshrl.u32 %v5030, 16
        %v5035 = vshll.u32 %v5031, 16
        %v5036 = vshrl.u32 %v5031, 16
        %vm5037 = vc.u32 %v5029, %v5033
        %v5038 = vsel %vm5037, 1, 0
        %v5039 = vadd.s32 %v5029, %v5033
        %v5040 = vadd.s32 %v5032, %v5038
        %vm5041 = vc.u32 %v5039, %v5035
        %v5042 = vsel %vm5041, 1, 0
        %v5043 = vadd.s32 %v5039, %v5035
        %v5044 = vadd.s32 %v5040, %v5042
        %v5045 = vadd.s32 %v5044, %v5034
        %v5046 = vadd.s32 %v5045, %v5036
        %v5047 = vmul.u32 %v5002, %v4993
        %v5048 = vadd.s32 %v5024, %v5043
        %vm5049 = vc.u32 %v5024, %v5043
        %v5050 = vadd.s32 %v5046, 1
        %v5051 = vsel %vm5049, %v5050, %v5046
        %v5052 = vadd.s32 %v5047, %v5051
        %v5053 = vadd.s32 %v5052, 536870912
        %v5054 = vshrl.u32 %v5053, 30
        %v5055 = vshll.u32 %v5054, 30
        %v5056 = vsub.s32 %v5052, %v5055
        %vm5057 = vcmp.lt.s32.totalorder %v5056, 0
        %v5058 = vsub.s32 0, %v5056
        %v5059 = vsel %vm5057, %v5058, %v5056
        %v5060 = vclz %v5059
        %v5061 = vsub.s32 %v5060, 2
        %vm5062 = vcmp.gt.s32.totalorder 0, %v5061
        %v5063 = vsel %vm5062, 0, %v5061
        %v5064 = vsub.s32 32, %v5063
        %v5065 = vshll.u32 %v5056, %v5063
        %v5066 = vshrl.u32 %v5048, %v5064
        %v5067 = vor.u32 %v5065, %v5066
        %v5068 = vsub.s32 4294967266, %v5063
        %v5069 = vadd.s32 %v5068, 127
        %v5070 = vshll.u32 %v5069, 23
        %v5071 = vor.u32 4788187, %v5070
        %v5072 = vand.u32 2147483647, %v5071
        %v5074 = vcvt.s32.f32 %v5067
        %v5075 = vmul.f32 %v5074, %v5072
        %v5076 = vxor.u32 %v5075, 2147483648
        %v5077 = vsel %vm4956, %v5076, %v5075
        %v5078 = vsub.s32 4, %v5054
        %v5079 = vsel %vm4956, %v5078, %v5054
        %v5080 = vsel %vm4955, %v401, %v5077
        %v5081 = vsel %vm4955, 0, %v5079
        %v5082 = vmul.f32 %v5080, %v5080
        %v5083 = vmul.f32 %v5082, -0.001358992
        %v5084 = vadd.f32 %v5083, 0.041655596
        %v5085 = vmul.f32 %v5082, %v5084
        %v5086 = vadd.f32 %v5085, -0.4999988
        %v5087 = vmul.f32 %v5082, %v5086
        %v5088 = vadd.f32 1.0, %v5087
        %v5089 = vmul.f32 %v5080, %v5080
        %v5090 = vmul.f32 %v5089, -0.00019511016
        %v5091 = vadd.f32 %v5090, 0.008332121
        %v5092 = vmul.f32 %v5089, %v5091
        %v5093 = vadd.f32 %v5092, -0.16666654
        %v5094 = vmul.f32 %v5089, %v5093
        %v5095 = vadd.f32 %v5094, 1.0
        %v5096 = vmul.f32 %v5095, %v5080
        %vm5097 = vweird.f32 %v401
        %v5098 = vadd.s32 %v5081, 3
        %v5099 = vand.u32 %v5098, 3
        %vm5100 = vcmp.lt.s32.totalorder %v5099, 2
        %vm5101 = vcmp.eq.s32.totalorder %v5099, 0
        %v5102 = vxor.u32 %v5096, 2147483648
        %v5103 = vsel %vm5101, %v5088, %v5102
        %vm5104 = vcmp.eq.s32.totalorder %v5099, 2
        %v5105 = vxor.u32 %v5088, 2147483648
        %v5106 = vsel %vm5104, %v5105, %v5096
        %v5107 = vsel %vm5100, %v5103, %v5106
        %v5108 = vsel %vm5097, nan, %v5107
        %v5109 = vand.u32 2147483647, %v404
        %vm5110 = vcmp.le.f32.partialorder %v5109, 0.7853982
        %vm5111 = vcmp.lt.s32.totalorder %v404, 0
        %v5112 = vand.u32 %v404, 2139095040
        %v5113 = vshrl.u32 %v5112, 23
        %v5114 = vsub.s32 %v5113, 127
        %v5115 = vand.u32 2147483647, %v404
        %v5116 = vand.u32 %v5115, 8388607
        %v5117 = vor.u32 %v5116, 8388608
        %v5118 = vsub.s32 0, %v5117
        %v5119 = vadd.s32 %v5114, 1
        %vm5120 = vcmp.gt.s32.totalorder %v5119, 0
        %v5121 = vsel %vm5120, %v5119, 0
        %v5122 = vshrl.u32 %v5121, 5
        %v5123 = vand.u32 %v5121, 31
        %v5124 = vsub.s32 32, %v5123
        %v5125 = vshrl.u32 683565275, %v5124
        %v5126 = vshll.u32 683565275, %v5123
        %v5127 = vshrl.u32 2475754826, %v5124
        %v5128 = vor.u32 %v5126, %v5127
        %v5129 = vshll.u32 2475754826, %v5123
        %v5130 = vshrl.u32 2131351028, %v5124
        %v5131 = vor.u32 %v5129, %v5130
        %v5132 = vshll.u32 2131351028, %v5123
        %v5133 = vshrl.u32 2102212464, %v5124
        %v5134 = vor.u32 %v5132, %v5133
        %v5135 = vshll.u32 2102212464, %v5123
        %v5136 = vshrl.u32 920167782, %v5124
        %v5137 = vor.u32 %v5135, %v5136
        %v5138 = vshll.u32 920167782, %v5123
        %v5139 = vshrl.u32 1326507024, %v5124
        %v5140 = vor.u32 %v5138, %v5139
        %vm5141 = vcmp.lt.s32.totalorder %v5122, 1
        %vm5142 = vcmp.lt.s32.totalorder %v5122, 2
        %vm5143 = vcmp.lt.s32.totalorder %v5122, 3
        %vm5144 = vcmp.lt.s32.totalorder %v5122, 4
        %v5145 = vsel %vm5141, %v5125, %v5128
        %v5146 = vsel %vm5144, %v5134, 2102212464
        %v5147 = vsel %vm5143, %v5131, %v5146
        %v5148 = vsel %vm5142, %v5145, %v5147
        %v5149 = vsel %vm5141, %v5128, %v5131
        %v5150 = vsel %vm5144, %v5137, 920167782
        %v5151 = vsel %vm5143, %v5134, %v5150
        %v5152 = vsel %vm5142, %v5149, %v5151
        %v5153 = vsel %vm5141, %v5131, %v5134
        %v5154 = vsel %vm5144, %v5140, 1326507024
        %v5155 = vsel %vm5143, %v5137, %v5154
        %v5156 = vsel %vm5142, %v5153, %v5155
        %v5157 = vshll.u32 %v5117, 8
        %v5158 = vand.u32 %v5157, 65535
        %v5159 = vshrl.u32 %v5157, 16
        %v5160 = vand.u32 %v5156, 65535
        %v5161 = vshrl.u32 %v5156, 16
        %v5162 = vmul.u32 %v5158, %v5160
        %v5163 = vmul.u32 %v5158, %v5161
        %v5164 = vmul.u32 %v5159, %v5160
        %v5165 = vmul.u32 %v5159, %v5161
        %v5166 = vshll.u32 %v5163, 16
        %v5167 = vshrl.u32 %v5163, 16
        %v5168 = vshll.u32 %v5164, 16
        %v5169 = vshrl.u32 %v5164, 16
        %vm5170 = vc.u32 %v5162, %v5166
        %v5171 = vsel %vm5170, 1, 0
        %v5172 = vadd.s32 %v5162, %v5166
        %v5173 = vadd.s32 %v5165, %v5171
        %vm5174 = vc.u32 %v5172, %v5168
        %v5175 = vsel %vm5174, 1, 0
        %v5176 = vadd.s32 %v5172, %v5168
        %v5177 = vadd.s32 %v5173, %v5175
        %v5178 = vadd.s32 %v5177, %v5167
        %v5179 = vadd.s32 %v5178, %v5169
        %v5180 = vand.u32 %v5157, 65535
        %v5181 = vshrl.u32 %v5157, 16
        %v5182 = vand.u32 %v5152, 65535
        %v5183 = vshrl.u32 %v5152, 16
        %v5184 = vmul.u32 %v5180, %v5182
        %v5185 = vmul.u32 %v5180, %v5183
        %v5186 = vmul.u32 %v5181, %v5182
        %v5187 = vmul.u32 %v5181, %v5183
        %v5188 = vshll.u32 %v5185, 16
        %v5189 = vshrl.u32 %v5185, 16
        %v5190 = vshll.u32 %v5186, 16
        %v5191 = vshrl.u32 %v5186, 16
        %vm5192 = vc.u32 %v5184, %v5188
        %v5193 = vsel %vm5192, 1, 0
        %v5194 = vadd.s32 %v5184, %v5188
        %v5195 = vadd.s32 %v5187, %v5193
        %vm5196 = vc.u32 %v5194, %v5190
        %v5197 = vsel %vm5196, 1, 0
        %v5198 = vadd.s32 %v5194, %v5190
        %v5199 = vadd.s32 %v5195, %v5197
        %v5200 = vadd.s32 %v5199, %v5189
        %v5201 = vadd.s32 %v5200, %v5191
        %v5202 = vmul.u32 %v5157, %v5148
        %v5203 = vadd.s32 %v5179, %v5198
        %vm5204 = vc.u32 %v5179, %v5198
        %v5205 = vadd.s32 %v5201, 1
        %v5206 = vsel %vm5204, %v5205, %v5201
        %v5207 = vadd.s32 %v5202, %v5206
        %v5208 = vadd.s32 %v5207, 536870912
        %v5209 = vshrl.u32 %v5208, 30
        %v5210 = vshll.u32 %v5209, 30
        %v5211 = vsub.s32 %v5207, %v5210
        %vm5212 = vcmp.lt.s32.totalorder %v5211, 0
        %v5213 = vsub.s32 0, %v5211
        %v5214 = vsel %vm5212, %v5213, %v5211
        %v5215 = vclz %v5214
        %v5216 = vsub.s32 %v5215, 2
        %vm5217 = vcmp.gt.s32.totalorder 0, %v5216
        %v5218 = vsel %vm5217, 0, %v5216
        %v5219 = vsub.s32 32, %v5218
        %v5220 = vshll.u32 %v5211, %v5218
        %v5221 = vshrl.u32 %v5203, %v5219
        %v5222 = vor.u32 %v5220, %v5221
        %v5223 = vsub.s32 4294967266, %v5218
        %v5224 = vadd.s32 %v5223, 127
        %v5225 = vshll.u32 %v5224, 23
        %v5226 = vor.u32 4788187, %v5225
        %v5227 = vand.u32 2147483647, %v5226
        %v5229 = vcvt.s32.f32 %v5222
        %v5230 = vmul.f32 %v5229, %v5227
        %v5231 = vxor.u32 %v5230, 2147483648
        %v5232 = vsel %vm5111, %v5231, %v5230
        %v5233 = vsub.s32 4, %v5209
        %v5234 = vsel %vm5111, %v5233, %v5209
        %v5235 = vsel %vm5110, %v404, %v5232
        %v5236 = vsel %vm5110, 0, %v5234
        %v5237 = vmul.f32 %v5235, %v5235
        %v5238 = vmul.f32 %v5237, -0.001358992
        %v5239 = vadd.f32 %v5238, 0.041655596
        %v5240 = vmul.f32 %v5237, %v5239
        %v5241 = vadd.f32 %v5240, -0.4999988
        %v5242 = vmul.f32 %v5237, %v5241
        %v5243 = vadd.f32 1.0, %v5242
        %v5244 = vmul.f32 %v5235, %v5235
        %v5245 = vmul.f32 %v5244, -0.00019511016
        %v5246 = vadd.f32 %v5245, 0.008332121
        %v5247 = vmul.f32 %v5244, %v5246
        %v5248 = vadd.f32 %v5247, -0.16666654
        %v5249 = vmul.f32 %v5244, %v5248
        %v5250 = vadd.f32 %v5249, 1.0
        %v5251 = vmul.f32 %v5250, %v5235
        %vm5252 = vweird.f32 %v404
        %v5253 = vadd.s32 %v5236, 3
        %v5254 = vand.u32 %v5253, 3
        %vm5255 = vcmp.lt.s32.totalorder %v5254, 2
        %vm5256 = vcmp.eq.s32.totalorder %v5254, 0
        %v5257 = vxor.u32 %v5251, 2147483648
        %v5258 = vsel %vm5256, %v5243, %v5257
        %vm5259 = vcmp.eq.s32.totalorder %v5254, 2
        %v5260 = vxor.u32 %v5243, 2147483648
        %v5261 = vsel %vm5259, %v5260, %v5251
        %v5262 = vsel %vm5255, %v5258, %v5261
        %v5263 = vsel %vm5252, nan, %v5262
        %v5264 = vand.u32 2147483647, %v407
        %vm5265 = vcmp.le.f32.partialorder %v5264, 0.7853982
        %vm5266 = vcmp.lt.s32.totalorder %v407, 0
        %v5267 = vand.u32 %v407, 2139095040
        %v5268 = vshrl.u32 %v5267, 23
        %v5269 = vsub.s32 %v5268, 127
        %v5270 = vand.u32 2147483647, %v407
        %v5271 = vand.u32 %v5270, 8388607
        %v5272 = vor.u32 %v5271, 8388608
        %v5273 = vsub.s32 0, %v5272
        %v5274 = vadd.s32 %v5269, 1
        %vm5275 = vcmp.gt.s32.totalorder %v5274, 0
        %v5276 = vsel %vm5275, %v5274, 0
        %v5277 = vshrl.u32 %v5276, 5
        %v5278 = vand.u32 %v5276, 31
        %v5279 = vsub.s32 32, %v5278
        %v5280 = vshrl.u32 683565275, %v5279
        %v5281 = vshll.u32 683565275, %v5278
        %v5282 = vshrl.u32 2475754826, %v5279
        %v5283 = vor.u32 %v5281, %v5282
        %v5284 = vshll.u32 2475754826, %v5278
        %v5285 = vshrl.u32 2131351028, %v5279
        %v5286 = vor.u32 %v5284, %v5285
        %v5287 = vshll.u32 2131351028, %v5278
        %v5288 = vshrl.u32 2102212464, %v5279
        %v5289 = vor.u32 %v5287, %v5288
        %v5290 = vshll.u32 2102212464, %v5278
        %v5291 = vshrl.u32 920167782, %v5279
        %v5292 = vor.u32 %v5290, %v5291
        %v5293 = vshll.u32 920167782, %v5278
        %v5294 = vshrl.u32 1326507024, %v5279
        %v5295 = vor.u32 %v5293, %v5294
        %vm5296 = vcmp.lt.s32.totalorder %v5277, 1
        %vm5297 = vcmp.lt.s32.totalorder %v5277, 2
        %vm5298 = vcmp.lt.s32.totalorder %v5277, 3
        %vm5299 = vcmp.lt.s32.totalorder %v5277, 4
        %v5300 = vsel %vm5296, %v5280, %v5283
        %v5301 = vsel %vm5299, %v5289, 2102212464
        %v5302 = vsel %vm5298, %v5286, %v5301
        %v5303 = vsel %vm5297, %v5300, %v5302
        %v5304 = vsel %vm5296, %v5283, %v5286
        %v5305 = vsel %vm5299, %v5292, 920167782
        %v5306 = vsel %vm5298, %v5289, %v5305
        %v5307 = vsel %vm5297, %v5304, %v5306
        %v5308 = vsel %vm5296, %v5286, %v5289
        %v5309 = vsel %vm5299, %v5295, 1326507024
        %v5310 = vsel %vm5298, %v5292, %v5309
        %v5311 = vsel %vm5297, %v5308, %v5310
        %v5312 = vshll.u32 %v5272, 8
        %v5313 = vand.u32 %v5312, 65535
        %v5314 = vshrl.u32 %v5312, 16
        %v5315 = vand.u32 %v5311, 65535
        %v5316 = vshrl.u32 %v5311, 16
        %v5317 = vmul.u32 %v5313, %v5315
        %v5318 = vmul.u32 %v5313, %v5316
        %v5319 = vmul.u32 %v5314, %v5315
        %v5320 = vmul.u32 %v5314, %v5316
        %v5321 = vshll.u32 %v5318, 16
        %v5322 = vshrl.u32 %v5318, 16
        %v5323 = vshll.u32 %v5319, 16
        %v5324 = vshrl.u32 %v5319, 16
        %vm5325 = vc.u32 %v5317, %v5321
        %v5326 = vsel %vm5325, 1, 0
        %v5327 = vadd.s32 %v5317, %v5321
        %v5328 = vadd.s32 %v5320, %v5326
        %vm5329 = vc.u32 %v5327, %v5323
        %v5330 = vsel %vm5329, 1, 0
        %v5331 = vadd.s32 %v5327, %v5323
        %v5332 = vadd.s32 %v5328, %v5330
        %v5333 = vadd.s32 %v5332, %v5322
        %v5334 = vadd.s32 %v5333, %v5324
        %v5335 = vand.u32 %v5312, 65535
        %v5336 = vshrl.u32 %v5312, 16
        %v5337 = vand.u32 %v5307, 65535
        %v5338 = vshrl.u32 %v5307, 16
        %v5339 = vmul.u32 %v5335, %v5337
        %v5340 = vmul.u32 %v5335, %v5338
        %v5341 = vmul.u32 %v5336, %v5337
        %v5342 = vmul.u32 %v5336, %v5338
        %v5343 = vshll.u32 %v5340, 16
        %v5344 = vshrl.u32 %v5340, 16
        %v5345 = vshll.u32 %v5341, 16
        %v5346 = vshrl.u32 %v5341, 16
        %vm5347 = vc.u32 %v5339, %v5343
        %v5348 = vsel %vm5347, 1, 0
        %v5349 = vadd.s32 %v5339, %v5343
        %v5350 = vadd.s32 %v5342, %v5348
        %vm5351 = vc.u32 %v5349, %v5345
        %v5352 = vsel %vm5351, 1, 0
        %v5353 = vadd.s32 %v5349, %v5345
        %v5354 = vadd.s32 %v5350, %v5352
        %v5355 = vadd.s32 %v5354, %v5344
        %v5356 = vadd.s32 %v5355, %v5346
        %v5357 = vmul.u32 %v5312, %v5303
        %v5358 = vadd.s32 %v5334, %v5353
        %vm5359 = vc.u32 %v5334, %v5353
        %v5360 = vadd.s32 %v5356, 1
        %v5361 = vsel %vm5359, %v5360, %v5356
        %v5362 = vadd.s32 %v5357, %v5361
        %v5363 = vadd.s32 %v5362, 536870912
        %v5364 = vshrl.u32 %v5363, 30
        %v5365 = vshll.u32 %v5364, 30
        %v5366 = vsub.s32 %v5362, %v5365
        %vm5367 = vcmp.lt.s32.totalorder %v5366, 0
        %v5368 = vsub.s32 0, %v5366
        %v5369 = vsel %vm5367, %v5368, %v5366
        %v5370 = vclz %v5369
        %v5371 = vsub.s32 %v5370, 2
        %vm5372 = vcmp.gt.s32.totalorder 0, %v5371
        %v5373 = vsel %vm5372, 0, %v5371
        %v5374 = vsub.s32 32, %v5373
        %v5375 = vshll.u32 %v5366, %v5373
        %v5376 = vshrl.u32 %v5358, %v5374
        %v5377 = vor.u32 %v5375, %v5376
        %v5378 = vsub.s32 4294967266, %v5373
        %v5379 = vadd.s32 %v5378, 127
        %v5380 = vshll.u32 %v5379, 23
        %v5381 = vor.u32 4788187, %v5380
        %v5382 = vand.u32 2147483647, %v5381
        %v5384 = vcvt.s32.f32 %v5377
        %v5385 = vmul.f32 %v5384, %v5382
        %v5386 = vxor.u32 %v5385, 2147483648
        %v5387 = vsel %vm5266, %v5386, %v5385
        %v5388 = vsub.s32 4, %v5364
        %v5389 = vsel %vm5266, %v5388, %v5364
        %v5390 = vsel %vm5265, %v407, %v5387
        %v5391 = vsel %vm5265, 0, %v5389
        %v5392 = vmul.f32 %v5390, %v5390
        %v5393 = vmul.f32 %v5392, -0.001358992
        %v5394 = vadd.f32 %v5393, 0.041655596
        %v5395 = vmul.f32 %v5392, %v5394
        %v5396 = vadd.f32 %v5395, -0.4999988
        %v5397 = vmul.f32 %v5392, %v5396
        %v5398 = vadd.f32 1.0, %v5397
        %v5399 = vmul.f32 %v5390, %v5390
        %v5400 = vmul.f32 %v5399, -0.00019511016
        %v5401 = vadd.f32 %v5400, 0.008332121
        %v5402 = vmul.f32 %v5399, %v5401
        %v5403 = vadd.f32 %v5402, -0.16666654
        %v5404 = vmul.f32 %v5399, %v5403
        %v5405 = vadd.f32 %v5404, 1.0
        %v5406 = vmul.f32 %v5405, %v5390
        %vm5407 = vweird.f32 %v407
        %v5408 = vadd.s32 %v5391, 3
        %v5409 = vand.u32 %v5408, 3
        %vm5410 = vcmp.lt.s32.totalorder %v5409, 2
        %vm5411 = vcmp.eq.s32.totalorder %v5409, 0
        %v5412 = vxor.u32 %v5406, 2147483648
        %v5413 = vsel %vm5411, %v5398, %v5412
        %vm5414 = vcmp.eq.s32.totalorder %v5409, 2
        %v5415 = vxor.u32 %v5398, 2147483648
        %v5416 = vsel %vm5414, %v5415, %v5406
        %v5417 = vsel %vm5410, %v5413, %v5416
        %v5418 = vsel %vm5407, nan, %v5417
        %5419 = vst [vmem:[%s250] sm:$0xff] %v628
        %5420 = vst [vmem:[%s250 + $0x8] sm:$0xff] %v3093
        %5421 = vst [vmem:[%s250 + $0x10] sm:$0xff] %v782
        %5422 = vst [vmem:[%s250 + $0x18] sm:$0xff] %v3248
        %5423 = vst [vmem:[%s250 + $0x20] sm:$0xff] %v936
        %5424 = vst [vmem:[%s250 + $0x28] sm:$0xff] %v3403
        %5425 = vst [vmem:[%s250 + $0x30] sm:$0xff] %v1090
        %5426 = vst [vmem:[%s250 + $0x38] sm:$0xff] %v3558
        %5427 = vst [vmem:[%s250 + $0x40] sm:$0xff] %v1244
        %5428 = vst [vmem:[%s250 + $0x48] sm:$0xff] %v3713
        %5429 = vst [vmem:[%s250 + $0x50] sm:$0xff] %v1398
        %5430 = vst [vmem:[%s250 + $0x58] sm:$0xff] %v3868
        %5431 = vst [vmem:[%s250 + $0x60] sm:$0xff] %v1552
        %5432 = vst [vmem:[%s250 + $0x68] sm:$0xff] %v4023
        %5433 = vst [vmem:[%s250 + $0x70] sm:$0xff] %v1706
        %5434 = vst [vmem:[%s250 + $0x78] sm:$0xff] %v4178
        %5435 = vst [vmem:[%s250 + $0x80] sm:$0xff] %v1860
        %5436 = vst [vmem:[%s250 + $0x88] sm:$0xff] %v4333
        %5437 = vst [vmem:[%s250 + $0x90] sm:$0xff] %v2014
        %5438 = vst [vmem:[%s250 + $0x98] sm:$0xff] %v4488
        %5439 = vst [vmem:[%s250 + $0xa0] sm:$0xff] %v2168
        %5440 = vst [vmem:[%s250 + $0xa8] sm:$0xff] %v4643
        %5441 = vst [vmem:[%s250 + $0xb0] sm:$0xff] %v2322
        %5442 = vst [vmem:[%s250 + $0xb8] sm:$0xff] %v4798
        %5443 = vst [vmem:[%s250 + $0xc0] sm:$0xff] %v2476
        %5444 = vst [vmem:[%s250 + $0xc8] sm:$0xff] %v4953
        %5445 = vst [vmem:[%s250 + $0xd0] sm:$0xff] %v2630
        %5446 = vst [vmem:[%s250 + $0xd8] sm:$0xff] %v5108
        %5447 = vst [vmem:[%s250 + $0xe0] sm:$0xff] %v2784
        %5448 = vst [vmem:[%s250 + $0xe8] sm:$0xff] %v5263
        %5449 = vst [vmem:[%s250 + $0xf0] sm:$0xff] %v2938
        %5450 = vst [vmem:[%s250 + $0xf8] sm:$0xff] %v5418
        %v5451 = vpack.c.bf16 %v3093, %v628
        %v5452 = vpack.c.bf16 %v3248, %v782
        %v5453 = vpack.c.bf16 %v3403, %v936
        %v5454 = vpack.c.bf16 %v3558, %v1090
        %v5455 = vpack.c.bf16 %v3713, %v1244
        %v5456 = vpack.c.bf16 %v3868, %v1398
        %v5457 = vpack.c.bf16 %v4023, %v1552
        %v5458 = vpack.c.bf16 %v4178, %v1706
        %v5459 = vpack.c.bf16 %v4333, %v1860
        %v5460 = vpack.c.bf16 %v4488, %v2014
        %v5461 = vpack.c.bf16 %v4643, %v2168
        %v5462 = vpack.c.bf16 %v4798, %v2322
        %v5463 = vpack.c.bf16 %v4953, %v2476
        %v5464 = vpack.c.bf16 %v5108, %v2630
        %v5465 = vpack.c.bf16 %v5263, %v2784
        %v5466 = vpack.c.bf16 %v5418, %v2938
        %5467 = vst [vmem:[%s257] sm:$0xff] %v5451
        %5468 = vst [vmem:[%s257 + $0x8] sm:$0xff] %v5452
        %5469 = vst [vmem:[%s257 + $0x10] sm:$0xff] %v5453
        %5470 = vst [vmem:[%s257 + $0x18] sm:$0xff] %v5454
        %5471 = vst [vmem:[%s257 + $0x20] sm:$0xff] %v5455
        %5472 = vst [vmem:[%s257 + $0x28] sm:$0xff] %v5456
        %5473 = vst [vmem:[%s257 + $0x30] sm:$0xff] %v5457
        %5474 = vst [vmem:[%s257 + $0x38] sm:$0xff] %v5458
        %5475 = vst [vmem:[%s257 + $0x40] sm:$0xff] %v5459
        %5476 = vst [vmem:[%s257 + $0x48] sm:$0xff] %v5460
        %5477 = vst [vmem:[%s257 + $0x50] sm:$0xff] %v5461
        %5478 = vst [vmem:[%s257 + $0x58] sm:$0xff] %v5462
        %5479 = vst [vmem:[%s257 + $0x60] sm:$0xff] %v5463
        %5480 = vst [vmem:[%s257 + $0x68] sm:$0xff] %v5464
        %5481 = vst [vmem:[%s257 + $0x70] sm:$0xff] %v5465
        %5482 = vst [vmem:[%s257 + $0x78] sm:$0xff] %v5466
        %v5483 = vand.u32 2147483647, %v428
        %vm5484 = vcmp.le.f32.partialorder %v5483, 0.7853982
        %vm5485 = vcmp.lt.s32.totalorder %v428, 0
        %v5486 = vand.u32 %v428, 2139095040
        %v5487 = vshrl.u32 %v5486, 23
        %v5488 = vsub.s32 %v5487, 127
        %v5489 = vand.u32 2147483647, %v428
        %v5490 = vand.u32 %v5489, 8388607
        %v5491 = vor.u32 %v5490, 8388608
        %v5492 = vsub.s32 0, %v5491
        %v5493 = vadd.s32 %v5488, 1
        %vm5494 = vcmp.gt.s32.totalorder %v5493, 0
        %v5495 = vsel %vm5494, %v5493, 0
        %v5496 = vshrl.u32 %v5495, 5
        %v5497 = vand.u32 %v5495, 31
        %v5498 = vsub.s32 32, %v5497
        %v5499 = vshrl.u32 683565275, %v5498
        %v5500 = vshll.u32 683565275, %v5497
        %v5501 = vshrl.u32 2475754826, %v5498
        %v5502 = vor.u32 %v5500, %v5501
        %v5503 = vshll.u32 2475754826, %v5497
        %v5504 = vshrl.u32 2131351028, %v5498
        %v5505 = vor.u32 %v5503, %v5504
        %v5506 = vshll.u32 2131351028, %v5497
        %v5507 = vshrl.u32 2102212464, %v5498
        %v5508 = vor.u32 %v5506, %v5507
        %v5509 = vshll.u32 2102212464, %v5497
        %v5510 = vshrl.u32 920167782, %v5498
        %v5511 = vor.u32 %v5509, %v5510
        %v5512 = vshll.u32 920167782, %v5497
        %v5513 = vshrl.u32 1326507024, %v5498
        %v5514 = vor.u32 %v5512, %v5513
        %vm5515 = vcmp.lt.s32.totalorder %v5496, 1
        %vm5516 = vcmp.lt.s32.totalorder %v5496, 2
        %vm5517 = vcmp.lt.s32.totalorder %v5496, 3
        %vm5518 = vcmp.lt.s32.totalorder %v5496, 4
        %v5519 = vsel %vm5515, %v5499, %v5502
        %v5520 = vsel %vm5518, %v5508, 2102212464
        %v5521 = vsel %vm5517, %v5505, %v5520
        %v5522 = vsel %vm5516, %v5519, %v5521
        %v5523 = vsel %vm5515, %v5502, %v5505
        %v5524 = vsel %vm5518, %v5511, 920167782
        %v5525 = vsel %vm5517, %v5508, %v5524
        %v5526 = vsel %vm5516, %v5523, %v5525
        %v5527 = vsel %vm5515, %v5505, %v5508
        %v5528 = vsel %vm5518, %v5514, 1326507024
        %v5529 = vsel %vm5517, %v5511, %v5528
        %v5530 = vsel %vm5516, %v5527, %v5529
        %v5531 = vshll.u32 %v5491, 8
        %v5532 = vand.u32 %v5531, 65535
        %v5533 = vshrl.u32 %v5531, 16
        %v5534 = vand.u32 %v5530, 65535
        %v5535 = vshrl.u32 %v5530, 16
        %v5536 = vmul.u32 %v5532, %v5534
        %v5537 = vmul.u32 %v5532, %v5535
        %v5538 = vmul.u32 %v5533, %v5534
        %v5539 = vmul.u32 %v5533, %v5535
        %v5540 = vshll.u32 %v5537, 16
        %v5541 = vshrl.u32 %v5537, 16
        %v5542 = vshll.u32 %v5538, 16
        %v5543 = vshrl.u32 %v5538, 16
        %vm5544 = vc.u32 %v5536, %v5540
        %v5545 = vsel %vm5544, 1, 0
        %v5546 = vadd.s32 %v5536, %v5540
        %v5547 = vadd.s32 %v5539, %v5545
        %vm5548 = vc.u32 %v5546, %v5542
        %v5549 = vsel %vm5548, 1, 0
        %v5550 = vadd.s32 %v5546, %v5542
        %v5551 = vadd.s32 %v5547, %v5549
        %v5552 = vadd.s32 %v5551, %v5541
        %v5553 = vadd.s32 %v5552, %v5543
        %v5554 = vand.u32 %v5531, 65535
        %v5555 = vshrl.u32 %v5531, 16
        %v5556 = vand.u32 %v5526, 65535
        %v5557 = vshrl.u32 %v5526, 16
        %v5558 = vmul.u32 %v5554, %v5556
        %v5559 = vmul.u32 %v5554, %v5557
        %v5560 = vmul.u32 %v5555, %v5556
        %v5561 = vmul.u32 %v5555, %v5557
        %v5562 = vshll.u32 %v5559, 16
        %v5563 = vshrl.u32 %v5559, 16
        %v5564 = vshll.u32 %v5560, 16
        %v5565 = vshrl.u32 %v5560, 16
        %vm5566 = vc.u32 %v5558, %v5562
        %v5567 = vsel %vm5566, 1, 0
        %v5568 = vadd.s32 %v5558, %v5562
        %v5569 = vadd.s32 %v5561, %v5567
        %vm5570 = vc.u32 %v5568, %v5564
        %v5571 = vsel %vm5570, 1, 0
        %v5572 = vadd.s32 %v5568, %v5564
        %v5573 = vadd.s32 %v5569, %v5571
        %v5574 = vadd.s32 %v5573, %v5563
        %v5575 = vadd.s32 %v5574, %v5565
        %v5576 = vmul.u32 %v5531, %v5522
        %v5577 = vadd.s32 %v5553, %v5572
        %vm5578 = vc.u32 %v5553, %v5572
        %v5579 = vadd.s32 %v5575, 1
        %v5580 = vsel %vm5578, %v5579, %v5575
        %v5581 = vadd.s32 %v5576, %v5580
        %v5582 = vadd.s32 %v5581, 536870912
        %v5583 = vshrl.u32 %v5582, 30
        %v5584 = vshll.u32 %v5583, 30
        %v5585 = vsub.s32 %v5581, %v5584
        %vm5586 = vcmp.lt.s32.totalorder %v5585, 0
        %v5587 = vsub.s32 0, %v5585
        %v5588 = vsel %vm5586, %v5587, %v5585
        %v5589 = vclz %v5588
        %v5590 = vsub.s32 %v5589, 2
        %vm5591 = vcmp.gt.s32.totalorder 0, %v5590
        %v5592 = vsel %vm5591, 0, %v5590
        %v5593 = vsub.s32 32, %v5592
        %v5594 = vshll.u32 %v5585, %v5592
        %v5595 = vshrl.u32 %v5577, %v5593
        %v5596 = vor.u32 %v5594, %v5595
        %v5597 = vsub.s32 4294967266, %v5592
        %v5598 = vadd.s32 %v5597, 127
        %v5599 = vshll.u32 %v5598, 23
        %v5600 = vor.u32 4788187, %v5599
        %v5601 = vand.u32 2147483647, %v5600
        %v5603 = vcvt.s32.f32 %v5596
        %v5604 = vmul.f32 %v5603, %v5601
        %v5605 = vxor.u32 %v5604, 2147483648
        %v5606 = vsel %vm5485, %v5605, %v5604
        %v5607 = vsub.s32 4, %v5583
        %v5608 = vsel %vm5485, %v5607, %v5583
        %v5609 = vsel %vm5484, %v428, %v5606
        %v5610 = vsel %vm5484, 0, %v5608
        %v5611 = vmul.f32 %v5609, %v5609
        %v5612 = vmul.f32 %v5611, -0.001358992
        %v5613 = vadd.f32 %v5612, 0.041655596
        %v5614 = vmul.f32 %v5611, %v5613
        %v5615 = vadd.f32 %v5614, -0.4999988
        %v5616 = vmul.f32 %v5611, %v5615
        %v5617 = vadd.f32 1.0, %v5616
        %v5618 = vmul.f32 %v5609, %v5609
        %v5619 = vmul.f32 %v5618, -0.00019511016
        %v5620 = vadd.f32 %v5619, 0.008332121
        %v5621 = vmul.f32 %v5618, %v5620
        %v5622 = vadd.f32 %v5621, -0.16666654
        %v5623 = vmul.f32 %v5618, %v5622
        %v5624 = vadd.f32 %v5623, 1.0
        %v5625 = vmul.f32 %v5624, %v5609
        %vm5626 = vweird.f32 %v428
        %v5627 = vand.u32 %v5610, 3
        %vm5628 = vcmp.lt.s32.totalorder %v5627, 2
        %vm5629 = vcmp.eq.s32.totalorder %v5627, 0
        %v5630 = vxor.u32 %v5625, 2147483648
        %v5631 = vsel %vm5629, %v5617, %v5630
        %vm5632 = vcmp.eq.s32.totalorder %v5627, 2
        %v5633 = vxor.u32 %v5617, 2147483648
        %v5634 = vsel %vm5632, %v5633, %v5625
        %v5635 = vsel %vm5628, %v5631, %v5634
        %v5636 = vsel %vm5626, nan, %v5635
        %v5637 = vand.u32 2147483647, %v431
        %vm5638 = vcmp.le.f32.partialorder %v5637, 0.7853982
        %vm5639 = vcmp.lt.s32.totalorder %v431, 0
        %v5640 = vand.u32 %v431, 2139095040
        %v5641 = vshrl.u32 %v5640, 23
        %v5642 = vsub.s32 %v5641, 127
        %v5643 = vand.u32 2147483647, %v431
        %v5644 = vand.u32 %v5643, 8388607
        %v5645 = vor.u32 %v5644, 8388608
        %v5646 = vsub.s32 0, %v5645
        %v5647 = vadd.s32 %v5642, 1
        %vm5648 = vcmp.gt.s32.totalorder %v5647, 0
        %v5649 = vsel %vm5648, %v5647, 0
        %v5650 = vshrl.u32 %v5649, 5
        %v5651 = vand.u32 %v5649, 31
        %v5652 = vsub.s32 32, %v5651
        %v5653 = vshrl.u32 683565275, %v5652
        %v5654 = vshll.u32 683565275, %v5651
        %v5655 = vshrl.u32 2475754826, %v5652
        %v5656 = vor.u32 %v5654, %v5655
        %v5657 = vshll.u32 2475754826, %v5651
        %v5658 = vshrl.u32 2131351028, %v5652
        %v5659 = vor.u32 %v5657, %v5658
        %v5660 = vshll.u32 2131351028, %v5651
        %v5661 = vshrl.u32 2102212464, %v5652
        %v5662 = vor.u32 %v5660, %v5661
        %v5663 = vshll.u32 2102212464, %v5651
        %v5664 = vshrl.u32 920167782, %v5652
        %v5665 = vor.u32 %v5663, %v5664
        %v5666 = vshll.u32 920167782, %v5651
        %v5667 = vshrl.u32 1326507024, %v5652
        %v5668 = vor.u32 %v5666, %v5667
        %vm5669 = vcmp.lt.s32.totalorder %v5650, 1
        %vm5670 = vcmp.lt.s32.totalorder %v5650, 2
        %vm5671 = vcmp.lt.s32.totalorder %v5650, 3
        %vm5672 = vcmp.lt.s32.totalorder %v5650, 4
        %v5673 = vsel %vm5669, %v5653, %v5656
        %v5674 = vsel %vm5672, %v5662, 2102212464
        %v5675 = vsel %vm5671, %v5659, %v5674
        %v5676 = vsel %vm5670, %v5673, %v5675
        %v5677 = vsel %vm5669, %v5656, %v5659
        %v5678 = vsel %vm5672, %v5665, 920167782
        %v5679 = vsel %vm5671, %v5662, %v5678
        %v5680 = vsel %vm5670, %v5677, %v5679
        %v5681 = vsel %vm5669, %v5659, %v5662
        %v5682 = vsel %vm5672, %v5668, 1326507024
        %v5683 = vsel %vm5671, %v5665, %v5682
        %v5684 = vsel %vm5670, %v5681, %v5683
        %v5685 = vshll.u32 %v5645, 8
        %v5686 = vand.u32 %v5685, 65535
        %v5687 = vshrl.u32 %v5685, 16
        %v5688 = vand.u32 %v5684, 65535
        %v5689 = vshrl.u32 %v5684, 16
        %v5690 = vmul.u32 %v5686, %v5688
        %v5691 = vmul.u32 %v5686, %v5689
        %v5692 = vmul.u32 %v5687, %v5688
        %v5693 = vmul.u32 %v5687, %v5689
        %v5694 = vshll.u32 %v5691, 16
        %v5695 = vshrl.u32 %v5691, 16
        %v5696 = vshll.u32 %v5692, 16
        %v5697 = vshrl.u32 %v5692, 16
        %vm5698 = vc.u32 %v5690, %v5694
        %v5699 = vsel %vm5698, 1, 0
        %v5700 = vadd.s32 %v5690, %v5694
        %v5701 = vadd.s32 %v5693, %v5699
        %vm5702 = vc.u32 %v5700, %v5696
        %v5703 = vsel %vm5702, 1, 0
        %v5704 = vadd.s32 %v5700, %v5696
        %v5705 = vadd.s32 %v5701, %v5703
        %v5706 = vadd.s32 %v5705, %v5695
        %v5707 = vadd.s32 %v5706, %v5697
        %v5708 = vand.u32 %v5685, 65535
        %v5709 = vshrl.u32 %v5685, 16
        %v5710 = vand.u32 %v5680, 65535
        %v5711 = vshrl.u32 %v5680, 16
        %v5712 = vmul.u32 %v5708, %v5710
        %v5713 = vmul.u32 %v5708, %v5711
        %v5714 = vmul.u32 %v5709, %v5710
        %v5715 = vmul.u32 %v5709, %v5711
        %v5716 = vshll.u32 %v5713, 16
        %v5717 = vshrl.u32 %v5713, 16
        %v5718 = vshll.u32 %v5714, 16
        %v5719 = vshrl.u32 %v5714, 16
        %vm5720 = vc.u32 %v5712, %v5716
        %v5721 = vsel %vm5720, 1, 0
        %v5722 = vadd.s32 %v5712, %v5716
        %v5723 = vadd.s32 %v5715, %v5721
        %vm5724 = vc.u32 %v5722, %v5718
        %v5725 = vsel %vm5724, 1, 0
        %v5726 = vadd.s32 %v5722, %v5718
        %v5727 = vadd.s32 %v5723, %v5725
        %v5728 = vadd.s32 %v5727, %v5717
        %v5729 = vadd.s32 %v5728, %v5719
        %v5730 = vmul.u32 %v5685, %v5676
        %v5731 = vadd.s32 %v5707, %v5726
        %vm5732 = vc.u32 %v5707, %v5726
        %v5733 = vadd.s32 %v5729, 1
        %v5734 = vsel %vm5732, %v5733, %v5729
        %v5735 = vadd.s32 %v5730, %v5734
        %v5736 = vadd.s32 %v5735, 536870912
        %v5737 = vshrl.u32 %v5736, 30
        %v5738 = vshll.u32 %v5737, 30
        %v5739 = vsub.s32 %v5735, %v5738
        %vm5740 = vcmp.lt.s32.totalorder %v5739, 0
        %v5741 = vsub.s32 0, %v5739
        %v5742 = vsel %vm5740, %v5741, %v5739
        %v5743 = vclz %v5742
        %v5744 = vsub.s32 %v5743, 2
        %vm5745 = vcmp.gt.s32.totalorder 0, %v5744
        %v5746 = vsel %vm5745, 0, %v5744
        %v5747 = vsub.s32 32, %v5746
        %v5748 = vshll.u32 %v5739, %v5746
        %v5749 = vshrl.u32 %v5731, %v5747
        %v5750 = vor.u32 %v5748, %v5749
        %v5751 = vsub.s32 4294967266, %v5746
        %v5752 = vadd.s32 %v5751, 127
        %v5753 = vshll.u32 %v5752, 23
        %v5754 = vor.u32 4788187, %v5753
        %v5755 = vand.u32 2147483647, %v5754
        %v5757 = vcvt.s32.f32 %v5750
        %v5758 = vmul.f32 %v5757, %v5755
        %v5759 = vxor.u32 %v5758, 2147483648
        %v5760 = vsel %vm5639, %v5759, %v5758
        %v5761 = vsub.s32 4, %v5737
        %v5762 = vsel %vm5639, %v5761, %v5737
        %v5763 = vsel %vm5638, %v431, %v5760
        %v5764 = vsel %vm5638, 0, %v5762
        %v5765 = vmul.f32 %v5763, %v5763
        %v5766 = vmul.f32 %v5765, -0.001358992
        %v5767 = vadd.f32 %v5766, 0.041655596
        %v5768 = vmul.f32 %v5765, %v5767
        %v5769 = vadd.f32 %v5768, -0.4999988
        %v5770 = vmul.f32 %v5765, %v5769
        %v5771 = vadd.f32 1.0, %v5770
        %v5772 = vmul.f32 %v5763, %v5763
        %v5773 = vmul.f32 %v5772, -0.00019511016
        %v5774 = vadd.f32 %v5773, 0.008332121
        %v5775 = vmul.f32 %v5772, %v5774
        %v5776 = vadd.f32 %v5775, -0.16666654
        %v5777 = vmul.f32 %v5772, %v5776
        %v5778 = vadd.f32 %v5777, 1.0
        %v5779 = vmul.f32 %v5778, %v5763
        %vm5780 = vweird.f32 %v431
        %v5781 = vand.u32 %v5764, 3
        %vm5782 = vcmp.lt.s32.totalorder %v5781, 2
        %vm5783 = vcmp.eq.s32.totalorder %v5781, 0
        %v5784 = vxor.u32 %v5779, 2147483648
        %v5785 = vsel %vm5783, %v5771, %v5784
        %vm5786 = vcmp.eq.s32.totalorder %v5781, 2
        %v5787 = vxor.u32 %v5771, 2147483648
        %v5788 = vsel %vm5786, %v5787, %v5779
        %v5789 = vsel %vm5782, %v5785, %v5788
        %v5790 = vsel %vm5780, nan, %v5789
        %v5791 = vand.u32 2147483647, %v434
        %vm5792 = vcmp.le.f32.partialorder %v5791, 0.7853982
        %vm5793 = vcmp.lt.s32.totalorder %v434, 0
        %v5794 = vand.u32 %v434, 2139095040
        %v5795 = vshrl.u32 %v5794, 23
        %v5796 = vsub.s32 %v5795, 127
        %v5797 = vand.u32 2147483647, %v434
        %v5798 = vand.u32 %v5797, 8388607
        %v5799 = vor.u32 %v5798, 8388608
        %v5800 = vsub.s32 0, %v5799
        %v5801 = vadd.s32 %v5796, 1
        %vm5802 = vcmp.gt.s32.totalorder %v5801, 0
        %v5803 = vsel %vm5802, %v5801, 0
        %v5804 = vshrl.u32 %v5803, 5
        %v5805 = vand.u32 %v5803, 31
        %v5806 = vsub.s32 32, %v5805
        %v5807 = vshrl.u32 683565275, %v5806
        %v5808 = vshll.u32 683565275, %v5805
        %v5809 = vshrl.u32 2475754826, %v5806
        %v5810 = vor.u32 %v5808, %v5809
        %v5811 = vshll.u32 2475754826, %v5805
        %v5812 = vshrl.u32 2131351028, %v5806
        %v5813 = vor.u32 %v5811, %v5812
        %v5814 = vshll.u32 2131351028, %v5805
        %v5815 = vshrl.u32 2102212464, %v5806
        %v5816 = vor.u32 %v5814, %v5815
        %v5817 = vshll.u32 2102212464, %v5805
        %v5818 = vshrl.u32 920167782, %v5806
        %v5819 = vor.u32 %v5817, %v5818
        %v5820 = vshll.u32 920167782, %v5805
        %v5821 = vshrl.u32 1326507024, %v5806
        %v5822 = vor.u32 %v5820, %v5821
        %vm5823 = vcmp.lt.s32.totalorder %v5804, 1
        %vm5824 = vcmp.lt.s32.totalorder %v5804, 2
        %vm5825 = vcmp.lt.s32.totalorder %v5804, 3
        %vm5826 = vcmp.lt.s32.totalorder %v5804, 4
        %v5827 = vsel %vm5823, %v5807, %v5810
        %v5828 = vsel %vm5826, %v5816, 2102212464
        %v5829 = vsel %vm5825, %v5813, %v5828
        %v5830 = vsel %vm5824, %v5827, %v5829
        %v5831 = vsel %vm5823, %v5810, %v5813
        %v5832 = vsel %vm5826, %v5819, 920167782
        %v5833 = vsel %vm5825, %v5816, %v5832
        %v5834 = vsel %vm5824, %v5831, %v5833
        %v5835 = vsel %vm5823, %v5813, %v5816
        %v5836 = vsel %vm5826, %v5822, 1326507024
        %v5837 = vsel %vm5825, %v5819, %v5836
        %v5838 = vsel %vm5824, %v5835, %v5837
        %v5839 = vshll.u32 %v5799, 8
        %v5840 = vand.u32 %v5839, 65535
        %v5841 = vshrl.u32 %v5839, 16
        %v5842 = vand.u32 %v5838, 65535
        %v5843 = vshrl.u32 %v5838, 16
        %v5844 = vmul.u32 %v5840, %v5842
        %v5845 = vmul.u32 %v5840, %v5843
        %v5846 = vmul.u32 %v5841, %v5842
        %v5847 = vmul.u32 %v5841, %v5843
        %v5848 = vshll.u32 %v5845, 16
        %v5849 = vshrl.u32 %v5845, 16
        %v5850 = vshll.u32 %v5846, 16
        %v5851 = vshrl.u32 %v5846, 16
        %vm5852 = vc.u32 %v5844, %v5848
        %v5853 = vsel %vm5852, 1, 0
        %v5854 = vadd.s32 %v5844, %v5848
        %v5855 = vadd.s32 %v5847, %v5853
        %vm5856 = vc.u32 %v5854, %v5850
        %v5857 = vsel %vm5856, 1, 0
        %v5858 = vadd.s32 %v5854, %v5850
        %v5859 = vadd.s32 %v5855, %v5857
        %v5860 = vadd.s32 %v5859, %v5849
        %v5861 = vadd.s32 %v5860, %v5851
        %v5862 = vand.u32 %v5839, 65535
        %v5863 = vshrl.u32 %v5839, 16
        %v5864 = vand.u32 %v5834, 65535
        %v5865 = vshrl.u32 %v5834, 16
        %v5866 = vmul.u32 %v5862, %v5864
        %v5867 = vmul.u32 %v5862, %v5865
        %v5868 = vmul.u32 %v5863, %v5864
        %v5869 = vmul.u32 %v5863, %v5865
        %v5870 = vshll.u32 %v5867, 16
        %v5871 = vshrl.u32 %v5867, 16
        %v5872 = vshll.u32 %v5868, 16
        %v5873 = vshrl.u32 %v5868, 16
        %vm5874 = vc.u32 %v5866, %v5870
        %v5875 = vsel %vm5874, 1, 0
        %v5876 = vadd.s32 %v5866, %v5870
        %v5877 = vadd.s32 %v5869, %v5875
        %vm5878 = vc.u32 %v5876, %v5872
        %v5879 = vsel %vm5878, 1, 0
        %v5880 = vadd.s32 %v5876, %v5872
        %v5881 = vadd.s32 %v5877, %v5879
        %v5882 = vadd.s32 %v5881, %v5871
        %v5883 = vadd.s32 %v5882, %v5873
        %v5884 = vmul.u32 %v5839, %v5830
        %v5885 = vadd.s32 %v5861, %v5880
        %vm5886 = vc.u32 %v5861, %v5880
        %v5887 = vadd.s32 %v5883, 1
        %v5888 = vsel %vm5886, %v5887, %v5883
        %v5889 = vadd.s32 %v5884, %v5888
        %v5890 = vadd.s32 %v5889, 536870912
        %v5891 = vshrl.u32 %v5890, 30
        %v5892 = vshll.u32 %v5891, 30
        %v5893 = vsub.s32 %v5889, %v5892
        %vm5894 = vcmp.lt.s32.totalorder %v5893, 0
        %v5895 = vsub.s32 0, %v5893
        %v5896 = vsel %vm5894, %v5895, %v5893
        %v5897 = vclz %v5896
        %v5898 = vsub.s32 %v5897, 2
        %vm5899 = vcmp.gt.s32.totalorder 0, %v5898
        %v5900 = vsel %vm5899, 0, %v5898
        %v5901 = vsub.s32 32, %v5900
        %v5902 = vshll.u32 %v5893, %v5900
        %v5903 = vshrl.u32 %v5885, %v5901
        %v5904 = vor.u32 %v5902, %v5903
        %v5905 = vsub.s32 4294967266, %v5900
        %v5906 = vadd.s32 %v5905, 127
        %v5907 = vshll.u32 %v5906, 23
        %v5908 = vor.u32 4788187, %v5907
        %v5909 = vand.u32 2147483647, %v5908
        %v5911 = vcvt.s32.f32 %v5904
        %v5912 = vmul.f32 %v5911, %v5909
        %v5913 = vxor.u32 %v5912, 2147483648
        %v5914 = vsel %vm5793, %v5913, %v5912
        %v5915 = vsub.s32 4, %v5891
        %v5916 = vsel %vm5793, %v5915, %v5891
        %v5917 = vsel %vm5792, %v434, %v5914
        %v5918 = vsel %vm5792, 0, %v5916
        %v5919 = vmul.f32 %v5917, %v5917
        %v5920 = vmul.f32 %v5919, -0.001358992
        %v5921 = vadd.f32 %v5920, 0.041655596
        %v5922 = vmul.f32 %v5919, %v5921
        %v5923 = vadd.f32 %v5922, -0.4999988
        %v5924 = vmul.f32 %v5919, %v5923
        %v5925 = vadd.f32 1.0, %v5924
        %v5926 = vmul.f32 %v5917, %v5917
        %v5927 = vmul.f32 %v5926, -0.00019511016
        %v5928 = vadd.f32 %v5927, 0.008332121
        %v5929 = vmul.f32 %v5926, %v5928
        %v5930 = vadd.f32 %v5929, -0.16666654
        %v5931 = vmul.f32 %v5926, %v5930
        %v5932 = vadd.f32 %v5931, 1.0
        %v5933 = vmul.f32 %v5932, %v5917
        %vm5934 = vweird.f32 %v434
        %v5935 = vand.u32 %v5918, 3
        %vm5936 = vcmp.lt.s32.totalorder %v5935, 2
        %vm5937 = vcmp.eq.s32.totalorder %v5935, 0
        %v5938 = vxor.u32 %v5933, 2147483648
        %v5939 = vsel %vm5937, %v5925, %v5938
        %vm5940 = vcmp.eq.s32.totalorder %v5935, 2
        %v5941 = vxor.u32 %v5925, 2147483648
        %v5942 = vsel %vm5940, %v5941, %v5933
        %v5943 = vsel %vm5936, %v5939, %v5942
        %v5944 = vsel %vm5934, nan, %v5943
        %v5945 = vand.u32 2147483647, %v437
        %vm5946 = vcmp.le.f32.partialorder %v5945, 0.7853982
        %vm5947 = vcmp.lt.s32.totalorder %v437, 0
        %v5948 = vand.u32 %v437, 2139095040
        %v5949 = vshrl.u32 %v5948, 23
        %v5950 = vsub.s32 %v5949, 127
        %v5951 = vand.u32 2147483647, %v437
        %v5952 = vand.u32 %v5951, 8388607
        %v5953 = vor.u32 %v5952, 8388608
        %v5954 = vsub.s32 0, %v5953
        %v5955 = vadd.s32 %v5950, 1
        %vm5956 = vcmp.gt.s32.totalorder %v5955, 0
        %v5957 = vsel %vm5956, %v5955, 0
        %v5958 = vshrl.u32 %v5957, 5
        %v5959 = vand.u32 %v5957, 31
        %v5960 = vsub.s32 32, %v5959
        %v5961 = vshrl.u32 683565275, %v5960
        %v5962 = vshll.u32 683565275, %v5959
        %v5963 = vshrl.u32 2475754826, %v5960
        %v5964 = vor.u32 %v5962, %v5963
        %v5965 = vshll.u32 2475754826, %v5959
        %v5966 = vshrl.u32 2131351028, %v5960
        %v5967 = vor.u32 %v5965, %v5966
        %v5968 = vshll.u32 2131351028, %v5959
        %v5969 = vshrl.u32 2102212464, %v5960
        %v5970 = vor.u32 %v5968, %v5969
        %v5971 = vshll.u32 2102212464, %v5959
        %v5972 = vshrl.u32 920167782, %v5960
        %v5973 = vor.u32 %v5971, %v5972
        %v5974 = vshll.u32 920167782, %v5959
        %v5975 = vshrl.u32 1326507024, %v5960
        %v5976 = vor.u32 %v5974, %v5975
        %vm5977 = vcmp.lt.s32.totalorder %v5958, 1
        %vm5978 = vcmp.lt.s32.totalorder %v5958, 2
        %vm5979 = vcmp.lt.s32.totalorder %v5958, 3
        %vm5980 = vcmp.lt.s32.totalorder %v5958, 4
        %v5981 = vsel %vm5977, %v5961, %v5964
        %v5982 = vsel %vm5980, %v5970, 2102212464
        %v5983 = vsel %vm5979, %v5967, %v5982
        %v5984 = vsel %vm5978, %v5981, %v5983
        %v5985 = vsel %vm5977, %v5964, %v5967
        %v5986 = vsel %vm5980, %v5973, 920167782
        %v5987 = vsel %vm5979, %v5970, %v5986
        %v5988 = vsel %vm5978, %v5985, %v5987
        %v5989 = vsel %vm5977, %v5967, %v5970
        %v5990 = vsel %vm5980, %v5976, 1326507024
        %v5991 = vsel %vm5979, %v5973, %v5990
        %v5992 = vsel %vm5978, %v5989, %v5991
        %v5993 = vshll.u32 %v5953, 8
        %v5994 = vand.u32 %v5993, 65535
        %v5995 = vshrl.u32 %v5993, 16
        %v5996 = vand.u32 %v5992, 65535
        %v5997 = vshrl.u32 %v5992, 16
        %v5998 = vmul.u32 %v5994, %v5996
        %v5999 = vmul.u32 %v5994, %v5997
        %v6000 = vmul.u32 %v5995, %v5996
        %v6001 = vmul.u32 %v5995, %v5997
        %v6002 = vshll.u32 %v5999, 16
        %v6003 = vshrl.u32 %v5999, 16
        %v6004 = vshll.u32 %v6000, 16
        %v6005 = vshrl.u32 %v6000, 16
        %vm6006 = vc.u32 %v5998, %v6002
        %v6007 = vsel %vm6006, 1, 0
        %v6008 = vadd.s32 %v5998, %v6002
        %v6009 = vadd.s32 %v6001, %v6007
        %vm6010 = vc.u32 %v6008, %v6004
        %v6011 = vsel %vm6010, 1, 0
        %v6012 = vadd.s32 %v6008, %v6004
        %v6013 = vadd.s32 %v6009, %v6011
        %v6014 = vadd.s32 %v6013, %v6003
        %v6015 = vadd.s32 %v6014, %v6005
        %v6016 = vand.u32 %v5993, 65535
        %v6017 = vshrl.u32 %v5993, 16
        %v6018 = vand.u32 %v5988, 65535
        %v6019 = vshrl.u32 %v5988, 16
        %v6020 = vmul.u32 %v6016, %v6018
        %v6021 = vmul.u32 %v6016, %v6019
        %v6022 = vmul.u32 %v6017, %v6018
        %v6023 = vmul.u32 %v6017, %v6019
        %v6024 = vshll.u32 %v6021, 16
        %v6025 = vshrl.u32 %v6021, 16
        %v6026 = vshll.u32 %v6022, 16
        %v6027 = vshrl.u32 %v6022, 16
        %vm6028 = vc.u32 %v6020, %v6024
        %v6029 = vsel %vm6028, 1, 0
        %v6030 = vadd.s32 %v6020, %v6024
        %v6031 = vadd.s32 %v6023, %v6029
        %vm6032 = vc.u32 %v6030, %v6026
        %v6033 = vsel %vm6032, 1, 0
        %v6034 = vadd.s32 %v6030, %v6026
        %v6035 = vadd.s32 %v6031, %v6033
        %v6036 = vadd.s32 %v6035, %v6025
        %v6037 = vadd.s32 %v6036, %v6027
        %v6038 = vmul.u32 %v5993, %v5984
        %v6039 = vadd.s32 %v6015, %v6034
        %vm6040 = vc.u32 %v6015, %v6034
        %v6041 = vadd.s32 %v6037, 1
        %v6042 = vsel %vm6040, %v6041, %v6037
        %v6043 = vadd.s32 %v6038, %v6042
        %v6044 = vadd.s32 %v6043, 536870912
        %v6045 = vshrl.u32 %v6044, 30
        %v6046 = vshll.u32 %v6045, 30
        %v6047 = vsub.s32 %v6043, %v6046
        %vm6048 = vcmp.lt.s32.totalorder %v6047, 0
        %v6049 = vsub.s32 0, %v6047
        %v6050 = vsel %vm6048, %v6049, %v6047
        %v6051 = vclz %v6050
        %v6052 = vsub.s32 %v6051, 2
        %vm6053 = vcmp.gt.s32.totalorder 0, %v6052
        %v6054 = vsel %vm6053, 0, %v6052
        %v6055 = vsub.s32 32, %v6054
        %v6056 = vshll.u32 %v6047, %v6054
        %v6057 = vshrl.u32 %v6039, %v6055
        %v6058 = vor.u32 %v6056, %v6057
        %v6059 = vsub.s32 4294967266, %v6054
        %v6060 = vadd.s32 %v6059, 127
        %v6061 = vshll.u32 %v6060, 23
        %v6062 = vor.u32 4788187, %v6061
        %v6063 = vand.u32 2147483647, %v6062
        %v6065 = vcvt.s32.f32 %v6058
        %v6066 = vmul.f32 %v6065, %v6063
        %v6067 = vxor.u32 %v6066, 2147483648
        %v6068 = vsel %vm5947, %v6067, %v6066
        %v6069 = vsub.s32 4, %v6045
        %v6070 = vsel %vm5947, %v6069, %v6045
        %v6071 = vsel %vm5946, %v437, %v6068
        %v6072 = vsel %vm5946, 0, %v6070
        %v6073 = vmul.f32 %v6071, %v6071
        %v6074 = vmul.f32 %v6073, -0.001358992
        %v6075 = vadd.f32 %v6074, 0.041655596
        %v6076 = vmul.f32 %v6073, %v6075
        %v6077 = vadd.f32 %v6076, -0.4999988
        %v6078 = vmul.f32 %v6073, %v6077
        %v6079 = vadd.f32 1.0, %v6078
        %v6080 = vmul.f32 %v6071, %v6071
        %v6081 = vmul.f32 %v6080, -0.00019511016
        %v6082 = vadd.f32 %v6081, 0.008332121
        %v6083 = vmul.f32 %v6080, %v6082
        %v6084 = vadd.f32 %v6083, -0.16666654
        %v6085 = vmul.f32 %v6080, %v6084
        %v6086 = vadd.f32 %v6085, 1.0
        %v6087 = vmul.f32 %v6086, %v6071
        %vm6088 = vweird.f32 %v437
        %v6089 = vand.u32 %v6072, 3
        %vm6090 = vcmp.lt.s32.totalorder %v6089, 2
        %vm6091 = vcmp.eq.s32.totalorder %v6089, 0
        %v6092 = vxor.u32 %v6087, 2147483648
        %v6093 = vsel %vm6091, %v6079, %v6092
        %vm6094 = vcmp.eq.s32.totalorder %v6089, 2
        %v6095 = vxor.u32 %v6079, 2147483648
        %v6096 = vsel %vm6094, %v6095, %v6087
        %v6097 = vsel %vm6090, %v6093, %v6096
        %v6098 = vsel %vm6088, nan, %v6097
        %v6099 = vand.u32 2147483647, %v440
        %vm6100 = vcmp.le.f32.partialorder %v6099, 0.7853982
        %vm6101 = vcmp.lt.s32.totalorder %v440, 0
        %v6102 = vand.u32 %v440, 2139095040
        %v6103 = vshrl.u32 %v6102, 23
        %v6104 = vsub.s32 %v6103, 127
        %v6105 = vand.u32 2147483647, %v440
        %v6106 = vand.u32 %v6105, 8388607
        %v6107 = vor.u32 %v6106, 8388608
        %v6108 = vsub.s32 0, %v6107
        %v6109 = vadd.s32 %v6104, 1
        %vm6110 = vcmp.gt.s32.totalorder %v6109, 0
        %v6111 = vsel %vm6110, %v6109, 0
        %v6112 = vshrl.u32 %v6111, 5
        %v6113 = vand.u32 %v6111, 31
        %v6114 = vsub.s32 32, %v6113
        %v6115 = vshrl.u32 683565275, %v6114
        %v6116 = vshll.u32 683565275, %v6113
        %v6117 = vshrl.u32 2475754826, %v6114
        %v6118 = vor.u32 %v6116, %v6117
        %v6119 = vshll.u32 2475754826, %v6113
        %v6120 = vshrl.u32 2131351028, %v6114
        %v6121 = vor.u32 %v6119, %v6120
        %v6122 = vshll.u32 2131351028, %v6113
        %v6123 = vshrl.u32 2102212464, %v6114
        %v6124 = vor.u32 %v6122, %v6123
        %v6125 = vshll.u32 2102212464, %v6113
        %v6126 = vshrl.u32 920167782, %v6114
        %v6127 = vor.u32 %v6125, %v6126
        %v6128 = vshll.u32 920167782, %v6113
        %v6129 = vshrl.u32 1326507024, %v6114
        %v6130 = vor.u32 %v6128, %v6129
        %vm6131 = vcmp.lt.s32.totalorder %v6112, 1
        %vm6132 = vcmp.lt.s32.totalorder %v6112, 2
        %vm6133 = vcmp.lt.s32.totalorder %v6112, 3
        %vm6134 = vcmp.lt.s32.totalorder %v6112, 4
        %v6135 = vsel %vm6131, %v6115, %v6118
        %v6136 = vsel %vm6134, %v6124, 2102212464
        %v6137 = vsel %vm6133, %v6121, %v6136
        %v6138 = vsel %vm6132, %v6135, %v6137
        %v6139 = vsel %vm6131, %v6118, %v6121
        %v6140 = vsel %vm6134, %v6127, 920167782
        %v6141 = vsel %vm6133, %v6124, %v6140
        %v6142 = vsel %vm6132, %v6139, %v6141
        %v6143 = vsel %vm6131, %v6121, %v6124
        %v6144 = vsel %vm6134, %v6130, 1326507024
        %v6145 = vsel %vm6133, %v6127, %v6144
        %v6146 = vsel %vm6132, %v6143, %v6145
        %v6147 = vshll.u32 %v6107, 8
        %v6148 = vand.u32 %v6147, 65535
        %v6149 = vshrl.u32 %v6147, 16
        %v6150 = vand.u32 %v6146, 65535
        %v6151 = vshrl.u32 %v6146, 16
        %v6152 = vmul.u32 %v6148, %v6150
        %v6153 = vmul.u32 %v6148, %v6151
        %v6154 = vmul.u32 %v6149, %v6150
        %v6155 = vmul.u32 %v6149, %v6151
        %v6156 = vshll.u32 %v6153, 16
        %v6157 = vshrl.u32 %v6153, 16
        %v6158 = vshll.u32 %v6154, 16
        %v6159 = vshrl.u32 %v6154, 16
        %vm6160 = vc.u32 %v6152, %v6156
        %v6161 = vsel %vm6160, 1, 0
        %v6162 = vadd.s32 %v6152, %v6156
        %v6163 = vadd.s32 %v6155, %v6161
        %vm6164 = vc.u32 %v6162, %v6158
        %v6165 = vsel %vm6164, 1, 0
        %v6166 = vadd.s32 %v6162, %v6158
        %v6167 = vadd.s32 %v6163, %v6165
        %v6168 = vadd.s32 %v6167, %v6157
        %v6169 = vadd.s32 %v6168, %v6159
        %v6170 = vand.u32 %v6147, 65535
        %v6171 = vshrl.u32 %v6147, 16
        %v6172 = vand.u32 %v6142, 65535
        %v6173 = vshrl.u32 %v6142, 16
        %v6174 = vmul.u32 %v6170, %v6172
        %v6175 = vmul.u32 %v6170, %v6173
        %v6176 = vmul.u32 %v6171, %v6172
        %v6177 = vmul.u32 %v6171, %v6173
        %v6178 = vshll.u32 %v6175, 16
        %v6179 = vshrl.u32 %v6175, 16
        %v6180 = vshll.u32 %v6176, 16
        %v6181 = vshrl.u32 %v6176, 16
        %vm6182 = vc.u32 %v6174, %v6178
        %v6183 = vsel %vm6182, 1, 0
        %v6184 = vadd.s32 %v6174, %v6178
        %v6185 = vadd.s32 %v6177, %v6183
        %vm6186 = vc.u32 %v6184, %v6180
        %v6187 = vsel %vm6186, 1, 0
        %v6188 = vadd.s32 %v6184, %v6180
        %v6189 = vadd.s32 %v6185, %v6187
        %v6190 = vadd.s32 %v6189, %v6179
        %v6191 = vadd.s32 %v6190, %v6181
        %v6192 = vmul.u32 %v6147, %v6138
        %v6193 = vadd.s32 %v6169, %v6188
        %vm6194 = vc.u32 %v6169, %v6188
        %v6195 = vadd.s32 %v6191, 1
        %v6196 = vsel %vm6194, %v6195, %v6191
        %v6197 = vadd.s32 %v6192, %v6196
        %v6198 = vadd.s32 %v6197, 536870912
        %v6199 = vshrl.u32 %v6198, 30
        %v6200 = vshll.u32 %v6199, 30
        %v6201 = vsub.s32 %v6197, %v6200
        %vm6202 = vcmp.lt.s32.totalorder %v6201, 0
        %v6203 = vsub.s32 0, %v6201
        %v6204 = vsel %vm6202, %v6203, %v6201
        %v6205 = vclz %v6204
        %v6206 = vsub.s32 %v6205, 2
        %vm6207 = vcmp.gt.s32.totalorder 0, %v6206
        %v6208 = vsel %vm6207, 0, %v6206
        %v6209 = vsub.s32 32, %v6208
        %v6210 = vshll.u32 %v6201, %v6208
        %v6211 = vshrl.u32 %v6193, %v6209
        %v6212 = vor.u32 %v6210, %v6211
        %v6213 = vsub.s32 4294967266, %v6208
        %v6214 = vadd.s32 %v6213, 127
        %v6215 = vshll.u32 %v6214, 23
        %v6216 = vor.u32 4788187, %v6215
        %v6217 = vand.u32 2147483647, %v6216
        %v6219 = vcvt.s32.f32 %v6212
        %v6220 = vmul.f32 %v6219, %v6217
        %v6221 = vxor.u32 %v6220, 2147483648
        %v6222 = vsel %vm6101, %v6221, %v6220
        %v6223 = vsub.s32 4, %v6199
        %v6224 = vsel %vm6101, %v6223, %v6199
        %v6225 = vsel %vm6100, %v440, %v6222
        %v6226 = vsel %vm6100, 0, %v6224
        %v6227 = vmul.f32 %v6225, %v6225
        %v6228 = vmul.f32 %v6227, -0.001358992
        %v6229 = vadd.f32 %v6228, 0.041655596
        %v6230 = vmul.f32 %v6227, %v6229
        %v6231 = vadd.f32 %v6230, -0.4999988
        %v6232 = vmul.f32 %v6227, %v6231
        %v6233 = vadd.f32 1.0, %v6232
        %v6234 = vmul.f32 %v6225, %v6225
        %v6235 = vmul.f32 %v6234, -0.00019511016
        %v6236 = vadd.f32 %v6235, 0.008332121
        %v6237 = vmul.f32 %v6234, %v6236
        %v6238 = vadd.f32 %v6237, -0.16666654
        %v6239 = vmul.f32 %v6234, %v6238
        %v6240 = vadd.f32 %v6239, 1.0
        %v6241 = vmul.f32 %v6240, %v6225
        %vm6242 = vweird.f32 %v440
        %v6243 = vand.u32 %v6226, 3
        %vm6244 = vcmp.lt.s32.totalorder %v6243, 2
        %vm6245 = vcmp.eq.s32.totalorder %v6243, 0
        %v6246 = vxor.u32 %v6241, 2147483648
        %v6247 = vsel %vm6245, %v6233, %v6246
        %vm6248 = vcmp.eq.s32.totalorder %v6243, 2
        %v6249 = vxor.u32 %v6233, 2147483648
        %v6250 = vsel %vm6248, %v6249, %v6241
        %v6251 = vsel %vm6244, %v6247, %v6250
        %v6252 = vsel %vm6242, nan, %v6251
        %v6253 = vand.u32 2147483647, %v443
        %vm6254 = vcmp.le.f32.partialorder %v6253, 0.7853982
        %vm6255 = vcmp.lt.s32.totalorder %v443, 0
        %v6256 = vand.u32 %v443, 2139095040
        %v6257 = vshrl.u32 %v6256, 23
        %v6258 = vsub.s32 %v6257, 127
        %v6259 = vand.u32 2147483647, %v443
        %v6260 = vand.u32 %v6259, 8388607
        %v6261 = vor.u32 %v6260, 8388608
        %v6262 = vsub.s32 0, %v6261
        %v6263 = vadd.s32 %v6258, 1
        %vm6264 = vcmp.gt.s32.totalorder %v6263, 0
        %v6265 = vsel %vm6264, %v6263, 0
        %v6266 = vshrl.u32 %v6265, 5
        %v6267 = vand.u32 %v6265, 31
        %v6268 = vsub.s32 32, %v6267
        %v6269 = vshrl.u32 683565275, %v6268
        %v6270 = vshll.u32 683565275, %v6267
        %v6271 = vshrl.u32 2475754826, %v6268
        %v6272 = vor.u32 %v6270, %v6271
        %v6273 = vshll.u32 2475754826, %v6267
        %v6274 = vshrl.u32 2131351028, %v6268
        %v6275 = vor.u32 %v6273, %v6274
        %v6276 = vshll.u32 2131351028, %v6267
        %v6277 = vshrl.u32 2102212464, %v6268
        %v6278 = vor.u32 %v6276, %v6277
        %v6279 = vshll.u32 2102212464, %v6267
        %v6280 = vshrl.u32 920167782, %v6268
        %v6281 = vor.u32 %v6279, %v6280
        %v6282 = vshll.u32 920167782, %v6267
        %v6283 = vshrl.u32 1326507024, %v6268
        %v6284 = vor.u32 %v6282, %v6283
        %vm6285 = vcmp.lt.s32.totalorder %v6266, 1
        %vm6286 = vcmp.lt.s32.totalorder %v6266, 2
        %vm6287 = vcmp.lt.s32.totalorder %v6266, 3
        %vm6288 = vcmp.lt.s32.totalorder %v6266, 4
        %v6289 = vsel %vm6285, %v6269, %v6272
        %v6290 = vsel %vm6288, %v6278, 2102212464
        %v6291 = vsel %vm6287, %v6275, %v6290
        %v6292 = vsel %vm6286, %v6289, %v6291
        %v6293 = vsel %vm6285, %v6272, %v6275
        %v6294 = vsel %vm6288, %v6281, 920167782
        %v6295 = vsel %vm6287, %v6278, %v6294
        %v6296 = vsel %vm6286, %v6293, %v6295
        %v6297 = vsel %vm6285, %v6275, %v6278
        %v6298 = vsel %vm6288, %v6284, 1326507024
        %v6299 = vsel %vm6287, %v6281, %v6298
        %v6300 = vsel %vm6286, %v6297, %v6299
        %v6301 = vshll.u32 %v6261, 8
        %v6302 = vand.u32 %v6301, 65535
        %v6303 = vshrl.u32 %v6301, 16
        %v6304 = vand.u32 %v6300, 65535
        %v6305 = vshrl.u32 %v6300, 16
        %v6306 = vmul.u32 %v6302, %v6304
        %v6307 = vmul.u32 %v6302, %v6305
        %v6308 = vmul.u32 %v6303, %v6304
        %v6309 = vmul.u32 %v6303, %v6305
        %v6310 = vshll.u32 %v6307, 16
        %v6311 = vshrl.u32 %v6307, 16
        %v6312 = vshll.u32 %v6308, 16
        %v6313 = vshrl.u32 %v6308, 16
        %vm6314 = vc.u32 %v6306, %v6310
        %v6315 = vsel %vm6314, 1, 0
        %v6316 = vadd.s32 %v6306, %v6310
        %v6317 = vadd.s32 %v6309, %v6315
        %vm6318 = vc.u32 %v6316, %v6312
        %v6319 = vsel %vm6318, 1, 0
        %v6320 = vadd.s32 %v6316, %v6312
        %v6321 = vadd.s32 %v6317, %v6319
        %v6322 = vadd.s32 %v6321, %v6311
        %v6323 = vadd.s32 %v6322, %v6313
        %v6324 = vand.u32 %v6301, 65535
        %v6325 = vshrl.u32 %v6301, 16
        %v6326 = vand.u32 %v6296, 65535
        %v6327 = vshrl.u32 %v6296, 16
        %v6328 = vmul.u32 %v6324, %v6326
        %v6329 = vmul.u32 %v6324, %v6327
        %v6330 = vmul.u32 %v6325, %v6326
        %v6331 = vmul.u32 %v6325, %v6327
        %v6332 = vshll.u32 %v6329, 16
        %v6333 = vshrl.u32 %v6329, 16
        %v6334 = vshll.u32 %v6330, 16
        %v6335 = vshrl.u32 %v6330, 16
        %vm6336 = vc.u32 %v6328, %v6332
        %v6337 = vsel %vm6336, 1, 0
        %v6338 = vadd.s32 %v6328, %v6332
        %v6339 = vadd.s32 %v6331, %v6337
        %vm6340 = vc.u32 %v6338, %v6334
        %v6341 = vsel %vm6340, 1, 0
        %v6342 = vadd.s32 %v6338, %v6334
        %v6343 = vadd.s32 %v6339, %v6341
        %v6344 = vadd.s32 %v6343, %v6333
        %v6345 = vadd.s32 %v6344, %v6335
        %v6346 = vmul.u32 %v6301, %v6292
        %v6347 = vadd.s32 %v6323, %v6342
        %vm6348 = vc.u32 %v6323, %v6342
        %v6349 = vadd.s32 %v6345, 1
        %v6350 = vsel %vm6348, %v6349, %v6345
        %v6351 = vadd.s32 %v6346, %v6350
        %v6352 = vadd.s32 %v6351, 536870912
        %v6353 = vshrl.u32 %v6352, 30
        %v6354 = vshll.u32 %v6353, 30
        %v6355 = vsub.s32 %v6351, %v6354
        %vm6356 = vcmp.lt.s32.totalorder %v6355, 0
        %v6357 = vsub.s32 0, %v6355
        %v6358 = vsel %vm6356, %v6357, %v6355
        %v6359 = vclz %v6358
        %v6360 = vsub.s32 %v6359, 2
        %vm6361 = vcmp.gt.s32.totalorder 0, %v6360
        %v6362 = vsel %vm6361, 0, %v6360
        %v6363 = vsub.s32 32, %v6362
        %v6364 = vshll.u32 %v6355, %v6362
        %v6365 = vshrl.u32 %v6347, %v6363
        %v6366 = vor.u32 %v6364, %v6365
        %v6367 = vsub.s32 4294967266, %v6362
        %v6368 = vadd.s32 %v6367, 127
        %v6369 = vshll.u32 %v6368, 23
        %v6370 = vor.u32 4788187, %v6369
        %v6371 = vand.u32 2147483647, %v6370
        %v6373 = vcvt.s32.f32 %v6366
        %v6374 = vmul.f32 %v6373, %v6371
        %v6375 = vxor.u32 %v6374, 2147483648
        %v6376 = vsel %vm6255, %v6375, %v6374
        %v6377 = vsub.s32 4, %v6353
        %v6378 = vsel %vm6255, %v6377, %v6353
        %v6379 = vsel %vm6254, %v443, %v6376
        %v6380 = vsel %vm6254, 0, %v6378
        %v6381 = vmul.f32 %v6379, %v6379
        %v6382 = vmul.f32 %v6381, -0.001358992
        %v6383 = vadd.f32 %v6382, 0.041655596
        %v6384 = vmul.f32 %v6381, %v6383
        %v6385 = vadd.f32 %v6384, -0.4999988
        %v6386 = vmul.f32 %v6381, %v6385
        %v6387 = vadd.f32 1.0, %v6386
        %v6388 = vmul.f32 %v6379, %v6379
        %v6389 = vmul.f32 %v6388, -0.00019511016
        %v6390 = vadd.f32 %v6389, 0.008332121
        %v6391 = vmul.f32 %v6388, %v6390
        %v6392 = vadd.f32 %v6391, -0.16666654
        %v6393 = vmul.f32 %v6388, %v6392
        %v6394 = vadd.f32 %v6393, 1.0
        %v6395 = vmul.f32 %v6394, %v6379
        %vm6396 = vweird.f32 %v443
        %v6397 = vand.u32 %v6380, 3
        %vm6398 = vcmp.lt.s32.totalorder %v6397, 2
        %vm6399 = vcmp.eq.s32.totalorder %v6397, 0
        %v6400 = vxor.u32 %v6395, 2147483648
        %v6401 = vsel %vm6399, %v6387, %v6400
        %vm6402 = vcmp.eq.s32.totalorder %v6397, 2
        %v6403 = vxor.u32 %v6387, 2147483648
        %v6404 = vsel %vm6402, %v6403, %v6395
        %v6405 = vsel %vm6398, %v6401, %v6404
        %v6406 = vsel %vm6396, nan, %v6405
        %v6407 = vand.u32 2147483647, %v446
        %vm6408 = vcmp.le.f32.partialorder %v6407, 0.7853982
        %vm6409 = vcmp.lt.s32.totalorder %v446, 0
        %v6410 = vand.u32 %v446, 2139095040
        %v6411 = vshrl.u32 %v6410, 23
        %v6412 = vsub.s32 %v6411, 127
        %v6413 = vand.u32 2147483647, %v446
        %v6414 = vand.u32 %v6413, 8388607
        %v6415 = vor.u32 %v6414, 8388608
        %v6416 = vsub.s32 0, %v6415
        %v6417 = vadd.s32 %v6412, 1
        %vm6418 = vcmp.gt.s32.totalorder %v6417, 0
        %v6419 = vsel %vm6418, %v6417, 0
        %v6420 = vshrl.u32 %v6419, 5
        %v6421 = vand.u32 %v6419, 31
        %v6422 = vsub.s32 32, %v6421
        %v6423 = vshrl.u32 683565275, %v6422
        %v6424 = vshll.u32 683565275, %v6421
        %v6425 = vshrl.u32 2475754826, %v6422
        %v6426 = vor.u32 %v6424, %v6425
        %v6427 = vshll.u32 2475754826, %v6421
        %v6428 = vshrl.u32 2131351028, %v6422
        %v6429 = vor.u32 %v6427, %v6428
        %v6430 = vshll.u32 2131351028, %v6421
        %v6431 = vshrl.u32 2102212464, %v6422
        %v6432 = vor.u32 %v6430, %v6431
        %v6433 = vshll.u32 2102212464, %v6421
        %v6434 = vshrl.u32 920167782, %v6422
        %v6435 = vor.u32 %v6433, %v6434
        %v6436 = vshll.u32 920167782, %v6421
        %v6437 = vshrl.u32 1326507024, %v6422
        %v6438 = vor.u32 %v6436, %v6437
        %vm6439 = vcmp.lt.s32.totalorder %v6420, 1
        %vm6440 = vcmp.lt.s32.totalorder %v6420, 2
        %vm6441 = vcmp.lt.s32.totalorder %v6420, 3
        %vm6442 = vcmp.lt.s32.totalorder %v6420, 4
        %v6443 = vsel %vm6439, %v6423, %v6426
        %v6444 = vsel %vm6442, %v6432, 2102212464
        %v6445 = vsel %vm6441, %v6429, %v6444
        %v6446 = vsel %vm6440, %v6443, %v6445
        %v6447 = vsel %vm6439, %v6426, %v6429
        %v6448 = vsel %vm6442, %v6435, 920167782
        %v6449 = vsel %vm6441, %v6432, %v6448
        %v6450 = vsel %vm6440, %v6447, %v6449
        %v6451 = vsel %vm6439, %v6429, %v6432
        %v6452 = vsel %vm6442, %v6438, 1326507024
        %v6453 = vsel %vm6441, %v6435, %v6452
        %v6454 = vsel %vm6440, %v6451, %v6453
        %v6455 = vshll.u32 %v6415, 8
        %v6456 = vand.u32 %v6455, 65535
        %v6457 = vshrl.u32 %v6455, 16
        %v6458 = vand.u32 %v6454, 65535
        %v6459 = vshrl.u32 %v6454, 16
        %v6460 = vmul.u32 %v6456, %v6458
        %v6461 = vmul.u32 %v6456, %v6459
        %v6462 = vmul.u32 %v6457, %v6458
        %v6463 = vmul.u32 %v6457, %v6459
        %v6464 = vshll.u32 %v6461, 16
        %v6465 = vshrl.u32 %v6461, 16
        %v6466 = vshll.u32 %v6462, 16
        %v6467 = vshrl.u32 %v6462, 16
        %vm6468 = vc.u32 %v6460, %v6464
        %v6469 = vsel %vm6468, 1, 0
        %v6470 = vadd.s32 %v6460, %v6464
        %v6471 = vadd.s32 %v6463, %v6469
        %vm6472 = vc.u32 %v6470, %v6466
        %v6473 = vsel %vm6472, 1, 0
        %v6474 = vadd.s32 %v6470, %v6466
        %v6475 = vadd.s32 %v6471, %v6473
        %v6476 = vadd.s32 %v6475, %v6465
        %v6477 = vadd.s32 %v6476, %v6467
        %v6478 = vand.u32 %v6455, 65535
        %v6479 = vshrl.u32 %v6455, 16
        %v6480 = vand.u32 %v6450, 65535
        %v6481 = vshrl.u32 %v6450, 16
        %v6482 = vmul.u32 %v6478, %v6480
        %v6483 = vmul.u32 %v6478, %v6481
        %v6484 = vmul.u32 %v6479, %v6480
        %v6485 = vmul.u32 %v6479, %v6481
        %v6486 = vshll.u32 %v6483, 16
        %v6487 = vshrl.u32 %v6483, 16
        %v6488 = vshll.u32 %v6484, 16
        %v6489 = vshrl.u32 %v6484, 16
        %vm6490 = vc.u32 %v6482, %v6486
        %v6491 = vsel %vm6490, 1, 0
        %v6492 = vadd.s32 %v6482, %v6486
        %v6493 = vadd.s32 %v6485, %v6491
        %vm6494 = vc.u32 %v6492, %v6488
        %v6495 = vsel %vm6494, 1, 0
        %v6496 = vadd.s32 %v6492, %v6488
        %v6497 = vadd.s32 %v6493, %v6495
        %v6498 = vadd.s32 %v6497, %v6487
        %v6499 = vadd.s32 %v6498, %v6489
        %v6500 = vmul.u32 %v6455, %v6446
        %v6501 = vadd.s32 %v6477, %v6496
        %vm6502 = vc.u32 %v6477, %v6496
        %v6503 = vadd.s32 %v6499, 1
        %v6504 = vsel %vm6502, %v6503, %v6499
        %v6505 = vadd.s32 %v6500, %v6504
        %v6506 = vadd.s32 %v6505, 536870912
        %v6507 = vshrl.u32 %v6506, 30
        %v6508 = vshll.u32 %v6507, 30
        %v6509 = vsub.s32 %v6505, %v6508
        %vm6510 = vcmp.lt.s32.totalorder %v6509, 0
        %v6511 = vsub.s32 0, %v6509
        %v6512 = vsel %vm6510, %v6511, %v6509
        %v6513 = vclz %v6512
        %v6514 = vsub.s32 %v6513, 2
        %vm6515 = vcmp.gt.s32.totalorder 0, %v6514
        %v6516 = vsel %vm6515, 0, %v6514
        %v6517 = vsub.s32 32, %v6516
        %v6518 = vshll.u32 %v6509, %v6516
        %v6519 = vshrl.u32 %v6501, %v6517
        %v6520 = vor.u32 %v6518, %v6519
        %v6521 = vsub.s32 4294967266, %v6516
        %v6522 = vadd.s32 %v6521, 127
        %v6523 = vshll.u32 %v6522, 23
        %v6524 = vor.u32 4788187, %v6523
        %v6525 = vand.u32 2147483647, %v6524
        %v6527 = vcvt.s32.f32 %v6520
        %v6528 = vmul.f32 %v6527, %v6525
        %v6529 = vxor.u32 %v6528, 2147483648
        %v6530 = vsel %vm6409, %v6529, %v6528
        %v6531 = vsub.s32 4, %v6507
        %v6532 = vsel %vm6409, %v6531, %v6507
        %v6533 = vsel %vm6408, %v446, %v6530
        %v6534 = vsel %vm6408, 0, %v6532
        %v6535 = vmul.f32 %v6533, %v6533
        %v6536 = vmul.f32 %v6535, -0.001358992
        %v6537 = vadd.f32 %v6536, 0.041655596
        %v6538 = vmul.f32 %v6535, %v6537
        %v6539 = vadd.f32 %v6538, -0.4999988
        %v6540 = vmul.f32 %v6535, %v6539
        %v6541 = vadd.f32 1.0, %v6540
        %v6542 = vmul.f32 %v6533, %v6533
        %v6543 = vmul.f32 %v6542, -0.00019511016
        %v6544 = vadd.f32 %v6543, 0.008332121
        %v6545 = vmul.f32 %v6542, %v6544
        %v6546 = vadd.f32 %v6545, -0.16666654
        %v6547 = vmul.f32 %v6542, %v6546
        %v6548 = vadd.f32 %v6547, 1.0
        %v6549 = vmul.f32 %v6548, %v6533
        %vm6550 = vweird.f32 %v446
        %v6551 = vand.u32 %v6534, 3
        %vm6552 = vcmp.lt.s32.totalorder %v6551, 2
        %vm6553 = vcmp.eq.s32.totalorder %v6551, 0
        %v6554 = vxor.u32 %v6549, 2147483648
        %v6555 = vsel %vm6553, %v6541, %v6554
        %vm6556 = vcmp.eq.s32.totalorder %v6551, 2
        %v6557 = vxor.u32 %v6541, 2147483648
        %v6558 = vsel %vm6556, %v6557, %v6549
        %v6559 = vsel %vm6552, %v6555, %v6558
        %v6560 = vsel %vm6550, nan, %v6559
        %v6561 = vand.u32 2147483647, %v449
        %vm6562 = vcmp.le.f32.partialorder %v6561, 0.7853982
        %vm6563 = vcmp.lt.s32.totalorder %v449, 0
        %v6564 = vand.u32 %v449, 2139095040
        %v6565 = vshrl.u32 %v6564, 23
        %v6566 = vsub.s32 %v6565, 127
        %v6567 = vand.u32 2147483647, %v449
        %v6568 = vand.u32 %v6567, 8388607
        %v6569 = vor.u32 %v6568, 8388608
        %v6570 = vsub.s32 0, %v6569
        %v6571 = vadd.s32 %v6566, 1
        %vm6572 = vcmp.gt.s32.totalorder %v6571, 0
        %v6573 = vsel %vm6572, %v6571, 0
        %v6574 = vshrl.u32 %v6573, 5
        %v6575 = vand.u32 %v6573, 31
        %v6576 = vsub.s32 32, %v6575
        %v6577 = vshrl.u32 683565275, %v6576
        %v6578 = vshll.u32 683565275, %v6575
        %v6579 = vshrl.u32 2475754826, %v6576
        %v6580 = vor.u32 %v6578, %v6579
        %v6581 = vshll.u32 2475754826, %v6575
        %v6582 = vshrl.u32 2131351028, %v6576
        %v6583 = vor.u32 %v6581, %v6582
        %v6584 = vshll.u32 2131351028, %v6575
        %v6585 = vshrl.u32 2102212464, %v6576
        %v6586 = vor.u32 %v6584, %v6585
        %v6587 = vshll.u32 2102212464, %v6575
        %v6588 = vshrl.u32 920167782, %v6576
        %v6589 = vor.u32 %v6587, %v6588
        %v6590 = vshll.u32 920167782, %v6575
        %v6591 = vshrl.u32 1326507024, %v6576
        %v6592 = vor.u32 %v6590, %v6591
        %vm6593 = vcmp.lt.s32.totalorder %v6574, 1
        %vm6594 = vcmp.lt.s32.totalorder %v6574, 2
        %vm6595 = vcmp.lt.s32.totalorder %v6574, 3
        %vm6596 = vcmp.lt.s32.totalorder %v6574, 4
        %v6597 = vsel %vm6593, %v6577, %v6580
        %v6598 = vsel %vm6596, %v6586, 2102212464
        %v6599 = vsel %vm6595, %v6583, %v6598
        %v6600 = vsel %vm6594, %v6597, %v6599
        %v6601 = vsel %vm6593, %v6580, %v6583
        %v6602 = vsel %vm6596, %v6589, 920167782
        %v6603 = vsel %vm6595, %v6586, %v6602
        %v6604 = vsel %vm6594, %v6601, %v6603
        %v6605 = vsel %vm6593, %v6583, %v6586
        %v6606 = vsel %vm6596, %v6592, 1326507024
        %v6607 = vsel %vm6595, %v6589, %v6606
        %v6608 = vsel %vm6594, %v6605, %v6607
        %v6609 = vshll.u32 %v6569, 8
        %v6610 = vand.u32 %v6609, 65535
        %v6611 = vshrl.u32 %v6609, 16
        %v6612 = vand.u32 %v6608, 65535
        %v6613 = vshrl.u32 %v6608, 16
        %v6614 = vmul.u32 %v6610, %v6612
        %v6615 = vmul.u32 %v6610, %v6613
        %v6616 = vmul.u32 %v6611, %v6612
        %v6617 = vmul.u32 %v6611, %v6613
        %v6618 = vshll.u32 %v6615, 16
        %v6619 = vshrl.u32 %v6615, 16
        %v6620 = vshll.u32 %v6616, 16
        %v6621 = vshrl.u32 %v6616, 16
        %vm6622 = vc.u32 %v6614, %v6618
        %v6623 = vsel %vm6622, 1, 0
        %v6624 = vadd.s32 %v6614, %v6618
        %v6625 = vadd.s32 %v6617, %v6623
        %vm6626 = vc.u32 %v6624, %v6620
        %v6627 = vsel %vm6626, 1, 0
        %v6628 = vadd.s32 %v6624, %v6620
        %v6629 = vadd.s32 %v6625, %v6627
        %v6630 = vadd.s32 %v6629, %v6619
        %v6631 = vadd.s32 %v6630, %v6621
        %v6632 = vand.u32 %v6609, 65535
        %v6633 = vshrl.u32 %v6609, 16
        %v6634 = vand.u32 %v6604, 65535
        %v6635 = vshrl.u32 %v6604, 16
        %v6636 = vmul.u32 %v6632, %v6634
        %v6637 = vmul.u32 %v6632, %v6635
        %v6638 = vmul.u32 %v6633, %v6634
        %v6639 = vmul.u32 %v6633, %v6635
        %v6640 = vshll.u32 %v6637, 16
        %v6641 = vshrl.u32 %v6637, 16
        %v6642 = vshll.u32 %v6638, 16
        %v6643 = vshrl.u32 %v6638, 16
        %vm6644 = vc.u32 %v6636, %v6640
        %v6645 = vsel %vm6644, 1, 0
        %v6646 = vadd.s32 %v6636, %v6640
        %v6647 = vadd.s32 %v6639, %v6645
        %vm6648 = vc.u32 %v6646, %v6642
        %v6649 = vsel %vm6648, 1, 0
        %v6650 = vadd.s32 %v6646, %v6642
        %v6651 = vadd.s32 %v6647, %v6649
        %v6652 = vadd.s32 %v6651, %v6641
        %v6653 = vadd.s32 %v6652, %v6643
        %v6654 = vmul.u32 %v6609, %v6600
        %v6655 = vadd.s32 %v6631, %v6650
        %vm6656 = vc.u32 %v6631, %v6650
        %v6657 = vadd.s32 %v6653, 1
        %v6658 = vsel %vm6656, %v6657, %v6653
        %v6659 = vadd.s32 %v6654, %v6658
        %v6660 = vadd.s32 %v6659, 536870912
        %v6661 = vshrl.u32 %v6660, 30
        %v6662 = vshll.u32 %v6661, 30
        %v6663 = vsub.s32 %v6659, %v6662
        %vm6664 = vcmp.lt.s32.totalorder %v6663, 0
        %v6665 = vsub.s32 0, %v6663
        %v6666 = vsel %vm6664, %v6665, %v6663
        %v6667 = vclz %v6666
        %v6668 = vsub.s32 %v6667, 2
        %vm6669 = vcmp.gt.s32.totalorder 0, %v6668
        %v6670 = vsel %vm6669, 0, %v6668
        %v6671 = vsub.s32 32, %v6670
        %v6672 = vshll.u32 %v6663, %v6670
        %v6673 = vshrl.u32 %v6655, %v6671
        %v6674 = vor.u32 %v6672, %v6673
        %v6675 = vsub.s32 4294967266, %v6670
        %v6676 = vadd.s32 %v6675, 127
        %v6677 = vshll.u32 %v6676, 23
        %v6678 = vor.u32 4788187, %v6677
        %v6679 = vand.u32 2147483647, %v6678
        %v6681 = vcvt.s32.f32 %v6674
        %v6682 = vmul.f32 %v6681, %v6679
        %v6683 = vxor.u32 %v6682, 2147483648
        %v6684 = vsel %vm6563, %v6683, %v6682
        %v6685 = vsub.s32 4, %v6661
        %v6686 = vsel %vm6563, %v6685, %v6661
        %v6687 = vsel %vm6562, %v449, %v6684
        %v6688 = vsel %vm6562, 0, %v6686
        %v6689 = vmul.f32 %v6687, %v6687
        %v6690 = vmul.f32 %v6689, -0.001358992
        %v6691 = vadd.f32 %v6690, 0.041655596
        %v6692 = vmul.f32 %v6689, %v6691
        %v6693 = vadd.f32 %v6692, -0.4999988
        %v6694 = vmul.f32 %v6689, %v6693
        %v6695 = vadd.f32 1.0, %v6694
        %v6696 = vmul.f32 %v6687, %v6687
        %v6697 = vmul.f32 %v6696, -0.00019511016
        %v6698 = vadd.f32 %v6697, 0.008332121
        %v6699 = vmul.f32 %v6696, %v6698
        %v6700 = vadd.f32 %v6699, -0.16666654
        %v6701 = vmul.f32 %v6696, %v6700
        %v6702 = vadd.f32 %v6701, 1.0
        %v6703 = vmul.f32 %v6702, %v6687
        %vm6704 = vweird.f32 %v449
        %v6705 = vand.u32 %v6688, 3
        %vm6706 = vcmp.lt.s32.totalorder %v6705, 2
        %vm6707 = vcmp.eq.s32.totalorder %v6705, 0
        %v6708 = vxor.u32 %v6703, 2147483648
        %v6709 = vsel %vm6707, %v6695, %v6708
        %vm6710 = vcmp.eq.s32.totalorder %v6705, 2
        %v6711 = vxor.u32 %v6695, 2147483648
        %v6712 = vsel %vm6710, %v6711, %v6703
        %v6713 = vsel %vm6706, %v6709, %v6712
        %v6714 = vsel %vm6704, nan, %v6713
        %v6715 = vand.u32 2147483647, %v452
        %vm6716 = vcmp.le.f32.partialorder %v6715, 0.7853982
        %vm6717 = vcmp.lt.s32.totalorder %v452, 0
        %v6718 = vand.u32 %v452, 2139095040
        %v6719 = vshrl.u32 %v6718, 23
        %v6720 = vsub.s32 %v6719, 127
        %v6721 = vand.u32 2147483647, %v452
        %v6722 = vand.u32 %v6721, 8388607
        %v6723 = vor.u32 %v6722, 8388608
        %v6724 = vsub.s32 0, %v6723
        %v6725 = vadd.s32 %v6720, 1
        %vm6726 = vcmp.gt.s32.totalorder %v6725, 0
        %v6727 = vsel %vm6726, %v6725, 0
        %v6728 = vshrl.u32 %v6727, 5
        %v6729 = vand.u32 %v6727, 31
        %v6730 = vsub.s32 32, %v6729
        %v6731 = vshrl.u32 683565275, %v6730
        %v6732 = vshll.u32 683565275, %v6729
        %v6733 = vshrl.u32 2475754826, %v6730
        %v6734 = vor.u32 %v6732, %v6733
        %v6735 = vshll.u32 2475754826, %v6729
        %v6736 = vshrl.u32 2131351028, %v6730
        %v6737 = vor.u32 %v6735, %v6736
        %v6738 = vshll.u32 2131351028, %v6729
        %v6739 = vshrl.u32 2102212464, %v6730
        %v6740 = vor.u32 %v6738, %v6739
        %v6741 = vshll.u32 2102212464, %v6729
        %v6742 = vshrl.u32 920167782, %v6730
        %v6743 = vor.u32 %v6741, %v6742
        %v6744 = vshll.u32 920167782, %v6729
        %v6745 = vshrl.u32 1326507024, %v6730
        %v6746 = vor.u32 %v6744, %v6745
        %vm6747 = vcmp.lt.s32.totalorder %v6728, 1
        %vm6748 = vcmp.lt.s32.totalorder %v6728, 2
        %vm6749 = vcmp.lt.s32.totalorder %v6728, 3
        %vm6750 = vcmp.lt.s32.totalorder %v6728, 4
        %v6751 = vsel %vm6747, %v6731, %v6734
        %v6752 = vsel %vm6750, %v6740, 2102212464
        %v6753 = vsel %vm6749, %v6737, %v6752
        %v6754 = vsel %vm6748, %v6751, %v6753
        %v6755 = vsel %vm6747, %v6734, %v6737
        %v6756 = vsel %vm6750, %v6743, 920167782
        %v6757 = vsel %vm6749, %v6740, %v6756
        %v6758 = vsel %vm6748, %v6755, %v6757
        %v6759 = vsel %vm6747, %v6737, %v6740
        %v6760 = vsel %vm6750, %v6746, 1326507024
        %v6761 = vsel %vm6749, %v6743, %v6760
        %v6762 = vsel %vm6748, %v6759, %v6761
        %v6763 = vshll.u32 %v6723, 8
        %v6764 = vand.u32 %v6763, 65535
        %v6765 = vshrl.u32 %v6763, 16
        %v6766 = vand.u32 %v6762, 65535
        %v6767 = vshrl.u32 %v6762, 16
        %v6768 = vmul.u32 %v6764, %v6766
        %v6769 = vmul.u32 %v6764, %v6767
        %v6770 = vmul.u32 %v6765, %v6766
        %v6771 = vmul.u32 %v6765, %v6767
        %v6772 = vshll.u32 %v6769, 16
        %v6773 = vshrl.u32 %v6769, 16
        %v6774 = vshll.u32 %v6770, 16
        %v6775 = vshrl.u32 %v6770, 16
        %vm6776 = vc.u32 %v6768, %v6772
        %v6777 = vsel %vm6776, 1, 0
        %v6778 = vadd.s32 %v6768, %v6772
        %v6779 = vadd.s32 %v6771, %v6777
        %vm6780 = vc.u32 %v6778, %v6774
        %v6781 = vsel %vm6780, 1, 0
        %v6782 = vadd.s32 %v6778, %v6774
        %v6783 = vadd.s32 %v6779, %v6781
        %v6784 = vadd.s32 %v6783, %v6773
        %v6785 = vadd.s32 %v6784, %v6775
        %v6786 = vand.u32 %v6763, 65535
        %v6787 = vshrl.u32 %v6763, 16
        %v6788 = vand.u32 %v6758, 65535
        %v6789 = vshrl.u32 %v6758, 16
        %v6790 = vmul.u32 %v6786, %v6788
        %v6791 = vmul.u32 %v6786, %v6789
        %v6792 = vmul.u32 %v6787, %v6788
        %v6793 = vmul.u32 %v6787, %v6789
        %v6794 = vshll.u32 %v6791, 16
        %v6795 = vshrl.u32 %v6791, 16
        %v6796 = vshll.u32 %v6792, 16
        %v6797 = vshrl.u32 %v6792, 16
        %vm6798 = vc.u32 %v6790, %v6794
        %v6799 = vsel %vm6798, 1, 0
        %v6800 = vadd.s32 %v6790, %v6794
        %v6801 = vadd.s32 %v6793, %v6799
        %vm6802 = vc.u32 %v6800, %v6796
        %v6803 = vsel %vm6802, 1, 0
        %v6804 = vadd.s32 %v6800, %v6796
        %v6805 = vadd.s32 %v6801, %v6803
        %v6806 = vadd.s32 %v6805, %v6795
        %v6807 = vadd.s32 %v6806, %v6797
        %v6808 = vmul.u32 %v6763, %v6754
        %v6809 = vadd.s32 %v6785, %v6804
        %vm6810 = vc.u32 %v6785, %v6804
        %v6811 = vadd.s32 %v6807, 1
        %v6812 = vsel %vm6810, %v6811, %v6807
        %v6813 = vadd.s32 %v6808, %v6812
        %v6814 = vadd.s32 %v6813, 536870912
        %v6815 = vshrl.u32 %v6814, 30
        %v6816 = vshll.u32 %v6815, 30
        %v6817 = vsub.s32 %v6813, %v6816
        %vm6818 = vcmp.lt.s32.totalorder %v6817, 0
        %v6819 = vsub.s32 0, %v6817
        %v6820 = vsel %vm6818, %v6819, %v6817
        %v6821 = vclz %v6820
        %v6822 = vsub.s32 %v6821, 2
        %vm6823 = vcmp.gt.s32.totalorder 0, %v6822
        %v6824 = vsel %vm6823, 0, %v6822
        %v6825 = vsub.s32 32, %v6824
        %v6826 = vshll.u32 %v6817, %v6824
        %v6827 = vshrl.u32 %v6809, %v6825
        %v6828 = vor.u32 %v6826, %v6827
        %v6829 = vsub.s32 4294967266, %v6824
        %v6830 = vadd.s32 %v6829, 127
        %v6831 = vshll.u32 %v6830, 23
        %v6832 = vor.u32 4788187, %v6831
        %v6833 = vand.u32 2147483647, %v6832
        %v6835 = vcvt.s32.f32 %v6828
        %v6836 = vmul.f32 %v6835, %v6833
        %v6837 = vxor.u32 %v6836, 2147483648
        %v6838 = vsel %vm6717, %v6837, %v6836
        %v6839 = vsub.s32 4, %v6815
        %v6840 = vsel %vm6717, %v6839, %v6815
        %v6841 = vsel %vm6716, %v452, %v6838
        %v6842 = vsel %vm6716, 0, %v6840
        %v6843 = vmul.f32 %v6841, %v6841
        %v6844 = vmul.f32 %v6843, -0.001358992
        %v6845 = vadd.f32 %v6844, 0.041655596
        %v6846 = vmul.f32 %v6843, %v6845
        %v6847 = vadd.f32 %v6846, -0.4999988
        %v6848 = vmul.f32 %v6843, %v6847
        %v6849 = vadd.f32 1.0, %v6848
        %v6850 = vmul.f32 %v6841, %v6841
        %v6851 = vmul.f32 %v6850, -0.00019511016
        %v6852 = vadd.f32 %v6851, 0.008332121
        %v6853 = vmul.f32 %v6850, %v6852
        %v6854 = vadd.f32 %v6853, -0.16666654
        %v6855 = vmul.f32 %v6850, %v6854
        %v6856 = vadd.f32 %v6855, 1.0
        %v6857 = vmul.f32 %v6856, %v6841
        %vm6858 = vweird.f32 %v452
        %v6859 = vand.u32 %v6842, 3
        %vm6860 = vcmp.lt.s32.totalorder %v6859, 2
        %vm6861 = vcmp.eq.s32.totalorder %v6859, 0
        %v6862 = vxor.u32 %v6857, 2147483648
        %v6863 = vsel %vm6861, %v6849, %v6862
        %vm6864 = vcmp.eq.s32.totalorder %v6859, 2
        %v6865 = vxor.u32 %v6849, 2147483648
        %v6866 = vsel %vm6864, %v6865, %v6857
        %v6867 = vsel %vm6860, %v6863, %v6866
        %v6868 = vsel %vm6858, nan, %v6867
        %v6869 = vand.u32 2147483647, %v455
        %vm6870 = vcmp.le.f32.partialorder %v6869, 0.7853982
        %vm6871 = vcmp.lt.s32.totalorder %v455, 0
        %v6872 = vand.u32 %v455, 2139095040
        %v6873 = vshrl.u32 %v6872, 23
        %v6874 = vsub.s32 %v6873, 127
        %v6875 = vand.u32 2147483647, %v455
        %v6876 = vand.u32 %v6875, 8388607
        %v6877 = vor.u32 %v6876, 8388608
        %v6878 = vsub.s32 0, %v6877
        %v6879 = vadd.s32 %v6874, 1
        %vm6880 = vcmp.gt.s32.totalorder %v6879, 0
        %v6881 = vsel %vm6880, %v6879, 0
        %v6882 = vshrl.u32 %v6881, 5
        %v6883 = vand.u32 %v6881, 31
        %v6884 = vsub.s32 32, %v6883
        %v6885 = vshrl.u32 683565275, %v6884
        %v6886 = vshll.u32 683565275, %v6883
        %v6887 = vshrl.u32 2475754826, %v6884
        %v6888 = vor.u32 %v6886, %v6887
        %v6889 = vshll.u32 2475754826, %v6883
        %v6890 = vshrl.u32 2131351028, %v6884
        %v6891 = vor.u32 %v6889, %v6890
        %v6892 = vshll.u32 2131351028, %v6883
        %v6893 = vshrl.u32 2102212464, %v6884
        %v6894 = vor.u32 %v6892, %v6893
        %v6895 = vshll.u32 2102212464, %v6883
        %v6896 = vshrl.u32 920167782, %v6884
        %v6897 = vor.u32 %v6895, %v6896
        %v6898 = vshll.u32 920167782, %v6883
        %v6899 = vshrl.u32 1326507024, %v6884
        %v6900 = vor.u32 %v6898, %v6899
        %vm6901 = vcmp.lt.s32.totalorder %v6882, 1
        %vm6902 = vcmp.lt.s32.totalorder %v6882, 2
        %vm6903 = vcmp.lt.s32.totalorder %v6882, 3
        %vm6904 = vcmp.lt.s32.totalorder %v6882, 4
        %v6905 = vsel %vm6901, %v6885, %v6888
        %v6906 = vsel %vm6904, %v6894, 2102212464
        %v6907 = vsel %vm6903, %v6891, %v6906
        %v6908 = vsel %vm6902, %v6905, %v6907
        %v6909 = vsel %vm6901, %v6888, %v6891
        %v6910 = vsel %vm6904, %v6897, 920167782
        %v6911 = vsel %vm6903, %v6894, %v6910
        %v6912 = vsel %vm6902, %v6909, %v6911
        %v6913 = vsel %vm6901, %v6891, %v6894
        %v6914 = vsel %vm6904, %v6900, 1326507024
        %v6915 = vsel %vm6903, %v6897, %v6914
        %v6916 = vsel %vm6902, %v6913, %v6915
        %v6917 = vshll.u32 %v6877, 8
        %v6918 = vand.u32 %v6917, 65535
        %v6919 = vshrl.u32 %v6917, 16
        %v6920 = vand.u32 %v6916, 65535
        %v6921 = vshrl.u32 %v6916, 16
        %v6922 = vmul.u32 %v6918, %v6920
        %v6923 = vmul.u32 %v6918, %v6921
        %v6924 = vmul.u32 %v6919, %v6920
        %v6925 = vmul.u32 %v6919, %v6921
        %v6926 = vshll.u32 %v6923, 16
        %v6927 = vshrl.u32 %v6923, 16
        %v6928 = vshll.u32 %v6924, 16
        %v6929 = vshrl.u32 %v6924, 16
        %vm6930 = vc.u32 %v6922, %v6926
        %v6931 = vsel %vm6930, 1, 0
        %v6932 = vadd.s32 %v6922, %v6926
        %v6933 = vadd.s32 %v6925, %v6931
        %vm6934 = vc.u32 %v6932, %v6928
        %v6935 = vsel %vm6934, 1, 0
        %v6936 = vadd.s32 %v6932, %v6928
        %v6937 = vadd.s32 %v6933, %v6935
        %v6938 = vadd.s32 %v6937, %v6927
        %v6939 = vadd.s32 %v6938, %v6929
        %v6940 = vand.u32 %v6917, 65535
        %v6941 = vshrl.u32 %v6917, 16
        %v6942 = vand.u32 %v6912, 65535
        %v6943 = vshrl.u32 %v6912, 16
        %v6944 = vmul.u32 %v6940, %v6942
        %v6945 = vmul.u32 %v6940, %v6943
        %v6946 = vmul.u32 %v6941, %v6942
        %v6947 = vmul.u32 %v6941, %v6943
        %v6948 = vshll.u32 %v6945, 16
        %v6949 = vshrl.u32 %v6945, 16
        %v6950 = vshll.u32 %v6946, 16
        %v6951 = vshrl.u32 %v6946, 16
        %vm6952 = vc.u32 %v6944, %v6948
        %v6953 = vsel %vm6952, 1, 0
        %v6954 = vadd.s32 %v6944, %v6948
        %v6955 = vadd.s32 %v6947, %v6953
        %vm6956 = vc.u32 %v6954, %v6950
        %v6957 = vsel %vm6956, 1, 0
        %v6958 = vadd.s32 %v6954, %v6950
        %v6959 = vadd.s32 %v6955, %v6957
        %v6960 = vadd.s32 %v6959, %v6949
        %v6961 = vadd.s32 %v6960, %v6951
        %v6962 = vmul.u32 %v6917, %v6908
        %v6963 = vadd.s32 %v6939, %v6958
        %vm6964 = vc.u32 %v6939, %v6958
        %v6965 = vadd.s32 %v6961, 1
        %v6966 = vsel %vm6964, %v6965, %v6961
        %v6967 = vadd.s32 %v6962, %v6966
        %v6968 = vadd.s32 %v6967, 536870912
        %v6969 = vshrl.u32 %v6968, 30
        %v6970 = vshll.u32 %v6969, 30
        %v6971 = vsub.s32 %v6967, %v6970
        %vm6972 = vcmp.lt.s32.totalorder %v6971, 0
        %v6973 = vsub.s32 0, %v6971
        %v6974 = vsel %vm6972, %v6973, %v6971
        %v6975 = vclz %v6974
        %v6976 = vsub.s32 %v6975, 2
        %vm6977 = vcmp.gt.s32.totalorder 0, %v6976
        %v6978 = vsel %vm6977, 0, %v6976
        %v6979 = vsub.s32 32, %v6978
        %v6980 = vshll.u32 %v6971, %v6978
        %v6981 = vshrl.u32 %v6963, %v6979
        %v6982 = vor.u32 %v6980, %v6981
        %v6983 = vsub.s32 4294967266, %v6978
        %v6984 = vadd.s32 %v6983, 127
        %v6985 = vshll.u32 %v6984, 23
        %v6986 = vor.u32 4788187, %v6985
        %v6987 = vand.u32 2147483647, %v6986
        %v6989 = vcvt.s32.f32 %v6982
        %v6990 = vmul.f32 %v6989, %v6987
        %v6991 = vxor.u32 %v6990, 2147483648
        %v6992 = vsel %vm6871, %v6991, %v6990
        %v6993 = vsub.s32 4, %v6969
        %v6994 = vsel %vm6871, %v6993, %v6969
        %v6995 = vsel %vm6870, %v455, %v6992
        %v6996 = vsel %vm6870, 0, %v6994
        %v6997 = vmul.f32 %v6995, %v6995
        %v6998 = vmul.f32 %v6997, -0.001358992
        %v6999 = vadd.f32 %v6998, 0.041655596
        %v7000 = vmul.f32 %v6997, %v6999
        %v7001 = vadd.f32 %v7000, -0.4999988
        %v7002 = vmul.f32 %v6997, %v7001
        %v7003 = vadd.f32 1.0, %v7002
        %v7004 = vmul.f32 %v6995, %v6995
        %v7005 = vmul.f32 %v7004, -0.00019511016
        %v7006 = vadd.f32 %v7005, 0.008332121
        %v7007 = vmul.f32 %v7004, %v7006
        %v7008 = vadd.f32 %v7007, -0.16666654
        %v7009 = vmul.f32 %v7004, %v7008
        %v7010 = vadd.f32 %v7009, 1.0
        %v7011 = vmul.f32 %v7010, %v6995
        %vm7012 = vweird.f32 %v455
        %v7013 = vand.u32 %v6996, 3
        %vm7014 = vcmp.lt.s32.totalorder %v7013, 2
        %vm7015 = vcmp.eq.s32.totalorder %v7013, 0
        %v7016 = vxor.u32 %v7011, 2147483648
        %v7017 = vsel %vm7015, %v7003, %v7016
        %vm7018 = vcmp.eq.s32.totalorder %v7013, 2
        %v7019 = vxor.u32 %v7003, 2147483648
        %v7020 = vsel %vm7018, %v7019, %v7011
        %v7021 = vsel %vm7014, %v7017, %v7020
        %v7022 = vsel %vm7012, nan, %v7021
        %v7023 = vand.u32 2147483647, %v458
        %vm7024 = vcmp.le.f32.partialorder %v7023, 0.7853982
        %vm7025 = vcmp.lt.s32.totalorder %v458, 0
        %v7026 = vand.u32 %v458, 2139095040
        %v7027 = vshrl.u32 %v7026, 23
        %v7028 = vsub.s32 %v7027, 127
        %v7029 = vand.u32 2147483647, %v458
        %v7030 = vand.u32 %v7029, 8388607
        %v7031 = vor.u32 %v7030, 8388608
        %v7032 = vsub.s32 0, %v7031
        %v7033 = vadd.s32 %v7028, 1
        %vm7034 = vcmp.gt.s32.totalorder %v7033, 0
        %v7035 = vsel %vm7034, %v7033, 0
        %v7036 = vshrl.u32 %v7035, 5
        %v7037 = vand.u32 %v7035, 31
        %v7038 = vsub.s32 32, %v7037
        %v7039 = vshrl.u32 683565275, %v7038
        %v7040 = vshll.u32 683565275, %v7037
        %v7041 = vshrl.u32 2475754826, %v7038
        %v7042 = vor.u32 %v7040, %v7041
        %v7043 = vshll.u32 2475754826, %v7037
        %v7044 = vshrl.u32 2131351028, %v7038
        %v7045 = vor.u32 %v7043, %v7044
        %v7046 = vshll.u32 2131351028, %v7037
        %v7047 = vshrl.u32 2102212464, %v7038
        %v7048 = vor.u32 %v7046, %v7047
        %v7049 = vshll.u32 2102212464, %v7037
        %v7050 = vshrl.u32 920167782, %v7038
        %v7051 = vor.u32 %v7049, %v7050
        %v7052 = vshll.u32 920167782, %v7037
        %v7053 = vshrl.u32 1326507024, %v7038
        %v7054 = vor.u32 %v7052, %v7053
        %vm7055 = vcmp.lt.s32.totalorder %v7036, 1
        %vm7056 = vcmp.lt.s32.totalorder %v7036, 2
        %vm7057 = vcmp.lt.s32.totalorder %v7036, 3
        %vm7058 = vcmp.lt.s32.totalorder %v7036, 4
        %v7059 = vsel %vm7055, %v7039, %v7042
        %v7060 = vsel %vm7058, %v7048, 2102212464
        %v7061 = vsel %vm7057, %v7045, %v7060
        %v7062 = vsel %vm7056, %v7059, %v7061
        %v7063 = vsel %vm7055, %v7042, %v7045
        %v7064 = vsel %vm7058, %v7051, 920167782
        %v7065 = vsel %vm7057, %v7048, %v7064
        %v7066 = vsel %vm7056, %v7063, %v7065
        %v7067 = vsel %vm7055, %v7045, %v7048
        %v7068 = vsel %vm7058, %v7054, 1326507024
        %v7069 = vsel %vm7057, %v7051, %v7068
        %v7070 = vsel %vm7056, %v7067, %v7069
        %v7071 = vshll.u32 %v7031, 8
        %v7072 = vand.u32 %v7071, 65535
        %v7073 = vshrl.u32 %v7071, 16
        %v7074 = vand.u32 %v7070, 65535
        %v7075 = vshrl.u32 %v7070, 16
        %v7076 = vmul.u32 %v7072, %v7074
        %v7077 = vmul.u32 %v7072, %v7075
        %v7078 = vmul.u32 %v7073, %v7074
        %v7079 = vmul.u32 %v7073, %v7075
        %v7080 = vshll.u32 %v7077, 16
        %v7081 = vshrl.u32 %v7077, 16
        %v7082 = vshll.u32 %v7078, 16
        %v7083 = vshrl.u32 %v7078, 16
        %vm7084 = vc.u32 %v7076, %v7080
        %v7085 = vsel %vm7084, 1, 0
        %v7086 = vadd.s32 %v7076, %v7080
        %v7087 = vadd.s32 %v7079, %v7085
        %vm7088 = vc.u32 %v7086, %v7082
        %v7089 = vsel %vm7088, 1, 0
        %v7090 = vadd.s32 %v7086, %v7082
        %v7091 = vadd.s32 %v7087, %v7089
        %v7092 = vadd.s32 %v7091, %v7081
        %v7093 = vadd.s32 %v7092, %v7083
        %v7094 = vand.u32 %v7071, 65535
        %v7095 = vshrl.u32 %v7071, 16
        %v7096 = vand.u32 %v7066, 65535
        %v7097 = vshrl.u32 %v7066, 16
        %v7098 = vmul.u32 %v7094, %v7096
        %v7099 = vmul.u32 %v7094, %v7097
        %v7100 = vmul.u32 %v7095, %v7096
        %v7101 = vmul.u32 %v7095, %v7097
        %v7102 = vshll.u32 %v7099, 16
        %v7103 = vshrl.u32 %v7099, 16
        %v7104 = vshll.u32 %v7100, 16
        %v7105 = vshrl.u32 %v7100, 16
        %vm7106 = vc.u32 %v7098, %v7102
        %v7107 = vsel %vm7106, 1, 0
        %v7108 = vadd.s32 %v7098, %v7102
        %v7109 = vadd.s32 %v7101, %v7107
        %vm7110 = vc.u32 %v7108, %v7104
        %v7111 = vsel %vm7110, 1, 0
        %v7112 = vadd.s32 %v7108, %v7104
        %v7113 = vadd.s32 %v7109, %v7111
        %v7114 = vadd.s32 %v7113, %v7103
        %v7115 = vadd.s32 %v7114, %v7105
        %v7116 = vmul.u32 %v7071, %v7062
        %v7117 = vadd.s32 %v7093, %v7112
        %vm7118 = vc.u32 %v7093, %v7112
        %v7119 = vadd.s32 %v7115, 1
        %v7120 = vsel %vm7118, %v7119, %v7115
        %v7121 = vadd.s32 %v7116, %v7120
        %v7122 = vadd.s32 %v7121, 536870912
        %v7123 = vshrl.u32 %v7122, 30
        %v7124 = vshll.u32 %v7123, 30
        %v7125 = vsub.s32 %v7121, %v7124
        %vm7126 = vcmp.lt.s32.totalorder %v7125, 0
        %v7127 = vsub.s32 0, %v7125
        %v7128 = vsel %vm7126, %v7127, %v7125
        %v7129 = vclz %v7128
        %v7130 = vsub.s32 %v7129, 2
        %vm7131 = vcmp.gt.s32.totalorder 0, %v7130
        %v7132 = vsel %vm7131, 0, %v7130
        %v7133 = vsub.s32 32, %v7132
        %v7134 = vshll.u32 %v7125, %v7132
        %v7135 = vshrl.u32 %v7117, %v7133
        %v7136 = vor.u32 %v7134, %v7135
        %v7137 = vsub.s32 4294967266, %v7132
        %v7138 = vadd.s32 %v7137, 127
        %v7139 = vshll.u32 %v7138, 23
        %v7140 = vor.u32 4788187, %v7139
        %v7141 = vand.u32 2147483647, %v7140
        %v7143 = vcvt.s32.f32 %v7136
        %v7144 = vmul.f32 %v7143, %v7141
        %v7145 = vxor.u32 %v7144, 2147483648
        %v7146 = vsel %vm7025, %v7145, %v7144
        %v7147 = vsub.s32 4, %v7123
        %v7148 = vsel %vm7025, %v7147, %v7123
        %v7149 = vsel %vm7024, %v458, %v7146
        %v7150 = vsel %vm7024, 0, %v7148
        %v7151 = vmul.f32 %v7149, %v7149
        %v7152 = vmul.f32 %v7151, -0.001358992
        %v7153 = vadd.f32 %v7152, 0.041655596
        %v7154 = vmul.f32 %v7151, %v7153
        %v7155 = vadd.f32 %v7154, -0.4999988
        %v7156 = vmul.f32 %v7151, %v7155
        %v7157 = vadd.f32 1.0, %v7156
        %v7158 = vmul.f32 %v7149, %v7149
        %v7159 = vmul.f32 %v7158, -0.00019511016
        %v7160 = vadd.f32 %v7159, 0.008332121
        %v7161 = vmul.f32 %v7158, %v7160
        %v7162 = vadd.f32 %v7161, -0.16666654
        %v7163 = vmul.f32 %v7158, %v7162
        %v7164 = vadd.f32 %v7163, 1.0
        %v7165 = vmul.f32 %v7164, %v7149
        %vm7166 = vweird.f32 %v458
        %v7167 = vand.u32 %v7150, 3
        %vm7168 = vcmp.lt.s32.totalorder %v7167, 2
        %vm7169 = vcmp.eq.s32.totalorder %v7167, 0
        %v7170 = vxor.u32 %v7165, 2147483648
        %v7171 = vsel %vm7169, %v7157, %v7170
        %vm7172 = vcmp.eq.s32.totalorder %v7167, 2
        %v7173 = vxor.u32 %v7157, 2147483648
        %v7174 = vsel %vm7172, %v7173, %v7165
        %v7175 = vsel %vm7168, %v7171, %v7174
        %v7176 = vsel %vm7166, nan, %v7175
        %v7177 = vand.u32 2147483647, %v461
        %vm7178 = vcmp.le.f32.partialorder %v7177, 0.7853982
        %vm7179 = vcmp.lt.s32.totalorder %v461, 0
        %v7180 = vand.u32 %v461, 2139095040
        %v7181 = vshrl.u32 %v7180, 23
        %v7182 = vsub.s32 %v7181, 127
        %v7183 = vand.u32 2147483647, %v461
        %v7184 = vand.u32 %v7183, 8388607
        %v7185 = vor.u32 %v7184, 8388608
        %v7186 = vsub.s32 0, %v7185
        %v7187 = vadd.s32 %v7182, 1
        %vm7188 = vcmp.gt.s32.totalorder %v7187, 0
        %v7189 = vsel %vm7188, %v7187, 0
        %v7190 = vshrl.u32 %v7189, 5
        %v7191 = vand.u32 %v7189, 31
        %v7192 = vsub.s32 32, %v7191
        %v7193 = vshrl.u32 683565275, %v7192
        %v7194 = vshll.u32 683565275, %v7191
        %v7195 = vshrl.u32 2475754826, %v7192
        %v7196 = vor.u32 %v7194, %v7195
        %v7197 = vshll.u32 2475754826, %v7191
        %v7198 = vshrl.u32 2131351028, %v7192
        %v7199 = vor.u32 %v7197, %v7198
        %v7200 = vshll.u32 2131351028, %v7191
        %v7201 = vshrl.u32 2102212464, %v7192
        %v7202 = vor.u32 %v7200, %v7201
        %v7203 = vshll.u32 2102212464, %v7191
        %v7204 = vshrl.u32 920167782, %v7192
        %v7205 = vor.u32 %v7203, %v7204
        %v7206 = vshll.u32 920167782, %v7191
        %v7207 = vshrl.u32 1326507024, %v7192
        %v7208 = vor.u32 %v7206, %v7207
        %vm7209 = vcmp.lt.s32.totalorder %v7190, 1
        %vm7210 = vcmp.lt.s32.totalorder %v7190, 2
        %vm7211 = vcmp.lt.s32.totalorder %v7190, 3
        %vm7212 = vcmp.lt.s32.totalorder %v7190, 4
        %v7213 = vsel %vm7209, %v7193, %v7196
        %v7214 = vsel %vm7212, %v7202, 2102212464
        %v7215 = vsel %vm7211, %v7199, %v7214
        %v7216 = vsel %vm7210, %v7213, %v7215
        %v7217 = vsel %vm7209, %v7196, %v7199
        %v7218 = vsel %vm7212, %v7205, 920167782
        %v7219 = vsel %vm7211, %v7202, %v7218
        %v7220 = vsel %vm7210, %v7217, %v7219
        %v7221 = vsel %vm7209, %v7199, %v7202
        %v7222 = vsel %vm7212, %v7208, 1326507024
        %v7223 = vsel %vm7211, %v7205, %v7222
        %v7224 = vsel %vm7210, %v7221, %v7223
        %v7225 = vshll.u32 %v7185, 8
        %v7226 = vand.u32 %v7225, 65535
        %v7227 = vshrl.u32 %v7225, 16
        %v7228 = vand.u32 %v7224, 65535
        %v7229 = vshrl.u32 %v7224, 16
        %v7230 = vmul.u32 %v7226, %v7228
        %v7231 = vmul.u32 %v7226, %v7229
        %v7232 = vmul.u32 %v7227, %v7228
        %v7233 = vmul.u32 %v7227, %v7229
        %v7234 = vshll.u32 %v7231, 16
        %v7235 = vshrl.u32 %v7231, 16
        %v7236 = vshll.u32 %v7232, 16
        %v7237 = vshrl.u32 %v7232, 16
        %vm7238 = vc.u32 %v7230, %v7234
        %v7239 = vsel %vm7238, 1, 0
        %v7240 = vadd.s32 %v7230, %v7234
        %v7241 = vadd.s32 %v7233, %v7239
        %vm7242 = vc.u32 %v7240, %v7236
        %v7243 = vsel %vm7242, 1, 0
        %v7244 = vadd.s32 %v7240, %v7236
        %v7245 = vadd.s32 %v7241, %v7243
        %v7246 = vadd.s32 %v7245, %v7235
        %v7247 = vadd.s32 %v7246, %v7237
        %v7248 = vand.u32 %v7225, 65535
        %v7249 = vshrl.u32 %v7225, 16
        %v7250 = vand.u32 %v7220, 65535
        %v7251 = vshrl.u32 %v7220, 16
        %v7252 = vmul.u32 %v7248, %v7250
        %v7253 = vmul.u32 %v7248, %v7251
        %v7254 = vmul.u32 %v7249, %v7250
        %v7255 = vmul.u32 %v7249, %v7251
        %v7256 = vshll.u32 %v7253, 16
        %v7257 = vshrl.u32 %v7253, 16
        %v7258 = vshll.u32 %v7254, 16
        %v7259 = vshrl.u32 %v7254, 16
        %vm7260 = vc.u32 %v7252, %v7256
        %v7261 = vsel %vm7260, 1, 0
        %v7262 = vadd.s32 %v7252, %v7256
        %v7263 = vadd.s32 %v7255, %v7261
        %vm7264 = vc.u32 %v7262, %v7258
        %v7265 = vsel %vm7264, 1, 0
        %v7266 = vadd.s32 %v7262, %v7258
        %v7267 = vadd.s32 %v7263, %v7265
        %v7268 = vadd.s32 %v7267, %v7257
        %v7269 = vadd.s32 %v7268, %v7259
        %v7270 = vmul.u32 %v7225, %v7216
        %v7271 = vadd.s32 %v7247, %v7266
        %vm7272 = vc.u32 %v7247, %v7266
        %v7273 = vadd.s32 %v7269, 1
        %v7274 = vsel %vm7272, %v7273, %v7269
        %v7275 = vadd.s32 %v7270, %v7274
        %v7276 = vadd.s32 %v7275, 536870912
        %v7277 = vshrl.u32 %v7276, 30
        %v7278 = vshll.u32 %v7277, 30
        %v7279 = vsub.s32 %v7275, %v7278
        %vm7280 = vcmp.lt.s32.totalorder %v7279, 0
        %v7281 = vsub.s32 0, %v7279
        %v7282 = vsel %vm7280, %v7281, %v7279
        %v7283 = vclz %v7282
        %v7284 = vsub.s32 %v7283, 2
        %vm7285 = vcmp.gt.s32.totalorder 0, %v7284
        %v7286 = vsel %vm7285, 0, %v7284
        %v7287 = vsub.s32 32, %v7286
        %v7288 = vshll.u32 %v7279, %v7286
        %v7289 = vshrl.u32 %v7271, %v7287
        %v7290 = vor.u32 %v7288, %v7289
        %v7291 = vsub.s32 4294967266, %v7286
        %v7292 = vadd.s32 %v7291, 127
        %v7293 = vshll.u32 %v7292, 23
        %v7294 = vor.u32 4788187, %v7293
        %v7295 = vand.u32 2147483647, %v7294
        %v7297 = vcvt.s32.f32 %v7290
        %v7298 = vmul.f32 %v7297, %v7295
        %v7299 = vxor.u32 %v7298, 2147483648
        %v7300 = vsel %vm7179, %v7299, %v7298
        %v7301 = vsub.s32 4, %v7277
        %v7302 = vsel %vm7179, %v7301, %v7277
        %v7303 = vsel %vm7178, %v461, %v7300
        %v7304 = vsel %vm7178, 0, %v7302
        %v7305 = vmul.f32 %v7303, %v7303
        %v7306 = vmul.f32 %v7305, -0.001358992
        %v7307 = vadd.f32 %v7306, 0.041655596
        %v7308 = vmul.f32 %v7305, %v7307
        %v7309 = vadd.f32 %v7308, -0.4999988
        %v7310 = vmul.f32 %v7305, %v7309
        %v7311 = vadd.f32 1.0, %v7310
        %v7312 = vmul.f32 %v7303, %v7303
        %v7313 = vmul.f32 %v7312, -0.00019511016
        %v7314 = vadd.f32 %v7313, 0.008332121
        %v7315 = vmul.f32 %v7312, %v7314
        %v7316 = vadd.f32 %v7315, -0.16666654
        %v7317 = vmul.f32 %v7312, %v7316
        %v7318 = vadd.f32 %v7317, 1.0
        %v7319 = vmul.f32 %v7318, %v7303
        %vm7320 = vweird.f32 %v461
        %v7321 = vand.u32 %v7304, 3
        %vm7322 = vcmp.lt.s32.totalorder %v7321, 2
        %vm7323 = vcmp.eq.s32.totalorder %v7321, 0
        %v7324 = vxor.u32 %v7319, 2147483648
        %v7325 = vsel %vm7323, %v7311, %v7324
        %vm7326 = vcmp.eq.s32.totalorder %v7321, 2
        %v7327 = vxor.u32 %v7311, 2147483648
        %v7328 = vsel %vm7326, %v7327, %v7319
        %v7329 = vsel %vm7322, %v7325, %v7328
        %v7330 = vsel %vm7320, nan, %v7329
        %v7331 = vand.u32 2147483647, %v464
        %vm7332 = vcmp.le.f32.partialorder %v7331, 0.7853982
        %vm7333 = vcmp.lt.s32.totalorder %v464, 0
        %v7334 = vand.u32 %v464, 2139095040
        %v7335 = vshrl.u32 %v7334, 23
        %v7336 = vsub.s32 %v7335, 127
        %v7337 = vand.u32 2147483647, %v464
        %v7338 = vand.u32 %v7337, 8388607
        %v7339 = vor.u32 %v7338, 8388608
        %v7340 = vsub.s32 0, %v7339
        %v7341 = vadd.s32 %v7336, 1
        %vm7342 = vcmp.gt.s32.totalorder %v7341, 0
        %v7343 = vsel %vm7342, %v7341, 0
        %v7344 = vshrl.u32 %v7343, 5
        %v7345 = vand.u32 %v7343, 31
        %v7346 = vsub.s32 32, %v7345
        %v7347 = vshrl.u32 683565275, %v7346
        %v7348 = vshll.u32 683565275, %v7345
        %v7349 = vshrl.u32 2475754826, %v7346
        %v7350 = vor.u32 %v7348, %v7349
        %v7351 = vshll.u32 2475754826, %v7345
        %v7352 = vshrl.u32 2131351028, %v7346
        %v7353 = vor.u32 %v7351, %v7352
        %v7354 = vshll.u32 2131351028, %v7345
        %v7355 = vshrl.u32 2102212464, %v7346
        %v7356 = vor.u32 %v7354, %v7355
        %v7357 = vshll.u32 2102212464, %v7345
        %v7358 = vshrl.u32 920167782, %v7346
        %v7359 = vor.u32 %v7357, %v7358
        %v7360 = vshll.u32 920167782, %v7345
        %v7361 = vshrl.u32 1326507024, %v7346
        %v7362 = vor.u32 %v7360, %v7361
        %vm7363 = vcmp.lt.s32.totalorder %v7344, 1
        %vm7364 = vcmp.lt.s32.totalorder %v7344, 2
        %vm7365 = vcmp.lt.s32.totalorder %v7344, 3
        %vm7366 = vcmp.lt.s32.totalorder %v7344, 4
        %v7367 = vsel %vm7363, %v7347, %v7350
        %v7368 = vsel %vm7366, %v7356, 2102212464
        %v7369 = vsel %vm7365, %v7353, %v7368
        %v7370 = vsel %vm7364, %v7367, %v7369
        %v7371 = vsel %vm7363, %v7350, %v7353
        %v7372 = vsel %vm7366, %v7359, 920167782
        %v7373 = vsel %vm7365, %v7356, %v7372
        %v7374 = vsel %vm7364, %v7371, %v7373
        %v7375 = vsel %vm7363, %v7353, %v7356
        %v7376 = vsel %vm7366, %v7362, 1326507024
        %v7377 = vsel %vm7365, %v7359, %v7376
        %v7378 = vsel %vm7364, %v7375, %v7377
        %v7379 = vshll.u32 %v7339, 8
        %v7380 = vand.u32 %v7379, 65535
        %v7381 = vshrl.u32 %v7379, 16
        %v7382 = vand.u32 %v7378, 65535
        %v7383 = vshrl.u32 %v7378, 16
        %v7384 = vmul.u32 %v7380, %v7382
        %v7385 = vmul.u32 %v7380, %v7383
        %v7386 = vmul.u32 %v7381, %v7382
        %v7387 = vmul.u32 %v7381, %v7383
        %v7388 = vshll.u32 %v7385, 16
        %v7389 = vshrl.u32 %v7385, 16
        %v7390 = vshll.u32 %v7386, 16
        %v7391 = vshrl.u32 %v7386, 16
        %vm7392 = vc.u32 %v7384, %v7388
        %v7393 = vsel %vm7392, 1, 0
        %v7394 = vadd.s32 %v7384, %v7388
        %v7395 = vadd.s32 %v7387, %v7393
        %vm7396 = vc.u32 %v7394, %v7390
        %v7397 = vsel %vm7396, 1, 0
        %v7398 = vadd.s32 %v7394, %v7390
        %v7399 = vadd.s32 %v7395, %v7397
        %v7400 = vadd.s32 %v7399, %v7389
        %v7401 = vadd.s32 %v7400, %v7391
        %v7402 = vand.u32 %v7379, 65535
        %v7403 = vshrl.u32 %v7379, 16
        %v7404 = vand.u32 %v7374, 65535
        %v7405 = vshrl.u32 %v7374, 16
        %v7406 = vmul.u32 %v7402, %v7404
        %v7407 = vmul.u32 %v7402, %v7405
        %v7408 = vmul.u32 %v7403, %v7404
        %v7409 = vmul.u32 %v7403, %v7405
        %v7410 = vshll.u32 %v7407, 16
        %v7411 = vshrl.u32 %v7407, 16
        %v7412 = vshll.u32 %v7408, 16
        %v7413 = vshrl.u32 %v7408, 16
        %vm7414 = vc.u32 %v7406, %v7410
        %v7415 = vsel %vm7414, 1, 0
        %v7416 = vadd.s32 %v7406, %v7410
        %v7417 = vadd.s32 %v7409, %v7415
        %vm7418 = vc.u32 %v7416, %v7412
        %v7419 = vsel %vm7418, 1, 0
        %v7420 = vadd.s32 %v7416, %v7412
        %v7421 = vadd.s32 %v7417, %v7419
        %v7422 = vadd.s32 %v7421, %v7411
        %v7423 = vadd.s32 %v7422, %v7413
        %v7424 = vmul.u32 %v7379, %v7370
        %v7425 = vadd.s32 %v7401, %v7420
        %vm7426 = vc.u32 %v7401, %v7420
        %v7427 = vadd.s32 %v7423, 1
        %v7428 = vsel %vm7426, %v7427, %v7423
        %v7429 = vadd.s32 %v7424, %v7428
        %v7430 = vadd.s32 %v7429, 536870912
        %v7431 = vshrl.u32 %v7430, 30
        %v7432 = vshll.u32 %v7431, 30
        %v7433 = vsub.s32 %v7429, %v7432
        %vm7434 = vcmp.lt.s32.totalorder %v7433, 0
        %v7435 = vsub.s32 0, %v7433
        %v7436 = vsel %vm7434, %v7435, %v7433
        %v7437 = vclz %v7436
        %v7438 = vsub.s32 %v7437, 2
        %vm7439 = vcmp.gt.s32.totalorder 0, %v7438
        %v7440 = vsel %vm7439, 0, %v7438
        %v7441 = vsub.s32 32, %v7440
        %v7442 = vshll.u32 %v7433, %v7440
        %v7443 = vshrl.u32 %v7425, %v7441
        %v7444 = vor.u32 %v7442, %v7443
        %v7445 = vsub.s32 4294967266, %v7440
        %v7446 = vadd.s32 %v7445, 127
        %v7447 = vshll.u32 %v7446, 23
        %v7448 = vor.u32 4788187, %v7447
        %v7449 = vand.u32 2147483647, %v7448
        %v7451 = vcvt.s32.f32 %v7444
        %v7452 = vmul.f32 %v7451, %v7449
        %v7453 = vxor.u32 %v7452, 2147483648
        %v7454 = vsel %vm7333, %v7453, %v7452
        %v7455 = vsub.s32 4, %v7431
        %v7456 = vsel %vm7333, %v7455, %v7431
        %v7457 = vsel %vm7332, %v464, %v7454
        %v7458 = vsel %vm7332, 0, %v7456
        %v7459 = vmul.f32 %v7457, %v7457
        %v7460 = vmul.f32 %v7459, -0.001358992
        %v7461 = vadd.f32 %v7460, 0.041655596
        %v7462 = vmul.f32 %v7459, %v7461
        %v7463 = vadd.f32 %v7462, -0.4999988
        %v7464 = vmul.f32 %v7459, %v7463
        %v7465 = vadd.f32 1.0, %v7464
        %v7466 = vmul.f32 %v7457, %v7457
        %v7467 = vmul.f32 %v7466, -0.00019511016
        %v7468 = vadd.f32 %v7467, 0.008332121
        %v7469 = vmul.f32 %v7466, %v7468
        %v7470 = vadd.f32 %v7469, -0.16666654
        %v7471 = vmul.f32 %v7466, %v7470
        %v7472 = vadd.f32 %v7471, 1.0
        %v7473 = vmul.f32 %v7472, %v7457
        %vm7474 = vweird.f32 %v464
        %v7475 = vand.u32 %v7458, 3
        %vm7476 = vcmp.lt.s32.totalorder %v7475, 2
        %vm7477 = vcmp.eq.s32.totalorder %v7475, 0
        %v7478 = vxor.u32 %v7473, 2147483648
        %v7479 = vsel %vm7477, %v7465, %v7478
        %vm7480 = vcmp.eq.s32.totalorder %v7475, 2
        %v7481 = vxor.u32 %v7465, 2147483648
        %v7482 = vsel %vm7480, %v7481, %v7473
        %v7483 = vsel %vm7476, %v7479, %v7482
        %v7484 = vsel %vm7474, nan, %v7483
        %v7485 = vand.u32 2147483647, %v467
        %vm7486 = vcmp.le.f32.partialorder %v7485, 0.7853982
        %vm7487 = vcmp.lt.s32.totalorder %v467, 0
        %v7488 = vand.u32 %v467, 2139095040
        %v7489 = vshrl.u32 %v7488, 23
        %v7490 = vsub.s32 %v7489, 127
        %v7491 = vand.u32 2147483647, %v467
        %v7492 = vand.u32 %v7491, 8388607
        %v7493 = vor.u32 %v7492, 8388608
        %v7494 = vsub.s32 0, %v7493
        %v7495 = vadd.s32 %v7490, 1
        %vm7496 = vcmp.gt.s32.totalorder %v7495, 0
        %v7497 = vsel %vm7496, %v7495, 0
        %v7498 = vshrl.u32 %v7497, 5
        %v7499 = vand.u32 %v7497, 31
        %v7500 = vsub.s32 32, %v7499
        %v7501 = vshrl.u32 683565275, %v7500
        %v7502 = vshll.u32 683565275, %v7499
        %v7503 = vshrl.u32 2475754826, %v7500
        %v7504 = vor.u32 %v7502, %v7503
        %v7505 = vshll.u32 2475754826, %v7499
        %v7506 = vshrl.u32 2131351028, %v7500
        %v7507 = vor.u32 %v7505, %v7506
        %v7508 = vshll.u32 2131351028, %v7499
        %v7509 = vshrl.u32 2102212464, %v7500
        %v7510 = vor.u32 %v7508, %v7509
        %v7511 = vshll.u32 2102212464, %v7499
        %v7512 = vshrl.u32 920167782, %v7500
        %v7513 = vor.u32 %v7511, %v7512
        %v7514 = vshll.u32 920167782, %v7499
        %v7515 = vshrl.u32 1326507024, %v7500
        %v7516 = vor.u32 %v7514, %v7515
        %vm7517 = vcmp.lt.s32.totalorder %v7498, 1
        %vm7518 = vcmp.lt.s32.totalorder %v7498, 2
        %vm7519 = vcmp.lt.s32.totalorder %v7498, 3
        %vm7520 = vcmp.lt.s32.totalorder %v7498, 4
        %v7521 = vsel %vm7517, %v7501, %v7504
        %v7522 = vsel %vm7520, %v7510, 2102212464
        %v7523 = vsel %vm7519, %v7507, %v7522
        %v7524 = vsel %vm7518, %v7521, %v7523
        %v7525 = vsel %vm7517, %v7504, %v7507
        %v7526 = vsel %vm7520, %v7513, 920167782
        %v7527 = vsel %vm7519, %v7510, %v7526
        %v7528 = vsel %vm7518, %v7525, %v7527
        %v7529 = vsel %vm7517, %v7507, %v7510
        %v7530 = vsel %vm7520, %v7516, 1326507024
        %v7531 = vsel %vm7519, %v7513, %v7530
        %v7532 = vsel %vm7518, %v7529, %v7531
        %v7533 = vshll.u32 %v7493, 8
        %v7534 = vand.u32 %v7533, 65535
        %v7535 = vshrl.u32 %v7533, 16
        %v7536 = vand.u32 %v7532, 65535
        %v7537 = vshrl.u32 %v7532, 16
        %v7538 = vmul.u32 %v7534, %v7536
        %v7539 = vmul.u32 %v7534, %v7537
        %v7540 = vmul.u32 %v7535, %v7536
        %v7541 = vmul.u32 %v7535, %v7537
        %v7542 = vshll.u32 %v7539, 16
        %v7543 = vshrl.u32 %v7539, 16
        %v7544 = vshll.u32 %v7540, 16
        %v7545 = vshrl.u32 %v7540, 16
        %vm7546 = vc.u32 %v7538, %v7542
        %v7547 = vsel %vm7546, 1, 0
        %v7548 = vadd.s32 %v7538, %v7542
        %v7549 = vadd.s32 %v7541, %v7547
        %vm7550 = vc.u32 %v7548, %v7544
        %v7551 = vsel %vm7550, 1, 0
        %v7552 = vadd.s32 %v7548, %v7544
        %v7553 = vadd.s32 %v7549, %v7551
        %v7554 = vadd.s32 %v7553, %v7543
        %v7555 = vadd.s32 %v7554, %v7545
        %v7556 = vand.u32 %v7533, 65535
        %v7557 = vshrl.u32 %v7533, 16
        %v7558 = vand.u32 %v7528, 65535
        %v7559 = vshrl.u32 %v7528, 16
        %v7560 = vmul.u32 %v7556, %v7558
        %v7561 = vmul.u32 %v7556, %v7559
        %v7562 = vmul.u32 %v7557, %v7558
        %v7563 = vmul.u32 %v7557, %v7559
        %v7564 = vshll.u32 %v7561, 16
        %v7565 = vshrl.u32 %v7561, 16
        %v7566 = vshll.u32 %v7562, 16
        %v7567 = vshrl.u32 %v7562, 16
        %vm7568 = vc.u32 %v7560, %v7564
        %v7569 = vsel %vm7568, 1, 0
        %v7570 = vadd.s32 %v7560, %v7564
        %v7571 = vadd.s32 %v7563, %v7569
        %vm7572 = vc.u32 %v7570, %v7566
        %v7573 = vsel %vm7572, 1, 0
        %v7574 = vadd.s32 %v7570, %v7566
        %v7575 = vadd.s32 %v7571, %v7573
        %v7576 = vadd.s32 %v7575, %v7565
        %v7577 = vadd.s32 %v7576, %v7567
        %v7578 = vmul.u32 %v7533, %v7524
        %v7579 = vadd.s32 %v7555, %v7574
        %vm7580 = vc.u32 %v7555, %v7574
        %v7581 = vadd.s32 %v7577, 1
        %v7582 = vsel %vm7580, %v7581, %v7577
        %v7583 = vadd.s32 %v7578, %v7582
        %v7584 = vadd.s32 %v7583, 536870912
        %v7585 = vshrl.u32 %v7584, 30
        %v7586 = vshll.u32 %v7585, 30
        %v7587 = vsub.s32 %v7583, %v7586
        %vm7588 = vcmp.lt.s32.totalorder %v7587, 0
        %v7589 = vsub.s32 0, %v7587
        %v7590 = vsel %vm7588, %v7589, %v7587
        %v7591 = vclz %v7590
        %v7592 = vsub.s32 %v7591, 2
        %vm7593 = vcmp.gt.s32.totalorder 0, %v7592
        %v7594 = vsel %vm7593, 0, %v7592
        %v7595 = vsub.s32 32, %v7594
        %v7596 = vshll.u32 %v7587, %v7594
        %v7597 = vshrl.u32 %v7579, %v7595
        %v7598 = vor.u32 %v7596, %v7597
        %v7599 = vsub.s32 4294967266, %v7594
        %v7600 = vadd.s32 %v7599, 127
        %v7601 = vshll.u32 %v7600, 23
        %v7602 = vor.u32 4788187, %v7601
        %v7603 = vand.u32 2147483647, %v7602
        %v7605 = vcvt.s32.f32 %v7598
        %v7606 = vmul.f32 %v7605, %v7603
        %v7607 = vxor.u32 %v7606, 2147483648
        %v7608 = vsel %vm7487, %v7607, %v7606
        %v7609 = vsub.s32 4, %v7585
        %v7610 = vsel %vm7487, %v7609, %v7585
        %v7611 = vsel %vm7486, %v467, %v7608
        %v7612 = vsel %vm7486, 0, %v7610
        %v7613 = vmul.f32 %v7611, %v7611
        %v7614 = vmul.f32 %v7613, -0.001358992
        %v7615 = vadd.f32 %v7614, 0.041655596
        %v7616 = vmul.f32 %v7613, %v7615
        %v7617 = vadd.f32 %v7616, -0.4999988
        %v7618 = vmul.f32 %v7613, %v7617
        %v7619 = vadd.f32 1.0, %v7618
        %v7620 = vmul.f32 %v7611, %v7611
        %v7621 = vmul.f32 %v7620, -0.00019511016
        %v7622 = vadd.f32 %v7621, 0.008332121
        %v7623 = vmul.f32 %v7620, %v7622
        %v7624 = vadd.f32 %v7623, -0.16666654
        %v7625 = vmul.f32 %v7620, %v7624
        %v7626 = vadd.f32 %v7625, 1.0
        %v7627 = vmul.f32 %v7626, %v7611
        %vm7628 = vweird.f32 %v467
        %v7629 = vand.u32 %v7612, 3
        %vm7630 = vcmp.lt.s32.totalorder %v7629, 2
        %vm7631 = vcmp.eq.s32.totalorder %v7629, 0
        %v7632 = vxor.u32 %v7627, 2147483648
        %v7633 = vsel %vm7631, %v7619, %v7632
        %vm7634 = vcmp.eq.s32.totalorder %v7629, 2
        %v7635 = vxor.u32 %v7619, 2147483648
        %v7636 = vsel %vm7634, %v7635, %v7627
        %v7637 = vsel %vm7630, %v7633, %v7636
        %v7638 = vsel %vm7628, nan, %v7637
        %v7639 = vand.u32 2147483647, %v470
        %vm7640 = vcmp.le.f32.partialorder %v7639, 0.7853982
        %vm7641 = vcmp.lt.s32.totalorder %v470, 0
        %v7642 = vand.u32 %v470, 2139095040
        %v7643 = vshrl.u32 %v7642, 23
        %v7644 = vsub.s32 %v7643, 127
        %v7645 = vand.u32 2147483647, %v470
        %v7646 = vand.u32 %v7645, 8388607
        %v7647 = vor.u32 %v7646, 8388608
        %v7648 = vsub.s32 0, %v7647
        %v7649 = vadd.s32 %v7644, 1
        %vm7650 = vcmp.gt.s32.totalorder %v7649, 0
        %v7651 = vsel %vm7650, %v7649, 0
        %v7652 = vshrl.u32 %v7651, 5
        %v7653 = vand.u32 %v7651, 31
        %v7654 = vsub.s32 32, %v7653
        %v7655 = vshrl.u32 683565275, %v7654
        %v7656 = vshll.u32 683565275, %v7653
        %v7657 = vshrl.u32 2475754826, %v7654
        %v7658 = vor.u32 %v7656, %v7657
        %v7659 = vshll.u32 2475754826, %v7653
        %v7660 = vshrl.u32 2131351028, %v7654
        %v7661 = vor.u32 %v7659, %v7660
        %v7662 = vshll.u32 2131351028, %v7653
        %v7663 = vshrl.u32 2102212464, %v7654
        %v7664 = vor.u32 %v7662, %v7663
        %v7665 = vshll.u32 2102212464, %v7653
        %v7666 = vshrl.u32 920167782, %v7654
        %v7667 = vor.u32 %v7665, %v7666
        %v7668 = vshll.u32 920167782, %v7653
        %v7669 = vshrl.u32 1326507024, %v7654
        %v7670 = vor.u32 %v7668, %v7669
        %vm7671 = vcmp.lt.s32.totalorder %v7652, 1
        %vm7672 = vcmp.lt.s32.totalorder %v7652, 2
        %vm7673 = vcmp.lt.s32.totalorder %v7652, 3
        %vm7674 = vcmp.lt.s32.totalorder %v7652, 4
        %v7675 = vsel %vm7671, %v7655, %v7658
        %v7676 = vsel %vm7674, %v7664, 2102212464
        %v7677 = vsel %vm7673, %v7661, %v7676
        %v7678 = vsel %vm7672, %v7675, %v7677
        %v7679 = vsel %vm7671, %v7658, %v7661
        %v7680 = vsel %vm7674, %v7667, 920167782
        %v7681 = vsel %vm7673, %v7664, %v7680
        %v7682 = vsel %vm7672, %v7679, %v7681
        %v7683 = vsel %vm7671, %v7661, %v7664
        %v7684 = vsel %vm7674, %v7670, 1326507024
        %v7685 = vsel %vm7673, %v7667, %v7684
        %v7686 = vsel %vm7672, %v7683, %v7685
        %v7687 = vshll.u32 %v7647, 8
        %v7688 = vand.u32 %v7687, 65535
        %v7689 = vshrl.u32 %v7687, 16
        %v7690 = vand.u32 %v7686, 65535
        %v7691 = vshrl.u32 %v7686, 16
        %v7692 = vmul.u32 %v7688, %v7690
        %v7693 = vmul.u32 %v7688, %v7691
        %v7694 = vmul.u32 %v7689, %v7690
        %v7695 = vmul.u32 %v7689, %v7691
        %v7696 = vshll.u32 %v7693, 16
        %v7697 = vshrl.u32 %v7693, 16
        %v7698 = vshll.u32 %v7694, 16
        %v7699 = vshrl.u32 %v7694, 16
        %vm7700 = vc.u32 %v7692, %v7696
        %v7701 = vsel %vm7700, 1, 0
        %v7702 = vadd.s32 %v7692, %v7696
        %v7703 = vadd.s32 %v7695, %v7701
        %vm7704 = vc.u32 %v7702, %v7698
        %v7705 = vsel %vm7704, 1, 0
        %v7706 = vadd.s32 %v7702, %v7698
        %v7707 = vadd.s32 %v7703, %v7705
        %v7708 = vadd.s32 %v7707, %v7697
        %v7709 = vadd.s32 %v7708, %v7699
        %v7710 = vand.u32 %v7687, 65535
        %v7711 = vshrl.u32 %v7687, 16
        %v7712 = vand.u32 %v7682, 65535
        %v7713 = vshrl.u32 %v7682, 16
        %v7714 = vmul.u32 %v7710, %v7712
        %v7715 = vmul.u32 %v7710, %v7713
        %v7716 = vmul.u32 %v7711, %v7712
        %v7717 = vmul.u32 %v7711, %v7713
        %v7718 = vshll.u32 %v7715, 16
        %v7719 = vshrl.u32 %v7715, 16
        %v7720 = vshll.u32 %v7716, 16
        %v7721 = vshrl.u32 %v7716, 16
        %vm7722 = vc.u32 %v7714, %v7718
        %v7723 = vsel %vm7722, 1, 0
        %v7724 = vadd.s32 %v7714, %v7718
        %v7725 = vadd.s32 %v7717, %v7723
        %vm7726 = vc.u32 %v7724, %v7720
        %v7727 = vsel %vm7726, 1, 0
        %v7728 = vadd.s32 %v7724, %v7720
        %v7729 = vadd.s32 %v7725, %v7727
        %v7730 = vadd.s32 %v7729, %v7719
        %v7731 = vadd.s32 %v7730, %v7721
        %v7732 = vmul.u32 %v7687, %v7678
        %v7733 = vadd.s32 %v7709, %v7728
        %vm7734 = vc.u32 %v7709, %v7728
        %v7735 = vadd.s32 %v7731, 1
        %v7736 = vsel %vm7734, %v7735, %v7731
        %v7737 = vadd.s32 %v7732, %v7736
        %v7738 = vadd.s32 %v7737, 536870912
        %v7739 = vshrl.u32 %v7738, 30
        %v7740 = vshll.u32 %v7739, 30
        %v7741 = vsub.s32 %v7737, %v7740
        %vm7742 = vcmp.lt.s32.totalorder %v7741, 0
        %v7743 = vsub.s32 0, %v7741
        %v7744 = vsel %vm7742, %v7743, %v7741
        %v7745 = vclz %v7744
        %v7746 = vsub.s32 %v7745, 2
        %vm7747 = vcmp.gt.s32.totalorder 0, %v7746
        %v7748 = vsel %vm7747, 0, %v7746
        %v7749 = vsub.s32 32, %v7748
        %v7750 = vshll.u32 %v7741, %v7748
        %v7751 = vshrl.u32 %v7733, %v7749
        %v7752 = vor.u32 %v7750, %v7751
        %v7753 = vsub.s32 4294967266, %v7748
        %v7754 = vadd.s32 %v7753, 127
        %v7755 = vshll.u32 %v7754, 23
        %v7756 = vor.u32 4788187, %v7755
        %v7757 = vand.u32 2147483647, %v7756
        %v7759 = vcvt.s32.f32 %v7752
        %v7760 = vmul.f32 %v7759, %v7757
        %v7761 = vxor.u32 %v7760, 2147483648
        %v7762 = vsel %vm7641, %v7761, %v7760
        %v7763 = vsub.s32 4, %v7739
        %v7764 = vsel %vm7641, %v7763, %v7739
        %v7765 = vsel %vm7640, %v470, %v7762
        %v7766 = vsel %vm7640, 0, %v7764
        %v7767 = vmul.f32 %v7765, %v7765
        %v7768 = vmul.f32 %v7767, -0.001358992
        %v7769 = vadd.f32 %v7768, 0.041655596
        %v7770 = vmul.f32 %v7767, %v7769
        %v7771 = vadd.f32 %v7770, -0.4999988
        %v7772 = vmul.f32 %v7767, %v7771
        %v7773 = vadd.f32 1.0, %v7772
        %v7774 = vmul.f32 %v7765, %v7765
        %v7775 = vmul.f32 %v7774, -0.00019511016
        %v7776 = vadd.f32 %v7775, 0.008332121
        %v7777 = vmul.f32 %v7774, %v7776
        %v7778 = vadd.f32 %v7777, -0.16666654
        %v7779 = vmul.f32 %v7774, %v7778
        %v7780 = vadd.f32 %v7779, 1.0
        %v7781 = vmul.f32 %v7780, %v7765
        %vm7782 = vweird.f32 %v470
        %v7783 = vand.u32 %v7766, 3
        %vm7784 = vcmp.lt.s32.totalorder %v7783, 2
        %vm7785 = vcmp.eq.s32.totalorder %v7783, 0
        %v7786 = vxor.u32 %v7781, 2147483648
        %v7787 = vsel %vm7785, %v7773, %v7786
        %vm7788 = vcmp.eq.s32.totalorder %v7783, 2
        %v7789 = vxor.u32 %v7773, 2147483648
        %v7790 = vsel %vm7788, %v7789, %v7781
        %v7791 = vsel %vm7784, %v7787, %v7790
        %v7792 = vsel %vm7782, nan, %v7791
        %v7793 = vand.u32 2147483647, %v473
        %vm7794 = vcmp.le.f32.partialorder %v7793, 0.7853982
        %vm7795 = vcmp.lt.s32.totalorder %v473, 0
        %v7796 = vand.u32 %v473, 2139095040
        %v7797 = vshrl.u32 %v7796, 23
        %v7798 = vsub.s32 %v7797, 127
        %v7799 = vand.u32 2147483647, %v473
        %v7800 = vand.u32 %v7799, 8388607
        %v7801 = vor.u32 %v7800, 8388608
        %v7802 = vsub.s32 0, %v7801
        %v7803 = vadd.s32 %v7798, 1
        %vm7804 = vcmp.gt.s32.totalorder %v7803, 0
        %v7805 = vsel %vm7804, %v7803, 0
        %v7806 = vshrl.u32 %v7805, 5
        %v7807 = vand.u32 %v7805, 31
        %v7808 = vsub.s32 32, %v7807
        %v7809 = vshrl.u32 683565275, %v7808
        %v7810 = vshll.u32 683565275, %v7807
        %v7811 = vshrl.u32 2475754826, %v7808
        %v7812 = vor.u32 %v7810, %v7811
        %v7813 = vshll.u32 2475754826, %v7807
        %v7814 = vshrl.u32 2131351028, %v7808
        %v7815 = vor.u32 %v7813, %v7814
        %v7816 = vshll.u32 2131351028, %v7807
        %v7817 = vshrl.u32 2102212464, %v7808
        %v7818 = vor.u32 %v7816, %v7817
        %v7819 = vshll.u32 2102212464, %v7807
        %v7820 = vshrl.u32 920167782, %v7808
        %v7821 = vor.u32 %v7819, %v7820
        %v7822 = vshll.u32 920167782, %v7807
        %v7823 = vshrl.u32 1326507024, %v7808
        %v7824 = vor.u32 %v7822, %v7823
        %vm7825 = vcmp.lt.s32.totalorder %v7806, 1
        %vm7826 = vcmp.lt.s32.totalorder %v7806, 2
        %vm7827 = vcmp.lt.s32.totalorder %v7806, 3
        %vm7828 = vcmp.lt.s32.totalorder %v7806, 4
        %v7829 = vsel %vm7825, %v7809, %v7812
        %v7830 = vsel %vm7828, %v7818, 2102212464
        %v7831 = vsel %vm7827, %v7815, %v7830
        %v7832 = vsel %vm7826, %v7829, %v7831
        %v7833 = vsel %vm7825, %v7812, %v7815
        %v7834 = vsel %vm7828, %v7821, 920167782
        %v7835 = vsel %vm7827, %v7818, %v7834
        %v7836 = vsel %vm7826, %v7833, %v7835
        %v7837 = vsel %vm7825, %v7815, %v7818
        %v7838 = vsel %vm7828, %v7824, 1326507024
        %v7839 = vsel %vm7827, %v7821, %v7838
        %v7840 = vsel %vm7826, %v7837, %v7839
        %v7841 = vshll.u32 %v7801, 8
        %v7842 = vand.u32 %v7841, 65535
        %v7843 = vshrl.u32 %v7841, 16
        %v7844 = vand.u32 %v7840, 65535
        %v7845 = vshrl.u32 %v7840, 16
        %v7846 = vmul.u32 %v7842, %v7844
        %v7847 = vmul.u32 %v7842, %v7845
        %v7848 = vmul.u32 %v7843, %v7844
        %v7849 = vmul.u32 %v7843, %v7845
        %v7850 = vshll.u32 %v7847, 16
        %v7851 = vshrl.u32 %v7847, 16
        %v7852 = vshll.u32 %v7848, 16
        %v7853 = vshrl.u32 %v7848, 16
        %vm7854 = vc.u32 %v7846, %v7850
        %v7855 = vsel %vm7854, 1, 0
        %v7856 = vadd.s32 %v7846, %v7850
        %v7857 = vadd.s32 %v7849, %v7855
        %vm7858 = vc.u32 %v7856, %v7852
        %v7859 = vsel %vm7858, 1, 0
        %v7860 = vadd.s32 %v7856, %v7852
        %v7861 = vadd.s32 %v7857, %v7859
        %v7862 = vadd.s32 %v7861, %v7851
        %v7863 = vadd.s32 %v7862, %v7853
        %v7864 = vand.u32 %v7841, 65535
        %v7865 = vshrl.u32 %v7841, 16
        %v7866 = vand.u32 %v7836, 65535
        %v7867 = vshrl.u32 %v7836, 16
        %v7868 = vmul.u32 %v7864, %v7866
        %v7869 = vmul.u32 %v7864, %v7867
        %v7870 = vmul.u32 %v7865, %v7866
        %v7871 = vmul.u32 %v7865, %v7867
        %v7872 = vshll.u32 %v7869, 16
        %v7873 = vshrl.u32 %v7869, 16
        %v7874 = vshll.u32 %v7870, 16
        %v7875 = vshrl.u32 %v7870, 16
        %vm7876 = vc.u32 %v7868, %v7872
        %v7877 = vsel %vm7876, 1, 0
        %v7878 = vadd.s32 %v7868, %v7872
        %v7879 = vadd.s32 %v7871, %v7877
        %vm7880 = vc.u32 %v7878, %v7874
        %v7881 = vsel %vm7880, 1, 0
        %v7882 = vadd.s32 %v7878, %v7874
        %v7883 = vadd.s32 %v7879, %v7881
        %v7884 = vadd.s32 %v7883, %v7873
        %v7885 = vadd.s32 %v7884, %v7875
        %v7886 = vmul.u32 %v7841, %v7832
        %v7887 = vadd.s32 %v7863, %v7882
        %vm7888 = vc.u32 %v7863, %v7882
        %v7889 = vadd.s32 %v7885, 1
        %v7890 = vsel %vm7888, %v7889, %v7885
        %v7891 = vadd.s32 %v7886, %v7890
        %v7892 = vadd.s32 %v7891, 536870912
        %v7893 = vshrl.u32 %v7892, 30
        %v7894 = vshll.u32 %v7893, 30
        %v7895 = vsub.s32 %v7891, %v7894
        %vm7896 = vcmp.lt.s32.totalorder %v7895, 0
        %v7897 = vsub.s32 0, %v7895
        %v7898 = vsel %vm7896, %v7897, %v7895
        %v7899 = vclz %v7898
        %v7900 = vsub.s32 %v7899, 2
        %vm7901 = vcmp.gt.s32.totalorder 0, %v7900
        %v7902 = vsel %vm7901, 0, %v7900
        %v7903 = vsub.s32 32, %v7902
        %v7904 = vshll.u32 %v7895, %v7902
        %v7905 = vshrl.u32 %v7887, %v7903
        %v7906 = vor.u32 %v7904, %v7905
        %v7907 = vsub.s32 4294967266, %v7902
        %v7908 = vadd.s32 %v7907, 127
        %v7909 = vshll.u32 %v7908, 23
        %v7910 = vor.u32 4788187, %v7909
        %v7911 = vand.u32 2147483647, %v7910
        %v7913 = vcvt.s32.f32 %v7906
        %v7914 = vmul.f32 %v7913, %v7911
        %v7915 = vxor.u32 %v7914, 2147483648
        %v7916 = vsel %vm7795, %v7915, %v7914
        %v7917 = vsub.s32 4, %v7893
        %v7918 = vsel %vm7795, %v7917, %v7893
        %v7919 = vsel %vm7794, %v473, %v7916
        %v7920 = vsel %vm7794, 0, %v7918
        %v7921 = vmul.f32 %v7919, %v7919
        %v7922 = vmul.f32 %v7921, -0.001358992
        %v7923 = vadd.f32 %v7922, 0.041655596
        %v7924 = vmul.f32 %v7921, %v7923
        %v7925 = vadd.f32 %v7924, -0.4999988
        %v7926 = vmul.f32 %v7921, %v7925
        %v7927 = vadd.f32 1.0, %v7926
        %v7928 = vmul.f32 %v7919, %v7919
        %v7929 = vmul.f32 %v7928, -0.00019511016
        %v7930 = vadd.f32 %v7929, 0.008332121
        %v7931 = vmul.f32 %v7928, %v7930
        %v7932 = vadd.f32 %v7931, -0.16666654
        %v7933 = vmul.f32 %v7928, %v7932
        %v7934 = vadd.f32 %v7933, 1.0
        %v7935 = vmul.f32 %v7934, %v7919
        %vm7936 = vweird.f32 %v473
        %v7937 = vand.u32 %v7920, 3
        %vm7938 = vcmp.lt.s32.totalorder %v7937, 2
        %vm7939 = vcmp.eq.s32.totalorder %v7937, 0
        %v7940 = vxor.u32 %v7935, 2147483648
        %v7941 = vsel %vm7939, %v7927, %v7940
        %vm7942 = vcmp.eq.s32.totalorder %v7937, 2
        %v7943 = vxor.u32 %v7927, 2147483648
        %v7944 = vsel %vm7942, %v7943, %v7935
        %v7945 = vsel %vm7938, %v7941, %v7944
        %v7946 = vsel %vm7936, nan, %v7945
        %v7947 = vand.u32 2147483647, %v428
        %vm7948 = vcmp.le.f32.partialorder %v7947, 0.7853982
        %vm7949 = vcmp.lt.s32.totalorder %v428, 0
        %v7950 = vand.u32 %v428, 2139095040
        %v7951 = vshrl.u32 %v7950, 23
        %v7952 = vsub.s32 %v7951, 127
        %v7953 = vand.u32 2147483647, %v428
        %v7954 = vand.u32 %v7953, 8388607
        %v7955 = vor.u32 %v7954, 8388608
        %v7956 = vsub.s32 0, %v7955
        %v7957 = vadd.s32 %v7952, 1
        %vm7958 = vcmp.gt.s32.totalorder %v7957, 0
        %v7959 = vsel %vm7958, %v7957, 0
        %v7960 = vshrl.u32 %v7959, 5
        %v7961 = vand.u32 %v7959, 31
        %v7962 = vsub.s32 32, %v7961
        %v7963 = vshrl.u32 683565275, %v7962
        %v7964 = vshll.u32 683565275, %v7961
        %v7965 = vshrl.u32 2475754826, %v7962
        %v7966 = vor.u32 %v7964, %v7965
        %v7967 = vshll.u32 2475754826, %v7961
        %v7968 = vshrl.u32 2131351028, %v7962
        %v7969 = vor.u32 %v7967, %v7968
        %v7970 = vshll.u32 2131351028, %v7961
        %v7971 = vshrl.u32 2102212464, %v7962
        %v7972 = vor.u32 %v7970, %v7971
        %v7973 = vshll.u32 2102212464, %v7961
        %v7974 = vshrl.u32 920167782, %v7962
        %v7975 = vor.u32 %v7973, %v7974
        %v7976 = vshll.u32 920167782, %v7961
        %v7977 = vshrl.u32 1326507024, %v7962
        %v7978 = vor.u32 %v7976, %v7977
        %vm7979 = vcmp.lt.s32.totalorder %v7960, 1
        %vm7980 = vcmp.lt.s32.totalorder %v7960, 2
        %vm7981 = vcmp.lt.s32.totalorder %v7960, 3
        %vm7982 = vcmp.lt.s32.totalorder %v7960, 4
        %v7983 = vsel %vm7979, %v7963, %v7966
        %v7984 = vsel %vm7982, %v7972, 2102212464
        %v7985 = vsel %vm7981, %v7969, %v7984
        %v7986 = vsel %vm7980, %v7983, %v7985
        %v7987 = vsel %vm7979, %v7966, %v7969
        %v7988 = vsel %vm7982, %v7975, 920167782
        %v7989 = vsel %vm7981, %v7972, %v7988
        %v7990 = vsel %vm7980, %v7987, %v7989
        %v7991 = vsel %vm7979, %v7969, %v7972
        %v7992 = vsel %vm7982, %v7978, 1326507024
        %v7993 = vsel %vm7981, %v7975, %v7992
        %v7994 = vsel %vm7980, %v7991, %v7993
        %v7995 = vshll.u32 %v7955, 8
        %v7996 = vand.u32 %v7995, 65535
        %v7997 = vshrl.u32 %v7995, 16
        %v7998 = vand.u32 %v7994, 65535
        %v7999 = vshrl.u32 %v7994, 16
        %v8000 = vmul.u32 %v7996, %v7998
        %v8001 = vmul.u32 %v7996, %v7999
        %v8002 = vmul.u32 %v7997, %v7998
        %v8003 = vmul.u32 %v7997, %v7999
        %v8004 = vshll.u32 %v8001, 16
        %v8005 = vshrl.u32 %v8001, 16
        %v8006 = vshll.u32 %v8002, 16
        %v8007 = vshrl.u32 %v8002, 16
        %vm8008 = vc.u32 %v8000, %v8004
        %v8009 = vsel %vm8008, 1, 0
        %v8010 = vadd.s32 %v8000, %v8004
        %v8011 = vadd.s32 %v8003, %v8009
        %vm8012 = vc.u32 %v8010, %v8006
        %v8013 = vsel %vm8012, 1, 0
        %v8014 = vadd.s32 %v8010, %v8006
        %v8015 = vadd.s32 %v8011, %v8013
        %v8016 = vadd.s32 %v8015, %v8005
        %v8017 = vadd.s32 %v8016, %v8007
        %v8018 = vand.u32 %v7995, 65535
        %v8019 = vshrl.u32 %v7995, 16
        %v8020 = vand.u32 %v7990, 65535
        %v8021 = vshrl.u32 %v7990, 16
        %v8022 = vmul.u32 %v8018, %v8020
        %v8023 = vmul.u32 %v8018, %v8021
        %v8024 = vmul.u32 %v8019, %v8020
        %v8025 = vmul.u32 %v8019, %v8021
        %v8026 = vshll.u32 %v8023, 16
        %v8027 = vshrl.u32 %v8023, 16
        %v8028 = vshll.u32 %v8024, 16
        %v8029 = vshrl.u32 %v8024, 16
        %vm8030 = vc.u32 %v8022, %v8026
        %v8031 = vsel %vm8030, 1, 0
        %v8032 = vadd.s32 %v8022, %v8026
        %v8033 = vadd.s32 %v8025, %v8031
        %vm8034 = vc.u32 %v8032, %v8028
        %v8035 = vsel %vm8034, 1, 0
        %v8036 = vadd.s32 %v8032, %v8028
        %v8037 = vadd.s32 %v8033, %v8035
        %v8038 = vadd.s32 %v8037, %v8027
        %v8039 = vadd.s32 %v8038, %v8029
        %v8040 = vmul.u32 %v7995, %v7986
        %v8041 = vadd.s32 %v8017, %v8036
        %vm8042 = vc.u32 %v8017, %v8036
        %v8043 = vadd.s32 %v8039, 1
        %v8044 = vsel %vm8042, %v8043, %v8039
        %v8045 = vadd.s32 %v8040, %v8044
        %v8046 = vadd.s32 %v8045, 536870912
        %v8047 = vshrl.u32 %v8046, 30
        %v8048 = vshll.u32 %v8047, 30
        %v8049 = vsub.s32 %v8045, %v8048
        %vm8050 = vcmp.lt.s32.totalorder %v8049, 0
        %v8051 = vsub.s32 0, %v8049
        %v8052 = vsel %vm8050, %v8051, %v8049
        %v8053 = vclz %v8052
        %v8054 = vsub.s32 %v8053, 2
        %vm8055 = vcmp.gt.s32.totalorder 0, %v8054
        %v8056 = vsel %vm8055, 0, %v8054
        %v8057 = vsub.s32 32, %v8056
        %v8058 = vshll.u32 %v8049, %v8056
        %v8059 = vshrl.u32 %v8041, %v8057
        %v8060 = vor.u32 %v8058, %v8059
        %v8061 = vsub.s32 4294967266, %v8056
        %v8062 = vadd.s32 %v8061, 127
        %v8063 = vshll.u32 %v8062, 23
        %v8064 = vor.u32 4788187, %v8063
        %v8065 = vand.u32 2147483647, %v8064
        %v8067 = vcvt.s32.f32 %v8060
        %v8068 = vmul.f32 %v8067, %v8065
        %v8069 = vxor.u32 %v8068, 2147483648
        %v8070 = vsel %vm7949, %v8069, %v8068
        %v8071 = vsub.s32 4, %v8047
        %v8072 = vsel %vm7949, %v8071, %v8047
        %v8073 = vsel %vm7948, %v428, %v8070
        %v8074 = vsel %vm7948, 0, %v8072
        %v8075 = vmul.f32 %v8073, %v8073
        %v8076 = vmul.f32 %v8075, -0.001358992
        %v8077 = vadd.f32 %v8076, 0.041655596
        %v8078 = vmul.f32 %v8075, %v8077
        %v8079 = vadd.f32 %v8078, -0.4999988
        %v8080 = vmul.f32 %v8075, %v8079
        %v8081 = vadd.f32 1.0, %v8080
        %v8082 = vmul.f32 %v8073, %v8073
        %v8083 = vmul.f32 %v8082, -0.00019511016
        %v8084 = vadd.f32 %v8083, 0.008332121
        %v8085 = vmul.f32 %v8082, %v8084
        %v8086 = vadd.f32 %v8085, -0.16666654
        %v8087 = vmul.f32 %v8082, %v8086
        %v8088 = vadd.f32 %v8087, 1.0
        %v8089 = vmul.f32 %v8088, %v8073
        %vm8090 = vweird.f32 %v428
        %v8091 = vadd.s32 %v8074, 3
        %v8092 = vand.u32 %v8091, 3
        %vm8093 = vcmp.lt.s32.totalorder %v8092, 2
        %vm8094 = vcmp.eq.s32.totalorder %v8092, 0
        %v8095 = vxor.u32 %v8089, 2147483648
        %v8096 = vsel %vm8094, %v8081, %v8095
        %vm8097 = vcmp.eq.s32.totalorder %v8092, 2
        %v8098 = vxor.u32 %v8081, 2147483648
        %v8099 = vsel %vm8097, %v8098, %v8089
        %v8100 = vsel %vm8093, %v8096, %v8099
        %v8101 = vsel %vm8090, nan, %v8100
        %v8102 = vand.u32 2147483647, %v431
        %vm8103 = vcmp.le.f32.partialorder %v8102, 0.7853982
        %vm8104 = vcmp.lt.s32.totalorder %v431, 0
        %v8105 = vand.u32 %v431, 2139095040
        %v8106 = vshrl.u32 %v8105, 23
        %v8107 = vsub.s32 %v8106, 127
        %v8108 = vand.u32 2147483647, %v431
        %v8109 = vand.u32 %v8108, 8388607
        %v8110 = vor.u32 %v8109, 8388608
        %v8111 = vsub.s32 0, %v8110
        %v8112 = vadd.s32 %v8107, 1
        %vm8113 = vcmp.gt.s32.totalorder %v8112, 0
        %v8114 = vsel %vm8113, %v8112, 0
        %v8115 = vshrl.u32 %v8114, 5
        %v8116 = vand.u32 %v8114, 31
        %v8117 = vsub.s32 32, %v8116
        %v8118 = vshrl.u32 683565275, %v8117
        %v8119 = vshll.u32 683565275, %v8116
        %v8120 = vshrl.u32 2475754826, %v8117
        %v8121 = vor.u32 %v8119, %v8120
        %v8122 = vshll.u32 2475754826, %v8116
        %v8123 = vshrl.u32 2131351028, %v8117
        %v8124 = vor.u32 %v8122, %v8123
        %v8125 = vshll.u32 2131351028, %v8116
        %v8126 = vshrl.u32 2102212464, %v8117
        %v8127 = vor.u32 %v8125, %v8126
        %v8128 = vshll.u32 2102212464, %v8116
        %v8129 = vshrl.u32 920167782, %v8117
        %v8130 = vor.u32 %v8128, %v8129
        %v8131 = vshll.u32 920167782, %v8116
        %v8132 = vshrl.u32 1326507024, %v8117
        %v8133 = vor.u32 %v8131, %v8132
        %vm8134 = vcmp.lt.s32.totalorder %v8115, 1
        %vm8135 = vcmp.lt.s32.totalorder %v8115, 2
        %vm8136 = vcmp.lt.s32.totalorder %v8115, 3
        %vm8137 = vcmp.lt.s32.totalorder %v8115, 4
        %v8138 = vsel %vm8134, %v8118, %v8121
        %v8139 = vsel %vm8137, %v8127, 2102212464
        %v8140 = vsel %vm8136, %v8124, %v8139
        %v8141 = vsel %vm8135, %v8138, %v8140
        %v8142 = vsel %vm8134, %v8121, %v8124
        %v8143 = vsel %vm8137, %v8130, 920167782
        %v8144 = vsel %vm8136, %v8127, %v8143
        %v8145 = vsel %vm8135, %v8142, %v8144
        %v8146 = vsel %vm8134, %v8124, %v8127
        %v8147 = vsel %vm8137, %v8133, 1326507024
        %v8148 = vsel %vm8136, %v8130, %v8147
        %v8149 = vsel %vm8135, %v8146, %v8148
        %v8150 = vshll.u32 %v8110, 8
        %v8151 = vand.u32 %v8150, 65535
        %v8152 = vshrl.u32 %v8150, 16
        %v8153 = vand.u32 %v8149, 65535
        %v8154 = vshrl.u32 %v8149, 16
        %v8155 = vmul.u32 %v8151, %v8153
        %v8156 = vmul.u32 %v8151, %v8154
        %v8157 = vmul.u32 %v8152, %v8153
        %v8158 = vmul.u32 %v8152, %v8154
        %v8159 = vshll.u32 %v8156, 16
        %v8160 = vshrl.u32 %v8156, 16
        %v8161 = vshll.u32 %v8157, 16
        %v8162 = vshrl.u32 %v8157, 16
        %vm8163 = vc.u32 %v8155, %v8159
        %v8164 = vsel %vm8163, 1, 0
        %v8165 = vadd.s32 %v8155, %v8159
        %v8166 = vadd.s32 %v8158, %v8164
        %vm8167 = vc.u32 %v8165, %v8161
        %v8168 = vsel %vm8167, 1, 0
        %v8169 = vadd.s32 %v8165, %v8161
        %v8170 = vadd.s32 %v8166, %v8168
        %v8171 = vadd.s32 %v8170, %v8160
        %v8172 = vadd.s32 %v8171, %v8162
        %v8173 = vand.u32 %v8150, 65535
        %v8174 = vshrl.u32 %v8150, 16
        %v8175 = vand.u32 %v8145, 65535
        %v8176 = vshrl.u32 %v8145, 16
        %v8177 = vmul.u32 %v8173, %v8175
        %v8178 = vmul.u32 %v8173, %v8176
        %v8179 = vmul.u32 %v8174, %v8175
        %v8180 = vmul.u32 %v8174, %v8176
        %v8181 = vshll.u32 %v8178, 16
        %v8182 = vshrl.u32 %v8178, 16
        %v8183 = vshll.u32 %v8179, 16
        %v8184 = vshrl.u32 %v8179, 16
        %vm8185 = vc.u32 %v8177, %v8181
        %v8186 = vsel %vm8185, 1, 0
        %v8187 = vadd.s32 %v8177, %v8181
        %v8188 = vadd.s32 %v8180, %v8186
        %vm8189 = vc.u32 %v8187, %v8183
        %v8190 = vsel %vm8189, 1, 0
        %v8191 = vadd.s32 %v8187, %v8183
        %v8192 = vadd.s32 %v8188, %v8190
        %v8193 = vadd.s32 %v8192, %v8182
        %v8194 = vadd.s32 %v8193, %v8184
        %v8195 = vmul.u32 %v8150, %v8141
        %v8196 = vadd.s32 %v8172, %v8191
        %vm8197 = vc.u32 %v8172, %v8191
        %v8198 = vadd.s32 %v8194, 1
        %v8199 = vsel %vm8197, %v8198, %v8194
        %v8200 = vadd.s32 %v8195, %v8199
        %v8201 = vadd.s32 %v8200, 536870912
        %v8202 = vshrl.u32 %v8201, 30
        %v8203 = vshll.u32 %v8202, 30
        %v8204 = vsub.s32 %v8200, %v8203
        %vm8205 = vcmp.lt.s32.totalorder %v8204, 0
        %v8206 = vsub.s32 0, %v8204
        %v8207 = vsel %vm8205, %v8206, %v8204
        %v8208 = vclz %v8207
        %v8209 = vsub.s32 %v8208, 2
        %vm8210 = vcmp.gt.s32.totalorder 0, %v8209
        %v8211 = vsel %vm8210, 0, %v8209
        %v8212 = vsub.s32 32, %v8211
        %v8213 = vshll.u32 %v8204, %v8211
        %v8214 = vshrl.u32 %v8196, %v8212
        %v8215 = vor.u32 %v8213, %v8214
        %v8216 = vsub.s32 4294967266, %v8211
        %v8217 = vadd.s32 %v8216, 127
        %v8218 = vshll.u32 %v8217, 23
        %v8219 = vor.u32 4788187, %v8218
        %v8220 = vand.u32 2147483647, %v8219
        %v8222 = vcvt.s32.f32 %v8215
        %v8223 = vmul.f32 %v8222, %v8220
        %v8224 = vxor.u32 %v8223, 2147483648
        %v8225 = vsel %vm8104, %v8224, %v8223
        %v8226 = vsub.s32 4, %v8202
        %v8227 = vsel %vm8104, %v8226, %v8202
        %v8228 = vsel %vm8103, %v431, %v8225
        %v8229 = vsel %vm8103, 0, %v8227
        %v8230 = vmul.f32 %v8228, %v8228
        %v8231 = vmul.f32 %v8230, -0.001358992
        %v8232 = vadd.f32 %v8231, 0.041655596
        %v8233 = vmul.f32 %v8230, %v8232
        %v8234 = vadd.f32 %v8233, -0.4999988
        %v8235 = vmul.f32 %v8230, %v8234
        %v8236 = vadd.f32 1.0, %v8235
        %v8237 = vmul.f32 %v8228, %v8228
        %v8238 = vmul.f32 %v8237, -0.00019511016
        %v8239 = vadd.f32 %v8238, 0.008332121
        %v8240 = vmul.f32 %v8237, %v8239
        %v8241 = vadd.f32 %v8240, -0.16666654
        %v8242 = vmul.f32 %v8237, %v8241
        %v8243 = vadd.f32 %v8242, 1.0
        %v8244 = vmul.f32 %v8243, %v8228
        %vm8245 = vweird.f32 %v431
        %v8246 = vadd.s32 %v8229, 3
        %v8247 = vand.u32 %v8246, 3
        %vm8248 = vcmp.lt.s32.totalorder %v8247, 2
        %vm8249 = vcmp.eq.s32.totalorder %v8247, 0
        %v8250 = vxor.u32 %v8244, 2147483648
        %v8251 = vsel %vm8249, %v8236, %v8250
        %vm8252 = vcmp.eq.s32.totalorder %v8247, 2
        %v8253 = vxor.u32 %v8236, 2147483648
        %v8254 = vsel %vm8252, %v8253, %v8244
        %v8255 = vsel %vm8248, %v8251, %v8254
        %v8256 = vsel %vm8245, nan, %v8255
        %v8257 = vand.u32 2147483647, %v434
        %vm8258 = vcmp.le.f32.partialorder %v8257, 0.7853982
        %vm8259 = vcmp.lt.s32.totalorder %v434, 0
        %v8260 = vand.u32 %v434, 2139095040
        %v8261 = vshrl.u32 %v8260, 23
        %v8262 = vsub.s32 %v8261, 127
        %v8263 = vand.u32 2147483647, %v434
        %v8264 = vand.u32 %v8263, 8388607
        %v8265 = vor.u32 %v8264, 8388608
        %v8266 = vsub.s32 0, %v8265
        %v8267 = vadd.s32 %v8262, 1
        %vm8268 = vcmp.gt.s32.totalorder %v8267, 0
        %v8269 = vsel %vm8268, %v8267, 0
        %v8270 = vshrl.u32 %v8269, 5
        %v8271 = vand.u32 %v8269, 31
        %v8272 = vsub.s32 32, %v8271
        %v8273 = vshrl.u32 683565275, %v8272
        %v8274 = vshll.u32 683565275, %v8271
        %v8275 = vshrl.u32 2475754826, %v8272
        %v8276 = vor.u32 %v8274, %v8275
        %v8277 = vshll.u32 2475754826, %v8271
        %v8278 = vshrl.u32 2131351028, %v8272
        %v8279 = vor.u32 %v8277, %v8278
        %v8280 = vshll.u32 2131351028, %v8271
        %v8281 = vshrl.u32 2102212464, %v8272
        %v8282 = vor.u32 %v8280, %v8281
        %v8283 = vshll.u32 2102212464, %v8271
        %v8284 = vshrl.u32 920167782, %v8272
        %v8285 = vor.u32 %v8283, %v8284
        %v8286 = vshll.u32 920167782, %v8271
        %v8287 = vshrl.u32 1326507024, %v8272
        %v8288 = vor.u32 %v8286, %v8287
        %vm8289 = vcmp.lt.s32.totalorder %v8270, 1
        %vm8290 = vcmp.lt.s32.totalorder %v8270, 2
        %vm8291 = vcmp.lt.s32.totalorder %v8270, 3
        %vm8292 = vcmp.lt.s32.totalorder %v8270, 4
        %v8293 = vsel %vm8289, %v8273, %v8276
        %v8294 = vsel %vm8292, %v8282, 2102212464
        %v8295 = vsel %vm8291, %v8279, %v8294
        %v8296 = vsel %vm8290, %v8293, %v8295
        %v8297 = vsel %vm8289, %v8276, %v8279
        %v8298 = vsel %vm8292, %v8285, 920167782
        %v8299 = vsel %vm8291, %v8282, %v8298
        %v8300 = vsel %vm8290, %v8297, %v8299
        %v8301 = vsel %vm8289, %v8279, %v8282
        %v8302 = vsel %vm8292, %v8288, 1326507024
        %v8303 = vsel %vm8291, %v8285, %v8302
        %v8304 = vsel %vm8290, %v8301, %v8303
        %v8305 = vshll.u32 %v8265, 8
        %v8306 = vand.u32 %v8305, 65535
        %v8307 = vshrl.u32 %v8305, 16
        %v8308 = vand.u32 %v8304, 65535
        %v8309 = vshrl.u32 %v8304, 16
        %v8310 = vmul.u32 %v8306, %v8308
        %v8311 = vmul.u32 %v8306, %v8309
        %v8312 = vmul.u32 %v8307, %v8308
        %v8313 = vmul.u32 %v8307, %v8309
        %v8314 = vshll.u32 %v8311, 16
        %v8315 = vshrl.u32 %v8311, 16
        %v8316 = vshll.u32 %v8312, 16
        %v8317 = vshrl.u32 %v8312, 16
        %vm8318 = vc.u32 %v8310, %v8314
        %v8319 = vsel %vm8318, 1, 0
        %v8320 = vadd.s32 %v8310, %v8314
        %v8321 = vadd.s32 %v8313, %v8319
        %vm8322 = vc.u32 %v8320, %v8316
        %v8323 = vsel %vm8322, 1, 0
        %v8324 = vadd.s32 %v8320, %v8316
        %v8325 = vadd.s32 %v8321, %v8323
        %v8326 = vadd.s32 %v8325, %v8315
        %v8327 = vadd.s32 %v8326, %v8317
        %v8328 = vand.u32 %v8305, 65535
        %v8329 = vshrl.u32 %v8305, 16
        %v8330 = vand.u32 %v8300, 65535
        %v8331 = vshrl.u32 %v8300, 16
        %v8332 = vmul.u32 %v8328, %v8330
        %v8333 = vmul.u32 %v8328, %v8331
        %v8334 = vmul.u32 %v8329, %v8330
        %v8335 = vmul.u32 %v8329, %v8331
        %v8336 = vshll.u32 %v8333, 16
        %v8337 = vshrl.u32 %v8333, 16
        %v8338 = vshll.u32 %v8334, 16
        %v8339 = vshrl.u32 %v8334, 16
        %vm8340 = vc.u32 %v8332, %v8336
        %v8341 = vsel %vm8340, 1, 0
        %v8342 = vadd.s32 %v8332, %v8336
        %v8343 = vadd.s32 %v8335, %v8341
        %vm8344 = vc.u32 %v8342, %v8338
        %v8345 = vsel %vm8344, 1, 0
        %v8346 = vadd.s32 %v8342, %v8338
        %v8347 = vadd.s32 %v8343, %v8345
        %v8348 = vadd.s32 %v8347, %v8337
        %v8349 = vadd.s32 %v8348, %v8339
        %v8350 = vmul.u32 %v8305, %v8296
        %v8351 = vadd.s32 %v8327, %v8346
        %vm8352 = vc.u32 %v8327, %v8346
        %v8353 = vadd.s32 %v8349, 1
        %v8354 = vsel %vm8352, %v8353, %v8349
        %v8355 = vadd.s32 %v8350, %v8354
        %v8356 = vadd.s32 %v8355, 536870912
        %v8357 = vshrl.u32 %v8356, 30
        %v8358 = vshll.u32 %v8357, 30
        %v8359 = vsub.s32 %v8355, %v8358
        %vm8360 = vcmp.lt.s32.totalorder %v8359, 0
        %v8361 = vsub.s32 0, %v8359
        %v8362 = vsel %vm8360, %v8361, %v8359
        %v8363 = vclz %v8362
        %v8364 = vsub.s32 %v8363, 2
        %vm8365 = vcmp.gt.s32.totalorder 0, %v8364
        %v8366 = vsel %vm8365, 0, %v8364
        %v8367 = vsub.s32 32, %v8366
        %v8368 = vshll.u32 %v8359, %v8366
        %v8369 = vshrl.u32 %v8351, %v8367
        %v8370 = vor.u32 %v8368, %v8369
        %v8371 = vsub.s32 4294967266, %v8366
        %v8372 = vadd.s32 %v8371, 127
        %v8373 = vshll.u32 %v8372, 23
        %v8374 = vor.u32 4788187, %v8373
        %v8375 = vand.u32 2147483647, %v8374
        %v8377 = vcvt.s32.f32 %v8370
        %v8378 = vmul.f32 %v8377, %v8375
        %v8379 = vxor.u32 %v8378, 2147483648
        %v8380 = vsel %vm8259, %v8379, %v8378
        %v8381 = vsub.s32 4, %v8357
        %v8382 = vsel %vm8259, %v8381, %v8357
        %v8383 = vsel %vm8258, %v434, %v8380
        %v8384 = vsel %vm8258, 0, %v8382
        %v8385 = vmul.f32 %v8383, %v8383
        %v8386 = vmul.f32 %v8385, -0.001358992
        %v8387 = vadd.f32 %v8386, 0.041655596
        %v8388 = vmul.f32 %v8385, %v8387
        %v8389 = vadd.f32 %v8388, -0.4999988
        %v8390 = vmul.f32 %v8385, %v8389
        %v8391 = vadd.f32 1.0, %v8390
        %v8392 = vmul.f32 %v8383, %v8383
        %v8393 = vmul.f32 %v8392, -0.00019511016
        %v8394 = vadd.f32 %v8393, 0.008332121
        %v8395 = vmul.f32 %v8392, %v8394
        %v8396 = vadd.f32 %v8395, -0.16666654
        %v8397 = vmul.f32 %v8392, %v8396
        %v8398 = vadd.f32 %v8397, 1.0
        %v8399 = vmul.f32 %v8398, %v8383
        %vm8400 = vweird.f32 %v434
        %v8401 = vadd.s32 %v8384, 3
        %v8402 = vand.u32 %v8401, 3
        %vm8403 = vcmp.lt.s32.totalorder %v8402, 2
        %vm8404 = vcmp.eq.s32.totalorder %v8402, 0
        %v8405 = vxor.u32 %v8399, 2147483648
        %v8406 = vsel %vm8404, %v8391, %v8405
        %vm8407 = vcmp.eq.s32.totalorder %v8402, 2
        %v8408 = vxor.u32 %v8391, 2147483648
        %v8409 = vsel %vm8407, %v8408, %v8399
        %v8410 = vsel %vm8403, %v8406, %v8409
        %v8411 = vsel %vm8400, nan, %v8410
        %v8412 = vand.u32 2147483647, %v437
        %vm8413 = vcmp.le.f32.partialorder %v8412, 0.7853982
        %vm8414 = vcmp.lt.s32.totalorder %v437, 0
        %v8415 = vand.u32 %v437, 2139095040
        %v8416 = vshrl.u32 %v8415, 23
        %v8417 = vsub.s32 %v8416, 127
        %v8418 = vand.u32 2147483647, %v437
        %v8419 = vand.u32 %v8418, 8388607
        %v8420 = vor.u32 %v8419, 8388608
        %v8421 = vsub.s32 0, %v8420
        %v8422 = vadd.s32 %v8417, 1
        %vm8423 = vcmp.gt.s32.totalorder %v8422, 0
        %v8424 = vsel %vm8423, %v8422, 0
        %v8425 = vshrl.u32 %v8424, 5
        %v8426 = vand.u32 %v8424, 31
        %v8427 = vsub.s32 32, %v8426
        %v8428 = vshrl.u32 683565275, %v8427
        %v8429 = vshll.u32 683565275, %v8426
        %v8430 = vshrl.u32 2475754826, %v8427
        %v8431 = vor.u32 %v8429, %v8430
        %v8432 = vshll.u32 2475754826, %v8426
        %v8433 = vshrl.u32 2131351028, %v8427
        %v8434 = vor.u32 %v8432, %v8433
        %v8435 = vshll.u32 2131351028, %v8426
        %v8436 = vshrl.u32 2102212464, %v8427
        %v8437 = vor.u32 %v8435, %v8436
        %v8438 = vshll.u32 2102212464, %v8426
        %v8439 = vshrl.u32 920167782, %v8427
        %v8440 = vor.u32 %v8438, %v8439
        %v8441 = vshll.u32 920167782, %v8426
        %v8442 = vshrl.u32 1326507024, %v8427
        %v8443 = vor.u32 %v8441, %v8442
        %vm8444 = vcmp.lt.s32.totalorder %v8425, 1
        %vm8445 = vcmp.lt.s32.totalorder %v8425, 2
        %vm8446 = vcmp.lt.s32.totalorder %v8425, 3
        %vm8447 = vcmp.lt.s32.totalorder %v8425, 4
        %v8448 = vsel %vm8444, %v8428, %v8431
        %v8449 = vsel %vm8447, %v8437, 2102212464
        %v8450 = vsel %vm8446, %v8434, %v8449
        %v8451 = vsel %vm8445, %v8448, %v8450
        %v8452 = vsel %vm8444, %v8431, %v8434
        %v8453 = vsel %vm8447, %v8440, 920167782
        %v8454 = vsel %vm8446, %v8437, %v8453
        %v8455 = vsel %vm8445, %v8452, %v8454
        %v8456 = vsel %vm8444, %v8434, %v8437
        %v8457 = vsel %vm8447, %v8443, 1326507024
        %v8458 = vsel %vm8446, %v8440, %v8457
        %v8459 = vsel %vm8445, %v8456, %v8458
        %v8460 = vshll.u32 %v8420, 8
        %v8461 = vand.u32 %v8460, 65535
        %v8462 = vshrl.u32 %v8460, 16
        %v8463 = vand.u32 %v8459, 65535
        %v8464 = vshrl.u32 %v8459, 16
        %v8465 = vmul.u32 %v8461, %v8463
        %v8466 = vmul.u32 %v8461, %v8464
        %v8467 = vmul.u32 %v8462, %v8463
        %v8468 = vmul.u32 %v8462, %v8464
        %v8469 = vshll.u32 %v8466, 16
        %v8470 = vshrl.u32 %v8466, 16
        %v8471 = vshll.u32 %v8467, 16
        %v8472 = vshrl.u32 %v8467, 16
        %vm8473 = vc.u32 %v8465, %v8469
        %v8474 = vsel %vm8473, 1, 0
        %v8475 = vadd.s32 %v8465, %v8469
        %v8476 = vadd.s32 %v8468, %v8474
        %vm8477 = vc.u32 %v8475, %v8471
        %v8478 = vsel %vm8477, 1, 0
        %v8479 = vadd.s32 %v8475, %v8471
        %v8480 = vadd.s32 %v8476, %v8478
        %v8481 = vadd.s32 %v8480, %v8470
        %v8482 = vadd.s32 %v8481, %v8472
        %v8483 = vand.u32 %v8460, 65535
        %v8484 = vshrl.u32 %v8460, 16
        %v8485 = vand.u32 %v8455, 65535
        %v8486 = vshrl.u32 %v8455, 16
        %v8487 = vmul.u32 %v8483, %v8485
        %v8488 = vmul.u32 %v8483, %v8486
        %v8489 = vmul.u32 %v8484, %v8485
        %v8490 = vmul.u32 %v8484, %v8486
        %v8491 = vshll.u32 %v8488, 16
        %v8492 = vshrl.u32 %v8488, 16
        %v8493 = vshll.u32 %v8489, 16
        %v8494 = vshrl.u32 %v8489, 16
        %vm8495 = vc.u32 %v8487, %v8491
        %v8496 = vsel %vm8495, 1, 0
        %v8497 = vadd.s32 %v8487, %v8491
        %v8498 = vadd.s32 %v8490, %v8496
        %vm8499 = vc.u32 %v8497, %v8493
        %v8500 = vsel %vm8499, 1, 0
        %v8501 = vadd.s32 %v8497, %v8493
        %v8502 = vadd.s32 %v8498, %v8500
        %v8503 = vadd.s32 %v8502, %v8492
        %v8504 = vadd.s32 %v8503, %v8494
        %v8505 = vmul.u32 %v8460, %v8451
        %v8506 = vadd.s32 %v8482, %v8501
        %vm8507 = vc.u32 %v8482, %v8501
        %v8508 = vadd.s32 %v8504, 1
        %v8509 = vsel %vm8507, %v8508, %v8504
        %v8510 = vadd.s32 %v8505, %v8509
        %v8511 = vadd.s32 %v8510, 536870912
        %v8512 = vshrl.u32 %v8511, 30
        %v8513 = vshll.u32 %v8512, 30
        %v8514 = vsub.s32 %v8510, %v8513
        %vm8515 = vcmp.lt.s32.totalorder %v8514, 0
        %v8516 = vsub.s32 0, %v8514
        %v8517 = vsel %vm8515, %v8516, %v8514
        %v8518 = vclz %v8517
        %v8519 = vsub.s32 %v8518, 2
        %vm8520 = vcmp.gt.s32.totalorder 0, %v8519
        %v8521 = vsel %vm8520, 0, %v8519
        %v8522 = vsub.s32 32, %v8521
        %v8523 = vshll.u32 %v8514, %v8521
        %v8524 = vshrl.u32 %v8506, %v8522
        %v8525 = vor.u32 %v8523, %v8524
        %v8526 = vsub.s32 4294967266, %v8521
        %v8527 = vadd.s32 %v8526, 127
        %v8528 = vshll.u32 %v8527, 23
        %v8529 = vor.u32 4788187, %v8528
        %v8530 = vand.u32 2147483647, %v8529
        %v8532 = vcvt.s32.f32 %v8525
        %v8533 = vmul.f32 %v8532, %v8530
        %v8534 = vxor.u32 %v8533, 2147483648
        %v8535 = vsel %vm8414, %v8534, %v8533
        %v8536 = vsub.s32 4, %v8512
        %v8537 = vsel %vm8414, %v8536, %v8512
        %v8538 = vsel %vm8413, %v437, %v8535
        %v8539 = vsel %vm8413, 0, %v8537
        %v8540 = vmul.f32 %v8538, %v8538
        %v8541 = vmul.f32 %v8540, -0.001358992
        %v8542 = vadd.f32 %v8541, 0.041655596
        %v8543 = vmul.f32 %v8540, %v8542
        %v8544 = vadd.f32 %v8543, -0.4999988
        %v8545 = vmul.f32 %v8540, %v8544
        %v8546 = vadd.f32 1.0, %v8545
        %v8547 = vmul.f32 %v8538, %v8538
        %v8548 = vmul.f32 %v8547, -0.00019511016
        %v8549 = vadd.f32 %v8548, 0.008332121
        %v8550 = vmul.f32 %v8547, %v8549
        %v8551 = vadd.f32 %v8550, -0.16666654
        %v8552 = vmul.f32 %v8547, %v8551
        %v8553 = vadd.f32 %v8552, 1.0
        %v8554 = vmul.f32 %v8553, %v8538
        %vm8555 = vweird.f32 %v437
        %v8556 = vadd.s32 %v8539, 3
        %v8557 = vand.u32 %v8556, 3
        %vm8558 = vcmp.lt.s32.totalorder %v8557, 2
        %vm8559 = vcmp.eq.s32.totalorder %v8557, 0
        %v8560 = vxor.u32 %v8554, 2147483648
        %v8561 = vsel %vm8559, %v8546, %v8560
        %vm8562 = vcmp.eq.s32.totalorder %v8557, 2
        %v8563 = vxor.u32 %v8546, 2147483648
        %v8564 = vsel %vm8562, %v8563, %v8554
        %v8565 = vsel %vm8558, %v8561, %v8564
        %v8566 = vsel %vm8555, nan, %v8565
        %v8567 = vand.u32 2147483647, %v440
        %vm8568 = vcmp.le.f32.partialorder %v8567, 0.7853982
        %vm8569 = vcmp.lt.s32.totalorder %v440, 0
        %v8570 = vand.u32 %v440, 2139095040
        %v8571 = vshrl.u32 %v8570, 23
        %v8572 = vsub.s32 %v8571, 127
        %v8573 = vand.u32 2147483647, %v440
        %v8574 = vand.u32 %v8573, 8388607
        %v8575 = vor.u32 %v8574, 8388608
        %v8576 = vsub.s32 0, %v8575
        %v8577 = vadd.s32 %v8572, 1
        %vm8578 = vcmp.gt.s32.totalorder %v8577, 0
        %v8579 = vsel %vm8578, %v8577, 0
        %v8580 = vshrl.u32 %v8579, 5
        %v8581 = vand.u32 %v8579, 31
        %v8582 = vsub.s32 32, %v8581
        %v8583 = vshrl.u32 683565275, %v8582
        %v8584 = vshll.u32 683565275, %v8581
        %v8585 = vshrl.u32 2475754826, %v8582
        %v8586 = vor.u32 %v8584, %v8585
        %v8587 = vshll.u32 2475754826, %v8581
        %v8588 = vshrl.u32 2131351028, %v8582
        %v8589 = vor.u32 %v8587, %v8588
        %v8590 = vshll.u32 2131351028, %v8581
        %v8591 = vshrl.u32 2102212464, %v8582
        %v8592 = vor.u32 %v8590, %v8591
        %v8593 = vshll.u32 2102212464, %v8581
        %v8594 = vshrl.u32 920167782, %v8582
        %v8595 = vor.u32 %v8593, %v8594
        %v8596 = vshll.u32 920167782, %v8581
        %v8597 = vshrl.u32 1326507024, %v8582
        %v8598 = vor.u32 %v8596, %v8597
        %vm8599 = vcmp.lt.s32.totalorder %v8580, 1
        %vm8600 = vcmp.lt.s32.totalorder %v8580, 2
        %vm8601 = vcmp.lt.s32.totalorder %v8580, 3
        %vm8602 = vcmp.lt.s32.totalorder %v8580, 4
        %v8603 = vsel %vm8599, %v8583, %v8586
        %v8604 = vsel %vm8602, %v8592, 2102212464
        %v8605 = vsel %vm8601, %v8589, %v8604
        %v8606 = vsel %vm8600, %v8603, %v8605
        %v8607 = vsel %vm8599, %v8586, %v8589
        %v8608 = vsel %vm8602, %v8595, 920167782
        %v8609 = vsel %vm8601, %v8592, %v8608
        %v8610 = vsel %vm8600, %v8607, %v8609
        %v8611 = vsel %vm8599, %v8589, %v8592
        %v8612 = vsel %vm8602, %v8598, 1326507024
        %v8613 = vsel %vm8601, %v8595, %v8612
        %v8614 = vsel %vm8600, %v8611, %v8613
        %v8615 = vshll.u32 %v8575, 8
        %v8616 = vand.u32 %v8615, 65535
        %v8617 = vshrl.u32 %v8615, 16
        %v8618 = vand.u32 %v8614, 65535
        %v8619 = vshrl.u32 %v8614, 16
        %v8620 = vmul.u32 %v8616, %v8618
        %v8621 = vmul.u32 %v8616, %v8619
        %v8622 = vmul.u32 %v8617, %v8618
        %v8623 = vmul.u32 %v8617, %v8619
        %v8624 = vshll.u32 %v8621, 16
        %v8625 = vshrl.u32 %v8621, 16
        %v8626 = vshll.u32 %v8622, 16
        %v8627 = vshrl.u32 %v8622, 16
        %vm8628 = vc.u32 %v8620, %v8624
        %v8629 = vsel %vm8628, 1, 0
        %v8630 = vadd.s32 %v8620, %v8624
        %v8631 = vadd.s32 %v8623, %v8629
        %vm8632 = vc.u32 %v8630, %v8626
        %v8633 = vsel %vm8632, 1, 0
        %v8634 = vadd.s32 %v8630, %v8626
        %v8635 = vadd.s32 %v8631, %v8633
        %v8636 = vadd.s32 %v8635, %v8625
        %v8637 = vadd.s32 %v8636, %v8627
        %v8638 = vand.u32 %v8615, 65535
        %v8639 = vshrl.u32 %v8615, 16
        %v8640 = vand.u32 %v8610, 65535
        %v8641 = vshrl.u32 %v8610, 16
        %v8642 = vmul.u32 %v8638, %v8640
        %v8643 = vmul.u32 %v8638, %v8641
        %v8644 = vmul.u32 %v8639, %v8640
        %v8645 = vmul.u32 %v8639, %v8641
        %v8646 = vshll.u32 %v8643, 16
        %v8647 = vshrl.u32 %v8643, 16
        %v8648 = vshll.u32 %v8644, 16
        %v8649 = vshrl.u32 %v8644, 16
        %vm8650 = vc.u32 %v8642, %v8646
        %v8651 = vsel %vm8650, 1, 0
        %v8652 = vadd.s32 %v8642, %v8646
        %v8653 = vadd.s32 %v8645, %v8651
        %vm8654 = vc.u32 %v8652, %v8648
        %v8655 = vsel %vm8654, 1, 0
        %v8656 = vadd.s32 %v8652, %v8648
        %v8657 = vadd.s32 %v8653, %v8655
        %v8658 = vadd.s32 %v8657, %v8647
        %v8659 = vadd.s32 %v8658, %v8649
        %v8660 = vmul.u32 %v8615, %v8606
        %v8661 = vadd.s32 %v8637, %v8656
        %vm8662 = vc.u32 %v8637, %v8656
        %v8663 = vadd.s32 %v8659, 1
        %v8664 = vsel %vm8662, %v8663, %v8659
        %v8665 = vadd.s32 %v8660, %v8664
        %v8666 = vadd.s32 %v8665, 536870912
        %v8667 = vshrl.u32 %v8666, 30
        %v8668 = vshll.u32 %v8667, 30
        %v8669 = vsub.s32 %v8665, %v8668
        %vm8670 = vcmp.lt.s32.totalorder %v8669, 0
        %v8671 = vsub.s32 0, %v8669
        %v8672 = vsel %vm8670, %v8671, %v8669
        %v8673 = vclz %v8672
        %v8674 = vsub.s32 %v8673, 2
        %vm8675 = vcmp.gt.s32.totalorder 0, %v8674
        %v8676 = vsel %vm8675, 0, %v8674
        %v8677 = vsub.s32 32, %v8676
        %v8678 = vshll.u32 %v8669, %v8676
        %v8679 = vshrl.u32 %v8661, %v8677
        %v8680 = vor.u32 %v8678, %v8679
        %v8681 = vsub.s32 4294967266, %v8676
        %v8682 = vadd.s32 %v8681, 127
        %v8683 = vshll.u32 %v8682, 23
        %v8684 = vor.u32 4788187, %v8683
        %v8685 = vand.u32 2147483647, %v8684
        %v8687 = vcvt.s32.f32 %v8680
        %v8688 = vmul.f32 %v8687, %v8685
        %v8689 = vxor.u32 %v8688, 2147483648
        %v8690 = vsel %vm8569, %v8689, %v8688
        %v8691 = vsub.s32 4, %v8667
        %v8692 = vsel %vm8569, %v8691, %v8667
        %v8693 = vsel %vm8568, %v440, %v8690
        %v8694 = vsel %vm8568, 0, %v8692
        %v8695 = vmul.f32 %v8693, %v8693
        %v8696 = vmul.f32 %v8695, -0.001358992
        %v8697 = vadd.f32 %v8696, 0.041655596
        %v8698 = vmul.f32 %v8695, %v8697
        %v8699 = vadd.f32 %v8698, -0.4999988
        %v8700 = vmul.f32 %v8695, %v8699
        %v8701 = vadd.f32 1.0, %v8700
        %v8702 = vmul.f32 %v8693, %v8693
        %v8703 = vmul.f32 %v8702, -0.00019511016
        %v8704 = vadd.f32 %v8703, 0.008332121
        %v8705 = vmul.f32 %v8702, %v8704
        %v8706 = vadd.f32 %v8705, -0.16666654
        %v8707 = vmul.f32 %v8702, %v8706
        %v8708 = vadd.f32 %v8707, 1.0
        %v8709 = vmul.f32 %v8708, %v8693
        %vm8710 = vweird.f32 %v440
        %v8711 = vadd.s32 %v8694, 3
        %v8712 = vand.u32 %v8711, 3
        %vm8713 = vcmp.lt.s32.totalorder %v8712, 2
        %vm8714 = vcmp.eq.s32.totalorder %v8712, 0
        %v8715 = vxor.u32 %v8709, 2147483648
        %v8716 = vsel %vm8714, %v8701, %v8715
        %vm8717 = vcmp.eq.s32.totalorder %v8712, 2
        %v8718 = vxor.u32 %v8701, 2147483648
        %v8719 = vsel %vm8717, %v8718, %v8709
        %v8720 = vsel %vm8713, %v8716, %v8719
        %v8721 = vsel %vm8710, nan, %v8720
        %v8722 = vand.u32 2147483647, %v443
        %vm8723 = vcmp.le.f32.partialorder %v8722, 0.7853982
        %vm8724 = vcmp.lt.s32.totalorder %v443, 0
        %v8725 = vand.u32 %v443, 2139095040
        %v8726 = vshrl.u32 %v8725, 23
        %v8727 = vsub.s32 %v8726, 127
        %v8728 = vand.u32 2147483647, %v443
        %v8729 = vand.u32 %v8728, 8388607
        %v8730 = vor.u32 %v8729, 8388608
        %v8731 = vsub.s32 0, %v8730
        %v8732 = vadd.s32 %v8727, 1
        %vm8733 = vcmp.gt.s32.totalorder %v8732, 0
        %v8734 = vsel %vm8733, %v8732, 0
        %v8735 = vshrl.u32 %v8734, 5
        %v8736 = vand.u32 %v8734, 31
        %v8737 = vsub.s32 32, %v8736
        %v8738 = vshrl.u32 683565275, %v8737
        %v8739 = vshll.u32 683565275, %v8736
        %v8740 = vshrl.u32 2475754826, %v8737
        %v8741 = vor.u32 %v8739, %v8740
        %v8742 = vshll.u32 2475754826, %v8736
        %v8743 = vshrl.u32 2131351028, %v8737
        %v8744 = vor.u32 %v8742, %v8743
        %v8745 = vshll.u32 2131351028, %v8736
        %v8746 = vshrl.u32 2102212464, %v8737
        %v8747 = vor.u32 %v8745, %v8746
        %v8748 = vshll.u32 2102212464, %v8736
        %v8749 = vshrl.u32 920167782, %v8737
        %v8750 = vor.u32 %v8748, %v8749
        %v8751 = vshll.u32 920167782, %v8736
        %v8752 = vshrl.u32 1326507024, %v8737
        %v8753 = vor.u32 %v8751, %v8752
        %vm8754 = vcmp.lt.s32.totalorder %v8735, 1
        %vm8755 = vcmp.lt.s32.totalorder %v8735, 2
        %vm8756 = vcmp.lt.s32.totalorder %v8735, 3
        %vm8757 = vcmp.lt.s32.totalorder %v8735, 4
        %v8758 = vsel %vm8754, %v8738, %v8741
        %v8759 = vsel %vm8757, %v8747, 2102212464
        %v8760 = vsel %vm8756, %v8744, %v8759
        %v8761 = vsel %vm8755, %v8758, %v8760
        %v8762 = vsel %vm8754, %v8741, %v8744
        %v8763 = vsel %vm8757, %v8750, 920167782
        %v8764 = vsel %vm8756, %v8747, %v8763
        %v8765 = vsel %vm8755, %v8762, %v8764
        %v8766 = vsel %vm8754, %v8744, %v8747
        %v8767 = vsel %vm8757, %v8753, 1326507024
        %v8768 = vsel %vm8756, %v8750, %v8767
        %v8769 = vsel %vm8755, %v8766, %v8768
        %v8770 = vshll.u32 %v8730, 8
        %v8771 = vand.u32 %v8770, 65535
        %v8772 = vshrl.u32 %v8770, 16
        %v8773 = vand.u32 %v8769, 65535
        %v8774 = vshrl.u32 %v8769, 16
        %v8775 = vmul.u32 %v8771, %v8773
        %v8776 = vmul.u32 %v8771, %v8774
        %v8777 = vmul.u32 %v8772, %v8773
        %v8778 = vmul.u32 %v8772, %v8774
        %v8779 = vshll.u32 %v8776, 16
        %v8780 = vshrl.u32 %v8776, 16
        %v8781 = vshll.u32 %v8777, 16
        %v8782 = vshrl.u32 %v8777, 16
        %vm8783 = vc.u32 %v8775, %v8779
        %v8784 = vsel %vm8783, 1, 0
        %v8785 = vadd.s32 %v8775, %v8779
        %v8786 = vadd.s32 %v8778, %v8784
        %vm8787 = vc.u32 %v8785, %v8781
        %v8788 = vsel %vm8787, 1, 0
        %v8789 = vadd.s32 %v8785, %v8781
        %v8790 = vadd.s32 %v8786, %v8788
        %v8791 = vadd.s32 %v8790, %v8780
        %v8792 = vadd.s32 %v8791, %v8782
        %v8793 = vand.u32 %v8770, 65535
        %v8794 = vshrl.u32 %v8770, 16
        %v8795 = vand.u32 %v8765, 65535
        %v8796 = vshrl.u32 %v8765, 16
        %v8797 = vmul.u32 %v8793, %v8795
        %v8798 = vmul.u32 %v8793, %v8796
        %v8799 = vmul.u32 %v8794, %v8795
        %v8800 = vmul.u32 %v8794, %v8796
        %v8801 = vshll.u32 %v8798, 16
        %v8802 = vshrl.u32 %v8798, 16
        %v8803 = vshll.u32 %v8799, 16
        %v8804 = vshrl.u32 %v8799, 16
        %vm8805 = vc.u32 %v8797, %v8801
        %v8806 = vsel %vm8805, 1, 0
        %v8807 = vadd.s32 %v8797, %v8801
        %v8808 = vadd.s32 %v8800, %v8806
        %vm8809 = vc.u32 %v8807, %v8803
        %v8810 = vsel %vm8809, 1, 0
        %v8811 = vadd.s32 %v8807, %v8803
        %v8812 = vadd.s32 %v8808, %v8810
        %v8813 = vadd.s32 %v8812, %v8802
        %v8814 = vadd.s32 %v8813, %v8804
        %v8815 = vmul.u32 %v8770, %v8761
        %v8816 = vadd.s32 %v8792, %v8811
        %vm8817 = vc.u32 %v8792, %v8811
        %v8818 = vadd.s32 %v8814, 1
        %v8819 = vsel %vm8817, %v8818, %v8814
        %v8820 = vadd.s32 %v8815, %v8819
        %v8821 = vadd.s32 %v8820, 536870912
        %v8822 = vshrl.u32 %v8821, 30
        %v8823 = vshll.u32 %v8822, 30
        %v8824 = vsub.s32 %v8820, %v8823
        %vm8825 = vcmp.lt.s32.totalorder %v8824, 0
        %v8826 = vsub.s32 0, %v8824
        %v8827 = vsel %vm8825, %v8826, %v8824
        %v8828 = vclz %v8827
        %v8829 = vsub.s32 %v8828, 2
        %vm8830 = vcmp.gt.s32.totalorder 0, %v8829
        %v8831 = vsel %vm8830, 0, %v8829
        %v8832 = vsub.s32 32, %v8831
        %v8833 = vshll.u32 %v8824, %v8831
        %v8834 = vshrl.u32 %v8816, %v8832
        %v8835 = vor.u32 %v8833, %v8834
        %v8836 = vsub.s32 4294967266, %v8831
        %v8837 = vadd.s32 %v8836, 127
        %v8838 = vshll.u32 %v8837, 23
        %v8839 = vor.u32 4788187, %v8838
        %v8840 = vand.u32 2147483647, %v8839
        %v8842 = vcvt.s32.f32 %v8835
        %v8843 = vmul.f32 %v8842, %v8840
        %v8844 = vxor.u32 %v8843, 2147483648
        %v8845 = vsel %vm8724, %v8844, %v8843
        %v8846 = vsub.s32 4, %v8822
        %v8847 = vsel %vm8724, %v8846, %v8822
        %v8848 = vsel %vm8723, %v443, %v8845
        %v8849 = vsel %vm8723, 0, %v8847
        %v8850 = vmul.f32 %v8848, %v8848
        %v8851 = vmul.f32 %v8850, -0.001358992
        %v8852 = vadd.f32 %v8851, 0.041655596
        %v8853 = vmul.f32 %v8850, %v8852
        %v8854 = vadd.f32 %v8853, -0.4999988
        %v8855 = vmul.f32 %v8850, %v8854
        %v8856 = vadd.f32 1.0, %v8855
        %v8857 = vmul.f32 %v8848, %v8848
        %v8858 = vmul.f32 %v8857, -0.00019511016
        %v8859 = vadd.f32 %v8858, 0.008332121
        %v8860 = vmul.f32 %v8857, %v8859
        %v8861 = vadd.f32 %v8860, -0.16666654
        %v8862 = vmul.f32 %v8857, %v8861
        %v8863 = vadd.f32 %v8862, 1.0
        %v8864 = vmul.f32 %v8863, %v8848
        %vm8865 = vweird.f32 %v443
        %v8866 = vadd.s32 %v8849, 3
        %v8867 = vand.u32 %v8866, 3
        %vm8868 = vcmp.lt.s32.totalorder %v8867, 2
        %vm8869 = vcmp.eq.s32.totalorder %v8867, 0
        %v8870 = vxor.u32 %v8864, 2147483648
        %v8871 = vsel %vm8869, %v8856, %v8870
        %vm8872 = vcmp.eq.s32.totalorder %v8867, 2
        %v8873 = vxor.u32 %v8856, 2147483648
        %v8874 = vsel %vm8872, %v8873, %v8864
        %v8875 = vsel %vm8868, %v8871, %v8874
        %v8876 = vsel %vm8865, nan, %v8875
        %v8877 = vand.u32 2147483647, %v446
        %vm8878 = vcmp.le.f32.partialorder %v8877, 0.7853982
        %vm8879 = vcmp.lt.s32.totalorder %v446, 0
        %v8880 = vand.u32 %v446, 2139095040
        %v8881 = vshrl.u32 %v8880, 23
        %v8882 = vsub.s32 %v8881, 127
        %v8883 = vand.u32 2147483647, %v446
        %v8884 = vand.u32 %v8883, 8388607
        %v8885 = vor.u32 %v8884, 8388608
        %v8886 = vsub.s32 0, %v8885
        %v8887 = vadd.s32 %v8882, 1
        %vm8888 = vcmp.gt.s32.totalorder %v8887, 0
        %v8889 = vsel %vm8888, %v8887, 0
        %v8890 = vshrl.u32 %v8889, 5
        %v8891 = vand.u32 %v8889, 31
        %v8892 = vsub.s32 32, %v8891
        %v8893 = vshrl.u32 683565275, %v8892
        %v8894 = vshll.u32 683565275, %v8891
        %v8895 = vshrl.u32 2475754826, %v8892
        %v8896 = vor.u32 %v8894, %v8895
        %v8897 = vshll.u32 2475754826, %v8891
        %v8898 = vshrl.u32 2131351028, %v8892
        %v8899 = vor.u32 %v8897, %v8898
        %v8900 = vshll.u32 2131351028, %v8891
        %v8901 = vshrl.u32 2102212464, %v8892
        %v8902 = vor.u32 %v8900, %v8901
        %v8903 = vshll.u32 2102212464, %v8891
        %v8904 = vshrl.u32 920167782, %v8892
        %v8905 = vor.u32 %v8903, %v8904
        %v8906 = vshll.u32 920167782, %v8891
        %v8907 = vshrl.u32 1326507024, %v8892
        %v8908 = vor.u32 %v8906, %v8907
        %vm8909 = vcmp.lt.s32.totalorder %v8890, 1
        %vm8910 = vcmp.lt.s32.totalorder %v8890, 2
        %vm8911 = vcmp.lt.s32.totalorder %v8890, 3
        %vm8912 = vcmp.lt.s32.totalorder %v8890, 4
        %v8913 = vsel %vm8909, %v8893, %v8896
        %v8914 = vsel %vm8912, %v8902, 2102212464
        %v8915 = vsel %vm8911, %v8899, %v8914
        %v8916 = vsel %vm8910, %v8913, %v8915
        %v8917 = vsel %vm8909, %v8896, %v8899
        %v8918 = vsel %vm8912, %v8905, 920167782
        %v8919 = vsel %vm8911, %v8902, %v8918
        %v8920 = vsel %vm8910, %v8917, %v8919
        %v8921 = vsel %vm8909, %v8899, %v8902
        %v8922 = vsel %vm8912, %v8908, 1326507024
        %v8923 = vsel %vm8911, %v8905, %v8922
        %v8924 = vsel %vm8910, %v8921, %v8923
        %v8925 = vshll.u32 %v8885, 8
        %v8926 = vand.u32 %v8925, 65535
        %v8927 = vshrl.u32 %v8925, 16
        %v8928 = vand.u32 %v8924, 65535
        %v8929 = vshrl.u32 %v8924, 16
        %v8930 = vmul.u32 %v8926, %v8928
        %v8931 = vmul.u32 %v8926, %v8929
        %v8932 = vmul.u32 %v8927, %v8928
        %v8933 = vmul.u32 %v8927, %v8929
        %v8934 = vshll.u32 %v8931, 16
        %v8935 = vshrl.u32 %v8931, 16
        %v8936 = vshll.u32 %v8932, 16
        %v8937 = vshrl.u32 %v8932, 16
        %vm8938 = vc.u32 %v8930, %v8934
        %v8939 = vsel %vm8938, 1, 0
        %v8940 = vadd.s32 %v8930, %v8934
        %v8941 = vadd.s32 %v8933, %v8939
        %vm8942 = vc.u32 %v8940, %v8936
        %v8943 = vsel %vm8942, 1, 0
        %v8944 = vadd.s32 %v8940, %v8936
        %v8945 = vadd.s32 %v8941, %v8943
        %v8946 = vadd.s32 %v8945, %v8935
        %v8947 = vadd.s32 %v8946, %v8937
        %v8948 = vand.u32 %v8925, 65535
        %v8949 = vshrl.u32 %v8925, 16
        %v8950 = vand.u32 %v8920, 65535
        %v8951 = vshrl.u32 %v8920, 16
        %v8952 = vmul.u32 %v8948, %v8950
        %v8953 = vmul.u32 %v8948, %v8951
        %v8954 = vmul.u32 %v8949, %v8950
        %v8955 = vmul.u32 %v8949, %v8951
        %v8956 = vshll.u32 %v8953, 16
        %v8957 = vshrl.u32 %v8953, 16
        %v8958 = vshll.u32 %v8954, 16
        %v8959 = vshrl.u32 %v8954, 16
        %vm8960 = vc.u32 %v8952, %v8956
        %v8961 = vsel %vm8960, 1, 0
        %v8962 = vadd.s32 %v8952, %v8956
        %v8963 = vadd.s32 %v8955, %v8961
        %vm8964 = vc.u32 %v8962, %v8958
        %v8965 = vsel %vm8964, 1, 0
        %v8966 = vadd.s32 %v8962, %v8958
        %v8967 = vadd.s32 %v8963, %v8965
        %v8968 = vadd.s32 %v8967, %v8957
        %v8969 = vadd.s32 %v8968, %v8959
        %v8970 = vmul.u32 %v8925, %v8916
        %v8971 = vadd.s32 %v8947, %v8966
        %vm8972 = vc.u32 %v8947, %v8966
        %v8973 = vadd.s32 %v8969, 1
        %v8974 = vsel %vm8972, %v8973, %v8969
        %v8975 = vadd.s32 %v8970, %v8974
        %v8976 = vadd.s32 %v8975, 536870912
        %v8977 = vshrl.u32 %v8976, 30
        %v8978 = vshll.u32 %v8977, 30
        %v8979 = vsub.s32 %v8975, %v8978
        %vm8980 = vcmp.lt.s32.totalorder %v8979, 0
        %v8981 = vsub.s32 0, %v8979
        %v8982 = vsel %vm8980, %v8981, %v8979
        %v8983 = vclz %v8982
        %v8984 = vsub.s32 %v8983, 2
        %vm8985 = vcmp.gt.s32.totalorder 0, %v8984
        %v8986 = vsel %vm8985, 0, %v8984
        %v8987 = vsub.s32 32, %v8986
        %v8988 = vshll.u32 %v8979, %v8986
        %v8989 = vshrl.u32 %v8971, %v8987
        %v8990 = vor.u32 %v8988, %v8989
        %v8991 = vsub.s32 4294967266, %v8986
        %v8992 = vadd.s32 %v8991, 127
        %v8993 = vshll.u32 %v8992, 23
        %v8994 = vor.u32 4788187, %v8993
        %v8995 = vand.u32 2147483647, %v8994
        %v8997 = vcvt.s32.f32 %v8990
        %v8998 = vmul.f32 %v8997, %v8995
        %v8999 = vxor.u32 %v8998, 2147483648
        %v9000 = vsel %vm8879, %v8999, %v8998
        %v9001 = vsub.s32 4, %v8977
        %v9002 = vsel %vm8879, %v9001, %v8977
        %v9003 = vsel %vm8878, %v446, %v9000
        %v9004 = vsel %vm8878, 0, %v9002
        %v9005 = vmul.f32 %v9003, %v9003
        %v9006 = vmul.f32 %v9005, -0.001358992
        %v9007 = vadd.f32 %v9006, 0.041655596
        %v9008 = vmul.f32 %v9005, %v9007
        %v9009 = vadd.f32 %v9008, -0.4999988
        %v9010 = vmul.f32 %v9005, %v9009
        %v9011 = vadd.f32 1.0, %v9010
        %v9012 = vmul.f32 %v9003, %v9003
        %v9013 = vmul.f32 %v9012, -0.00019511016
        %v9014 = vadd.f32 %v9013, 0.008332121
        %v9015 = vmul.f32 %v9012, %v9014
        %v9016 = vadd.f32 %v9015, -0.16666654
        %v9017 = vmul.f32 %v9012, %v9016
        %v9018 = vadd.f32 %v9017, 1.0
        %v9019 = vmul.f32 %v9018, %v9003
        %vm9020 = vweird.f32 %v446
        %v9021 = vadd.s32 %v9004, 3
        %v9022 = vand.u32 %v9021, 3
        %vm9023 = vcmp.lt.s32.totalorder %v9022, 2
        %vm9024 = vcmp.eq.s32.totalorder %v9022, 0
        %v9025 = vxor.u32 %v9019, 2147483648
        %v9026 = vsel %vm9024, %v9011, %v9025
        %vm9027 = vcmp.eq.s32.totalorder %v9022, 2
        %v9028 = vxor.u32 %v9011, 2147483648
        %v9029 = vsel %vm9027, %v9028, %v9019
        %v9030 = vsel %vm9023, %v9026, %v9029
        %v9031 = vsel %vm9020, nan, %v9030
        %v9032 = vand.u32 2147483647, %v449
        %vm9033 = vcmp.le.f32.partialorder %v9032, 0.7853982
        %vm9034 = vcmp.lt.s32.totalorder %v449, 0
        %v9035 = vand.u32 %v449, 2139095040
        %v9036 = vshrl.u32 %v9035, 23
        %v9037 = vsub.s32 %v9036, 127
        %v9038 = vand.u32 2147483647, %v449
        %v9039 = vand.u32 %v9038, 8388607
        %v9040 = vor.u32 %v9039, 8388608
        %v9041 = vsub.s32 0, %v9040
        %v9042 = vadd.s32 %v9037, 1
        %vm9043 = vcmp.gt.s32.totalorder %v9042, 0
        %v9044 = vsel %vm9043, %v9042, 0
        %v9045 = vshrl.u32 %v9044, 5
        %v9046 = vand.u32 %v9044, 31
        %v9047 = vsub.s32 32, %v9046
        %v9048 = vshrl.u32 683565275, %v9047
        %v9049 = vshll.u32 683565275, %v9046
        %v9050 = vshrl.u32 2475754826, %v9047
        %v9051 = vor.u32 %v9049, %v9050
        %v9052 = vshll.u32 2475754826, %v9046
        %v9053 = vshrl.u32 2131351028, %v9047
        %v9054 = vor.u32 %v9052, %v9053
        %v9055 = vshll.u32 2131351028, %v9046
        %v9056 = vshrl.u32 2102212464, %v9047
        %v9057 = vor.u32 %v9055, %v9056
        %v9058 = vshll.u32 2102212464, %v9046
        %v9059 = vshrl.u32 920167782, %v9047
        %v9060 = vor.u32 %v9058, %v9059
        %v9061 = vshll.u32 920167782, %v9046
        %v9062 = vshrl.u32 1326507024, %v9047
        %v9063 = vor.u32 %v9061, %v9062
        %vm9064 = vcmp.lt.s32.totalorder %v9045, 1
        %vm9065 = vcmp.lt.s32.totalorder %v9045, 2
        %vm9066 = vcmp.lt.s32.totalorder %v9045, 3
        %vm9067 = vcmp.lt.s32.totalorder %v9045, 4
        %v9068 = vsel %vm9064, %v9048, %v9051
        %v9069 = vsel %vm9067, %v9057, 2102212464
        %v9070 = vsel %vm9066, %v9054, %v9069
        %v9071 = vsel %vm9065, %v9068, %v9070
        %v9072 = vsel %vm9064, %v9051, %v9054
        %v9073 = vsel %vm9067, %v9060, 920167782
        %v9074 = vsel %vm9066, %v9057, %v9073
        %v9075 = vsel %vm9065, %v9072, %v9074
        %v9076 = vsel %vm9064, %v9054, %v9057
        %v9077 = vsel %vm9067, %v9063, 1326507024
        %v9078 = vsel %vm9066, %v9060, %v9077
        %v9079 = vsel %vm9065, %v9076, %v9078
        %v9080 = vshll.u32 %v9040, 8
        %v9081 = vand.u32 %v9080, 65535
        %v9082 = vshrl.u32 %v9080, 16
        %v9083 = vand.u32 %v9079, 65535
        %v9084 = vshrl.u32 %v9079, 16
        %v9085 = vmul.u32 %v9081, %v9083
        %v9086 = vmul.u32 %v9081, %v9084
        %v9087 = vmul.u32 %v9082, %v9083
        %v9088 = vmul.u32 %v9082, %v9084
        %v9089 = vshll.u32 %v9086, 16
        %v9090 = vshrl.u32 %v9086, 16
        %v9091 = vshll.u32 %v9087, 16
        %v9092 = vshrl.u32 %v9087, 16
        %vm9093 = vc.u32 %v9085, %v9089
        %v9094 = vsel %vm9093, 1, 0
        %v9095 = vadd.s32 %v9085, %v9089
        %v9096 = vadd.s32 %v9088, %v9094
        %vm9097 = vc.u32 %v9095, %v9091
        %v9098 = vsel %vm9097, 1, 0
        %v9099 = vadd.s32 %v9095, %v9091
        %v9100 = vadd.s32 %v9096, %v9098
        %v9101 = vadd.s32 %v9100, %v9090
        %v9102 = vadd.s32 %v9101, %v9092
        %v9103 = vand.u32 %v9080, 65535
        %v9104 = vshrl.u32 %v9080, 16
        %v9105 = vand.u32 %v9075, 65535
        %v9106 = vshrl.u32 %v9075, 16
        %v9107 = vmul.u32 %v9103, %v9105
        %v9108 = vmul.u32 %v9103, %v9106
        %v9109 = vmul.u32 %v9104, %v9105
        %v9110 = vmul.u32 %v9104, %v9106
        %v9111 = vshll.u32 %v9108, 16
        %v9112 = vshrl.u32 %v9108, 16
        %v9113 = vshll.u32 %v9109, 16
        %v9114 = vshrl.u32 %v9109, 16
        %vm9115 = vc.u32 %v9107, %v9111
        %v9116 = vsel %vm9115, 1, 0
        %v9117 = vadd.s32 %v9107, %v9111
        %v9118 = vadd.s32 %v9110, %v9116
        %vm9119 = vc.u32 %v9117, %v9113
        %v9120 = vsel %vm9119, 1, 0
        %v9121 = vadd.s32 %v9117, %v9113
        %v9122 = vadd.s32 %v9118, %v9120
        %v9123 = vadd.s32 %v9122, %v9112
        %v9124 = vadd.s32 %v9123, %v9114
        %v9125 = vmul.u32 %v9080, %v9071
        %v9126 = vadd.s32 %v9102, %v9121
        %vm9127 = vc.u32 %v9102, %v9121
        %v9128 = vadd.s32 %v9124, 1
        %v9129 = vsel %vm9127, %v9128, %v9124
        %v9130 = vadd.s32 %v9125, %v9129
        %v9131 = vadd.s32 %v9130, 536870912
        %v9132 = vshrl.u32 %v9131, 30
        %v9133 = vshll.u32 %v9132, 30
        %v9134 = vsub.s32 %v9130, %v9133
        %vm9135 = vcmp.lt.s32.totalorder %v9134, 0
        %v9136 = vsub.s32 0, %v9134
        %v9137 = vsel %vm9135, %v9136, %v9134
        %v9138 = vclz %v9137
        %v9139 = vsub.s32 %v9138, 2
        %vm9140 = vcmp.gt.s32.totalorder 0, %v9139
        %v9141 = vsel %vm9140, 0, %v9139
        %v9142 = vsub.s32 32, %v9141
        %v9143 = vshll.u32 %v9134, %v9141
        %v9144 = vshrl.u32 %v9126, %v9142
        %v9145 = vor.u32 %v9143, %v9144
        %v9146 = vsub.s32 4294967266, %v9141
        %v9147 = vadd.s32 %v9146, 127
        %v9148 = vshll.u32 %v9147, 23
        %v9149 = vor.u32 4788187, %v9148
        %v9150 = vand.u32 2147483647, %v9149
        %v9152 = vcvt.s32.f32 %v9145
        %v9153 = vmul.f32 %v9152, %v9150
        %v9154 = vxor.u32 %v9153, 2147483648
        %v9155 = vsel %vm9034, %v9154, %v9153
        %v9156 = vsub.s32 4, %v9132
        %v9157 = vsel %vm9034, %v9156, %v9132
        %v9158 = vsel %vm9033, %v449, %v9155
        %v9159 = vsel %vm9033, 0, %v9157
        %v9160 = vmul.f32 %v9158, %v9158
        %v9161 = vmul.f32 %v9160, -0.001358992
        %v9162 = vadd.f32 %v9161, 0.041655596
        %v9163 = vmul.f32 %v9160, %v9162
        %v9164 = vadd.f32 %v9163, -0.4999988
        %v9165 = vmul.f32 %v9160, %v9164
        %v9166 = vadd.f32 1.0, %v9165
        %v9167 = vmul.f32 %v9158, %v9158
        %v9168 = vmul.f32 %v9167, -0.00019511016
        %v9169 = vadd.f32 %v9168, 0.008332121
        %v9170 = vmul.f32 %v9167, %v9169
        %v9171 = vadd.f32 %v9170, -0.16666654
        %v9172 = vmul.f32 %v9167, %v9171
        %v9173 = vadd.f32 %v9172, 1.0
        %v9174 = vmul.f32 %v9173, %v9158
        %vm9175 = vweird.f32 %v449
        %v9176 = vadd.s32 %v9159, 3
        %v9177 = vand.u32 %v9176, 3
        %vm9178 = vcmp.lt.s32.totalorder %v9177, 2
        %vm9179 = vcmp.eq.s32.totalorder %v9177, 0
        %v9180 = vxor.u32 %v9174, 2147483648
        %v9181 = vsel %vm9179, %v9166, %v9180
        %vm9182 = vcmp.eq.s32.totalorder %v9177, 2
        %v9183 = vxor.u32 %v9166, 2147483648
        %v9184 = vsel %vm9182, %v9183, %v9174
        %v9185 = vsel %vm9178, %v9181, %v9184
        %v9186 = vsel %vm9175, nan, %v9185
        %v9187 = vand.u32 2147483647, %v452
        %vm9188 = vcmp.le.f32.partialorder %v9187, 0.7853982
        %vm9189 = vcmp.lt.s32.totalorder %v452, 0
        %v9190 = vand.u32 %v452, 2139095040
        %v9191 = vshrl.u32 %v9190, 23
        %v9192 = vsub.s32 %v9191, 127
        %v9193 = vand.u32 2147483647, %v452
        %v9194 = vand.u32 %v9193, 8388607
        %v9195 = vor.u32 %v9194, 8388608
        %v9196 = vsub.s32 0, %v9195
        %v9197 = vadd.s32 %v9192, 1
        %vm9198 = vcmp.gt.s32.totalorder %v9197, 0
        %v9199 = vsel %vm9198, %v9197, 0
        %v9200 = vshrl.u32 %v9199, 5
        %v9201 = vand.u32 %v9199, 31
        %v9202 = vsub.s32 32, %v9201
        %v9203 = vshrl.u32 683565275, %v9202
        %v9204 = vshll.u32 683565275, %v9201
        %v9205 = vshrl.u32 2475754826, %v9202
        %v9206 = vor.u32 %v9204, %v9205
        %v9207 = vshll.u32 2475754826, %v9201
        %v9208 = vshrl.u32 2131351028, %v9202
        %v9209 = vor.u32 %v9207, %v9208
        %v9210 = vshll.u32 2131351028, %v9201
        %v9211 = vshrl.u32 2102212464, %v9202
        %v9212 = vor.u32 %v9210, %v9211
        %v9213 = vshll.u32 2102212464, %v9201
        %v9214 = vshrl.u32 920167782, %v9202
        %v9215 = vor.u32 %v9213, %v9214
        %v9216 = vshll.u32 920167782, %v9201
        %v9217 = vshrl.u32 1326507024, %v9202
        %v9218 = vor.u32 %v9216, %v9217
        %vm9219 = vcmp.lt.s32.totalorder %v9200, 1
        %vm9220 = vcmp.lt.s32.totalorder %v9200, 2
        %vm9221 = vcmp.lt.s32.totalorder %v9200, 3
        %vm9222 = vcmp.lt.s32.totalorder %v9200, 4
        %v9223 = vsel %vm9219, %v9203, %v9206
        %v9224 = vsel %vm9222, %v9212, 2102212464
        %v9225 = vsel %vm9221, %v9209, %v9224
        %v9226 = vsel %vm9220, %v9223, %v9225
        %v9227 = vsel %vm9219, %v9206, %v9209
        %v9228 = vsel %vm9222, %v9215, 920167782
        %v9229 = vsel %vm9221, %v9212, %v9228
        %v9230 = vsel %vm9220, %v9227, %v9229
        %v9231 = vsel %vm9219, %v9209, %v9212
        %v9232 = vsel %vm9222, %v9218, 1326507024
        %v9233 = vsel %vm9221, %v9215, %v9232
        %v9234 = vsel %vm9220, %v9231, %v9233
        %v9235 = vshll.u32 %v9195, 8
        %v9236 = vand.u32 %v9235, 65535
        %v9237 = vshrl.u32 %v9235, 16
        %v9238 = vand.u32 %v9234, 65535
        %v9239 = vshrl.u32 %v9234, 16
        %v9240 = vmul.u32 %v9236, %v9238
        %v9241 = vmul.u32 %v9236, %v9239
        %v9242 = vmul.u32 %v9237, %v9238
        %v9243 = vmul.u32 %v9237, %v9239
        %v9244 = vshll.u32 %v9241, 16
        %v9245 = vshrl.u32 %v9241, 16
        %v9246 = vshll.u32 %v9242, 16
        %v9247 = vshrl.u32 %v9242, 16
        %vm9248 = vc.u32 %v9240, %v9244
        %v9249 = vsel %vm9248, 1, 0
        %v9250 = vadd.s32 %v9240, %v9244
        %v9251 = vadd.s32 %v9243, %v9249
        %vm9252 = vc.u32 %v9250, %v9246
        %v9253 = vsel %vm9252, 1, 0
        %v9254 = vadd.s32 %v9250, %v9246
        %v9255 = vadd.s32 %v9251, %v9253
        %v9256 = vadd.s32 %v9255, %v9245
        %v9257 = vadd.s32 %v9256, %v9247
        %v9258 = vand.u32 %v9235, 65535
        %v9259 = vshrl.u32 %v9235, 16
        %v9260 = vand.u32 %v9230, 65535
        %v9261 = vshrl.u32 %v9230, 16
        %v9262 = vmul.u32 %v9258, %v9260
        %v9263 = vmul.u32 %v9258, %v9261
        %v9264 = vmul.u32 %v9259, %v9260
        %v9265 = vmul.u32 %v9259, %v9261
        %v9266 = vshll.u32 %v9263, 16
        %v9267 = vshrl.u32 %v9263, 16
        %v9268 = vshll.u32 %v9264, 16
        %v9269 = vshrl.u32 %v9264, 16
        %vm9270 = vc.u32 %v9262, %v9266
        %v9271 = vsel %vm9270, 1, 0
        %v9272 = vadd.s32 %v9262, %v9266
        %v9273 = vadd.s32 %v9265, %v9271
        %vm9274 = vc.u32 %v9272, %v9268
        %v9275 = vsel %vm9274, 1, 0
        %v9276 = vadd.s32 %v9272, %v9268
        %v9277 = vadd.s32 %v9273, %v9275
        %v9278 = vadd.s32 %v9277, %v9267
        %v9279 = vadd.s32 %v9278, %v9269
        %v9280 = vmul.u32 %v9235, %v9226
        %v9281 = vadd.s32 %v9257, %v9276
        %vm9282 = vc.u32 %v9257, %v9276
        %v9283 = vadd.s32 %v9279, 1
        %v9284 = vsel %vm9282, %v9283, %v9279
        %v9285 = vadd.s32 %v9280, %v9284
        %v9286 = vadd.s32 %v9285, 536870912
        %v9287 = vshrl.u32 %v9286, 30
        %v9288 = vshll.u32 %v9287, 30
        %v9289 = vsub.s32 %v9285, %v9288
        %vm9290 = vcmp.lt.s32.totalorder %v9289, 0
        %v9291 = vsub.s32 0, %v9289
        %v9292 = vsel %vm9290, %v9291, %v9289
        %v9293 = vclz %v9292
        %v9294 = vsub.s32 %v9293, 2
        %vm9295 = vcmp.gt.s32.totalorder 0, %v9294
        %v9296 = vsel %vm9295, 0, %v9294
        %v9297 = vsub.s32 32, %v9296
        %v9298 = vshll.u32 %v9289, %v9296
        %v9299 = vshrl.u32 %v9281, %v9297
        %v9300 = vor.u32 %v9298, %v9299
        %v9301 = vsub.s32 4294967266, %v9296
        %v9302 = vadd.s32 %v9301, 127
        %v9303 = vshll.u32 %v9302, 23
        %v9304 = vor.u32 4788187, %v9303
        %v9305 = vand.u32 2147483647, %v9304
        %v9307 = vcvt.s32.f32 %v9300
        %v9308 = vmul.f32 %v9307, %v9305
        %v9309 = vxor.u32 %v9308, 2147483648
        %v9310 = vsel %vm9189, %v9309, %v9308
        %v9311 = vsub.s32 4, %v9287
        %v9312 = vsel %vm9189, %v9311, %v9287
        %v9313 = vsel %vm9188, %v452, %v9310
        %v9314 = vsel %vm9188, 0, %v9312
        %v9315 = vmul.f32 %v9313, %v9313
        %v9316 = vmul.f32 %v9315, -0.001358992
        %v9317 = vadd.f32 %v9316, 0.041655596
        %v9318 = vmul.f32 %v9315, %v9317
        %v9319 = vadd.f32 %v9318, -0.4999988
        %v9320 = vmul.f32 %v9315, %v9319
        %v9321 = vadd.f32 1.0, %v9320
        %v9322 = vmul.f32 %v9313, %v9313
        %v9323 = vmul.f32 %v9322, -0.00019511016
        %v9324 = vadd.f32 %v9323, 0.008332121
        %v9325 = vmul.f32 %v9322, %v9324
        %v9326 = vadd.f32 %v9325, -0.16666654
        %v9327 = vmul.f32 %v9322, %v9326
        %v9328 = vadd.f32 %v9327, 1.0
        %v9329 = vmul.f32 %v9328, %v9313
        %vm9330 = vweird.f32 %v452
        %v9331 = vadd.s32 %v9314, 3
        %v9332 = vand.u32 %v9331, 3
        %vm9333 = vcmp.lt.s32.totalorder %v9332, 2
        %vm9334 = vcmp.eq.s32.totalorder %v9332, 0
        %v9335 = vxor.u32 %v9329, 2147483648
        %v9336 = vsel %vm9334, %v9321, %v9335
        %vm9337 = vcmp.eq.s32.totalorder %v9332, 2
        %v9338 = vxor.u32 %v9321, 2147483648
        %v9339 = vsel %vm9337, %v9338, %v9329
        %v9340 = vsel %vm9333, %v9336, %v9339
        %v9341 = vsel %vm9330, nan, %v9340
        %v9342 = vand.u32 2147483647, %v455
        %vm9343 = vcmp.le.f32.partialorder %v9342, 0.7853982
        %vm9344 = vcmp.lt.s32.totalorder %v455, 0
        %v9345 = vand.u32 %v455, 2139095040
        %v9346 = vshrl.u32 %v9345, 23
        %v9347 = vsub.s32 %v9346, 127
        %v9348 = vand.u32 2147483647, %v455
        %v9349 = vand.u32 %v9348, 8388607
        %v9350 = vor.u32 %v9349, 8388608
        %v9351 = vsub.s32 0, %v9350
        %v9352 = vadd.s32 %v9347, 1
        %vm9353 = vcmp.gt.s32.totalorder %v9352, 0
        %v9354 = vsel %vm9353, %v9352, 0
        %v9355 = vshrl.u32 %v9354, 5
        %v9356 = vand.u32 %v9354, 31
        %v9357 = vsub.s32 32, %v9356
        %v9358 = vshrl.u32 683565275, %v9357
        %v9359 = vshll.u32 683565275, %v9356
        %v9360 = vshrl.u32 2475754826, %v9357
        %v9361 = vor.u32 %v9359, %v9360
        %v9362 = vshll.u32 2475754826, %v9356
        %v9363 = vshrl.u32 2131351028, %v9357
        %v9364 = vor.u32 %v9362, %v9363
        %v9365 = vshll.u32 2131351028, %v9356
        %v9366 = vshrl.u32 2102212464, %v9357
        %v9367 = vor.u32 %v9365, %v9366
        %v9368 = vshll.u32 2102212464, %v9356
        %v9369 = vshrl.u32 920167782, %v9357
        %v9370 = vor.u32 %v9368, %v9369
        %v9371 = vshll.u32 920167782, %v9356
        %v9372 = vshrl.u32 1326507024, %v9357
        %v9373 = vor.u32 %v9371, %v9372
        %vm9374 = vcmp.lt.s32.totalorder %v9355, 1
        %vm9375 = vcmp.lt.s32.totalorder %v9355, 2
        %vm9376 = vcmp.lt.s32.totalorder %v9355, 3
        %vm9377 = vcmp.lt.s32.totalorder %v9355, 4
        %v9378 = vsel %vm9374, %v9358, %v9361
        %v9379 = vsel %vm9377, %v9367, 2102212464
        %v9380 = vsel %vm9376, %v9364, %v9379
        %v9381 = vsel %vm9375, %v9378, %v9380
        %v9382 = vsel %vm9374, %v9361, %v9364
        %v9383 = vsel %vm9377, %v9370, 920167782
        %v9384 = vsel %vm9376, %v9367, %v9383
        %v9385 = vsel %vm9375, %v9382, %v9384
        %v9386 = vsel %vm9374, %v9364, %v9367
        %v9387 = vsel %vm9377, %v9373, 1326507024
        %v9388 = vsel %vm9376, %v9370, %v9387
        %v9389 = vsel %vm9375, %v9386, %v9388
        %v9390 = vshll.u32 %v9350, 8
        %v9391 = vand.u32 %v9390, 65535
        %v9392 = vshrl.u32 %v9390, 16
        %v9393 = vand.u32 %v9389, 65535
        %v9394 = vshrl.u32 %v9389, 16
        %v9395 = vmul.u32 %v9391, %v9393
        %v9396 = vmul.u32 %v9391, %v9394
        %v9397 = vmul.u32 %v9392, %v9393
        %v9398 = vmul.u32 %v9392, %v9394
        %v9399 = vshll.u32 %v9396, 16
        %v9400 = vshrl.u32 %v9396, 16
        %v9401 = vshll.u32 %v9397, 16
        %v9402 = vshrl.u32 %v9397, 16
        %vm9403 = vc.u32 %v9395, %v9399
        %v9404 = vsel %vm9403, 1, 0
        %v9405 = vadd.s32 %v9395, %v9399
        %v9406 = vadd.s32 %v9398, %v9404
        %vm9407 = vc.u32 %v9405, %v9401
        %v9408 = vsel %vm9407, 1, 0
        %v9409 = vadd.s32 %v9405, %v9401
        %v9410 = vadd.s32 %v9406, %v9408
        %v9411 = vadd.s32 %v9410, %v9400
        %v9412 = vadd.s32 %v9411, %v9402
        %v9413 = vand.u32 %v9390, 65535
        %v9414 = vshrl.u32 %v9390, 16
        %v9415 = vand.u32 %v9385, 65535
        %v9416 = vshrl.u32 %v9385, 16
        %v9417 = vmul.u32 %v9413, %v9415
        %v9418 = vmul.u32 %v9413, %v9416
        %v9419 = vmul.u32 %v9414, %v9415
        %v9420 = vmul.u32 %v9414, %v9416
        %v9421 = vshll.u32 %v9418, 16
        %v9422 = vshrl.u32 %v9418, 16
        %v9423 = vshll.u32 %v9419, 16
        %v9424 = vshrl.u32 %v9419, 16
        %vm9425 = vc.u32 %v9417, %v9421
        %v9426 = vsel %vm9425, 1, 0
        %v9427 = vadd.s32 %v9417, %v9421
        %v9428 = vadd.s32 %v9420, %v9426
        %vm9429 = vc.u32 %v9427, %v9423
        %v9430 = vsel %vm9429, 1, 0
        %v9431 = vadd.s32 %v9427, %v9423
        %v9432 = vadd.s32 %v9428, %v9430
        %v9433 = vadd.s32 %v9432, %v9422
        %v9434 = vadd.s32 %v9433, %v9424
        %v9435 = vmul.u32 %v9390, %v9381
        %v9436 = vadd.s32 %v9412, %v9431
        %vm9437 = vc.u32 %v9412, %v9431
        %v9438 = vadd.s32 %v9434, 1
        %v9439 = vsel %vm9437, %v9438, %v9434
        %v9440 = vadd.s32 %v9435, %v9439
        %v9441 = vadd.s32 %v9440, 536870912
        %v9442 = vshrl.u32 %v9441, 30
        %v9443 = vshll.u32 %v9442, 30
        %v9444 = vsub.s32 %v9440, %v9443
        %vm9445 = vcmp.lt.s32.totalorder %v9444, 0
        %v9446 = vsub.s32 0, %v9444
        %v9447 = vsel %vm9445, %v9446, %v9444
        %v9448 = vclz %v9447
        %v9449 = vsub.s32 %v9448, 2
        %vm9450 = vcmp.gt.s32.totalorder 0, %v9449
        %v9451 = vsel %vm9450, 0, %v9449
        %v9452 = vsub.s32 32, %v9451
        %v9453 = vshll.u32 %v9444, %v9451
        %v9454 = vshrl.u32 %v9436, %v9452
        %v9455 = vor.u32 %v9453, %v9454
        %v9456 = vsub.s32 4294967266, %v9451
        %v9457 = vadd.s32 %v9456, 127
        %v9458 = vshll.u32 %v9457, 23
        %v9459 = vor.u32 4788187, %v9458
        %v9460 = vand.u32 2147483647, %v9459
        %v9462 = vcvt.s32.f32 %v9455
        %v9463 = vmul.f32 %v9462, %v9460
        %v9464 = vxor.u32 %v9463, 2147483648
        %v9465 = vsel %vm9344, %v9464, %v9463
        %v9466 = vsub.s32 4, %v9442
        %v9467 = vsel %vm9344, %v9466, %v9442
        %v9468 = vsel %vm9343, %v455, %v9465
        %v9469 = vsel %vm9343, 0, %v9467
        %v9470 = vmul.f32 %v9468, %v9468
        %v9471 = vmul.f32 %v9470, -0.001358992
        %v9472 = vadd.f32 %v9471, 0.041655596
        %v9473 = vmul.f32 %v9470, %v9472
        %v9474 = vadd.f32 %v9473, -0.4999988
        %v9475 = vmul.f32 %v9470, %v9474
        %v9476 = vadd.f32 1.0, %v9475
        %v9477 = vmul.f32 %v9468, %v9468
        %v9478 = vmul.f32 %v9477, -0.00019511016
        %v9479 = vadd.f32 %v9478, 0.008332121
        %v9480 = vmul.f32 %v9477, %v9479
        %v9481 = vadd.f32 %v9480, -0.16666654
        %v9482 = vmul.f32 %v9477, %v9481
        %v9483 = vadd.f32 %v9482, 1.0
        %v9484 = vmul.f32 %v9483, %v9468
        %vm9485 = vweird.f32 %v455
        %v9486 = vadd.s32 %v9469, 3
        %v9487 = vand.u32 %v9486, 3
        %vm9488 = vcmp.lt.s32.totalorder %v9487, 2
        %vm9489 = vcmp.eq.s32.totalorder %v9487, 0
        %v9490 = vxor.u32 %v9484, 2147483648
        %v9491 = vsel %vm9489, %v9476, %v9490
        %vm9492 = vcmp.eq.s32.totalorder %v9487, 2
        %v9493 = vxor.u32 %v9476, 2147483648
        %v9494 = vsel %vm9492, %v9493, %v9484
        %v9495 = vsel %vm9488, %v9491, %v9494
        %v9496 = vsel %vm9485, nan, %v9495
        %v9497 = vand.u32 2147483647, %v458
        %vm9498 = vcmp.le.f32.partialorder %v9497, 0.7853982
        %vm9499 = vcmp.lt.s32.totalorder %v458, 0
        %v9500 = vand.u32 %v458, 2139095040
        %v9501 = vshrl.u32 %v9500, 23
        %v9502 = vsub.s32 %v9501, 127
        %v9503 = vand.u32 2147483647, %v458
        %v9504 = vand.u32 %v9503, 8388607
        %v9505 = vor.u32 %v9504, 8388608
        %v9506 = vsub.s32 0, %v9505
        %v9507 = vadd.s32 %v9502, 1
        %vm9508 = vcmp.gt.s32.totalorder %v9507, 0
        %v9509 = vsel %vm9508, %v9507, 0
        %v9510 = vshrl.u32 %v9509, 5
        %v9511 = vand.u32 %v9509, 31
        %v9512 = vsub.s32 32, %v9511
        %v9513 = vshrl.u32 683565275, %v9512
        %v9514 = vshll.u32 683565275, %v9511
        %v9515 = vshrl.u32 2475754826, %v9512
        %v9516 = vor.u32 %v9514, %v9515
        %v9517 = vshll.u32 2475754826, %v9511
        %v9518 = vshrl.u32 2131351028, %v9512
        %v9519 = vor.u32 %v9517, %v9518
        %v9520 = vshll.u32 2131351028, %v9511
        %v9521 = vshrl.u32 2102212464, %v9512
        %v9522 = vor.u32 %v9520, %v9521
        %v9523 = vshll.u32 2102212464, %v9511
        %v9524 = vshrl.u32 920167782, %v9512
        %v9525 = vor.u32 %v9523, %v9524
        %v9526 = vshll.u32 920167782, %v9511
        %v9527 = vshrl.u32 1326507024, %v9512
        %v9528 = vor.u32 %v9526, %v9527
        %vm9529 = vcmp.lt.s32.totalorder %v9510, 1
        %vm9530 = vcmp.lt.s32.totalorder %v9510, 2
        %vm9531 = vcmp.lt.s32.totalorder %v9510, 3
        %vm9532 = vcmp.lt.s32.totalorder %v9510, 4
        %v9533 = vsel %vm9529, %v9513, %v9516
        %v9534 = vsel %vm9532, %v9522, 2102212464
        %v9535 = vsel %vm9531, %v9519, %v9534
        %v9536 = vsel %vm9530, %v9533, %v9535
        %v9537 = vsel %vm9529, %v9516, %v9519
        %v9538 = vsel %vm9532, %v9525, 920167782
        %v9539 = vsel %vm9531, %v9522, %v9538
        %v9540 = vsel %vm9530, %v9537, %v9539
        %v9541 = vsel %vm9529, %v9519, %v9522
        %v9542 = vsel %vm9532, %v9528, 1326507024
        %v9543 = vsel %vm9531, %v9525, %v9542
        %v9544 = vsel %vm9530, %v9541, %v9543
        %v9545 = vshll.u32 %v9505, 8
        %v9546 = vand.u32 %v9545, 65535
        %v9547 = vshrl.u32 %v9545, 16
        %v9548 = vand.u32 %v9544, 65535
        %v9549 = vshrl.u32 %v9544, 16
        %v9550 = vmul.u32 %v9546, %v9548
        %v9551 = vmul.u32 %v9546, %v9549
        %v9552 = vmul.u32 %v9547, %v9548
        %v9553 = vmul.u32 %v9547, %v9549
        %v9554 = vshll.u32 %v9551, 16
        %v9555 = vshrl.u32 %v9551, 16
        %v9556 = vshll.u32 %v9552, 16
        %v9557 = vshrl.u32 %v9552, 16
        %vm9558 = vc.u32 %v9550, %v9554
        %v9559 = vsel %vm9558, 1, 0
        %v9560 = vadd.s32 %v9550, %v9554
        %v9561 = vadd.s32 %v9553, %v9559
        %vm9562 = vc.u32 %v9560, %v9556
        %v9563 = vsel %vm9562, 1, 0
        %v9564 = vadd.s32 %v9560, %v9556
        %v9565 = vadd.s32 %v9561, %v9563
        %v9566 = vadd.s32 %v9565, %v9555
        %v9567 = vadd.s32 %v9566, %v9557
        %v9568 = vand.u32 %v9545, 65535
        %v9569 = vshrl.u32 %v9545, 16
        %v9570 = vand.u32 %v9540, 65535
        %v9571 = vshrl.u32 %v9540, 16
        %v9572 = vmul.u32 %v9568, %v9570
        %v9573 = vmul.u32 %v9568, %v9571
        %v9574 = vmul.u32 %v9569, %v9570
        %v9575 = vmul.u32 %v9569, %v9571
        %v9576 = vshll.u32 %v9573, 16
        %v9577 = vshrl.u32 %v9573, 16
        %v9578 = vshll.u32 %v9574, 16
        %v9579 = vshrl.u32 %v9574, 16
        %vm9580 = vc.u32 %v9572, %v9576
        %v9581 = vsel %vm9580, 1, 0
        %v9582 = vadd.s32 %v9572, %v9576
        %v9583 = vadd.s32 %v9575, %v9581
        %vm9584 = vc.u32 %v9582, %v9578
        %v9585 = vsel %vm9584, 1, 0
        %v9586 = vadd.s32 %v9582, %v9578
        %v9587 = vadd.s32 %v9583, %v9585
        %v9588 = vadd.s32 %v9587, %v9577
        %v9589 = vadd.s32 %v9588, %v9579
        %v9590 = vmul.u32 %v9545, %v9536
        %v9591 = vadd.s32 %v9567, %v9586
        %vm9592 = vc.u32 %v9567, %v9586
        %v9593 = vadd.s32 %v9589, 1
        %v9594 = vsel %vm9592, %v9593, %v9589
        %v9595 = vadd.s32 %v9590, %v9594
        %v9596 = vadd.s32 %v9595, 536870912
        %v9597 = vshrl.u32 %v9596, 30
        %v9598 = vshll.u32 %v9597, 30
        %v9599 = vsub.s32 %v9595, %v9598
        %vm9600 = vcmp.lt.s32.totalorder %v9599, 0
        %v9601 = vsub.s32 0, %v9599
        %v9602 = vsel %vm9600, %v9601, %v9599
        %v9603 = vclz %v9602
        %v9604 = vsub.s32 %v9603, 2
        %vm9605 = vcmp.gt.s32.totalorder 0, %v9604
        %v9606 = vsel %vm9605, 0, %v9604
        %v9607 = vsub.s32 32, %v9606
        %v9608 = vshll.u32 %v9599, %v9606
        %v9609 = vshrl.u32 %v9591, %v9607
        %v9610 = vor.u32 %v9608, %v9609
        %v9611 = vsub.s32 4294967266, %v9606
        %v9612 = vadd.s32 %v9611, 127
        %v9613 = vshll.u32 %v9612, 23
        %v9614 = vor.u32 4788187, %v9613
        %v9615 = vand.u32 2147483647, %v9614
        %v9617 = vcvt.s32.f32 %v9610
        %v9618 = vmul.f32 %v9617, %v9615
        %v9619 = vxor.u32 %v9618, 2147483648
        %v9620 = vsel %vm9499, %v9619, %v9618
        %v9621 = vsub.s32 4, %v9597
        %v9622 = vsel %vm9499, %v9621, %v9597
        %v9623 = vsel %vm9498, %v458, %v9620
        %v9624 = vsel %vm9498, 0, %v9622
        %v9625 = vmul.f32 %v9623, %v9623
        %v9626 = vmul.f32 %v9625, -0.001358992
        %v9627 = vadd.f32 %v9626, 0.041655596
        %v9628 = vmul.f32 %v9625, %v9627
        %v9629 = vadd.f32 %v9628, -0.4999988
        %v9630 = vmul.f32 %v9625, %v9629
        %v9631 = vadd.f32 1.0, %v9630
        %v9632 = vmul.f32 %v9623, %v9623
        %v9633 = vmul.f32 %v9632, -0.00019511016
        %v9634 = vadd.f32 %v9633, 0.008332121
        %v9635 = vmul.f32 %v9632, %v9634
        %v9636 = vadd.f32 %v9635, -0.16666654
        %v9637 = vmul.f32 %v9632, %v9636
        %v9638 = vadd.f32 %v9637, 1.0
        %v9639 = vmul.f32 %v9638, %v9623
        %vm9640 = vweird.f32 %v458
        %v9641 = vadd.s32 %v9624, 3
        %v9642 = vand.u32 %v9641, 3
        %vm9643 = vcmp.lt.s32.totalorder %v9642, 2
        %vm9644 = vcmp.eq.s32.totalorder %v9642, 0
        %v9645 = vxor.u32 %v9639, 2147483648
        %v9646 = vsel %vm9644, %v9631, %v9645
        %vm9647 = vcmp.eq.s32.totalorder %v9642, 2
        %v9648 = vxor.u32 %v9631, 2147483648
        %v9649 = vsel %vm9647, %v9648, %v9639
        %v9650 = vsel %vm9643, %v9646, %v9649
        %v9651 = vsel %vm9640, nan, %v9650
        %v9652 = vand.u32 2147483647, %v461
        %vm9653 = vcmp.le.f32.partialorder %v9652, 0.7853982
        %vm9654 = vcmp.lt.s32.totalorder %v461, 0
        %v9655 = vand.u32 %v461, 2139095040
        %v9656 = vshrl.u32 %v9655, 23
        %v9657 = vsub.s32 %v9656, 127
        %v9658 = vand.u32 2147483647, %v461
        %v9659 = vand.u32 %v9658, 8388607
        %v9660 = vor.u32 %v9659, 8388608
        %v9661 = vsub.s32 0, %v9660
        %v9662 = vadd.s32 %v9657, 1
        %vm9663 = vcmp.gt.s32.totalorder %v9662, 0
        %v9664 = vsel %vm9663, %v9662, 0
        %v9665 = vshrl.u32 %v9664, 5
        %v9666 = vand.u32 %v9664, 31
        %v9667 = vsub.s32 32, %v9666
        %v9668 = vshrl.u32 683565275, %v9667
        %v9669 = vshll.u32 683565275, %v9666
        %v9670 = vshrl.u32 2475754826, %v9667
        %v9671 = vor.u32 %v9669, %v9670
        %v9672 = vshll.u32 2475754826, %v9666
        %v9673 = vshrl.u32 2131351028, %v9667
        %v9674 = vor.u32 %v9672, %v9673
        %v9675 = vshll.u32 2131351028, %v9666
        %v9676 = vshrl.u32 2102212464, %v9667
        %v9677 = vor.u32 %v9675, %v9676
        %v9678 = vshll.u32 2102212464, %v9666
        %v9679 = vshrl.u32 920167782, %v9667
        %v9680 = vor.u32 %v9678, %v9679
        %v9681 = vshll.u32 920167782, %v9666
        %v9682 = vshrl.u32 1326507024, %v9667
        %v9683 = vor.u32 %v9681, %v9682
        %vm9684 = vcmp.lt.s32.totalorder %v9665, 1
        %vm9685 = vcmp.lt.s32.totalorder %v9665, 2
        %vm9686 = vcmp.lt.s32.totalorder %v9665, 3
        %vm9687 = vcmp.lt.s32.totalorder %v9665, 4
        %v9688 = vsel %vm9684, %v9668, %v9671
        %v9689 = vsel %vm9687, %v9677, 2102212464
        %v9690 = vsel %vm9686, %v9674, %v9689
        %v9691 = vsel %vm9685, %v9688, %v9690
        %v9692 = vsel %vm9684, %v9671, %v9674
        %v9693 = vsel %vm9687, %v9680, 920167782
        %v9694 = vsel %vm9686, %v9677, %v9693
        %v9695 = vsel %vm9685, %v9692, %v9694
        %v9696 = vsel %vm9684, %v9674, %v9677
        %v9697 = vsel %vm9687, %v9683, 1326507024
        %v9698 = vsel %vm9686, %v9680, %v9697
        %v9699 = vsel %vm9685, %v9696, %v9698
        %v9700 = vshll.u32 %v9660, 8
        %v9701 = vand.u32 %v9700, 65535
        %v9702 = vshrl.u32 %v9700, 16
        %v9703 = vand.u32 %v9699, 65535
        %v9704 = vshrl.u32 %v9699, 16
        %v9705 = vmul.u32 %v9701, %v9703
        %v9706 = vmul.u32 %v9701, %v9704
        %v9707 = vmul.u32 %v9702, %v9703
        %v9708 = vmul.u32 %v9702, %v9704
        %v9709 = vshll.u32 %v9706, 16
        %v9710 = vshrl.u32 %v9706, 16
        %v9711 = vshll.u32 %v9707, 16
        %v9712 = vshrl.u32 %v9707, 16
        %vm9713 = vc.u32 %v9705, %v9709
        %v9714 = vsel %vm9713, 1, 0
        %v9715 = vadd.s32 %v9705, %v9709
        %v9716 = vadd.s32 %v9708, %v9714
        %vm9717 = vc.u32 %v9715, %v9711
        %v9718 = vsel %vm9717, 1, 0
        %v9719 = vadd.s32 %v9715, %v9711
        %v9720 = vadd.s32 %v9716, %v9718
        %v9721 = vadd.s32 %v9720, %v9710
        %v9722 = vadd.s32 %v9721, %v9712
        %v9723 = vand.u32 %v9700, 65535
        %v9724 = vshrl.u32 %v9700, 16
        %v9725 = vand.u32 %v9695, 65535
        %v9726 = vshrl.u32 %v9695, 16
        %v9727 = vmul.u32 %v9723, %v9725
        %v9728 = vmul.u32 %v9723, %v9726
        %v9729 = vmul.u32 %v9724, %v9725
        %v9730 = vmul.u32 %v9724, %v9726
        %v9731 = vshll.u32 %v9728, 16
        %v9732 = vshrl.u32 %v9728, 16
        %v9733 = vshll.u32 %v9729, 16
        %v9734 = vshrl.u32 %v9729, 16
        %vm9735 = vc.u32 %v9727, %v9731
        %v9736 = vsel %vm9735, 1, 0
        %v9737 = vadd.s32 %v9727, %v9731
        %v9738 = vadd.s32 %v9730, %v9736
        %vm9739 = vc.u32 %v9737, %v9733
        %v9740 = vsel %vm9739, 1, 0
        %v9741 = vadd.s32 %v9737, %v9733
        %v9742 = vadd.s32 %v9738, %v9740
        %v9743 = vadd.s32 %v9742, %v9732
        %v9744 = vadd.s32 %v9743, %v9734
        %v9745 = vmul.u32 %v9700, %v9691
        %v9746 = vadd.s32 %v9722, %v9741
        %vm9747 = vc.u32 %v9722, %v9741
        %v9748 = vadd.s32 %v9744, 1
        %v9749 = vsel %vm9747, %v9748, %v9744
        %v9750 = vadd.s32 %v9745, %v9749
        %v9751 = vadd.s32 %v9750, 536870912
        %v9752 = vshrl.u32 %v9751, 30
        %v9753 = vshll.u32 %v9752, 30
        %v9754 = vsub.s32 %v9750, %v9753
        %vm9755 = vcmp.lt.s32.totalorder %v9754, 0
        %v9756 = vsub.s32 0, %v9754
        %v9757 = vsel %vm9755, %v9756, %v9754
        %v9758 = vclz %v9757
        %v9759 = vsub.s32 %v9758, 2
        %vm9760 = vcmp.gt.s32.totalorder 0, %v9759
        %v9761 = vsel %vm9760, 0, %v9759
        %v9762 = vsub.s32 32, %v9761
        %v9763 = vshll.u32 %v9754, %v9761
        %v9764 = vshrl.u32 %v9746, %v9762
        %v9765 = vor.u32 %v9763, %v9764
        %v9766 = vsub.s32 4294967266, %v9761
        %v9767 = vadd.s32 %v9766, 127
        %v9768 = vshll.u32 %v9767, 23
        %v9769 = vor.u32 4788187, %v9768
        %v9770 = vand.u32 2147483647, %v9769
        %v9772 = vcvt.s32.f32 %v9765
        %v9773 = vmul.f32 %v9772, %v9770
        %v9774 = vxor.u32 %v9773, 2147483648
        %v9775 = vsel %vm9654, %v9774, %v9773
        %v9776 = vsub.s32 4, %v9752
        %v9777 = vsel %vm9654, %v9776, %v9752
        %v9778 = vsel %vm9653, %v461, %v9775
        %v9779 = vsel %vm9653, 0, %v9777
        %v9780 = vmul.f32 %v9778, %v9778
        %v9781 = vmul.f32 %v9780, -0.001358992
        %v9782 = vadd.f32 %v9781, 0.041655596
        %v9783 = vmul.f32 %v9780, %v9782
        %v9784 = vadd.f32 %v9783, -0.4999988
        %v9785 = vmul.f32 %v9780, %v9784
        %v9786 = vadd.f32 1.0, %v9785
        %v9787 = vmul.f32 %v9778, %v9778
        %v9788 = vmul.f32 %v9787, -0.00019511016
        %v9789 = vadd.f32 %v9788, 0.008332121
        %v9790 = vmul.f32 %v9787, %v9789
        %v9791 = vadd.f32 %v9790, -0.16666654
        %v9792 = vmul.f32 %v9787, %v9791
        %v9793 = vadd.f32 %v9792, 1.0
        %v9794 = vmul.f32 %v9793, %v9778
        %vm9795 = vweird.f32 %v461
        %v9796 = vadd.s32 %v9779, 3
        %v9797 = vand.u32 %v9796, 3
        %vm9798 = vcmp.lt.s32.totalorder %v9797, 2
        %vm9799 = vcmp.eq.s32.totalorder %v9797, 0
        %v9800 = vxor.u32 %v9794, 2147483648
        %v9801 = vsel %vm9799, %v9786, %v9800
        %vm9802 = vcmp.eq.s32.totalorder %v9797, 2
        %v9803 = vxor.u32 %v9786, 2147483648
        %v9804 = vsel %vm9802, %v9803, %v9794
        %v9805 = vsel %vm9798, %v9801, %v9804
        %v9806 = vsel %vm9795, nan, %v9805
        %v9807 = vand.u32 2147483647, %v464
        %vm9808 = vcmp.le.f32.partialorder %v9807, 0.7853982
        %vm9809 = vcmp.lt.s32.totalorder %v464, 0
        %v9810 = vand.u32 %v464, 2139095040
        %v9811 = vshrl.u32 %v9810, 23
        %v9812 = vsub.s32 %v9811, 127
        %v9813 = vand.u32 2147483647, %v464
        %v9814 = vand.u32 %v9813, 8388607
        %v9815 = vor.u32 %v9814, 8388608
        %v9816 = vsub.s32 0, %v9815
        %v9817 = vadd.s32 %v9812, 1
        %vm9818 = vcmp.gt.s32.totalorder %v9817, 0
        %v9819 = vsel %vm9818, %v9817, 0
        %v9820 = vshrl.u32 %v9819, 5
        %v9821 = vand.u32 %v9819, 31
        %v9822 = vsub.s32 32, %v9821
        %v9823 = vshrl.u32 683565275, %v9822
        %v9824 = vshll.u32 683565275, %v9821
        %v9825 = vshrl.u32 2475754826, %v9822
        %v9826 = vor.u32 %v9824, %v9825
        %v9827 = vshll.u32 2475754826, %v9821
        %v9828 = vshrl.u32 2131351028, %v9822
        %v9829 = vor.u32 %v9827, %v9828
        %v9830 = vshll.u32 2131351028, %v9821
        %v9831 = vshrl.u32 2102212464, %v9822
        %v9832 = vor.u32 %v9830, %v9831
        %v9833 = vshll.u32 2102212464, %v9821
        %v9834 = vshrl.u32 920167782, %v9822
        %v9835 = vor.u32 %v9833, %v9834
        %v9836 = vshll.u32 920167782, %v9821
        %v9837 = vshrl.u32 1326507024, %v9822
        %v9838 = vor.u32 %v9836, %v9837
        %vm9839 = vcmp.lt.s32.totalorder %v9820, 1
        %vm9840 = vcmp.lt.s32.totalorder %v9820, 2
        %vm9841 = vcmp.lt.s32.totalorder %v9820, 3
        %vm9842 = vcmp.lt.s32.totalorder %v9820, 4
        %v9843 = vsel %vm9839, %v9823, %v9826
        %v9844 = vsel %vm9842, %v9832, 2102212464
        %v9845 = vsel %vm9841, %v9829, %v9844
        %v9846 = vsel %vm9840, %v9843, %v9845
        %v9847 = vsel %vm9839, %v9826, %v9829
        %v9848 = vsel %vm9842, %v9835, 920167782
        %v9849 = vsel %vm9841, %v9832, %v9848
        %v9850 = vsel %vm9840, %v9847, %v9849
        %v9851 = vsel %vm9839, %v9829, %v9832
        %v9852 = vsel %vm9842, %v9838, 1326507024
        %v9853 = vsel %vm9841, %v9835, %v9852
        %v9854 = vsel %vm9840, %v9851, %v9853
        %v9855 = vshll.u32 %v9815, 8
        %v9856 = vand.u32 %v9855, 65535
        %v9857 = vshrl.u32 %v9855, 16
        %v9858 = vand.u32 %v9854, 65535
        %v9859 = vshrl.u32 %v9854, 16
        %v9860 = vmul.u32 %v9856, %v9858
        %v9861 = vmul.u32 %v9856, %v9859
        %v9862 = vmul.u32 %v9857, %v9858
        %v9863 = vmul.u32 %v9857, %v9859
        %v9864 = vshll.u32 %v9861, 16
        %v9865 = vshrl.u32 %v9861, 16
        %v9866 = vshll.u32 %v9862, 16
        %v9867 = vshrl.u32 %v9862, 16
        %vm9868 = vc.u32 %v9860, %v9864
        %v9869 = vsel %vm9868, 1, 0
        %v9870 = vadd.s32 %v9860, %v9864
        %v9871 = vadd.s32 %v9863, %v9869
        %vm9872 = vc.u32 %v9870, %v9866
        %v9873 = vsel %vm9872, 1, 0
        %v9874 = vadd.s32 %v9870, %v9866
        %v9875 = vadd.s32 %v9871, %v9873
        %v9876 = vadd.s32 %v9875, %v9865
        %v9877 = vadd.s32 %v9876, %v9867
        %v9878 = vand.u32 %v9855, 65535
        %v9879 = vshrl.u32 %v9855, 16
        %v9880 = vand.u32 %v9850, 65535
        %v9881 = vshrl.u32 %v9850, 16
        %v9882 = vmul.u32 %v9878, %v9880
        %v9883 = vmul.u32 %v9878, %v9881
        %v9884 = vmul.u32 %v9879, %v9880
        %v9885 = vmul.u32 %v9879, %v9881
        %v9886 = vshll.u32 %v9883, 16
        %v9887 = vshrl.u32 %v9883, 16
        %v9888 = vshll.u32 %v9884, 16
        %v9889 = vshrl.u32 %v9884, 16
        %vm9890 = vc.u32 %v9882, %v9886
        %v9891 = vsel %vm9890, 1, 0
        %v9892 = vadd.s32 %v9882, %v9886
        %v9893 = vadd.s32 %v9885, %v9891
        %vm9894 = vc.u32 %v9892, %v9888
        %v9895 = vsel %vm9894, 1, 0
        %v9896 = vadd.s32 %v9892, %v9888
        %v9897 = vadd.s32 %v9893, %v9895
        %v9898 = vadd.s32 %v9897, %v9887
        %v9899 = vadd.s32 %v9898, %v9889
        %v9900 = vmul.u32 %v9855, %v9846
        %v9901 = vadd.s32 %v9877, %v9896
        %vm9902 = vc.u32 %v9877, %v9896
        %v9903 = vadd.s32 %v9899, 1
        %v9904 = vsel %vm9902, %v9903, %v9899
        %v9905 = vadd.s32 %v9900, %v9904
        %v9906 = vadd.s32 %v9905, 536870912
        %v9907 = vshrl.u32 %v9906, 30
        %v9908 = vshll.u32 %v9907, 30
        %v9909 = vsub.s32 %v9905, %v9908
        %vm9910 = vcmp.lt.s32.totalorder %v9909, 0
        %v9911 = vsub.s32 0, %v9909
        %v9912 = vsel %vm9910, %v9911, %v9909
        %v9913 = vclz %v9912
        %v9914 = vsub.s32 %v9913, 2
        %vm9915 = vcmp.gt.s32.totalorder 0, %v9914
        %v9916 = vsel %vm9915, 0, %v9914
        %v9917 = vsub.s32 32, %v9916
        %v9918 = vshll.u32 %v9909, %v9916
        %v9919 = vshrl.u32 %v9901, %v9917
        %v9920 = vor.u32 %v9918, %v9919
        %v9921 = vsub.s32 4294967266, %v9916
        %v9922 = vadd.s32 %v9921, 127
        %v9923 = vshll.u32 %v9922, 23
        %v9924 = vor.u32 4788187, %v9923
        %v9925 = vand.u32 2147483647, %v9924
        %v9927 = vcvt.s32.f32 %v9920
        %v9928 = vmul.f32 %v9927, %v9925
        %v9929 = vxor.u32 %v9928, 2147483648
        %v9930 = vsel %vm9809, %v9929, %v9928
        %v9931 = vsub.s32 4, %v9907
        %v9932 = vsel %vm9809, %v9931, %v9907
        %v9933 = vsel %vm9808, %v464, %v9930
        %v9934 = vsel %vm9808, 0, %v9932
        %v9935 = vmul.f32 %v9933, %v9933
        %v9936 = vmul.f32 %v9935, -0.001358992
        %v9937 = vadd.f32 %v9936, 0.041655596
        %v9938 = vmul.f32 %v9935, %v9937
        %v9939 = vadd.f32 %v9938, -0.4999988
        %v9940 = vmul.f32 %v9935, %v9939
        %v9941 = vadd.f32 1.0, %v9940
        %v9942 = vmul.f32 %v9933, %v9933
        %v9943 = vmul.f32 %v9942, -0.00019511016
        %v9944 = vadd.f32 %v9943, 0.008332121
        %v9945 = vmul.f32 %v9942, %v9944
        %v9946 = vadd.f32 %v9945, -0.16666654
        %v9947 = vmul.f32 %v9942, %v9946
        %v9948 = vadd.f32 %v9947, 1.0
        %v9949 = vmul.f32 %v9948, %v9933
        %vm9950 = vweird.f32 %v464
        %v9951 = vadd.s32 %v9934, 3
        %v9952 = vand.u32 %v9951, 3
        %vm9953 = vcmp.lt.s32.totalorder %v9952, 2
        %vm9954 = vcmp.eq.s32.totalorder %v9952, 0
        %v9955 = vxor.u32 %v9949, 2147483648
        %v9956 = vsel %vm9954, %v9941, %v9955
        %vm9957 = vcmp.eq.s32.totalorder %v9952, 2
        %v9958 = vxor.u32 %v9941, 2147483648
        %v9959 = vsel %vm9957, %v9958, %v9949
        %v9960 = vsel %vm9953, %v9956, %v9959
        %v9961 = vsel %vm9950, nan, %v9960
        %v9962 = vand.u32 2147483647, %v467
        %vm9963 = vcmp.le.f32.partialorder %v9962, 0.7853982
        %vm9964 = vcmp.lt.s32.totalorder %v467, 0
        %v9965 = vand.u32 %v467, 2139095040
        %v9966 = vshrl.u32 %v9965, 23
        %v9967 = vsub.s32 %v9966, 127
        %v9968 = vand.u32 2147483647, %v467
        %v9969 = vand.u32 %v9968, 8388607
        %v9970 = vor.u32 %v9969, 8388608
        %v9971 = vsub.s32 0, %v9970
        %v9972 = vadd.s32 %v9967, 1
        %vm9973 = vcmp.gt.s32.totalorder %v9972, 0
        %v9974 = vsel %vm9973, %v9972, 0
        %v9975 = vshrl.u32 %v9974, 5
        %v9976 = vand.u32 %v9974, 31
        %v9977 = vsub.s32 32, %v9976
        %v9978 = vshrl.u32 683565275, %v9977
        %v9979 = vshll.u32 683565275, %v9976
        %v9980 = vshrl.u32 2475754826, %v9977
        %v9981 = vor.u32 %v9979, %v9980
        %v9982 = vshll.u32 2475754826, %v9976
        %v9983 = vshrl.u32 2131351028, %v9977
        %v9984 = vor.u32 %v9982, %v9983
        %v9985 = vshll.u32 2131351028, %v9976
        %v9986 = vshrl.u32 2102212464, %v9977
        %v9987 = vor.u32 %v9985, %v9986
        %v9988 = vshll.u32 2102212464, %v9976
        %v9989 = vshrl.u32 920167782, %v9977
        %v9990 = vor.u32 %v9988, %v9989
        %v9991 = vshll.u32 920167782, %v9976
        %v9992 = vshrl.u32 1326507024, %v9977
        %v9993 = vor.u32 %v9991, %v9992
        %vm9994 = vcmp.lt.s32.totalorder %v9975, 1
        %vm9995 = vcmp.lt.s32.totalorder %v9975, 2
        %vm9996 = vcmp.lt.s32.totalorder %v9975, 3
        %vm9997 = vcmp.lt.s32.totalorder %v9975, 4
        %v9998 = vsel %vm9994, %v9978, %v9981
        %v9999 = vsel %vm9997, %v9987, 2102212464
        %v10000 = vsel %vm9996, %v9984, %v9999
        %v10001 = vsel %vm9995, %v9998, %v10000
        %v10002 = vsel %vm9994, %v9981, %v9984
        %v10003 = vsel %vm9997, %v9990, 920167782
        %v10004 = vsel %vm9996, %v9987, %v10003
        %v10005 = vsel %vm9995, %v10002, %v10004
        %v10006 = vsel %vm9994, %v9984, %v9987
        %v10007 = vsel %vm9997, %v9993, 1326507024
        %v10008 = vsel %vm9996, %v9990, %v10007
        %v10009 = vsel %vm9995, %v10006, %v10008
        %v10010 = vshll.u32 %v9970, 8
        %v10011 = vand.u32 %v10010, 65535
        %v10012 = vshrl.u32 %v10010, 16
        %v10013 = vand.u32 %v10009, 65535
        %v10014 = vshrl.u32 %v10009, 16
        %v10015 = vmul.u32 %v10011, %v10013
        %v10016 = vmul.u32 %v10011, %v10014
        %v10017 = vmul.u32 %v10012, %v10013
        %v10018 = vmul.u32 %v10012, %v10014
        %v10019 = vshll.u32 %v10016, 16
        %v10020 = vshrl.u32 %v10016, 16
        %v10021 = vshll.u32 %v10017, 16
        %v10022 = vshrl.u32 %v10017, 16
        %vm10023 = vc.u32 %v10015, %v10019
        %v10024 = vsel %vm10023, 1, 0
        %v10025 = vadd.s32 %v10015, %v10019
        %v10026 = vadd.s32 %v10018, %v10024
        %vm10027 = vc.u32 %v10025, %v10021
        %v10028 = vsel %vm10027, 1, 0
        %v10029 = vadd.s32 %v10025, %v10021
        %v10030 = vadd.s32 %v10026, %v10028
        %v10031 = vadd.s32 %v10030, %v10020
        %v10032 = vadd.s32 %v10031, %v10022
        %v10033 = vand.u32 %v10010, 65535
        %v10034 = vshrl.u32 %v10010, 16
        %v10035 = vand.u32 %v10005, 65535
        %v10036 = vshrl.u32 %v10005, 16
        %v10037 = vmul.u32 %v10033, %v10035
        %v10038 = vmul.u32 %v10033, %v10036
        %v10039 = vmul.u32 %v10034, %v10035
        %v10040 = vmul.u32 %v10034, %v10036
        %v10041 = vshll.u32 %v10038, 16
        %v10042 = vshrl.u32 %v10038, 16
        %v10043 = vshll.u32 %v10039, 16
        %v10044 = vshrl.u32 %v10039, 16
        %vm10045 = vc.u32 %v10037, %v10041
        %v10046 = vsel %vm10045, 1, 0
        %v10047 = vadd.s32 %v10037, %v10041
        %v10048 = vadd.s32 %v10040, %v10046
        %vm10049 = vc.u32 %v10047, %v10043
        %v10050 = vsel %vm10049, 1, 0
        %v10051 = vadd.s32 %v10047, %v10043
        %v10052 = vadd.s32 %v10048, %v10050
        %v10053 = vadd.s32 %v10052, %v10042
        %v10054 = vadd.s32 %v10053, %v10044
        %v10055 = vmul.u32 %v10010, %v10001
        %v10056 = vadd.s32 %v10032, %v10051
        %vm10057 = vc.u32 %v10032, %v10051
        %v10058 = vadd.s32 %v10054, 1
        %v10059 = vsel %vm10057, %v10058, %v10054
        %v10060 = vadd.s32 %v10055, %v10059
        %v10061 = vadd.s32 %v10060, 536870912
        %v10062 = vshrl.u32 %v10061, 30
        %v10063 = vshll.u32 %v10062, 30
        %v10064 = vsub.s32 %v10060, %v10063
        %vm10065 = vcmp.lt.s32.totalorder %v10064, 0
        %v10066 = vsub.s32 0, %v10064
        %v10067 = vsel %vm10065, %v10066, %v10064
        %v10068 = vclz %v10067
        %v10069 = vsub.s32 %v10068, 2
        %vm10070 = vcmp.gt.s32.totalorder 0, %v10069
        %v10071 = vsel %vm10070, 0, %v10069
        %v10072 = vsub.s32 32, %v10071
        %v10073 = vshll.u32 %v10064, %v10071
        %v10074 = vshrl.u32 %v10056, %v10072
        %v10075 = vor.u32 %v10073, %v10074
        %v10076 = vsub.s32 4294967266, %v10071
        %v10077 = vadd.s32 %v10076, 127
        %v10078 = vshll.u32 %v10077, 23
        %v10079 = vor.u32 4788187, %v10078
        %v10080 = vand.u32 2147483647, %v10079
        %v10082 = vcvt.s32.f32 %v10075
        %v10083 = vmul.f32 %v10082, %v10080
        %v10084 = vxor.u32 %v10083, 2147483648
        %v10085 = vsel %vm9964, %v10084, %v10083
        %v10086 = vsub.s32 4, %v10062
        %v10087 = vsel %vm9964, %v10086, %v10062
        %v10088 = vsel %vm9963, %v467, %v10085
        %v10089 = vsel %vm9963, 0, %v10087
        %v10090 = vmul.f32 %v10088, %v10088
        %v10091 = vmul.f32 %v10090, -0.001358992
        %v10092 = vadd.f32 %v10091, 0.041655596
        %v10093 = vmul.f32 %v10090, %v10092
        %v10094 = vadd.f32 %v10093, -0.4999988
        %v10095 = vmul.f32 %v10090, %v10094
        %v10096 = vadd.f32 1.0, %v10095
        %v10097 = vmul.f32 %v10088, %v10088
        %v10098 = vmul.f32 %v10097, -0.00019511016
        %v10099 = vadd.f32 %v10098, 0.008332121
        %v10100 = vmul.f32 %v10097, %v10099
        %v10101 = vadd.f32 %v10100, -0.16666654
        %v10102 = vmul.f32 %v10097, %v10101
        %v10103 = vadd.f32 %v10102, 1.0
        %v10104 = vmul.f32 %v10103, %v10088
        %vm10105 = vweird.f32 %v467
        %v10106 = vadd.s32 %v10089, 3
        %v10107 = vand.u32 %v10106, 3
        %vm10108 = vcmp.lt.s32.totalorder %v10107, 2
        %vm10109 = vcmp.eq.s32.totalorder %v10107, 0
        %v10110 = vxor.u32 %v10104, 2147483648
        %v10111 = vsel %vm10109, %v10096, %v10110
        %vm10112 = vcmp.eq.s32.totalorder %v10107, 2
        %v10113 = vxor.u32 %v10096, 2147483648
        %v10114 = vsel %vm10112, %v10113, %v10104
        %v10115 = vsel %vm10108, %v10111, %v10114
        %v10116 = vsel %vm10105, nan, %v10115
        %v10117 = vand.u32 2147483647, %v470
        %vm10118 = vcmp.le.f32.partialorder %v10117, 0.7853982
        %vm10119 = vcmp.lt.s32.totalorder %v470, 0
        %v10120 = vand.u32 %v470, 2139095040
        %v10121 = vshrl.u32 %v10120, 23
        %v10122 = vsub.s32 %v10121, 127
        %v10123 = vand.u32 2147483647, %v470
        %v10124 = vand.u32 %v10123, 8388607
        %v10125 = vor.u32 %v10124, 8388608
        %v10126 = vsub.s32 0, %v10125
        %v10127 = vadd.s32 %v10122, 1
        %vm10128 = vcmp.gt.s32.totalorder %v10127, 0
        %v10129 = vsel %vm10128, %v10127, 0
        %v10130 = vshrl.u32 %v10129, 5
        %v10131 = vand.u32 %v10129, 31
        %v10132 = vsub.s32 32, %v10131
        %v10133 = vshrl.u32 683565275, %v10132
        %v10134 = vshll.u32 683565275, %v10131
        %v10135 = vshrl.u32 2475754826, %v10132
        %v10136 = vor.u32 %v10134, %v10135
        %v10137 = vshll.u32 2475754826, %v10131
        %v10138 = vshrl.u32 2131351028, %v10132
        %v10139 = vor.u32 %v10137, %v10138
        %v10140 = vshll.u32 2131351028, %v10131
        %v10141 = vshrl.u32 2102212464, %v10132
        %v10142 = vor.u32 %v10140, %v10141
        %v10143 = vshll.u32 2102212464, %v10131
        %v10144 = vshrl.u32 920167782, %v10132
        %v10145 = vor.u32 %v10143, %v10144
        %v10146 = vshll.u32 920167782, %v10131
        %v10147 = vshrl.u32 1326507024, %v10132
        %v10148 = vor.u32 %v10146, %v10147
        %vm10149 = vcmp.lt.s32.totalorder %v10130, 1
        %vm10150 = vcmp.lt.s32.totalorder %v10130, 2
        %vm10151 = vcmp.lt.s32.totalorder %v10130, 3
        %vm10152 = vcmp.lt.s32.totalorder %v10130, 4
        %v10153 = vsel %vm10149, %v10133, %v10136
        %v10154 = vsel %vm10152, %v10142, 2102212464
        %v10155 = vsel %vm10151, %v10139, %v10154
        %v10156 = vsel %vm10150, %v10153, %v10155
        %v10157 = vsel %vm10149, %v10136, %v10139
        %v10158 = vsel %vm10152, %v10145, 920167782
        %v10159 = vsel %vm10151, %v10142, %v10158
        %v10160 = vsel %vm10150, %v10157, %v10159
        %v10161 = vsel %vm10149, %v10139, %v10142
        %v10162 = vsel %vm10152, %v10148, 1326507024
        %v10163 = vsel %vm10151, %v10145, %v10162
        %v10164 = vsel %vm10150, %v10161, %v10163
        %v10165 = vshll.u32 %v10125, 8
        %v10166 = vand.u32 %v10165, 65535
        %v10167 = vshrl.u32 %v10165, 16
        %v10168 = vand.u32 %v10164, 65535
        %v10169 = vshrl.u32 %v10164, 16
        %v10170 = vmul.u32 %v10166, %v10168
        %v10171 = vmul.u32 %v10166, %v10169
        %v10172 = vmul.u32 %v10167, %v10168
        %v10173 = vmul.u32 %v10167, %v10169
        %v10174 = vshll.u32 %v10171, 16
        %v10175 = vshrl.u32 %v10171, 16
        %v10176 = vshll.u32 %v10172, 16
        %v10177 = vshrl.u32 %v10172, 16
        %vm10178 = vc.u32 %v10170, %v10174
        %v10179 = vsel %vm10178, 1, 0
        %v10180 = vadd.s32 %v10170, %v10174
        %v10181 = vadd.s32 %v10173, %v10179
        %vm10182 = vc.u32 %v10180, %v10176
        %v10183 = vsel %vm10182, 1, 0
        %v10184 = vadd.s32 %v10180, %v10176
        %v10185 = vadd.s32 %v10181, %v10183
        %v10186 = vadd.s32 %v10185, %v10175
        %v10187 = vadd.s32 %v10186, %v10177
        %v10188 = vand.u32 %v10165, 65535
        %v10189 = vshrl.u32 %v10165, 16
        %v10190 = vand.u32 %v10160, 65535
        %v10191 = vshrl.u32 %v10160, 16
        %v10192 = vmul.u32 %v10188, %v10190
        %v10193 = vmul.u32 %v10188, %v10191
        %v10194 = vmul.u32 %v10189, %v10190
        %v10195 = vmul.u32 %v10189, %v10191
        %v10196 = vshll.u32 %v10193, 16
        %v10197 = vshrl.u32 %v10193, 16
        %v10198 = vshll.u32 %v10194, 16
        %v10199 = vshrl.u32 %v10194, 16
        %vm10200 = vc.u32 %v10192, %v10196
        %v10201 = vsel %vm10200, 1, 0
        %v10202 = vadd.s32 %v10192, %v10196
        %v10203 = vadd.s32 %v10195, %v10201
        %vm10204 = vc.u32 %v10202, %v10198
        %v10205 = vsel %vm10204, 1, 0
        %v10206 = vadd.s32 %v10202, %v10198
        %v10207 = vadd.s32 %v10203, %v10205
        %v10208 = vadd.s32 %v10207, %v10197
        %v10209 = vadd.s32 %v10208, %v10199
        %v10210 = vmul.u32 %v10165, %v10156
        %v10211 = vadd.s32 %v10187, %v10206
        %vm10212 = vc.u32 %v10187, %v10206
        %v10213 = vadd.s32 %v10209, 1
        %v10214 = vsel %vm10212, %v10213, %v10209
        %v10215 = vadd.s32 %v10210, %v10214
        %v10216 = vadd.s32 %v10215, 536870912
        %v10217 = vshrl.u32 %v10216, 30
        %v10218 = vshll.u32 %v10217, 30
        %v10219 = vsub.s32 %v10215, %v10218
        %vm10220 = vcmp.lt.s32.totalorder %v10219, 0
        %v10221 = vsub.s32 0, %v10219
        %v10222 = vsel %vm10220, %v10221, %v10219
        %v10223 = vclz %v10222
        %v10224 = vsub.s32 %v10223, 2
        %vm10225 = vcmp.gt.s32.totalorder 0, %v10224
        %v10226 = vsel %vm10225, 0, %v10224
        %v10227 = vsub.s32 32, %v10226
        %v10228 = vshll.u32 %v10219, %v10226
        %v10229 = vshrl.u32 %v10211, %v10227
        %v10230 = vor.u32 %v10228, %v10229
        %v10231 = vsub.s32 4294967266, %v10226
        %v10232 = vadd.s32 %v10231, 127
        %v10233 = vshll.u32 %v10232, 23
        %v10234 = vor.u32 4788187, %v10233
        %v10235 = vand.u32 2147483647, %v10234
        %v10237 = vcvt.s32.f32 %v10230
        %v10238 = vmul.f32 %v10237, %v10235
        %v10239 = vxor.u32 %v10238, 2147483648
        %v10240 = vsel %vm10119, %v10239, %v10238
        %v10241 = vsub.s32 4, %v10217
        %v10242 = vsel %vm10119, %v10241, %v10217
        %v10243 = vsel %vm10118, %v470, %v10240
        %v10244 = vsel %vm10118, 0, %v10242
        %v10245 = vmul.f32 %v10243, %v10243
        %v10246 = vmul.f32 %v10245, -0.001358992
        %v10247 = vadd.f32 %v10246, 0.041655596
        %v10248 = vmul.f32 %v10245, %v10247
        %v10249 = vadd.f32 %v10248, -0.4999988
        %v10250 = vmul.f32 %v10245, %v10249
        %v10251 = vadd.f32 1.0, %v10250
        %v10252 = vmul.f32 %v10243, %v10243
        %v10253 = vmul.f32 %v10252, -0.00019511016
        %v10254 = vadd.f32 %v10253, 0.008332121
        %v10255 = vmul.f32 %v10252, %v10254
        %v10256 = vadd.f32 %v10255, -0.16666654
        %v10257 = vmul.f32 %v10252, %v10256
        %v10258 = vadd.f32 %v10257, 1.0
        %v10259 = vmul.f32 %v10258, %v10243
        %vm10260 = vweird.f32 %v470
        %v10261 = vadd.s32 %v10244, 3
        %v10262 = vand.u32 %v10261, 3
        %vm10263 = vcmp.lt.s32.totalorder %v10262, 2
        %vm10264 = vcmp.eq.s32.totalorder %v10262, 0
        %v10265 = vxor.u32 %v10259, 2147483648
        %v10266 = vsel %vm10264, %v10251, %v10265
        %vm10267 = vcmp.eq.s32.totalorder %v10262, 2
        %v10268 = vxor.u32 %v10251, 2147483648
        %v10269 = vsel %vm10267, %v10268, %v10259
        %v10270 = vsel %vm10263, %v10266, %v10269
        %v10271 = vsel %vm10260, nan, %v10270
        %v10272 = vand.u32 2147483647, %v473
        %vm10273 = vcmp.le.f32.partialorder %v10272, 0.7853982
        %vm10274 = vcmp.lt.s32.totalorder %v473, 0
        %v10275 = vand.u32 %v473, 2139095040
        %v10276 = vshrl.u32 %v10275, 23
        %v10277 = vsub.s32 %v10276, 127
        %v10278 = vand.u32 2147483647, %v473
        %v10279 = vand.u32 %v10278, 8388607
        %v10280 = vor.u32 %v10279, 8388608
        %v10281 = vsub.s32 0, %v10280
        %v10282 = vadd.s32 %v10277, 1
        %vm10283 = vcmp.gt.s32.totalorder %v10282, 0
        %v10284 = vsel %vm10283, %v10282, 0
        %v10285 = vshrl.u32 %v10284, 5
        %v10286 = vand.u32 %v10284, 31
        %v10287 = vsub.s32 32, %v10286
        %v10288 = vshrl.u32 683565275, %v10287
        %v10289 = vshll.u32 683565275, %v10286
        %v10290 = vshrl.u32 2475754826, %v10287
        %v10291 = vor.u32 %v10289, %v10290
        %v10292 = vshll.u32 2475754826, %v10286
        %v10293 = vshrl.u32 2131351028, %v10287
        %v10294 = vor.u32 %v10292, %v10293
        %v10295 = vshll.u32 2131351028, %v10286
        %v10296 = vshrl.u32 2102212464, %v10287
        %v10297 = vor.u32 %v10295, %v10296
        %v10298 = vshll.u32 2102212464, %v10286
        %v10299 = vshrl.u32 920167782, %v10287
        %v10300 = vor.u32 %v10298, %v10299
        %v10301 = vshll.u32 920167782, %v10286
        %v10302 = vshrl.u32 1326507024, %v10287
        %v10303 = vor.u32 %v10301, %v10302
        %vm10304 = vcmp.lt.s32.totalorder %v10285, 1
        %vm10305 = vcmp.lt.s32.totalorder %v10285, 2
        %vm10306 = vcmp.lt.s32.totalorder %v10285, 3
        %vm10307 = vcmp.lt.s32.totalorder %v10285, 4
        %v10308 = vsel %vm10304, %v10288, %v10291
        %v10309 = vsel %vm10307, %v10297, 2102212464
        %v10310 = vsel %vm10306, %v10294, %v10309
        %v10311 = vsel %vm10305, %v10308, %v10310
        %v10312 = vsel %vm10304, %v10291, %v10294
        %v10313 = vsel %vm10307, %v10300, 920167782
        %v10314 = vsel %vm10306, %v10297, %v10313
        %v10315 = vsel %vm10305, %v10312, %v10314
        %v10316 = vsel %vm10304, %v10294, %v10297
        %v10317 = vsel %vm10307, %v10303, 1326507024
        %v10318 = vsel %vm10306, %v10300, %v10317
        %v10319 = vsel %vm10305, %v10316, %v10318
        %v10320 = vshll.u32 %v10280, 8
        %v10321 = vand.u32 %v10320, 65535
        %v10322 = vshrl.u32 %v10320, 16
        %v10323 = vand.u32 %v10319, 65535
        %v10324 = vshrl.u32 %v10319, 16
        %v10325 = vmul.u32 %v10321, %v10323
        %v10326 = vmul.u32 %v10321, %v10324
        %v10327 = vmul.u32 %v10322, %v10323
        %v10328 = vmul.u32 %v10322, %v10324
        %v10329 = vshll.u32 %v10326, 16
        %v10330 = vshrl.u32 %v10326, 16
        %v10331 = vshll.u32 %v10327, 16
        %v10332 = vshrl.u32 %v10327, 16
        %vm10333 = vc.u32 %v10325, %v10329
        %v10334 = vsel %vm10333, 1, 0
        %v10335 = vadd.s32 %v10325, %v10329
        %v10336 = vadd.s32 %v10328, %v10334
        %vm10337 = vc.u32 %v10335, %v10331
        %v10338 = vsel %vm10337, 1, 0
        %v10339 = vadd.s32 %v10335, %v10331
        %v10340 = vadd.s32 %v10336, %v10338
        %v10341 = vadd.s32 %v10340, %v10330
        %v10342 = vadd.s32 %v10341, %v10332
        %v10343 = vand.u32 %v10320, 65535
        %v10344 = vshrl.u32 %v10320, 16
        %v10345 = vand.u32 %v10315, 65535
        %v10346 = vshrl.u32 %v10315, 16
        %v10347 = vmul.u32 %v10343, %v10345
        %v10348 = vmul.u32 %v10343, %v10346
        %v10349 = vmul.u32 %v10344, %v10345
        %v10350 = vmul.u32 %v10344, %v10346
        %v10351 = vshll.u32 %v10348, 16
        %v10352 = vshrl.u32 %v10348, 16
        %v10353 = vshll.u32 %v10349, 16
        %v10354 = vshrl.u32 %v10349, 16
        %vm10355 = vc.u32 %v10347, %v10351
        %v10356 = vsel %vm10355, 1, 0
        %v10357 = vadd.s32 %v10347, %v10351
        %v10358 = vadd.s32 %v10350, %v10356
        %vm10359 = vc.u32 %v10357, %v10353
        %v10360 = vsel %vm10359, 1, 0
        %v10361 = vadd.s32 %v10357, %v10353
        %v10362 = vadd.s32 %v10358, %v10360
        %v10363 = vadd.s32 %v10362, %v10352
        %v10364 = vadd.s32 %v10363, %v10354
        %v10365 = vmul.u32 %v10320, %v10311
        %v10366 = vadd.s32 %v10342, %v10361
        %vm10367 = vc.u32 %v10342, %v10361
        %v10368 = vadd.s32 %v10364, 1
        %v10369 = vsel %vm10367, %v10368, %v10364
        %v10370 = vadd.s32 %v10365, %v10369
        %v10371 = vadd.s32 %v10370, 536870912
        %v10372 = vshrl.u32 %v10371, 30
        %v10373 = vshll.u32 %v10372, 30
        %v10374 = vsub.s32 %v10370, %v10373
        %vm10375 = vcmp.lt.s32.totalorder %v10374, 0
        %v10376 = vsub.s32 0, %v10374
        %v10377 = vsel %vm10375, %v10376, %v10374
        %v10378 = vclz %v10377
        %v10379 = vsub.s32 %v10378, 2
        %vm10380 = vcmp.gt.s32.totalorder 0, %v10379
        %v10381 = vsel %vm10380, 0, %v10379
        %v10382 = vsub.s32 32, %v10381
        %v10383 = vshll.u32 %v10374, %v10381
        %v10384 = vshrl.u32 %v10366, %v10382
        %v10385 = vor.u32 %v10383, %v10384
        %v10386 = vsub.s32 4294967266, %v10381
        %v10387 = vadd.s32 %v10386, 127
        %v10388 = vshll.u32 %v10387, 23
        %v10389 = vor.u32 4788187, %v10388
        %v10390 = vand.u32 2147483647, %v10389
        %v10392 = vcvt.s32.f32 %v10385
        %v10393 = vmul.f32 %v10392, %v10390
        %v10394 = vxor.u32 %v10393, 2147483648
        %v10395 = vsel %vm10274, %v10394, %v10393
        %v10396 = vsub.s32 4, %v10372
        %v10397 = vsel %vm10274, %v10396, %v10372
        %v10398 = vsel %vm10273, %v473, %v10395
        %v10399 = vsel %vm10273, 0, %v10397
        %v10400 = vmul.f32 %v10398, %v10398
        %v10401 = vmul.f32 %v10400, -0.001358992
        %v10402 = vadd.f32 %v10401, 0.041655596
        %v10403 = vmul.f32 %v10400, %v10402
        %v10404 = vadd.f32 %v10403, -0.4999988
        %v10405 = vmul.f32 %v10400, %v10404
        %v10406 = vadd.f32 1.0, %v10405
        %v10407 = vmul.f32 %v10398, %v10398
        %v10408 = vmul.f32 %v10407, -0.00019511016
        %v10409 = vadd.f32 %v10408, 0.008332121
        %v10410 = vmul.f32 %v10407, %v10409
        %v10411 = vadd.f32 %v10410, -0.16666654
        %v10412 = vmul.f32 %v10407, %v10411
        %v10413 = vadd.f32 %v10412, 1.0
        %v10414 = vmul.f32 %v10413, %v10398
        %vm10415 = vweird.f32 %v473
        %v10416 = vadd.s32 %v10399, 3
        %v10417 = vand.u32 %v10416, 3
        %vm10418 = vcmp.lt.s32.totalorder %v10417, 2
        %vm10419 = vcmp.eq.s32.totalorder %v10417, 0
        %v10420 = vxor.u32 %v10414, 2147483648
        %v10421 = vsel %vm10419, %v10406, %v10420
        %vm10422 = vcmp.eq.s32.totalorder %v10417, 2
        %v10423 = vxor.u32 %v10406, 2147483648
        %v10424 = vsel %vm10422, %v10423, %v10414
        %v10425 = vsel %vm10418, %v10421, %v10424
        %v10426 = vsel %vm10415, nan, %v10425
        %10427 = vst [vmem:[%s264] sm:$0xff] %v5636
        %10428 = vst [vmem:[%s264 + $0x8] sm:$0xff] %v8101
        %10429 = vst [vmem:[%s264 + $0x10] sm:$0xff] %v5790
        %10430 = vst [vmem:[%s264 + $0x18] sm:$0xff] %v8256
        %10431 = vst [vmem:[%s264 + $0x20] sm:$0xff] %v5944
        %10432 = vst [vmem:[%s264 + $0x28] sm:$0xff] %v8411
        %10433 = vst [vmem:[%s264 + $0x30] sm:$0xff] %v6098
        %10434 = vst [vmem:[%s264 + $0x38] sm:$0xff] %v8566
        %10435 = vst [vmem:[%s264 + $0x40] sm:$0xff] %v6252
        %10436 = vst [vmem:[%s264 + $0x48] sm:$0xff] %v8721
        %10437 = vst [vmem:[%s264 + $0x50] sm:$0xff] %v6406
        %10438 = vst [vmem:[%s264 + $0x58] sm:$0xff] %v8876
        %10439 = vst [vmem:[%s264 + $0x60] sm:$0xff] %v6560
        %10440 = vst [vmem:[%s264 + $0x68] sm:$0xff] %v9031
        %10441 = vst [vmem:[%s264 + $0x70] sm:$0xff] %v6714
        %10442 = vst [vmem:[%s264 + $0x78] sm:$0xff] %v9186
        %10443 = vst [vmem:[%s264 + $0x80] sm:$0xff] %v6868
        %10444 = vst [vmem:[%s264 + $0x88] sm:$0xff] %v9341
        %10445 = vst [vmem:[%s264 + $0x90] sm:$0xff] %v7022
        %10446 = vst [vmem:[%s264 + $0x98] sm:$0xff] %v9496
        %10447 = vst [vmem:[%s264 + $0xa0] sm:$0xff] %v7176
        %10448 = vst [vmem:[%s264 + $0xa8] sm:$0xff] %v9651
        %10449 = vst [vmem:[%s264 + $0xb0] sm:$0xff] %v7330
        %10450 = vst [vmem:[%s264 + $0xb8] sm:$0xff] %v9806
        %10451 = vst [vmem:[%s264 + $0xc0] sm:$0xff] %v7484
        %10452 = vst [vmem:[%s264 + $0xc8] sm:$0xff] %v9961
        %10453 = vst [vmem:[%s264 + $0xd0] sm:$0xff] %v7638
        %10454 = vst [vmem:[%s264 + $0xd8] sm:$0xff] %v10116
        %10455 = vst [vmem:[%s264 + $0xe0] sm:$0xff] %v7792
        %10456 = vst [vmem:[%s264 + $0xe8] sm:$0xff] %v10271
        %10457 = vst [vmem:[%s264 + $0xf0] sm:$0xff] %v7946
        %10458 = vst [vmem:[%s264 + $0xf8] sm:$0xff] %v10426
        %s10459 = sand.u32 %s115, 1
        %s10460 = scalar_lea.sflag [#allocation3], %s10459
        %s10461 = sand.u32 %s115, 1
        %s10462 = smul.addr %s10461, 256
        %s10463 = scalar_lea.vmem [#allocation2], %s10462
        %s10464 = sand.u32 %s23, 1
        %s10465 = scalar_lea.sflag [#allocation5], %s10464
        %s10466 = sand.u32 %s143, 1
        %s10467 = smul.addr %s10466, 128
        %s10468 = scalar_lea.vmem [#allocation4], %s10467
        %s10469 = sand.u32 %s23, 1
        %s10470 = scalar_lea.sflag [#allocation5], %s10469
        %s10471 = sand.u32 %s171, 1
        %s10472 = smul.addr %s10471, 256
        %s10473 = scalar_lea.vmem [#allocation6], %s10472
        // Predicated region
        $region33: #{tpu_custom_call.1} parent=31 // pred_check
          %p10474 = pneg %p125
        $region34: #{tpu_custom_call.1} parent=31 // pred_check_branch
          %10476 = sbr.rel (%p10474) target = $region36
        $region35: #{tpu_custom_call.1} parent=31 // pred_region
          %s10477 = smul.u32 16, %s28
          %10479 = vsyncadd %s10460, 0
          %s10480 = smul.addr %s10477, 2
          %s10481 = smul.addr %s27, 64
          %s10482 = sadd.s32 %s10480, %s10481
          %s10483 = smul.addr %s10482, 8
          %s10484 = scalar_lea.hbm %s3, %s10483
          %s10485 = sshll.u32 %s10463, 4
          %s10486 = int_to_ptr.vmem [resolvable:$true] %s10485
          %s10487 = sshll.u32 %s10484, 4
          %s10488 = int_to_ptr.hbm [resolvable:$true] %s10487
          %10493 = dma.vmem_to_hbm [thread:$0]  %s10486, 4096, %s10488, %s10460, 256, 256, 16
        $region36: #{tpu_custom_call.1} parent=31 // pred_fallthru
          _
        // Predicated region
        $region37: #{tpu_custom_call.1} parent=31 // pred_check
          %p10494 = pneg %p153
        $region38: #{tpu_custom_call.1} parent=31 // pred_check_branch
          %10496 = sbr.rel (%p10494) target = $region40
        $region39: #{tpu_custom_call.1} parent=31 // pred_region
          %s10497 = smul.u32 16, %s28
          %10499 = vsyncadd %s10465, 0
          %s10500 = smul.addr %s10497, 2
          %s10501 = smul.addr %s27, 64
          %s10502 = sadd.s32 %s10500, %s10501
          %s10503 = smul.addr %s10502, 4
          %s10504 = scalar_lea.hbm %s4, %s10503
          %s10505 = sshll.u32 %s10468, 4
          %s10506 = int_to_ptr.vmem [resolvable:$true] %s10505
          %s10507 = sshll.u32 %s10504, 4
          %s10508 = int_to_ptr.hbm [resolvable:$true] %s10507
          %10513 = dma.vmem_to_hbm [thread:$0]  %s10506, 2048, %s10508, %s10465, 128, 128, 8
        $region40: #{tpu_custom_call.1} parent=31 // pred_fallthru
          _
        // Predicated region
        $region41: #{tpu_custom_call.1} parent=31 // pred_check
          %p10514 = pneg %p181
        $region42: #{tpu_custom_call.1} parent=31 // pred_check_branch
          %10516 = sbr.rel (%p10514) target = $region44
        $region43: #{tpu_custom_call.1} parent=31 // pred_region
          %s10517 = smul.u32 16, %s28
          %10519 = vsyncadd %s10470, 0
          %s10520 = smul.addr %s10517, 2
          %s10521 = smul.addr %s27, 64
          %s10522 = sadd.s32 %s10520, %s10521
          %s10523 = smul.addr %s10522, 8
          %s10524 = scalar_lea.hbm %s5, %s10523
          %s10525 = sshll.u32 %s10473, 4
          %s10526 = int_to_ptr.vmem [resolvable:$true] %s10525
          %s10527 = sshll.u32 %s10524, 4
          %s10528 = int_to_ptr.hbm [resolvable:$true] %s10527
          %10533 = dma.vmem_to_hbm [thread:$0]  %s10526, 4096, %s10528, %s10470, 256, 256, 16
        $region44: #{tpu_custom_call.1} parent=31 // pred_fallthru
          _
      $region32: #{tpu_custom_call.1} parent=5 // pred_fallthru
        _
      %p10534 = scmp.le.s32.totalorder 2, %s18
      // Predicated region
      $region45: #{tpu_custom_call.1} parent=5 // pred_check
        %p10535 = pneg %p10534
      $region46: #{tpu_custom_call.1} parent=5 // pred_check_branch
        %10537 = sbr.rel (%p10535) target = $region48
      $region47: #{tpu_custom_call.1} parent=5 // pred_region
        %s10538 = ssub.s32 %s18, 2
        // Predicated region
        $region49: #{tpu_custom_call.1} parent=47 // pred_check
          %p10539 = pneg %p131
        $region50: #{tpu_custom_call.1} parent=47 // pred_check_branch
          %10541 = sbr.rel (%p10539) target = $region52
        $region51: #{tpu_custom_call.1} parent=47 // pred_region
          %s10542 = sand.u32 %s116, 1
          %s10543 = scalar_lea.sflag [#allocation3], %s10542
          %s10544 = sand.u32 %s116, 1
          %s10545 = smul.addr %s10544, 256
          %s10546 = scalar_lea.vmem [#allocation2], %s10545
          %10548 = dma.done %s10543, 4096
        $region52: #{tpu_custom_call.1} parent=47 // pred_fallthru
          _
        // Predicated region
        $region53: #{tpu_custom_call.1} parent=47 // pred_check
          %p10549 = pneg %p159
        $region54: #{tpu_custom_call.1} parent=47 // pred_check_branch
          %10551 = sbr.rel (%p10549) target = $region56
        $region55: #{tpu_custom_call.1} parent=47 // pred_region
          %s10552 = sand.u32 %s24, 1
          %s10553 = scalar_lea.sflag [#allocation5], %s10552
          %s10554 = sand.u32 %s144, 1
          %s10555 = smul.addr %s10554, 128
          %s10556 = scalar_lea.vmem [#allocation4], %s10555
          %10558 = dma.done %s10553, 2048
        $region56: #{tpu_custom_call.1} parent=47 // pred_fallthru
          _
        // Predicated region
        $region57: #{tpu_custom_call.1} parent=47 // pred_check
          %p10559 = pneg %p187
        $region58: #{tpu_custom_call.1} parent=47 // pred_check_branch
          %10561 = sbr.rel (%p10559) target = $region60
        $region59: #{tpu_custom_call.1} parent=47 // pred_region
          %s10562 = sand.u32 %s24, 1
          %s10563 = scalar_lea.sflag [#allocation5], %s10562
          %s10564 = sand.u32 %s172, 1
          %s10565 = smul.addr %s10564, 256
          %s10566 = scalar_lea.vmem [#allocation6], %s10565
          %10568 = dma.done %s10563, 4096
        $region60: #{tpu_custom_call.1} parent=47 // pred_fallthru
          _
      $region48: #{tpu_custom_call.1} parent=5 // pred_fallthru
        _
    $region6: #{tpu_custom_call.1} parent=1 // loop_footer
      %s22 = sadd.s32 1, %s18
    $region7: #{tpu_custom_call.1} parent=1 // loop_footer_branch
      %17 = sbr.rel target = $region3
    $region8: #{tpu_custom_call.1} parent=1 // loop_exit
      _
    %10569 = vsyncpa [#allocation3], 1
    %s10570 = scalar_lea.sflag [#allocation3], 1
    %10571 = vsyncpa %s10570, 1
    %10572 = vsyncpa [#allocation5], 1
    %s10573 = scalar_lea.sflag [#allocation5], 1
    %10574 = vsyncpa %s10573, 1

</llo_original>
